<compile_context>
chip_gen: v5e
topology: v5e:2x2
jax: 0.10.0
libtpu: 0.0.40
codegen_flags: <defaults>
</compile_context>

<pallas_src>
import functools

import jax
import jax.numpy as jnp
from jax.experimental import pallas as pl
from jax.experimental.pallas import tpu as pltpu

_LANES = 128
_VMEM_LIMIT = 48 * 1024 * 1024  # below v7x's 64 MiB physical VMEM, with headroom


def _round_up(x, m):
    return (x + m - 1) // m * m


def _pick_rows(h, w, target_rows=1024, even=False):
    """Largest divisor `d` of h (optionally even) with d * w <= target_rows."""
    cands = [d for d in range(1, h + 1)
             if h % d == 0 and (not even or d % 2 == 0)]
    if not cands:
        return h
    fit = [d for d in cands if d * w <= target_rows]
    return max(fit) if fit else min(cands)


# ----------------------------------------------------------------------------
# Kernels
# ----------------------------------------------------------------------------
def _deconv_kernel(x_ref, w_ref, b_ref, o_ref):
    # ConvTranspose2d(k=2, s=2) has non-overlapping outputs: one matmul per
    # input pixel.  Two matmuls (one per output-row parity ki) write directly
    # into the (rows, 2, W, 2*Cout) layout so no host-side sub-pixel scatter
    # (reshape+transpose through HBM) is needed afterwards.
    #   x_ref: (1, TH, W, Cin_p)    bf16
    #   w_ref: (2, Cin_p, 2*Cout_p) bf16   [ki, ci, kj*Cout_p + co]
    #   b_ref: (1, 2*Cout_p)        f32
    #   o_ref: (TH, 2, W, 2*Cout_p) bf16
    th, wd, cin = x_ref.shape[1], x_ref.shape[2], x_ref.shape[3]
    x = x_ref[0].reshape(th * wd, cin)
    b = b_ref[0]
    for ki in range(2):
        y = jnp.dot(x, w_ref[ki], preferred_element_type=jnp.float32) + b
        o_ref[:, ki, :, :] = y.reshape(th, wd, y.shape[-1]).astype(o_ref.dtype)


def _conv3x3_stats_kernel(*refs, n_in):
    # 3x3/pad=1 conv over a row block, expressed as 9 shifted-slice matmuls per
    # input (no im2col in HBM), accumulating in f32.  Also emits per-block
    # per-channel (sum, sum_of_squares) so BatchNorm statistics can be reduced
    # cheaply outside (two-pass BN), keeping every grid axis "parallel".
    #   per input i: main_i (1, TH, W+2, Cin_p) bf16, halo_i (1, 2, W+2, Cin_p) bf16
    #   per input i: w_i (3, 3, Cin_p, Cout_p) bf16
    #   outputs: y (1, TH, W, Cout_p) bf16, stats (1, 2, Cout_p) f32
    ins = refs[:2 * n_in]
    ws = refs[2 * n_in:3 * n_in]
    y_ref, st_ref = refs[3 * n_in], refs[3 * n_in + 1]

    th = ins[0].shape[1]
    w = ins[0].shape[2] - 2
    cout = y_ref.shape[3]

    acc = jnp.zeros((th * w, cout), jnp.float32)
    for i in range(n_in):
        main = ins[2 * i][0]        # (TH, W+2, Cin_p)
        halo = ins[2 * i + 1][0]    # (2,  W+2, Cin_p)
        x = jnp.concatenate([main, halo], axis=0)   # (TH+2, W+2, Cin_p)
        wv = ws[i][...]                             # (3, 3, Cin_p, Cout_p)
        for kh in range(3):
            for kw in range(3):
                xs = x[kh:kh + th, kw:kw + w, :].reshape(th * w, x.shape[-1])
                acc = acc + jnp.dot(xs, wv[kh, kw],
                                    preferred_element_type=jnp.float32)

    y_ref[0] = acc.reshape(th, w, cout).astype(y_ref.dtype)
    s1 = jnp.sum(acc, axis=0)
    s2 = jnp.sum(acc * acc, axis=0)
    st_ref[0] = jnp.stack([s1, s2], axis=0)


def _bn_relu_kernel(x_ref, sc_ref, sh_ref, o_ref):
    # Second BN pass: y = relu(x * scale + shift); slices away padded channels.
    x = x_ref[0].astype(jnp.float32)                 # (TH, W, Cout_p)
    y = jnp.maximum(x * sc_ref[0] + sh_ref[0], 0.0)
    o_ref[0] = y[:, :, :o_ref.shape[3]].astype(o_ref.dtype)


# ----------------------------------------------------------------------------
# Wrappers
# ----------------------------------------------------------------------------
def deconv2x2_s2(x1p, w, b, cout_p, *, tile_rows_target=2048):
    """ConvTranspose2d(Cin, Cout, 2, stride=2).
    x1p: (N, H1, W1, Cin_p) bf16 (channel-padded); w: (Cin, Cout, 2, 2); b: (Cout,).
    Returns the upsampled (N, 2*H1, 2*W1, Cout_p) bf16 tensor (free reshape)."""
    N, H1, W1, cin_p = x1p.shape
    cin, ch = w.shape[0], w.shape[1]

    # (Cin, Cout, kh, kw) -> (kh, Cin, kw, Cout), pad, flatten to (2, Cin_p, 2*Cout_p)
    wt = jnp.transpose(w, (2, 0, 3, 1))
    wt = jnp.pad(wt, ((0, 0), (0, cin_p - cin), (0, 0), (0, cout_p - ch)))
    wt = wt.reshape(2, cin_p, 2 * cout_p).astype(jnp.bfloat16)
    b2 = jnp.tile(jnp.pad(b, (0, cout_p - ch)), 2)
    b2 = b2.reshape(1, 2 * cout_p).astype(jnp.float32)

    th = _pick_rows(H1, W1, target_rows=tile_rows_target)
    nrb = H1 // th

    out = pl.pallas_call(
        _deconv_kernel,
        out_shape=jax.ShapeDtypeStruct((N * H1, 2, W1, 2 * cout_p), jnp.bfloat16),
        grid=(N, nrb),
        in_specs=[
            pl.BlockSpec((1, th, W1, cin_p), lambda n, rb: (n, rb, 0, 0)),
            pl.BlockSpec((2, cin_p, 2 * cout_p), lambda n, rb: (0, 0, 0)),
            pl.BlockSpec((1, 2 * cout_p), lambda n, rb: (0, 0)),
        ],
        out_specs=pl.BlockSpec((th, 2, W1, 2 * cout_p),
                               lambda n, rb: (n * nrb + rb, 0, 0, 0)),
        compiler_params=pltpu.CompilerParams(
            dimension_semantics=("parallel", "parallel"),
            vmem_limit_bytes=_VMEM_LIMIT),
    )(x1p, wt, b2)

    # (N*H1, 2, W1, 2, Cout_p) -> (N, 2H1, 2W1, Cout_p) is row-major contiguous
    # => a free (no-copy) reshape, no scatter transpose through HBM.
    return out.reshape(N, 2 * H1, 2 * W1, cout_p)


def conv3x3_stats(xs_padded, ws, cout_p, *, tile_rows_target=1024,
                  out_dtype=jnp.bfloat16):
    """Conv2d(3x3, pad=1, bias=False) over the channel-concatenation of the
    inputs (without materializing the concat), returning the raw (pre-BN) conv
    output plus per-block per-channel (sum, sum_sq) for two-pass BatchNorm.

    xs_padded: list of (N, H+2, W+2, Cin_p) bf16 spatially zero-padded inputs.
    ws:        list of (3, 3, Cin_p, Cout_p) bf16 weights (one per input).
    """
    N, Hp2, Wp2, _ = xs_padded[0].shape
    H, W = Hp2 - 2, Wp2 - 2
    assert H % 2 == 0, "output height must be even (it is 2*H1 here)"
    th = _pick_rows(H, W, target_rows=tile_rows_target, even=True)
    nrb = H // th

    in_specs, args = [], []
    for x in xs_padded:
        cin_p = x.shape[-1]
        # main row block [rb*th, rb*th+th) of the padded rows ...
        in_specs.append(pl.BlockSpec((1, th, Wp2, cin_p),
                                     lambda n, rb: (n, rb, 0, 0)))
        # ... plus a 2-row halo [rb*th+th, rb*th+th+2) (always in bounds because
        # of the +1/+1 spatial zero padding).
        in_specs.append(pl.BlockSpec((1, 2, Wp2, cin_p),
                                     lambda n, rb: (n, (rb + 1) * (th // 2), 0, 0)))
        args += [x, x]
    for w_ in ws:
        in_specs.append(pl.BlockSpec(w_.shape, lambda n, rb: (0, 0, 0, 0)))
        args.append(w_)

    y, st = pl.pallas_call(
        functools.partial(_conv3x3_stats_kernel, n_in=len(xs_padded)),
        out_shape=(jax.ShapeDtypeStruct((N, H, W, cout_p), out_dtype),
                   jax.ShapeDtypeStruct((N * nrb, 2, cout_p), jnp.float32)),
        grid=(N, nrb),
        in_specs=in_specs,
        out_specs=(pl.BlockSpec((1, th, W, cout_p), lambda n, rb: (n, rb, 0, 0)),
                   pl.BlockSpec((1, 2, cout_p),
                                lambda n, rb: (n * nrb + rb, 0, 0))),
        compiler_params=pltpu.CompilerParams(
            dimension_semantics=("parallel", "parallel"),
            vmem_limit_bytes=_VMEM_LIMIT),
    )(*args)
    return y, st


def bn_relu_epilogue(y_raw, scale, shift, out_ch, *, tile_rows_target=1024):
    """Second BN pass for the final stage: relu(y*scale+shift), unpadded channels."""
    N, H, W, cp = y_raw.shape
    th = _pick_rows(H, W, target_rows=tile_rows_target)
    nrb = H // th
    return pl.pallas_call(
        _bn_relu_kernel,
        out_shape=jax.ShapeDtypeStruct((N, H, W, out_ch), jnp.float32),
        grid=(N, nrb),
        in_specs=[
            pl.BlockSpec((1, th, W, cp), lambda n, rb: (n, rb, 0, 0)),
            pl.BlockSpec((1, cp), lambda n, rb: (0, 0)),
            pl.BlockSpec((1, cp), lambda n, rb: (0, 0)),
        ],
        out_specs=pl.BlockSpec((1, th, W, out_ch), lambda n, rb: (n, rb, 0, 0)),
        compiler_params=pltpu.CompilerParams(
            dimension_semantics=("parallel", "parallel"),
            vmem_limit_bytes=_VMEM_LIMIT),
    )(y_raw, scale.reshape(1, cp), shift.reshape(1, cp))


def _bn_scale_shift(stats, gamma_p, beta_p, count, eps):
    """Reduce per-block (sum, sum_sq) -> per-channel affine (scale, shift).
    PyTorch train-mode forward: biased variance, eps inside rsqrt."""
    s = jnp.sum(stats.astype(jnp.float32), axis=0)        # (2, Cp)
    mean = s[0] / count
    var = jnp.maximum(s[1] / count - mean * mean, 0.0)     # guard tiny negatives
    inv = jax.lax.rsqrt(var + eps)
    scale = gamma_p * inv
    shift = beta_p - mean * scale
    return scale, shift


# ----------------------------------------------------------------------------
# Module: parameters + forward
# ----------------------------------------------------------------------------
def init_up_params(key, in_ch, out_ch):
    k = jax.random.split(key, 8)
    half = in_ch // 2
    return {
        # nn.ConvTranspose2d(in_ch, in_ch//2, 2, stride=2): weight (Cin, Cout, 2, 2), bias (Cout,)
        "up_w": 0.1 * jax.random.normal(k[0], (in_ch, half, 2, 2), jnp.float32),
        "up_b": 0.1 * jax.random.normal(k[1], (half,), jnp.float32),
        # double_conv: Conv2d(in_ch, out_ch, 3, pad=1, bias=False) weights in HWIO
        "w1": 0.1 * jax.random.normal(k[2], (3, 3, in_ch, out_ch), jnp.float32),
        "g1": 1.0 + 0.1 * jax.random.normal(k[3], (out_ch,), jnp.float32),
        "b1": 0.1 * jax.random.normal(k[4], (out_ch,), jnp.float32),
        "w2": 0.1 * jax.random.normal(k[5], (3, 3, out_ch, out_ch), jnp.float32),
        "g2": 1.0 + 0.1 * jax.random.normal(k[6], (out_ch,), jnp.float32),
        "b2": 0.1 * jax.random.normal(k[7], (out_ch,), jnp.float32),
    }


def up_forward(x1_nchw, x2_nchw, p, *, eps=1e-5):
    N, in_ch, H1, W1 = x1_nchw.shape
    C2 = x2_nchw.shape[1]            # = in_ch // 2 (skip connection)
    Ch = p["up_w"].shape[1]          # = in_ch // 2 (deconv output channels)
    out_ch = p["w1"].shape[-1]
    H, W = 2 * H1, 2 * W1

    cin_p = _round_up(in_ch, _LANES)
    c2_p = _round_up(C2, _LANES)
    ch_p = _round_up(Ch, _LANES)
    co_p = _round_up(out_ch, _LANES)

    # NCHW -> NHWC, channel pad to a lane multiple, bf16 (one fused XLA pass each)
    x1 = jnp.transpose(x1_nchw, (0, 2, 3, 1))
    x1 = jnp.pad(x1, ((0, 0), (0, 0), (0, 0), (0, cin_p - in_ch))).astype(jnp.bfloat16)
    # x2 also gets the +1 spatial zero-pad required by conv1's halo BlockSpecs.
    x2 = jnp.transpose(x2_nchw, (0, 2, 3, 1))
    x2 = jnp.pad(x2, ((0, 0), (1, 1), (1, 1), (0, c2_p - C2))).astype(jnp.bfloat16)

    # 1) ConvTranspose2d(k=2, s=2): kernel writes the upsampled layout directly.
    x1u = deconv2x2_s2(x1, p["up_w"], p["up_b"], ch_p)       # (N, H, W, Ch_p) bf16
    # TODO(synk): this spatial pad is one extra HBM round trip of x1u; it could
    # be removed with in-kernel border masking.
    x1u = jnp.pad(x1u, ((0, 0), (1, 1), (1, 1), (0, 0)))

    # 2) conv1 over {x2, x1u} without materializing torch.cat([x2, x1], dim=1):
    #    split the weight along its input-channel axis (x2 channels come first).
    w1 = p["w1"]
    w1_a = jnp.pad(w1[:, :, :C2, :],
                   ((0, 0), (0, 0), (0, c2_p - C2), (0, co_p - out_ch))).astype(jnp.bfloat16)
    w1_b = jnp.pad(w1[:, :, C2:, :],
                   ((0, 0), (0, 0), (0, ch_p - Ch), (0, co_p - out_ch))).astype(jnp.bfloat16)
    y1_raw, st1 = conv3x3_stats([x2, x1u], [w1_a, w1_b], co_p)

    M = N * H * W
    g1 = jnp.pad(p["g1"], (0, co_p - out_ch)).astype(jnp.float32)
    b1 = jnp.pad(p["b1"], (0, co_p - out_ch)).astype(jnp.float32)
    sc1, sh1 = _bn_scale_shift(st1, g1, b1, M, eps)

    # BN1 + ReLU, fused by XLA with the spatial zero-pad that conv2's halo
    # BlockSpecs require anyway (the border must be zero *after* normalization,
    # so the affine cannot be folded into the conv2 kernel's input read).
    y1 = jnp.maximum(y1_raw.astype(jnp.float32) * sc1 + sh1, 0.0)
    y1 = jnp.pad(y1, ((0, 0), (1, 1), (1, 1), (0, 0))).astype(jnp.bfloat16)

    # 3) conv2 + batch statistics.
    w2 = jnp.pad(p["w2"],
                 ((0, 0), (0, 0), (0, co_p - out_ch), (0, co_p - out_ch))).astype(jnp.bfloat16)
    y2_raw, st2 = conv3x3_stats([y1], [w2], co_p)

    g2 = jnp.pad(p["g2"], (0, co_p - out_ch)).astype(jnp.float32)
    b2 = jnp.pad(p["b2"], (0, co_p - out_ch)).astype(jnp.float32)
    sc2, sh2 = _bn_scale_shift(st2, g2, b2, M, eps)

    # 4) BN2 + ReLU epilogue (Pallas, second BN pass), then back to NCHW.
    y = bn_relu_epilogue(y2_raw, sc2, sh2, out_ch)           # (N, H, W, out_ch) f32
    return jnp.transpose(y, (0, 3, 1, 2))


# ----------------------------------------------------------------------------
if __name__ == "__main__":
    key = jax.random.PRNGKey(0)
    k1, k2, kp = jax.random.split(key, 3)

    N, in_ch, out_ch = 2, 8, 8
    H1 = W1 = 8
    # x1: low-res feature map, x2: skip connection at 2x resolution
    x1 = jax.random.normal(k1, (N, in_ch, H1, W1), jnp.float32)
    x2 = jax.random.normal(k2, (N, in_ch // 2, 2 * H1, 2 * W1), jnp.float32)
    params = init_up_params(kp, in_ch, out_ch)

    y = jax.jit(up_forward)(x1, x2, params)
    jax.block_until_ready(y)
    assert y.shape == (N, out_ch, 2 * H1, 2 * W1), y.shape
    assert bool(jnp.all(jnp.isfinite(y)))
    print("KERNEL_OK")
</pallas_src>

<mosaic_0001>
module attributes {stable_mosaic.version = 11 : i64} {
  func.func @_deconv_kernel(%arg0: i32, %arg1: i32, %arg2: memref<1x8x8x128xbf16, #tpu.memory_space<vmem>>, %arg3: memref<2x128x256xbf16, #tpu.memory_space<vmem>>, %arg4: memref<1x256xf32, #tpu.memory_space<vmem>>, %arg5: memref<8x2x8x256xbf16, #tpu.memory_space<vmem>>) attributes {dimension_semantics = [#tpu.dimension_semantics<parallel>, #tpu.dimension_semantics<parallel>], iteration_bounds = array<i64: 2, 1>, scalar_prefetch = 0 : i64, scratch_operands = 0 : i64, tpu.core_type = #tpu.core_type<tc>, window_params = [{transform_indices = @transform_0, window_bounds = array<i64: 1, 8, 8, 128>}, {pipeline_mode = #tpu.pipeline_mode<synchronous>, transform_indices = @transform_1, window_bounds = array<i64: 2, 128, 256>}, {pipeline_mode = #tpu.pipeline_mode<synchronous>, transform_indices = @transform_2, window_bounds = array<i64: 1, 256>}, {transform_indices = @transform_3, window_bounds = array<i64: 8, 2, 8, 256>}]} {
    %c0 = arith.constant 0 : index
    %c0_0 = arith.constant 0 : index
    %c0_1 = arith.constant 0 : index
    %c0_2 = arith.constant 0 : index
    %0 = vector.load %arg2[%c0, %c0_0, %c0_1, %c0_2] : memref<1x8x8x128xbf16, #tpu.memory_space<vmem>>, vector<1x8x8x128xbf16>
    %1 = vector.shape_cast %0 : vector<1x8x8x128xbf16> to vector<8x8x128xbf16>
    %2 = vector.shape_cast %1 : vector<8x8x128xbf16> to vector<64x128xbf16>
    %c0_3 = arith.constant 0 : index
    %c0_4 = arith.constant 0 : index
    %3 = vector.load %arg4[%c0_3, %c0_4] : memref<1x256xf32, #tpu.memory_space<vmem>>, vector<1x256xf32>
    %4 = vector.shape_cast %3 : vector<1x256xf32> to vector<256xf32>
    %c0_5 = arith.constant 0 : index
    %c0_6 = arith.constant 0 : index
    %c0_7 = arith.constant 0 : index
    %5 = vector.load %arg3[%c0_5, %c0_6, %c0_7] : memref<2x128x256xbf16, #tpu.memory_space<vmem>>, vector<1x128x256xbf16>
    %6 = vector.shape_cast %5 : vector<1x128x256xbf16> to vector<128x256xbf16>
    %cst = arith.constant dense<0.000000e+00> : vector<64x256xf32>
    %7 = tpu.matmul %2, %6, %cst {dimension_numbers = #tpu.dot_dimension_numbers<[1], [0], [0], [1], [0, 0, 1, 1], [], []>} : vector<64x128xbf16>, vector<128x256xbf16>, vector<64x256xf32> -> vector<64x256xf32>
    %8 = vector.shape_cast %4 : vector<256xf32> to vector<1x256xf32>
    %9 = vector.broadcast %8 : vector<1x256xf32> to vector<64x256xf32>
    %10 = arith.addf %7, %9 : vector<64x256xf32>
    %11 = vector.shape_cast %10 : vector<64x256xf32> to vector<8x8x256xf32>
    %12 = arith.truncf %11 : vector<8x8x256xf32> to vector<8x8x256xbf16>
    %c0_8 = arith.constant 0 : index
    %c0_9 = arith.constant 0 : index
    %c0_10 = arith.constant 0 : index
    %c0_11 = arith.constant 0 : index
    %13 = vector.load %arg5[%c0_8, %c0_9, %c0_10, %c0_11] : memref<8x2x8x256xbf16, #tpu.memory_space<vmem>>, vector<8x1x8x256xbf16>
    %14 = vector.shape_cast %13 : vector<8x1x8x256xbf16> to vector<8x8x256xbf16>
    %15 = vector.shape_cast %12 : vector<8x8x256xbf16> to vector<8x1x8x256xbf16>
    tpu.vector_store %arg5[%c0_8, %c0_9, %c0_10, %c0_11], %15 {strides = array<i32>} : memref<8x2x8x256xbf16, #tpu.memory_space<vmem>>, vector<8x1x8x256xbf16>,
    %c1 = arith.constant 1 : index
    %c0_12 = arith.constant 0 : index
    %c0_13 = arith.constant 0 : index
    %16 = vector.load %arg3[%c1, %c0_12, %c0_13] : memref<2x128x256xbf16, #tpu.memory_space<vmem>>, vector<1x128x256xbf16>
    %17 = vector.shape_cast %16 : vector<1x128x256xbf16> to vector<128x256xbf16>
    %cst_14 = arith.constant dense<0.000000e+00> : vector<64x256xf32>
    %18 = tpu.matmul %2, %17, %cst_14 {dimension_numbers = #tpu.dot_dimension_numbers<[1], [0], [0], [1], [0, 0, 1, 1], [], []>} : vector<64x128xbf16>, vector<128x256xbf16>, vector<64x256xf32> -> vector<64x256xf32>
    %19 = vector.shape_cast %4 : vector<256xf32> to vector<1x256xf32>
    %20 = vector.broadcast %19 : vector<1x256xf32> to vector<64x256xf32>
    %21 = arith.addf %18, %20 : vector<64x256xf32>
    %22 = vector.shape_cast %21 : vector<64x256xf32> to vector<8x8x256xf32>
    %23 = arith.truncf %22 : vector<8x8x256xf32> to vector<8x8x256xbf16>
    %c0_15 = arith.constant 0 : index
    %c1_16 = arith.constant 1 : index
    %c0_17 = arith.constant 0 : index
    %c0_18 = arith.constant 0 : index
    %24 = vector.load %arg5[%c0_15, %c1_16, %c0_17, %c0_18] : memref<8x2x8x256xbf16, #tpu.memory_space<vmem>>, vector<8x1x8x256xbf16>
    %25 = vector.shape_cast %24 : vector<8x1x8x256xbf16> to vector<8x8x256xbf16>
    %26 = vector.shape_cast %23 : vector<8x8x256xbf16> to vector<8x1x8x256xbf16>
    tpu.vector_store %arg5[%c0_15, %c1_16, %c0_17, %c0_18], %26 {strides = array<i32>} : memref<8x2x8x256xbf16, #tpu.memory_space<vmem>>, vector<8x1x8x256xbf16>,
    return
  }
  func.func @transform_0(%arg0: i32, %arg1: i32) -> (i32, i32, i32, i32) {
    %c0_i32 = arith.constant 0 : i32
    %c0_i32_0 = arith.constant 0 : i32
    %c0_i32_1 = arith.constant 0 : i32
    return %arg0, %arg1, %c0_i32, %c0_i32_0 : i32, i32, i32, i32
  }
  func.func @transform_1(%arg0: i32, %arg1: i32) -> (i32, i32, i32) {
    %c0_i32 = arith.constant 0 : i32
    %c0_i32_0 = arith.constant 0 : i32
    %c0_i32_1 = arith.constant 0 : i32
    %c0_i32_2 = arith.constant 0 : i32
    return %c0_i32, %c0_i32_0, %c0_i32_1 : i32, i32, i32
  }
  func.func @transform_2(%arg0: i32, %arg1: i32) -> (i32, i32) {
    %c0_i32 = arith.constant 0 : i32
    %c0_i32_0 = arith.constant 0 : i32
    %c0_i32_1 = arith.constant 0 : i32
    return %c0_i32, %c0_i32_0 : i32, i32
  }
  func.func @transform_3(%arg0: i32, %arg1: i32) -> (i32, i32, i32, i32) {
    %c1_i32 = arith.constant 1 : i32
    %0 = arith.muli %arg0, %c1_i32 : i32
    %1 = arith.addi %0, %arg1 : i32
    %c0_i32 = arith.constant 0 : i32
    %c0_i32_0 = arith.constant 0 : i32
    %c0_i32_1 = arith.constant 0 : i32
    %c0_i32_2 = arith.constant 0 : i32
    return %1, %c0_i32, %c0_i32_0, %c0_i32_1 : i32, i32, i32, i32
  }
}

module attributes {stable_mosaic.version = 11 : i64} {
  func.func @_conv3x3_stats_kernel(%arg0: i32, %arg1: i32, %arg2: memref<1x16x18x128xbf16, #tpu.memory_space<vmem>>, %arg3: memref<1x2x18x128xbf16, #tpu.memory_space<vmem>>, %arg4: memref<1x16x18x128xbf16, #tpu.memory_space<vmem>>, %arg5: memref<1x2x18x128xbf16, #tpu.memory_space<vmem>>, %arg6: memref<3x3x128x128xbf16, #tpu.memory_space<vmem>>, %arg7: memref<3x3x128x128xbf16, #tpu.memory_space<vmem>>, %arg8: memref<1x16x16x128xbf16, #tpu.memory_space<vmem>>, %arg9: memref<1x2x128xf32, #tpu.memory_space<vmem>>) attributes {dimension_semantics = [#tpu.dimension_semantics<parallel>, #tpu.dimension_semantics<parallel>], iteration_bounds = array<i64: 2, 1>, scalar_prefetch = 0 : i64, scratch_operands = 0 : i64, tpu.core_type = #tpu.core_type<tc>, window_params = [{transform_indices = @transform_0, window_bounds = array<i64: 1, 16, 18, 128>}, {transform_indices = @transform_1, window_bounds = array<i64: 1, 2, 18, 128>}, {transform_indices = @transform_2, window_bounds = array<i64: 1, 16, 18, 128>}, {transform_indices = @transform_3, window_bounds = array<i64: 1, 2, 18, 128>}, {pipeline_mode = #tpu.pipeline_mode<synchronous>, transform_indices = @transform_4, window_bounds = array<i64: 3, 3, 128, 128>}, {pipeline_mode = #tpu.pipeline_mode<synchronous>, transform_indices = @transform_5, window_bounds = array<i64: 3, 3, 128, 128>}, {transform_indices = @transform_6, window_bounds = array<i64: 1, 16, 16, 128>}, {transform_indices = @transform_7, window_bounds = array<i64: 1, 2, 128>}]} {
    %cst = arith.constant 0.000000e+00 : f32
    %0 = vector.broadcast %cst : f32 to vector<256x128xf32>
    %c0 = arith.constant 0 : index
    %c0_0 = arith.constant 0 : index
    %c0_1 = arith.constant 0 : index
    %c0_2 = arith.constant 0 : index
    %1 = vector.load %arg2[%c0, %c0_0, %c0_1, %c0_2] : memref<1x16x18x128xbf16, #tpu.memory_space<vmem>>, vector<1x16x18x128xbf16>
    %2 = vector.shape_cast %1 : vector<1x16x18x128xbf16> to vector<16x18x128xbf16>
    %c0_3 = arith.constant 0 : index
    %c0_4 = arith.constant 0 : index
    %c0_5 = arith.constant 0 : index
    %c0_6 = arith.constant 0 : index
    %3 = vector.load %arg3[%c0_3, %c0_4, %c0_5, %c0_6] : memref<1x2x18x128xbf16, #tpu.memory_space<vmem>>, vector<1x2x18x128xbf16>
    %4 = vector.shape_cast %3 : vector<1x2x18x128xbf16> to vector<2x18x128xbf16>
    %5 = tpu.concatenate %2, %4 in 0 : vector<16x18x128xbf16>, vector<2x18x128xbf16> -> vector<18x18x128xbf16>
    %c0_7 = arith.constant 0 : index
    %c0_8 = arith.constant 0 : index
    %c0_9 = arith.constant 0 : index
    %c0_10 = arith.constant 0 : index
    %6 = vector.load %arg6[%c0_7, %c0_8, %c0_9, %c0_10] : memref<3x3x128x128xbf16, #tpu.memory_space<vmem>>, vector<3x3x128x128xbf16>
    %7 = vector.extract_strided_slice %5 {offsets = [0, 0, 0], sizes = [16, 16, 128], strides = [1, 1, 1]} : vector<18x18x128xbf16> to vector<16x16x128xbf16>
    %8 = vector.shape_cast %7 : vector<16x16x128xbf16> to vector<256x128xbf16>
    %9 = vector.extract_strided_slice %6 {offsets = [0, 0, 0, 0], sizes = [1, 1, 128, 128], strides = [1, 1, 1, 1]} : vector<3x3x128x128xbf16> to vector<1x1x128x128xbf16>
    %10 = vector.shape_cast %9 : vector<1x1x128x128xbf16> to vector<128x128xbf16>
    %cst_11 = arith.constant dense<0.000000e+00> : vector<256x128xf32>
    %11 = tpu.matmul %8, %10, %cst_11 {dimension_numbers = #tpu.dot_dimension_numbers<[1], [0], [0], [1], [0, 0, 1, 1], [], []>} : vector<256x128xbf16>, vector<128x128xbf16>, vector<256x128xf32> -> vector<256x128xf32>
    %12 = arith.addf %0, %11 : vector<256x128xf32>
    %13 = vector.extract_strided_slice %5 {offsets = [0, 1, 0], sizes = [16, 16, 128], strides = [1, 1, 1]} : vector<18x18x128xbf16> to vector<16x16x128xbf16>
    %14 = vector.shape_cast %13 : vector<16x16x128xbf16> to vector<256x128xbf16>
    %15 = vector.extract_strided_slice %6 {offsets = [0, 1, 0, 0], sizes = [1, 1, 128, 128], strides = [1, 1, 1, 1]} : vector<3x3x128x128xbf16> to vector<1x1x128x128xbf16>
    %16 = vector.shape_cast %15 : vector<1x1x128x128xbf16> to vector<128x128xbf16>
    %cst_12 = arith.constant dense<0.000000e+00> : vector<256x128xf32>
    %17 = tpu.matmul %14, %16, %cst_12 {dimension_numbers = #tpu.dot_dimension_numbers<[1], [0], [0], [1], [0, 0, 1, 1], [], []>} : vector<256x128xbf16>, vector<128x128xbf16>, vector<256x128xf32> -> vector<256x128xf32>
    %18 = arith.addf %12, %17 : vector<256x128xf32>
    %19 = vector.extract_strided_slice %5 {offsets = [0, 2, 0], sizes = [16, 16, 128], strides = [1, 1, 1]} : vector<18x18x128xbf16> to vector<16x16x128xbf16>
    %20 = vector.shape_cast %19 : vector<16x16x128xbf16> to vector<256x128xbf16>
    %21 = vector.extract_strided_slice %6 {offsets = [0, 2, 0, 0], sizes = [1, 1, 128, 128], strides = [1, 1, 1, 1]} : vector<3x3x128x128xbf16> to vector<1x1x128x128xbf16>
    %22 = vector.shape_cast %21 : vector<1x1x128x128xbf16> to vector<128x128xbf16>
    %cst_13 = arith.constant dense<0.000000e+00> : vector<256x128xf32>
    %23 = tpu.matmul %20, %22, %cst_13 {dimension_numbers = #tpu.dot_dimension_numbers<[1], [0], [0], [1], [0, 0, 1, 1], [], []>} : vector<256x128xbf16>, vector<128x128xbf16>, vector<256x128xf32> -> vector<256x128xf32>
    %24 = arith.addf %18, %23 : vector<256x128xf32>
    %25 = vector.extract_strided_slice %5 {offsets = [1, 0, 0], sizes = [16, 16, 128], strides = [1, 1, 1]} : vector<18x18x128xbf16> to vector<16x16x128xbf16>
    %26 = vector.shape_cast %25 : vector<16x16x128xbf16> to vector<256x128xbf16>
    %27 = vector.extract_strided_slice %6 {offsets = [1, 0, 0, 0], sizes = [1, 1, 128, 128], strides = [1, 1, 1, 1]} : vector<3x3x128x128xbf16> to vector<1x1x128x128xbf16>
    %28 = vector.shape_cast %27 : vector<1x1x128x128xbf16> to vector<128x128xbf16>
    %cst_14 = arith.constant dense<0.000000e+00> : vector<256x128xf32>
    %29 = tpu.matmul %26, %28, %cst_14 {dimension_numbers = #tpu.dot_dimension_numbers<[1], [0], [0], [1], [0, 0, 1, 1], [], []>} : vector<256x128xbf16>, vector<128x128xbf16>, vector<256x128xf32> -> vector<256x128xf32>
    %30 = arith.addf %24, %29 : vector<256x128xf32>
    %31 = vector.extract_strided_slice %5 {offsets = [1, 1, 0], sizes = [16, 16, 128], strides = [1, 1, 1]} : vector<18x18x128xbf16> to vector<16x16x128xbf16>
    %32 = vector.shape_cast %31 : vector<16x16x128xbf16> to vector<256x128xbf16>
    %33 = vector.extract_strided_slice %6 {offsets = [1, 1, 0, 0], sizes = [1, 1, 128, 128], strides = [1, 1, 1, 1]} : vector<3x3x128x128xbf16> to vector<1x1x128x128xbf16>
    %34 = vector.shape_cast %33 : vector<1x1x128x128xbf16> to vector<128x128xbf16>
    %cst_15 = arith.constant dense<0.000000e+00> : vector<256x128xf32>
    %35 = tpu.matmul %32, %34, %cst_15 {dimension_numbers = #tpu.dot_dimension_numbers<[1], [0], [0], [1], [0, 0, 1, 1], [], []>} : vector<256x128xbf16>, vector<128x128xbf16>, vector<256x128xf32> -> vector<256x128xf32>
    %36 = arith.addf %30, %35 : vector<256x128xf32>
    %37 = vector.extract_strided_slice %5 {offsets = [1, 2, 0], sizes = [16, 16, 128], strides = [1, 1, 1]} : vector<18x18x128xbf16> to vector<16x16x128xbf16>
    %38 = vector.shape_cast %37 : vector<16x16x128xbf16> to vector<256x128xbf16>
    %39 = vector.extract_strided_slice %6 {offsets = [1, 2, 0, 0], sizes = [1, 1, 128, 128], strides = [1, 1, 1, 1]} : vector<3x3x128x128xbf16> to vector<1x1x128x128xbf16>
    %40 = vector.shape_cast %39 : vector<1x1x128x128xbf16> to vector<128x128xbf16>
    %cst_16 = arith.constant dense<0.000000e+00> : vector<256x128xf32>
    %41 = tpu.matmul %38, %40, %cst_16 {dimension_numbers = #tpu.dot_dimension_numbers<[1], [0], [0], [1], [0, 0, 1, 1], [], []>} : vector<256x128xbf16>, vector<128x128xbf16>, vector<256x128xf32> -> vector<256x128xf32>
    %42 = arith.addf %36, %41 : vector<256x128xf32>
    %43 = vector.extract_strided_slice %5 {offsets = [2, 0, 0], sizes = [16, 16, 128], strides = [1, 1, 1]} : vector<18x18x128xbf16> to vector<16x16x128xbf16>
    %44 = vector.shape_cast %43 : vector<16x16x128xbf16> to vector<256x128xbf16>
    %45 = vector.extract_strided_slice %6 {offsets = [2, 0, 0, 0], sizes = [1, 1, 128, 128], strides = [1, 1, 1, 1]} : vector<3x3x128x128xbf16> to vector<1x1x128x128xbf16>
    %46 = vector.shape_cast %45 : vector<1x1x128x128xbf16> to vector<128x128xbf16>
    %cst_17 = arith.constant dense<0.000000e+00> : vector<256x128xf32>
    %47 = tpu.matmul %44, %46, %cst_17 {dimension_numbers = #tpu.dot_dimension_numbers<[1], [0], [0], [1], [0, 0, 1, 1], [], []>} : vector<256x128xbf16>, vector<128x128xbf16>, vector<256x128xf32> -> vector<256x128xf32>
    %48 = arith.addf %42, %47 : vector<256x128xf32>
    %49 = vector.extract_strided_slice %5 {offsets = [2, 1, 0], sizes = [16, 16, 128], strides = [1, 1, 1]} : vector<18x18x128xbf16> to vector<16x16x128xbf16>
    %50 = vector.shape_cast %49 : vector<16x16x128xbf16> to vector<256x128xbf16>
    %51 = vector.extract_strided_slice %6 {offsets = [2, 1, 0, 0], sizes = [1, 1, 128, 128], strides = [1, 1, 1, 1]} : vector<3x3x128x128xbf16> to vector<1x1x128x128xbf16>
    %52 = vector.shape_cast %51 : vector<1x1x128x128xbf16> to vector<128x128xbf16>
    %cst_18 = arith.constant dense<0.000000e+00> : vector<256x128xf32>
    %53 = tpu.matmul %50, %52, %cst_18 {dimension_numbers = #tpu.dot_dimension_numbers<[1], [0], [0], [1], [0, 0, 1, 1], [], []>} : vector<256x128xbf16>, vector<128x128xbf16>, vector<256x128xf32> -> vector<256x128xf32>
    %54 = arith.addf %48, %53 : vector<256x128xf32>
    %55 = vector.extract_strided_slice %5 {offsets = [2, 2, 0], sizes = [16, 16, 128], strides = [1, 1, 1]} : vector<18x18x128xbf16> to vector<16x16x128xbf16>
    %56 = vector.shape_cast %55 : vector<16x16x128xbf16> to vector<256x128xbf16>
    %57 = vector.extract_strided_slice %6 {offsets = [2, 2, 0, 0], sizes = [1, 1, 128, 128], strides = [1, 1, 1, 1]} : vector<3x3x128x128xbf16> to vector<1x1x128x128xbf16>
    %58 = vector.shape_cast %57 : vector<1x1x128x128xbf16> to vector<128x128xbf16>
    %cst_19 = arith.constant dense<0.000000e+00> : vector<256x128xf32>
    %59 = tpu.matmul %56, %58, %cst_19 {dimension_numbers = #tpu.dot_dimension_numbers<[1], [0], [0], [1], [0, 0, 1, 1], [], []>} : vector<256x128xbf16>, vector<128x128xbf16>, vector<256x128xf32> -> vector<256x128xf32>
    %60 = arith.addf %54, %59 : vector<256x128xf32>
    %c0_20 = arith.constant 0 : index
    %c0_21 = arith.constant 0 : index
    %c0_22 = arith.constant 0 : index
    %c0_23 = arith.constant 0 : index
    %61 = vector.load %arg4[%c0_20, %c0_21, %c0_22, %c0_23] : memref<1x16x18x128xbf16, #tpu.memory_space<vmem>>, vector<1x16x18x128xbf16>
    %62 = vector.shape_cast %61 : vector<1x16x18x128xbf16> to vector<16x18x128xbf16>
    %c0_24 = arith.constant 0 : index
    %c0_25 = arith.constant 0 : index
    %c0_26 = arith.constant 0 : index
    %c0_27 = arith.constant 0 : index
    %63 = vector.load %arg5[%c0_24, %c0_25, %c0_26, %c0_27] : memref<1x2x18x128xbf16, #tpu.memory_space<vmem>>, vector<1x2x18x128xbf16>
    %64 = vector.shape_cast %63 : vector<1x2x18x128xbf16> to vector<2x18x128xbf16>
    %65 = tpu.concatenate %62, %64 in 0 : vector<16x18x128xbf16>, vector<2x18x128xbf16> -> vector<18x18x128xbf16>
    %c0_28 = arith.constant 0 : index
    %c0_29 = arith.constant 0 : index
    %c0_30 = arith.constant 0 : index
    %c0_31 = arith.constant 0 : index
    %66 = vector.load %arg7[%c0_28, %c0_29, %c0_30, %c0_31] : memref<3x3x128x128xbf16, #tpu.memory_space<vmem>>, vector<3x3x128x128xbf16>
    %67 = vector.extract_strided_slice %65 {offsets = [0, 0, 0], sizes = [16, 16, 128], strides = [1, 1, 1]} : vector<18x18x128xbf16> to vector<16x16x128xbf16>
    %68 = vector.shape_cast %67 : vector<16x16x128xbf16> to vector<256x128xbf16>
    %69 = vector.extract_strided_slice %66 {offsets = [0, 0, 0, 0], sizes = [1, 1, 128, 128], strides = [1, 1, 1, 1]} : vector<3x3x128x128xbf16> to vector<1x1x128x128xbf16>
    %70 = vector.shape_cast %69 : vector<1x1x128x128xbf16> to vector<128x128xbf16>
    %cst_32 = arith.constant dense<0.000000e+00> : vector<256x128xf32>
    %71 = tpu.matmul %68, %70, %cst_32 {dimension_numbers = #tpu.dot_dimension_numbers<[1], [0], [0], [1], [0, 0, 1, 1], [], []>} : vector<256x128xbf16>, vector<128x128xbf16>, vector<256x128xf32> -> vector<256x128xf32>
    %72 = arith.addf %60, %71 : vector<256x128xf32>
    %73 = vector.extract_strided_slice %65 {offsets = [0, 1, 0], sizes = [16, 16, 128], strides = [1, 1, 1]} : vector<18x18x128xbf16> to vector<16x16x128xbf16>
    %74 = vector.shape_cast %73 : vector<16x16x128xbf16> to vector<256x128xbf16>
    %75 = vector.extract_strided_slice %66 {offsets = [0, 1, 0, 0], sizes = [1, 1, 128, 128], strides = [1, 1, 1, 1]} : vector<3x3x128x128xbf16> to vector<1x1x128x128xbf16>
    %76 = vector.shape_cast %75 : vector<1x1x128x128xbf16> to vector<128x128xbf16>
    %cst_33 = arith.constant dense<0.000000e+00> : vector<256x128xf32>
    %77 = tpu.matmul %74, %76, %cst_33 {dimension_numbers = #tpu.dot_dimension_numbers<[1], [0], [0], [1], [0, 0, 1, 1], [], []>} : vector<256x128xbf16>, vector<128x128xbf16>, vector<256x128xf32> -> vector<256x128xf32>
    %78 = arith.addf %72, %77 : vector<256x128xf32>
    %79 = vector.extract_strided_slice %65 {offsets = [0, 2, 0], sizes = [16, 16, 128], strides = [1, 1, 1]} : vector<18x18x128xbf16> to vector<16x16x128xbf16>
    %80 = vector.shape_cast %79 : vector<16x16x128xbf16> to vector<256x128xbf16>
    %81 = vector.extract_strided_slice %66 {offsets = [0, 2, 0, 0], sizes = [1, 1, 128, 128], strides = [1, 1, 1, 1]} : vector<3x3x128x128xbf16> to vector<1x1x128x128xbf16>
    %82 = vector.shape_cast %81 : vector<1x1x128x128xbf16> to vector<128x128xbf16>
    %cst_34 = arith.constant dense<0.000000e+00> : vector<256x128xf32>
    %83 = tpu.matmul %80, %82, %cst_34 {dimension_numbers = #tpu.dot_dimension_numbers<[1], [0], [0], [1], [0, 0, 1, 1], [], []>} : vector<256x128xbf16>, vector<128x128xbf16>, vector<256x128xf32> -> vector<256x128xf32>
    %84 = arith.addf %78, %83 : vector<256x128xf32>
    %85 = vector.extract_strided_slice %65 {offsets = [1, 0, 0], sizes = [16, 16, 128], strides = [1, 1, 1]} : vector<18x18x128xbf16> to vector<16x16x128xbf16>
    %86 = vector.shape_cast %85 : vector<16x16x128xbf16> to vector<256x128xbf16>
    %87 = vector.extract_strided_slice %66 {offsets = [1, 0, 0, 0], sizes = [1, 1, 128, 128], strides = [1, 1, 1, 1]} : vector<3x3x128x128xbf16> to vector<1x1x128x128xbf16>
    %88 = vector.shape_cast %87 : vector<1x1x128x128xbf16> to vector<128x128xbf16>
    %cst_35 = arith.constant dense<0.000000e+00> : vector<256x128xf32>
    %89 = tpu.matmul %86, %88, %cst_35 {dimension_numbers = #tpu.dot_dimension_numbers<[1], [0], [0], [1], [0, 0, 1, 1], [], []>} : vector<256x128xbf16>, vector<128x128xbf16>, vector<256x128xf32> -> vector<256x128xf32>
    %90 = arith.addf %84, %89 : vector<256x128xf32>
    %91 = vector.extract_strided_slice %65 {offsets = [1, 1, 0], sizes = [16, 16, 128], strides = [1, 1, 1]} : vector<18x18x128xbf16> to vector<16x16x128xbf16>
    %92 = vector.shape_cast %91 : vector<16x16x128xbf16> to vector<256x128xbf16>
    %93 = vector.extract_strided_slice %66 {offsets = [1, 1, 0, 0], sizes = [1, 1, 128, 128], strides = [1, 1, 1, 1]} : vector<3x3x128x128xbf16> to vector<1x1x128x128xbf16>
    %94 = vector.shape_cast %93 : vector<1x1x128x128xbf16> to vector<128x128xbf16>
    %cst_36 = arith.constant dense<0.000000e+00> : vector<256x128xf32>
    %95 = tpu.matmul %92, %94, %cst_36 {dimension_numbers = #tpu.dot_dimension_numbers<[1], [0], [0], [1], [0, 0, 1, 1], [], []>} : vector<256x128xbf16>, vector<128x128xbf16>, vector<256x128xf32> -> vector<256x128xf32>
    %96 = arith.addf %90, %95 : vector<256x128xf32>
    %97 = vector.extract_strided_slice %65 {offsets = [1, 2, 0], sizes = [16, 16, 128], strides = [1, 1, 1]} : vector<18x18x128xbf16> to vector<16x16x128xbf16>
    %98 = vector.shape_cast %97 : vector<16x16x128xbf16> to vector<256x128xbf16>
    %99 = vector.extract_strided_slice %66 {offsets = [1, 2, 0, 0], sizes = [1, 1, 128, 128], strides = [1, 1, 1, 1]} : vector<3x3x128x128xbf16> to vector<1x1x128x128xbf16>
    %100 = vector.shape_cast %99 : vector<1x1x128x128xbf16> to vector<128x128xbf16>
    %cst_37 = arith.constant dense<0.000000e+00> : vector<256x128xf32>
    %101 = tpu.matmul %98, %100, %cst_37 {dimension_numbers = #tpu.dot_dimension_numbers<[1], [0], [0], [1], [0, 0, 1, 1], [], []>} : vector<256x128xbf16>, vector<128x128xbf16>, vector<256x128xf32> -> vector<256x128xf32>
    %102 = arith.addf %96, %101 : vector<256x128xf32>
    %103 = vector.extract_strided_slice %65 {offsets = [2, 0, 0], sizes = [16, 16, 128], strides = [1, 1, 1]} : vector<18x18x128xbf16> to vector<16x16x128xbf16>
    %104 = vector.shape_cast %103 : vector<16x16x128xbf16> to vector<256x128xbf16>
    %105 = vector.extract_strided_slice %66 {offsets = [2, 0, 0, 0], sizes = [1, 1, 128, 128], strides = [1, 1, 1, 1]} : vector<3x3x128x128xbf16> to vector<1x1x128x128xbf16>
    %106 = vector.shape_cast %105 : vector<1x1x128x128xbf16> to vector<128x128xbf16>
    %cst_38 = arith.constant dense<0.000000e+00> : vector<256x128xf32>
    %107 = tpu.matmul %104, %106, %cst_38 {dimension_numbers = #tpu.dot_dimension_numbers<[1], [0], [0], [1], [0, 0, 1, 1], [], []>} : vector<256x128xbf16>, vector<128x128xbf16>, vector<256x128xf32> -> vector<256x128xf32>
    %108 = arith.addf %102, %107 : vector<256x128xf32>
    %109 = vector.extract_strided_slice %65 {offsets = [2, 1, 0], sizes = [16, 16, 128], strides = [1, 1, 1]} : vector<18x18x128xbf16> to vector<16x16x128xbf16>
    %110 = vector.shape_cast %109 : vector<16x16x128xbf16> to vector<256x128xbf16>
    %111 = vector.extract_strided_slice %66 {offsets = [2, 1, 0, 0], sizes = [1, 1, 128, 128], strides = [1, 1, 1, 1]} : vector<3x3x128x128xbf16> to vector<1x1x128x128xbf16>
    %112 = vector.shape_cast %111 : vector<1x1x128x128xbf16> to vector<128x128xbf16>
    %cst_39 = arith.constant dense<0.000000e+00> : vector<256x128xf32>
    %113 = tpu.matmul %110, %112, %cst_39 {dimension_numbers = #tpu.dot_dimension_numbers<[1], [0], [0], [1], [0, 0, 1, 1], [], []>} : vector<256x128xbf16>, vector<128x128xbf16>, vector<256x128xf32> -> vector<256x128xf32>
    %114 = arith.addf %108, %113 : vector<256x128xf32>
    %115 = vector.extract_strided_slice %65 {offsets = [2, 2, 0], sizes = [16, 16, 128], strides = [1, 1, 1]} : vector<18x18x128xbf16> to vector<16x16x128xbf16>
    %116 = vector.shape_cast %115 : vector<16x16x128xbf16> to vector<256x128xbf16>
    %117 = vector.extract_strided_slice %66 {offsets = [2, 2, 0, 0], sizes = [1, 1, 128, 128], strides = [1, 1, 1, 1]} : vector<3x3x128x128xbf16> to vector<1x1x128x128xbf16>
    %118 = vector.shape_cast %117 : vector<1x1x128x128xbf16> to vector<128x128xbf16>
    %cst_40 = arith.constant dense<0.000000e+00> : vector<256x128xf32>
    %119 = tpu.matmul %116, %118, %cst_40 {dimension_numbers = #tpu.dot_dimension_numbers<[1], [0], [0], [1], [0, 0, 1, 1], [], []>} : vector<256x128xbf16>, vector<128x128xbf16>, vector<256x128xf32> -> vector<256x128xf32>
    %120 = arith.addf %114, %119 : vector<256x128xf32>
    %121 = vector.shape_cast %120 : vector<256x128xf32> to vector<16x16x128xf32>
    %122 = arith.truncf %121 : vector<16x16x128xf32> to vector<16x16x128xbf16>
    %c0_41 = arith.constant 0 : index
    %c0_42 = arith.constant 0 : index
    %c0_43 = arith.constant 0 : index
    %c0_44 = arith.constant 0 : index
    %123 = vector.load %arg8[%c0_41, %c0_42, %c0_43, %c0_44] : memref<1x16x16x128xbf16, #tpu.memory_space<vmem>>, vector<1x16x16x128xbf16>
    %124 = vector.shape_cast %123 : vector<1x16x16x128xbf16> to vector<16x16x128xbf16>
    %125 = vector.shape_cast %122 : vector<16x16x128xbf16> to vector<1x16x16x128xbf16>
    tpu.vector_store %arg8[%c0_41, %c0_42, %c0_43, %c0_44], %125 {strides = array<i32>} : memref<1x16x16x128xbf16, #tpu.memory_space<vmem>>, vector<1x16x16x128xbf16>,
    %cst_45 = arith.constant dense<0.000000e+00> : vector<128xf32>
    %126 = vector.multi_reduction <add>, %120, %cst_45 [0] : vector<256x128xf32> to vector<128xf32>
    %127 = arith.mulf %120, %120 : vector<256x128xf32>
    %cst_46 = arith.constant dense<0.000000e+00> : vector<128xf32>
    %128 = vector.multi_reduction <add>, %127, %cst_46 [0] : vector<256x128xf32> to vector<128xf32>
    %129 = vector.shape_cast %126 : vector<128xf32> to vector<1x128xf32>
    %130 = vector.shape_cast %128 : vector<128xf32> to vector<1x128xf32>
    %131 = tpu.concatenate %129, %130 in 0 : vector<1x128xf32>, vector<1x128xf32> -> vector<2x128xf32>
    %c0_47 = arith.constant 0 : index
    %c0_48 = arith.constant 0 : index
    %c0_49 = arith.constant 0 : index
    %132 = vector.load %arg9[%c0_47, %c0_48, %c0_49] : memref<1x2x128xf32, #tpu.memory_space<vmem>>, vector<1x2x128xf32>
    %133 = vector.shape_cast %132 : vector<1x2x128xf32> to vector<2x128xf32>
    %134 = vector.shape_cast %131 : vector<2x128xf32> to vector<1x2x128xf32>
    tpu.vector_store %arg9[%c0_47, %c0_48, %c0_49], %134 {strides = array<i32>} : memref<1x2x128xf32, #tpu.memory_space<vmem>>, vector<1x2x128xf32>,
    return
  }
  func.func @transform_0(%arg0: i32, %arg1: i32) -> (i32, i32, i32, i32) {
    %c0_i32 = arith.constant 0 : i32
    %c0_i32_0 = arith.constant 0 : i32
    %c0_i32_1 = arith.constant 0 : i32
    return %arg0, %arg1, %c0_i32, %c0_i32_0 : i32, i32, i32, i32
  }
  func.func @transform_1(%arg0: i32, %arg1: i32) -> (i32, i32, i32, i32) {
    %c1_i32 = arith.constant 1 : i32
    %0 = arith.addi %arg1, %c1_i32 : i32
    %c8_i32 = arith.constant 8 : i32
    %1 = arith.muli %0, %c8_i32 : i32
    %c0_i32 = arith.constant 0 : i32
    %c0_i32_0 = arith.constant 0 : i32
    %c0_i32_1 = arith.constant 0 : i32
    return %arg0, %1, %c0_i32, %c0_i32_0 : i32, i32, i32, i32
  }
  func.func @transform_2(%arg0: i32, %arg1: i32) -> (i32, i32, i32, i32) {
    %c0_i32 = arith.constant 0 : i32
    %c0_i32_0 = arith.constant 0 : i32
    %c0_i32_1 = arith.constant 0 : i32
    return %arg0, %arg1, %c0_i32, %c0_i32_0 : i32, i32, i32, i32
  }
  func.func @transform_3(%arg0: i32, %arg1: i32) -> (i32, i32, i32, i32) {
    %c1_i32 = arith.constant 1 : i32
    %0 = arith.addi %arg1, %c1_i32 : i32
    %c8_i32 = arith.constant 8 : i32
    %1 = arith.muli %0, %c8_i32 : i32
    %c0_i32 = arith.constant 0 : i32
    %c0_i32_0 = arith.constant 0 : i32
    %c0_i32_1 = arith.constant 0 : i32
    return %arg0, %1, %c0_i32, %c0_i32_0 : i32, i32, i32, i32
  }
  func.func @transform_4(%arg0: i32, %arg1: i32) -> (i32, i32, i32, i32) {
    %c0_i32 = arith.constant 0 : i32
    %c0_i32_0 = arith.constant 0 : i32
    %c0_i32_1 = arith.constant 0 : i32
    %c0_i32_2 = arith.constant 0 : i32
    %c0_i32_3 = arith.constant 0 : i32
    return %c0_i32, %c0_i32_0, %c0_i32_1, %c0_i32_2 : i32, i32, i32, i32
  }
  func.func @transform_5(%arg0: i32, %arg1: i32) -> (i32, i32, i32, i32) {
    %c0_i32 = arith.constant 0 : i32
    %c0_i32_0 = arith.constant 0 : i32
    %c0_i32_1 = arith.constant 0 : i32
    %c0_i32_2 = arith.constant 0 : i32
    %c0_i32_3 = arith.constant 0 : i32
    return %c0_i32, %c0_i32_0, %c0_i32_1, %c0_i32_2 : i32, i32, i32, i32
  }
  func.func @transform_6(%arg0: i32, %arg1: i32) -> (i32, i32, i32, i32) {
    %c0_i32 = arith.constant 0 : i32
    %c0_i32_0 = arith.constant 0 : i32
    %c0_i32_1 = arith.constant 0 : i32
    return %arg0, %arg1, %c0_i32, %c0_i32_0 : i32, i32, i32, i32
  }
  func.func @transform_7(%arg0: i32, %arg1: i32) -> (i32, i32, i32) {
    %c1_i32 = arith.constant 1 : i32
    %0 = arith.muli %arg0, %c1_i32 : i32
    %1 = arith.addi %0, %arg1 : i32
    %c0_i32 = arith.constant 0 : i32
    %c0_i32_0 = arith.constant 0 : i32
    %c0_i32_1 = arith.constant 0 : i32
    return %1, %c0_i32, %c0_i32_0 : i32, i32, i32
  }
}

module attributes {stable_mosaic.version = 11 : i64} {
  func.func @_conv3x3_stats_kernel(%arg0: i32, %arg1: i32, %arg2: memref<1x16x18x128xbf16, #tpu.memory_space<vmem>>, %arg3: memref<1x2x18x128xbf16, #tpu.memory_space<vmem>>, %arg4: memref<3x3x128x128xbf16, #tpu.memory_space<vmem>>, %arg5: memref<1x16x16x128xbf16, #tpu.memory_space<vmem>>, %arg6: memref<1x2x128xf32, #tpu.memory_space<vmem>>) attributes {dimension_semantics = [#tpu.dimension_semantics<parallel>, #tpu.dimension_semantics<parallel>], iteration_bounds = array<i64: 2, 1>, scalar_prefetch = 0 : i64, scratch_operands = 0 : i64, tpu.core_type = #tpu.core_type<tc>, window_params = [{transform_indices = @transform_0, window_bounds = array<i64: 1, 16, 18, 128>}, {transform_indices = @transform_1, window_bounds = array<i64: 1, 2, 18, 128>}, {pipeline_mode = #tpu.pipeline_mode<synchronous>, transform_indices = @transform_2, window_bounds = array<i64: 3, 3, 128, 128>}, {transform_indices = @transform_3, window_bounds = array<i64: 1, 16, 16, 128>}, {transform_indices = @transform_4, window_bounds = array<i64: 1, 2, 128>}]} {
    %cst = arith.constant 0.000000e+00 : f32
    %0 = vector.broadcast %cst : f32 to vector<256x128xf32>
    %c0 = arith.constant 0 : index
    %c0_0 = arith.constant 0 : index
    %c0_1 = arith.constant 0 : index
    %c0_2 = arith.constant 0 : index
    %1 = vector.load %arg2[%c0, %c0_0, %c0_1, %c0_2] : memref<1x16x18x128xbf16, #tpu.memory_space<vmem>>, vector<1x16x18x128xbf16>
    %2 = vector.shape_cast %1 : vector<1x16x18x128xbf16> to vector<16x18x128xbf16>
    %c0_3 = arith.constant 0 : index
    %c0_4 = arith.constant 0 : index
    %c0_5 = arith.constant 0 : index
    %c0_6 = arith.constant 0 : index
    %3 = vector.load %arg3[%c0_3, %c0_4, %c0_5, %c0_6] : memref<1x2x18x128xbf16, #tpu.memory_space<vmem>>, vector<1x2x18x128xbf16>
    %4 = vector.shape_cast %3 : vector<1x2x18x128xbf16> to vector<2x18x128xbf16>
    %5 = tpu.concatenate %2, %4 in 0 : vector<16x18x128xbf16>, vector<2x18x128xbf16> -> vector<18x18x128xbf16>
    %c0_7 = arith.constant 0 : index
    %c0_8 = arith.constant 0 : index
    %c0_9 = arith.constant 0 : index
    %c0_10 = arith.constant 0 : index
    %6 = vector.load %arg4[%c0_7, %c0_8, %c0_9, %c0_10] : memref<3x3x128x128xbf16, #tpu.memory_space<vmem>>, vector<3x3x128x128xbf16>
    %7 = vector.extract_strided_slice %5 {offsets = [0, 0, 0], sizes = [16, 16, 128], strides = [1, 1, 1]} : vector<18x18x128xbf16> to vector<16x16x128xbf16>
    %8 = vector.shape_cast %7 : vector<16x16x128xbf16> to vector<256x128xbf16>
    %9 = vector.extract_strided_slice %6 {offsets = [0, 0, 0, 0], sizes = [1, 1, 128, 128], strides = [1, 1, 1, 1]} : vector<3x3x128x128xbf16> to vector<1x1x128x128xbf16>
    %10 = vector.shape_cast %9 : vector<1x1x128x128xbf16> to vector<128x128xbf16>
    %cst_11 = arith.constant dense<0.000000e+00> : vector<256x128xf32>
    %11 = tpu.matmul %8, %10, %cst_11 {dimension_numbers = #tpu.dot_dimension_numbers<[1], [0], [0], [1], [0, 0, 1, 1], [], []>} : vector<256x128xbf16>, vector<128x128xbf16>, vector<256x128xf32> -> vector<256x128xf32>
    %12 = arith.addf %0, %11 : vector<256x128xf32>
    %13 = vector.extract_strided_slice %5 {offsets = [0, 1, 0], sizes = [16, 16, 128], strides = [1, 1, 1]} : vector<18x18x128xbf16> to vector<16x16x128xbf16>
    %14 = vector.shape_cast %13 : vector<16x16x128xbf16> to vector<256x128xbf16>
    %15 = vector.extract_strided_slice %6 {offsets = [0, 1, 0, 0], sizes = [1, 1, 128, 128], strides = [1, 1, 1, 1]} : vector<3x3x128x128xbf16> to vector<1x1x128x128xbf16>
    %16 = vector.shape_cast %15 : vector<1x1x128x128xbf16> to vector<128x128xbf16>
    %cst_12 = arith.constant dense<0.000000e+00> : vector<256x128xf32>
    %17 = tpu.matmul %14, %16, %cst_12 {dimension_numbers = #tpu.dot_dimension_numbers<[1], [0], [0], [1], [0, 0, 1, 1], [], []>} : vector<256x128xbf16>, vector<128x128xbf16>, vector<256x128xf32> -> vector<256x128xf32>
    %18 = arith.addf %12, %17 : vector<256x128xf32>
    %19 = vector.extract_strided_slice %5 {offsets = [0, 2, 0], sizes = [16, 16, 128], strides = [1, 1, 1]} : vector<18x18x128xbf16> to vector<16x16x128xbf16>
    %20 = vector.shape_cast %19 : vector<16x16x128xbf16> to vector<256x128xbf16>
    %21 = vector.extract_strided_slice %6 {offsets = [0, 2, 0, 0], sizes = [1, 1, 128, 128], strides = [1, 1, 1, 1]} : vector<3x3x128x128xbf16> to vector<1x1x128x128xbf16>
    %22 = vector.shape_cast %21 : vector<1x1x128x128xbf16> to vector<128x128xbf16>
    %cst_13 = arith.constant dense<0.000000e+00> : vector<256x128xf32>
    %23 = tpu.matmul %20, %22, %cst_13 {dimension_numbers = #tpu.dot_dimension_numbers<[1], [0], [0], [1], [0, 0, 1, 1], [], []>} : vector<256x128xbf16>, vector<128x128xbf16>, vector<256x128xf32> -> vector<256x128xf32>
    %24 = arith.addf %18, %23 : vector<256x128xf32>
    %25 = vector.extract_strided_slice %5 {offsets = [1, 0, 0], sizes = [16, 16, 128], strides = [1, 1, 1]} : vector<18x18x128xbf16> to vector<16x16x128xbf16>
    %26 = vector.shape_cast %25 : vector<16x16x128xbf16> to vector<256x128xbf16>
    %27 = vector.extract_strided_slice %6 {offsets = [1, 0, 0, 0], sizes = [1, 1, 128, 128], strides = [1, 1, 1, 1]} : vector<3x3x128x128xbf16> to vector<1x1x128x128xbf16>
    %28 = vector.shape_cast %27 : vector<1x1x128x128xbf16> to vector<128x128xbf16>
    %cst_14 = arith.constant dense<0.000000e+00> : vector<256x128xf32>
    %29 = tpu.matmul %26, %28, %cst_14 {dimension_numbers = #tpu.dot_dimension_numbers<[1], [0], [0], [1], [0, 0, 1, 1], [], []>} : vector<256x128xbf16>, vector<128x128xbf16>, vector<256x128xf32> -> vector<256x128xf32>
    %30 = arith.addf %24, %29 : vector<256x128xf32>
    %31 = vector.extract_strided_slice %5 {offsets = [1, 1, 0], sizes = [16, 16, 128], strides = [1, 1, 1]} : vector<18x18x128xbf16> to vector<16x16x128xbf16>
    %32 = vector.shape_cast %31 : vector<16x16x128xbf16> to vector<256x128xbf16>
    %33 = vector.extract_strided_slice %6 {offsets = [1, 1, 0, 0], sizes = [1, 1, 128, 128], strides = [1, 1, 1, 1]} : vector<3x3x128x128xbf16> to vector<1x1x128x128xbf16>
    %34 = vector.shape_cast %33 : vector<1x1x128x128xbf16> to vector<128x128xbf16>
    %cst_15 = arith.constant dense<0.000000e+00> : vector<256x128xf32>
    %35 = tpu.matmul %32, %34, %cst_15 {dimension_numbers = #tpu.dot_dimension_numbers<[1], [0], [0], [1], [0, 0, 1, 1], [], []>} : vector<256x128xbf16>, vector<128x128xbf16>, vector<256x128xf32> -> vector<256x128xf32>
    %36 = arith.addf %30, %35 : vector<256x128xf32>
    %37 = vector.extract_strided_slice %5 {offsets = [1, 2, 0], sizes = [16, 16, 128], strides = [1, 1, 1]} : vector<18x18x128xbf16> to vector<16x16x128xbf16>
    %38 = vector.shape_cast %37 : vector<16x16x128xbf16> to vector<256x128xbf16>
    %39 = vector.extract_strided_slice %6 {offsets = [1, 2, 0, 0], sizes = [1, 1, 128, 128], strides = [1, 1, 1, 1]} : vector<3x3x128x128xbf16> to vector<1x1x128x128xbf16>
    %40 = vector.shape_cast %39 : vector<1x1x128x128xbf16> to vector<128x128xbf16>
    %cst_16 = arith.constant dense<0.000000e+00> : vector<256x128xf32>
    %41 = tpu.matmul %38, %40, %cst_16 {dimension_numbers = #tpu.dot_dimension_numbers<[1], [0], [0], [1], [0, 0, 1, 1], [], []>} : vector<256x128xbf16>, vector<128x128xbf16>, vector<256x128xf32> -> vector<256x128xf32>
    %42 = arith.addf %36, %41 : vector<256x128xf32>
    %43 = vector.extract_strided_slice %5 {offsets = [2, 0, 0], sizes = [16, 16, 128], strides = [1, 1, 1]} : vector<18x18x128xbf16> to vector<16x16x128xbf16>
    %44 = vector.shape_cast %43 : vector<16x16x128xbf16> to vector<256x128xbf16>
    %45 = vector.extract_strided_slice %6 {offsets = [2, 0, 0, 0], sizes = [1, 1, 128, 128], strides = [1, 1, 1, 1]} : vector<3x3x128x128xbf16> to vector<1x1x128x128xbf16>
    %46 = vector.shape_cast %45 : vector<1x1x128x128xbf16> to vector<128x128xbf16>
    %cst_17 = arith.constant dense<0.000000e+00> : vector<256x128xf32>
    %47 = tpu.matmul %44, %46, %cst_17 {dimension_numbers = #tpu.dot_dimension_numbers<[1], [0], [0], [1], [0, 0, 1, 1], [], []>} : vector<256x128xbf16>, vector<128x128xbf16>, vector<256x128xf32> -> vector<256x128xf32>
    %48 = arith.addf %42, %47 : vector<256x128xf32>
    %49 = vector.extract_strided_slice %5 {offsets = [2, 1, 0], sizes = [16, 16, 128], strides = [1, 1, 1]} : vector<18x18x128xbf16> to vector<16x16x128xbf16>
    %50 = vector.shape_cast %49 : vector<16x16x128xbf16> to vector<256x128xbf16>
    %51 = vector.extract_strided_slice %6 {offsets = [2, 1, 0, 0], sizes = [1, 1, 128, 128], strides = [1, 1, 1, 1]} : vector<3x3x128x128xbf16> to vector<1x1x128x128xbf16>
    %52 = vector.shape_cast %51 : vector<1x1x128x128xbf16> to vector<128x128xbf16>
    %cst_18 = arith.constant dense<0.000000e+00> : vector<256x128xf32>
    %53 = tpu.matmul %50, %52, %cst_18 {dimension_numbers = #tpu.dot_dimension_numbers<[1], [0], [0], [1], [0, 0, 1, 1], [], []>} : vector<256x128xbf16>, vector<128x128xbf16>, vector<256x128xf32> -> vector<256x128xf32>
    %54 = arith.addf %48, %53 : vector<256x128xf32>
    %55 = vector.extract_strided_slice %5 {offsets = [2, 2, 0], sizes = [16, 16, 128], strides = [1, 1, 1]} : vector<18x18x128xbf16> to vector<16x16x128xbf16>
    %56 = vector.shape_cast %55 : vector<16x16x128xbf16> to vector<256x128xbf16>
    %57 = vector.extract_strided_slice %6 {offsets = [2, 2, 0, 0], sizes = [1, 1, 128, 128], strides = [1, 1, 1, 1]} : vector<3x3x128x128xbf16> to vector<1x1x128x128xbf16>
    %58 = vector.shape_cast %57 : vector<1x1x128x128xbf16> to vector<128x128xbf16>
    %cst_19 = arith.constant dense<0.000000e+00> : vector<256x128xf32>
    %59 = tpu.matmul %56, %58, %cst_19 {dimension_numbers = #tpu.dot_dimension_numbers<[1], [0], [0], [1], [0, 0, 1, 1], [], []>} : vector<256x128xbf16>, vector<128x128xbf16>, vector<256x128xf32> -> vector<256x128xf32>
    %60 = arith.addf %54, %59 : vector<256x128xf32>
    %61 = vector.shape_cast %60 : vector<256x128xf32> to vector<16x16x128xf32>
    %62 = arith.truncf %61 : vector<16x16x128xf32> to vector<16x16x128xbf16>
    %c0_20 = arith.constant 0 : index
    %c0_21 = arith.constant 0 : index
    %c0_22 = arith.constant 0 : index
    %c0_23 = arith.constant 0 : index
    %63 = vector.load %arg5[%c0_20, %c0_21, %c0_22, %c0_23] : memref<1x16x16x128xbf16, #tpu.memory_space<vmem>>, vector<1x16x16x128xbf16>
    %64 = vector.shape_cast %63 : vector<1x16x16x128xbf16> to vector<16x16x128xbf16>
    %65 = vector.shape_cast %62 : vector<16x16x128xbf16> to vector<1x16x16x128xbf16>
    tpu.vector_store %arg5[%c0_20, %c0_21, %c0_22, %c0_23], %65 {strides = array<i32>} : memref<1x16x16x128xbf16, #tpu.memory_space<vmem>>, vector<1x16x16x128xbf16>,
    %cst_24 = arith.constant dense<0.000000e+00> : vector<128xf32>
    %66 = vector.multi_reduction <add>, %60, %cst_24 [0] : vector<256x128xf32> to vector<128xf32>
    %67 = arith.mulf %60, %60 : vector<256x128xf32>
    %cst_25 = arith.constant dense<0.000000e+00> : vector<128xf32>
    %68 = vector.multi_reduction <add>, %67, %cst_25 [0] : vector<256x128xf32> to vector<128xf32>
    %69 = vector.shape_cast %66 : vector<128xf32> to vector<1x128xf32>
    %70 = vector.shape_cast %68 : vector<128xf32> to vector<1x128xf32>
    %71 = tpu.concatenate %69, %70 in 0 : vector<1x128xf32>, vector<1x128xf32> -> vector<2x128xf32>
    %c0_26 = arith.constant 0 : index
    %c0_27 = arith.constant 0 : index
    %c0_28 = arith.constant 0 : index
    %72 = vector.load %arg6[%c0_26, %c0_27, %c0_28] : memref<1x2x128xf32, #tpu.memory_space<vmem>>, vector<1x2x128xf32>
    %73 = vector.shape_cast %72 : vector<1x2x128xf32> to vector<2x128xf32>
    %74 = vector.shape_cast %71 : vector<2x128xf32> to vector<1x2x128xf32>
    tpu.vector_store %arg6[%c0_26, %c0_27, %c0_28], %74 {strides = array<i32>} : memref<1x2x128xf32, #tpu.memory_space<vmem>>, vector<1x2x128xf32>,
    return
  }
  func.func @transform_0(%arg0: i32, %arg1: i32) -> (i32, i32, i32, i32) {
    %c0_i32 = arith.constant 0 : i32
    %c0_i32_0 = arith.constant 0 : i32
    %c0_i32_1 = arith.constant 0 : i32
    return %arg0, %arg1, %c0_i32, %c0_i32_0 : i32, i32, i32, i32
  }
  func.func @transform_1(%arg0: i32, %arg1: i32) -> (i32, i32, i32, i32) {
    %c1_i32 = arith.constant 1 : i32
    %0 = arith.addi %arg1, %c1_i32 : i32
    %c8_i32 = arith.constant 8 : i32
    %1 = arith.muli %0, %c8_i32 : i32
    %c0_i32 = arith.constant 0 : i32
    %c0_i32_0 = arith.constant 0 : i32
    %c0_i32_1 = arith.constant 0 : i32
    return %arg0, %1, %c0_i32, %c0_i32_0 : i32, i32, i32, i32
  }
  func.func @transform_2(%arg0: i32, %arg1: i32) -> (i32, i32, i32, i32) {
    %c0_i32 = arith.constant 0 : i32
    %c0_i32_0 = arith.constant 0 : i32
    %c0_i32_1 = arith.constant 0 : i32
    %c0_i32_2 = arith.constant 0 : i32
    %c0_i32_3 = arith.constant 0 : i32
    return %c0_i32, %c0_i32_0, %c0_i32_1, %c0_i32_2 : i32, i32, i32, i32
  }
  func.func @transform_3(%arg0: i32, %arg1: i32) -> (i32, i32, i32, i32) {
    %c0_i32 = arith.constant 0 : i32
    %c0_i32_0 = arith.constant 0 : i32
    %c0_i32_1 = arith.constant 0 : i32
    return %arg0, %arg1, %c0_i32, %c0_i32_0 : i32, i32, i32, i32
  }
  func.func @transform_4(%arg0: i32, %arg1: i32) -> (i32, i32, i32) {
    %c1_i32 = arith.constant 1 : i32
    %0 = arith.muli %arg0, %c1_i32 : i32
    %1 = arith.addi %0, %arg1 : i32
    %c0_i32 = arith.constant 0 : i32
    %c0_i32_0 = arith.constant 0 : i32
    %c0_i32_1 = arith.constant 0 : i32
    return %1, %c0_i32, %c0_i32_0 : i32, i32, i32
  }
}

module attributes {stable_mosaic.version = 11 : i64} {
  func.func @_bn_relu_kernel(%arg0: i32, %arg1: i32, %arg2: memref<1x16x16x128xbf16, #tpu.memory_space<vmem>>, %arg3: memref<1x128xf32, #tpu.memory_space<vmem>>, %arg4: memref<1x128xf32, #tpu.memory_space<vmem>>, %arg5: memref<1x16x16x8xf32, #tpu.memory_space<vmem>>) attributes {dimension_semantics = [#tpu.dimension_semantics<parallel>, #tpu.dimension_semantics<parallel>], iteration_bounds = array<i64: 2, 1>, scalar_prefetch = 0 : i64, scratch_operands = 0 : i64, tpu.core_type = #tpu.core_type<tc>, window_params = [{transform_indices = @transform_0, window_bounds = array<i64: 1, 16, 16, 128>}, {pipeline_mode = #tpu.pipeline_mode<synchronous>, transform_indices = @transform_1, window_bounds = array<i64: 1, 128>}, {pipeline_mode = #tpu.pipeline_mode<synchronous>, transform_indices = @transform_2, window_bounds = array<i64: 1, 128>}, {transform_indices = @transform_3, window_bounds = array<i64: 1, 16, 16, 8>}]} {
    %c0 = arith.constant 0 : index
    %c0_0 = arith.constant 0 : index
    %c0_1 = arith.constant 0 : index
    %c0_2 = arith.constant 0 : index
    %0 = vector.load %arg2[%c0, %c0_0, %c0_1, %c0_2] : memref<1x16x16x128xbf16, #tpu.memory_space<vmem>>, vector<1x16x16x128xbf16>
    %1 = vector.shape_cast %0 : vector<1x16x16x128xbf16> to vector<16x16x128xbf16>
    %2 = arith.extf %1 : vector<16x16x128xbf16> to vector<16x16x128xf32>
    %c0_3 = arith.constant 0 : index
    %c0_4 = arith.constant 0 : index
    %3 = vector.load %arg3[%c0_3, %c0_4] : memref<1x128xf32, #tpu.memory_space<vmem>>, vector<1x128xf32>
    %4 = vector.shape_cast %3 : vector<1x128xf32> to vector<128xf32>
    %5 = vector.shape_cast %4 : vector<128xf32> to vector<1x1x128xf32>
    %6 = vector.broadcast %5 : vector<1x1x128xf32> to vector<16x16x128xf32>
    %7 = arith.mulf %2, %6 : vector<16x16x128xf32>
    %c0_5 = arith.constant 0 : index
    %c0_6 = arith.constant 0 : index
    %8 = vector.load %arg4[%c0_5, %c0_6] : memref<1x128xf32, #tpu.memory_space<vmem>>, vector<1x128xf32>
    %9 = vector.shape_cast %8 : vector<1x128xf32> to vector<128xf32>
    %10 = vector.shape_cast %9 : vector<128xf32> to vector<1x1x128xf32>
    %11 = vector.broadcast %10 : vector<1x1x128xf32> to vector<16x16x128xf32>
    %12 = arith.addf %7, %11 : vector<16x16x128xf32>
    %cst = arith.constant 0.000000e+00 : f32
    %13 = vector.broadcast %cst : f32 to vector<16x16x128xf32>
    %14 = arith.maximumf %12, %13 : vector<16x16x128xf32>
    %15 = vector.extract_strided_slice %14 {offsets = [0, 0, 0], sizes = [16, 16, 8], strides = [1, 1, 1]} : vector<16x16x128xf32> to vector<16x16x8xf32>
    %c0_7 = arith.constant 0 : index
    %c0_8 = arith.constant 0 : index
    %c0_9 = arith.constant 0 : index
    %c0_10 = arith.constant 0 : index
    %16 = vector.load %arg5[%c0_7, %c0_8, %c0_9, %c0_10] : memref<1x16x16x8xf32, #tpu.memory_space<vmem>>, vector<1x16x16x8xf32>
    %17 = vector.shape_cast %16 : vector<1x16x16x8xf32> to vector<16x16x8xf32>
    %18 = vector.shape_cast %15 : vector<16x16x8xf32> to vector<1x16x16x8xf32>
    tpu.vector_store %arg5[%c0_7, %c0_8, %c0_9, %c0_10], %18 {strides = array<i32>} : memref<1x16x16x8xf32, #tpu.memory_space<vmem>>, vector<1x16x16x8xf32>,
    return
  }
  func.func @transform_0(%arg0: i32, %arg1: i32) -> (i32, i32, i32, i32) {
    %c0_i32 = arith.constant 0 : i32
    %c0_i32_0 = arith.constant 0 : i32
    %c0_i32_1 = arith.constant 0 : i32
    return %arg0, %arg1, %c0_i32, %c0_i32_0 : i32, i32, i32, i32
  }
  func.func @transform_1(%arg0: i32, %arg1: i32) -> (i32, i32) {
    %c0_i32 = arith.constant 0 : i32
    %c0_i32_0 = arith.constant 0 : i32
    %c0_i32_1 = arith.constant 0 : i32
    return %c0_i32, %c0_i32_0 : i32, i32
  }
  func.func @transform_2(%arg0: i32, %arg1: i32) -> (i32, i32) {
    %c0_i32 = arith.constant 0 : i32
    %c0_i32_0 = arith.constant 0 : i32
    %c0_i32_1 = arith.constant 0 : i32
    return %c0_i32, %c0_i32_0 : i32, i32
  }
  func.func @transform_3(%arg0: i32, %arg1: i32) -> (i32, i32, i32, i32) {
    %c0_i32 = arith.constant 0 : i32
    %c0_i32_0 = arith.constant 0 : i32
    %c0_i32_1 = arith.constant 0 : i32
    return %arg0, %arg1, %c0_i32, %c0_i32_0 : i32, i32, i32, i32
  }
}

</mosaic_0001>

<llo_original>
// kernel: tile.8
$region0: #{tile.8}
  #allocation0 [shape = 's32[1]{0}', space=sflag, size = 0x4, scoped, tag = 'scoped memory for tile.8']
  %s0 = inlined_call_operand.vmem [shape: f32[128], index: 0, kind: input, shape index: {}]
  %s1 = inlined_call_operand.vmem [shape: f32[2,128], index: 1, kind: output, shape index: {}]
  // Predicated region
  $region2: #{tile.8} parent=0 // pred_check
    _
  $region3: #{tile.8} parent=0 // pred_check_branch
    %3 = sbr.rel (0) target = $region5
  $region4: #{tile.8} parent=0 // pred_region
    _
  $region5: #{tile.8} parent=0 // pred_fallthru
    _
  %v4 = vld [vmem:[%s0] ss:$0 sm:$0xff]
  %5 = vst [vmem:[%s1] sm:$0x3] %v4

// kernel: up_forward.4
$region0: #{up_forward.4}
  #allocation0 [shape = 'u32[]', space=smem, size = 0x4, offset = 0x4, fixed_abs, tag = 'smem constant byte address 0x4 - core index']
  #allocation1 [shape = 'u32[72,128]{1,0:T(1,128)}', space=vmem, size = 0x9000, scoped, tag = 'internal scratch']
  %s0 = inlined_call_operand.vmem [shape: bf16[2,8,8,128], index: 0, kind: input, shape index: {}]
  %s1 = inlined_call_operand.vmem [shape: bf16[2,128,256], index: 1, kind: input, shape index: {}]
  %s2 = inlined_call_operand.vmem [shape: f32[1,256], index: 2, kind: input, shape index: {}]
  %s3 = inlined_call_operand.vmem [shape: bf16[16,2,8,256], index: 3, kind: output, shape index: {}]
  %s4 = sld [smem:[#allocation0]]
  $region45: #{up_forward.4} parent=0
    _
  %s6 = ssub.s32 1, %s4
  %s7 = scalar_select 0, %s6, %s4
  loop: start=0, step=1, limit=4
  $region2: #{up_forward.4} parent=0 // loop_pre_header
    _
  $region3: #{up_forward.4} parent=0 // loop_header
    %s9 = sphi 0, %s13
    %p10 = scmp.ge.s32.totalorder %s9, 4
    %s16 = sphi 0, %s28
    %s17 = sphi 0, %s24
    %s18 = sphi 0, %s16
    %s19 = sphi 0, %s17
    %s20 = sphi 0, %s18
    %s21 = sphi 0, %s19
    %s33 = sphi 0, %s35
    %s36 = sphi 0, %s33
    %s37 = sphi 0, %s36
    %s53 = sphi 0, %s37
    %s57 = sphi 0, %s57
    %s59 = sphi 0, %s57
    %s60 = sphi 0, %s59
    %s74 = sphi 0, %s60
    %s78 = sphi 0, %s78
    %s80 = sphi 0, %s78
    %s81 = sphi 0, %s80
    %s95 = sphi 0, %s81
    %s103 = sphi 0, %s105
    %s106 = sphi 0, %s103
    %s107 = sphi 0, %s106
    %s123 = sphi 0, %s107
  $region4: #{up_forward.4} parent=0 // loop_header_branch
    %12 = sbr.rel (%p10) target = $region8
  $region5: #{up_forward.4} parent=0 // loop_body
    %s14 = ssub.s32 %s9, 1
    %s15 = ssub.s32 %s9, 2
    %s22 = sadd.s32 1, %s17
    %p23 = scmp.ge.s32.totalorder %s22, 1
    %s24 = scalar_select %p23, 0, %s22
    %s25 = sadd.s32 1, %s16
    %s26 = scalar_select %p23, %s25, %s16
    %p27 = scmp.ge.s32.totalorder %s26, 2
    %s28 = scalar_select %p27, 0, %s26
    %s29 = ssub.s32 %s16, %s28
    %s30 = ssub.s32 %s17, %s24
    %s31 = sor.u32 %s29, %s30
    %p32 = scmp.eq.s32.totalorder %s31, 0
    %s34 = sadd.s32 %s33, 1
    %s35 = scalar_select %p32, %s33, %s34
    %p38 = pneg %p32
    %p39 = scmp.eq.s32.totalorder %s9, 1
    %p40 = por %p38, %p39
    %p41 = scmp.ne.s32.totalorder %s33, %s36
    %p42 = scmp.eq.s32.totalorder %s9, 0
    %p43 = por %p41, %p42
    %p44 = scmp.ne.s32.totalorder %s33, %s36
    %p45 = scmp.eq.s32.totalorder %s14, 1
    %p46 = por %p44, %p45
    %p47 = scmp.ne.s32.totalorder %s36, %s37
    %p48 = scmp.eq.s32.totalorder %s14, 0
    %p49 = por %p47, %p48
    %p50 = scmp.ne.s32.totalorder %s36, %s37
    %p51 = scmp.eq.s32.totalorder %s15, 1
    %p52 = por %p50, %p51
    %p54 = scmp.ne.s32.totalorder %s37, %s53
    %p55 = scmp.eq.s32.totalorder %s15, 0
    %p56 = por %p54, %p55
    %s58 = sadd.s32 %s57, 1
    %p61 = scmp.eq.s32.totalorder %s9, 1
    %p62 = scmp.ne.s32.totalorder %s57, %s59
    %p63 = scmp.eq.s32.totalorder %s9, 0
    %p64 = por %p62, %p63
    %p65 = scmp.ne.s32.totalorder %s57, %s59
    %p66 = scmp.eq.s32.totalorder %s14, 1
    %p67 = por %p65, %p66
    %p68 = scmp.ne.s32.totalorder %s59, %s60
    %p69 = scmp.eq.s32.totalorder %s14, 0
    %p70 = por %p68, %p69
    %p71 = scmp.ne.s32.totalorder %s59, %s60
    %p72 = scmp.eq.s32.totalorder %s15, 1
    %p73 = por %p71, %p72
    %p75 = scmp.ne.s32.totalorder %s60, %s74
    %p76 = scmp.eq.s32.totalorder %s15, 0
    %p77 = por %p75, %p76
    %s79 = sadd.s32 %s78, 1
    %p82 = scmp.eq.s32.totalorder %s9, 1
    %p83 = scmp.ne.s32.totalorder %s78, %s80
    %p84 = scmp.eq.s32.totalorder %s9, 0
    %p85 = por %p83, %p84
    %p86 = scmp.ne.s32.totalorder %s78, %s80
    %p87 = scmp.eq.s32.totalorder %s14, 1
    %p88 = por %p86, %p87
    %p89 = scmp.ne.s32.totalorder %s80, %s81
    %p90 = scmp.eq.s32.totalorder %s14, 0
    %p91 = por %p89, %p90
    %p92 = scmp.ne.s32.totalorder %s80, %s81
    %p93 = scmp.eq.s32.totalorder %s15, 1
    %p94 = por %p92, %p93
    %p96 = scmp.ne.s32.totalorder %s81, %s95
    %p97 = scmp.eq.s32.totalorder %s15, 0
    %p98 = por %p96, %p97
    %s99 = sadd.s32 %s16, %s17
    %s100 = sadd.s32 %s28, %s24
    %s101 = ssub.s32 %s99, %s100
    %p102 = scmp.eq.s32.totalorder %s101, 0
    %s104 = sadd.s32 %s103, 1
    %s105 = scalar_select %p102, %s103, %s104
    %p108 = pneg %p102
    %p109 = scmp.eq.s32.totalorder %s9, 1
    %p110 = por %p108, %p109
    %p111 = scmp.ne.s32.totalorder %s103, %s106
    %p112 = scmp.eq.s32.totalorder %s9, 0
    %p113 = por %p111, %p112
    %p114 = scmp.ne.s32.totalorder %s103, %s106
    %p115 = scmp.eq.s32.totalorder %s14, 1
    %p116 = por %p114, %p115
    %p117 = scmp.ne.s32.totalorder %s106, %s107
    %p118 = scmp.eq.s32.totalorder %s14, 0
    %p119 = por %p117, %p118
    %p120 = scmp.ne.s32.totalorder %s106, %s107
    %p121 = scmp.eq.s32.totalorder %s15, 1
    %p122 = por %p120, %p121
    %p124 = scmp.ne.s32.totalorder %s107, %s123
    %p125 = scmp.eq.s32.totalorder %s15, 0
    %p126 = por %p124, %p125
    %p127 = scmp.le.s32.totalorder 1, %s9
    %p128 = scmp.lt.s32.totalorder %s9, 3
    %p129 = pnand %p127, %p128
    %p130 = pneg %p129
    // Predicated region
    $region9: #{up_forward.4} parent=5 // pred_check
      _
    $region10: #{up_forward.4} parent=5 // pred_check_branch
      %132 = sbr.rel (%p129) target = $region12
    $region11: #{up_forward.4} parent=5 // pred_region
      %s133 = ssub.s32 %s9, 1
      // Predicated region
      $region13: #{up_forward.4} parent=11 // pred_check
        %p134 = pneg %p70
      $region14: #{up_forward.4} parent=11 // pred_check_branch
        %136 = sbr.rel (%p134) target = $region16
      $region15: #{up_forward.4} parent=11 // pred_region
        _
      $region16: #{up_forward.4} parent=11 // pred_fallthru
        _
      // Predicated region
      $region17: #{up_forward.4} parent=11 // pred_check
        %p137 = pneg %p91
      $region18: #{up_forward.4} parent=11 // pred_check_branch
        %139 = sbr.rel (%p137) target = $region20
      $region19: #{up_forward.4} parent=11 // pred_region
        _
      $region20: #{up_forward.4} parent=11 // pred_fallthru
        _
    $region12: #{up_forward.4} parent=5 // pred_fallthru
      _
    %p140 = scmp.lt.s32.totalorder %s9, 2
    // Predicated region
    $region21: #{up_forward.4} parent=5 // pred_check
      %p141 = pneg %p140
    $region22: #{up_forward.4} parent=5 // pred_check_branch
      %143 = sbr.rel (%p141) target = $region24
    $region23: #{up_forward.4} parent=5 // pred_region
      // Predicated region
      $region25: #{up_forward.4} parent=23 // pred_check
        %p144 = pneg %p43
      $region26: #{up_forward.4} parent=23 // pred_check_branch
        %146 = sbr.rel (%p144) target = $region28
      $region27: #{up_forward.4} parent=23 // pred_region
        %s147 = smul.u32 8, %s17
        %p148 = scmp.lt.s32.totalorder %s16, 1
        %s149 = scalar_select %p148, %s16, 1
        %p150 = scmp.lt.s32.totalorder %s147, 7
        %s151 = scalar_select %p150, %s147, 7
        %s152 = smul.addr %s149, 8
        %s153 = sadd.s32 %s151, %s152
        %s154 = smul.addr %s153, 4
        %s155 = scalar_lea.vmem %s0, %s154
        %s156 = smul.u32 8, %s17
      $region28: #{up_forward.4} parent=23 // pred_fallthru
        _
    $region24: #{up_forward.4} parent=5 // pred_fallthru
      _
    %p157 = scmp.le.s32.totalorder 1, %s9
    %p158 = scmp.lt.s32.totalorder %s9, 3
    %p159 = pnand %p157, %p158
    %p160 = pneg %p159
    // Predicated region
    $region29: #{up_forward.4} parent=5 // pred_check
      _
    $region30: #{up_forward.4} parent=5 // pred_check_branch
      %162 = sbr.rel (%p159) target = $region32
    $region31: #{up_forward.4} parent=5 // pred_region
      %s163 = ssub.s32 %s9, 1
      %s164 = smul.u32 8, %s19
      %p165 = scmp.lt.s32.totalorder %s18, 1
      %s166 = scalar_select %p165, %s18, 1
      %p167 = scmp.lt.s32.totalorder %s164, 7
      %s168 = scalar_select %p167, %s164, 7
      %s169 = smul.addr %s166, 8
      %s170 = sadd.s32 %s168, %s169
      %s171 = smul.addr %s170, 4
      %s172 = scalar_lea.vmem %s0, %s171
      %p173 = pneg %p49
      %p174 = pneg %p46
      %p175 = pneg %p70
      %p176 = pneg %p67
      %p177 = pneg %p91
      %p178 = pneg %p88
      %p179 = pneg %p119
      %p180 = pneg %p116
      %s181 = sadd.s32 %s18, %s19
      %s182 = smul.u32 8, %s181
      %p183 = scmp.lt.s32.totalorder %s182, 15
      %s184 = scalar_select %p183, %s182, 15
      %s185 = smul.addr %s184, 4
      %s186 = smul.addr %s185, 4
      %s187 = scalar_lea.vmem %s3, %s186
      %s188 = smul.u32 8, %s19
      %p189 = scmp.lt.s32.totalorder %s18, 1
      %s190 = scalar_select %p189, %s18, 1
      %p191 = scmp.lt.s32.totalorder %s188, 7
      %s192 = scalar_select %p191, %s188, 7
      %s193 = smul.addr %s190, 8
      %s194 = sadd.s32 %s192, %s193
      %s195 = smul.addr %s194, 4
      %s196 = scalar_lea.vmem %s0, %s195
      %s197 = smul.u32 8, %s19
      %s198 = sadd.s32 %s18, %s19
      %s199 = smul.u32 8, %s198
      %p200 = scmp.lt.s32.totalorder %s199, 15
      %s201 = scalar_select %p200, %s199, 15
      %s202 = smul.addr %s201, 4
      %s203 = smul.addr %s202, 4
      %s204 = scalar_lea.vmem %s3, %s203
      %s205 = sadd.s32 %s18, %s19
      %s206 = smul.u32 8, %s205
      %v207 = vld [vmem:[%s196] sm:$0xf]
      %v208 = vld [vmem:[%s196 + $0x4] sm:$0xf]
      %v209 = vld [vmem:[%s196 + $0x8] sm:$0xf]
      %v210 = vld [vmem:[%s196 + $0xc] sm:$0xf]
      %v211 = vld [vmem:[%s196 + $0x10] sm:$0xf]
      %v212 = vld [vmem:[%s196 + $0x14] sm:$0xf]
      %v213 = vld [vmem:[%s196 + $0x18] sm:$0xf]
      %v214 = vld [vmem:[%s196 + $0x1c] sm:$0xf]
      %v215 = vld [vmem:[%s2] sm:$0x3]
      %v216 = vld [vmem:[%s1] sm:$0xff]
      %v217 = vld [vmem:[%s1 + $0x8] sm:$0xff]
      %v218 = vld [vmem:[%s1 + $0x10] sm:$0xff]
      %v219 = vld [vmem:[%s1 + $0x18] sm:$0xff]
      %v220 = vld [vmem:[%s1 + $0x20] sm:$0xff]
      %v221 = vld [vmem:[%s1 + $0x28] sm:$0xff]
      %v222 = vld [vmem:[%s1 + $0x30] sm:$0xff]
      %v223 = vld [vmem:[%s1 + $0x38] sm:$0xff]
      %v224 = vld [vmem:[%s1 + $0x40] sm:$0xff]
      %v225 = vld [vmem:[%s1 + $0x48] sm:$0xff]
      %v226 = vld [vmem:[%s1 + $0x50] sm:$0xff]
      %v227 = vld [vmem:[%s1 + $0x58] sm:$0xff]
      %v228 = vld [vmem:[%s1 + $0x60] sm:$0xff]
      %v229 = vld [vmem:[%s1 + $0x68] sm:$0xff]
      %v230 = vld [vmem:[%s1 + $0x70] sm:$0xff]
      %v231 = vld [vmem:[%s1 + $0x78] sm:$0xff]
      %v233 = vperm.slane %v215, 0
      %v234 = vperm.slane %v215, 1
      %v245 = vunpack.c.l.b16 %v207
      %v246 = vunpack.c.l.b16 %v208
      %v247 = vunpack.c.l.b16 %v209
      %v248 = vunpack.c.l.b16 %v210
      %v249 = vunpack.c.l.b16 %v211
      %v250 = vunpack.c.l.b16 %v212
      %v251 = vunpack.c.l.b16 %v213
      %v252 = vunpack.c.l.b16 %v214
      %v253 = vpack.c.b16 %v246, %v245
      %v254 = vpack.c.b16 %v248, %v247
      %v255 = vpack.c.b16 %v250, %v249
      %v256 = vpack.c.b16 %v252, %v251
      %v277 = vunpack.c.l.b16 %v216
      %v278 = vunpack.c.h.b16 %v216
      %v279 = vunpack.c.l.b16 %v217
      %v280 = vunpack.c.h.b16 %v217
      %v281 = vunpack.c.l.b16 %v218
      %v282 = vunpack.c.h.b16 %v218
      %v283 = vunpack.c.l.b16 %v219
      %v284 = vunpack.c.h.b16 %v219
      %v285 = vunpack.c.l.b16 %v220
      %v286 = vunpack.c.h.b16 %v220
      %v287 = vunpack.c.l.b16 %v221
      %v288 = vunpack.c.h.b16 %v221
      %v289 = vunpack.c.l.b16 %v222
      %v290 = vunpack.c.h.b16 %v222
      %v291 = vunpack.c.l.b16 %v223
      %v292 = vunpack.c.h.b16 %v223
      %v293 = vunpack.c.l.b16 %v224
      %v294 = vunpack.c.h.b16 %v224
      %v295 = vunpack.c.l.b16 %v225
      %v296 = vunpack.c.h.b16 %v225
      %v297 = vunpack.c.l.b16 %v226
      %v298 = vunpack.c.h.b16 %v226
      %v299 = vunpack.c.l.b16 %v227
      %v300 = vunpack.c.h.b16 %v227
      %v301 = vunpack.c.l.b16 %v228
      %v302 = vunpack.c.h.b16 %v228
      %v303 = vunpack.c.l.b16 %v229
      %v304 = vunpack.c.h.b16 %v229
      %v305 = vunpack.c.l.b16 %v230
      %v306 = vunpack.c.h.b16 %v230
      %v307 = vunpack.c.l.b16 %v231
      %v308 = vunpack.c.h.b16 %v231
      %v309 = vpack.c.b16 %v279, %v277
      %v310 = vpack.c.b16 %v280, %v278
      %v311 = vpack.c.b16 %v283, %v281
      %v312 = vpack.c.b16 %v284, %v282
      %v313 = vpack.c.b16 %v287, %v285
      %v314 = vpack.c.b16 %v288, %v286
      %v315 = vpack.c.b16 %v291, %v289
      %v316 = vpack.c.b16 %v292, %v290
      %v317 = vpack.c.b16 %v295, %v293
      %v318 = vpack.c.b16 %v296, %v294
      %v319 = vpack.c.b16 %v299, %v297
      %v320 = vpack.c.b16 %v300, %v298
      %v321 = vpack.c.b16 %v303, %v301
      %v322 = vpack.c.b16 %v304, %v302
      %v323 = vpack.c.b16 %v307, %v305
      %v324 = vpack.c.b16 %v308, %v306
      %341 = vmatpush.bf16.msra.mxu0 %v323
      %342 = vmatpush.bf16.msra.mxu0 %v321
      %343 = vmatpush.bf16.msra.mxu0 %v319
      %344 = vmatpush.bf16.msra.mxu0 %v317
      %345 = vmatpush.bf16.msra.mxu0 %v315
      %346 = vmatpush.bf16.msra.mxu0 %v313
      %347 = vmatpush.bf16.msra.mxu0 %v311
      %348 = vmatpush.bf16.msra.mxu0 %v309
      %349 = vmatmul.bf16.gmra.mxu0 %v253
      %v350 = vpop.f32.mrf.mxu0
      %v351 = vadd.f32 %v233, %v350
      %v352 = vpop.f32.mrf.mxu0
      %v353 = vadd.f32 %v233, %v352
      %354 = vmatmul.bf16.gmra.mxu0 %v254
      %v355 = vpop.f32.mrf.mxu0
      %v356 = vadd.f32 %v233, %v355
      %v357 = vpop.f32.mrf.mxu0
      %v358 = vadd.f32 %v233, %v357
      %359 = vmatmul.bf16.gmra.mxu0 %v255
      %v360 = vpop.f32.mrf.mxu0
      %v361 = vadd.f32 %v233, %v360
      %v362 = vpop.f32.mrf.mxu0
      %v363 = vadd.f32 %v233, %v362
      %364 = vmatmul.bf16.gmra.mxu0 %v256
      %v365 = vpop.f32.mrf.mxu0
      %v366 = vadd.f32 %v233, %v365
      %v367 = vpop.f32.mrf.mxu0
      %v368 = vadd.f32 %v233, %v367
      %369 = vdwg.mxu0
      %370 = vmatpush.bf16.msra.mxu0 %v324
      %371 = vmatpush.bf16.msra.mxu0 %v322
      %372 = vmatpush.bf16.msra.mxu0 %v320
      %373 = vmatpush.bf16.msra.mxu0 %v318
      %374 = vmatpush.bf16.msra.mxu0 %v316
      %375 = vmatpush.bf16.msra.mxu0 %v314
      %376 = vmatpush.bf16.msra.mxu0 %v312
      %377 = vmatpush.bf16.msra.mxu0 %v310
      %378 = vmatmul.bf16.gmra.mxu0 %v253
      %v379 = vpop.f32.mrf.mxu0
      %v380 = vadd.f32 %v234, %v379
      %v381 = vpop.f32.mrf.mxu0
      %v382 = vadd.f32 %v234, %v381
      %383 = vmatmul.bf16.gmra.mxu0 %v254
      %v384 = vpop.f32.mrf.mxu0
      %v385 = vadd.f32 %v234, %v384
      %v386 = vpop.f32.mrf.mxu0
      %v387 = vadd.f32 %v234, %v386
      %388 = vmatmul.bf16.gmra.mxu0 %v255
      %v389 = vpop.f32.mrf.mxu0
      %v390 = vadd.f32 %v234, %v389
      %v391 = vpop.f32.mrf.mxu0
      %v392 = vadd.f32 %v234, %v391
      %393 = vmatmul.bf16.gmra.mxu0 %v256
      %v394 = vpop.f32.mrf.mxu0
      %v395 = vadd.f32 %v234, %v394
      %v396 = vpop.f32.mrf.mxu0
      %v397 = vadd.f32 %v234, %v396
      %398 = vdwg.mxu0
      %v399 = vpack.c.bf16 %v380, %v351
      %v400 = vpack.c.bf16 %v382, %v353
      %v401 = vpack.c.bf16 %v385, %v356
      %v402 = vpack.c.bf16 %v387, %v358
      %v403 = vpack.c.bf16 %v390, %v361
      %v404 = vpack.c.bf16 %v392, %v363
      %v405 = vpack.c.bf16 %v395, %v366
      %v406 = vpack.c.bf16 %v397, %v368
      %407 = vst [vmem:[%s204] sm:$0xff] %v399
      %408 = vst [vmem:[%s204 + $0x10] sm:$0xff] %v400
      %409 = vst [vmem:[%s204 + $0x20] sm:$0xff] %v401
      %410 = vst [vmem:[%s204 + $0x30] sm:$0xff] %v402
      %411 = vst [vmem:[%s204 + $0x40] sm:$0xff] %v403
      %412 = vst [vmem:[%s204 + $0x50] sm:$0xff] %v404
      %413 = vst [vmem:[%s204 + $0x60] sm:$0xff] %v405
      %414 = vst [vmem:[%s204 + $0x70] sm:$0xff] %v406
      %s415 = scalar_lea.vmem %s1, 128
      %v416 = vld [vmem:[%s415] sm:$0xff]
      %v417 = vld [vmem:[%s415 + $0x8] sm:$0xff]
      %v418 = vld [vmem:[%s415 + $0x10] sm:$0xff]
      %v419 = vld [vmem:[%s415 + $0x18] sm:$0xff]
      %v420 = vld [vmem:[%s415 + $0x20] sm:$0xff]
      %v421 = vld [vmem:[%s415 + $0x28] sm:$0xff]
      %v422 = vld [vmem:[%s415 + $0x30] sm:$0xff]
      %v423 = vld [vmem:[%s415 + $0x38] sm:$0xff]
      %v424 = vld [vmem:[%s415 + $0x40] sm:$0xff]
      %v425 = vld [vmem:[%s415 + $0x48] sm:$0xff]
      %v426 = vld [vmem:[%s415 + $0x50] sm:$0xff]
      %v427 = vld [vmem:[%s415 + $0x58] sm:$0xff]
      %v428 = vld [vmem:[%s415 + $0x60] sm:$0xff]
      %v429 = vld [vmem:[%s415 + $0x68] sm:$0xff]
      %v430 = vld [vmem:[%s415 + $0x70] sm:$0xff]
      %v431 = vld [vmem:[%s415 + $0x78] sm:$0xff]
      %v448 = vunpack.c.l.b16 %v416
      %v449 = vunpack.c.h.b16 %v416
      %v450 = vunpack.c.l.b16 %v417
      %v451 = vunpack.c.h.b16 %v417
      %v452 = vunpack.c.l.b16 %v418
      %v453 = vunpack.c.h.b16 %v418
      %v454 = vunpack.c.l.b16 %v419
      %v455 = vunpack.c.h.b16 %v419
      %v456 = vunpack.c.l.b16 %v420
      %v457 = vunpack.c.h.b16 %v420
      %v458 = vunpack.c.l.b16 %v421
      %v459 = vunpack.c.h.b16 %v421
      %v460 = vunpack.c.l.b16 %v422
      %v461 = vunpack.c.h.b16 %v422
      %v462 = vunpack.c.l.b16 %v423
      %v463 = vunpack.c.h.b16 %v423
      %v464 = vunpack.c.l.b16 %v424
      %v465 = vunpack.c.h.b16 %v424
      %v466 = vunpack.c.l.b16 %v425
      %v467 = vunpack.c.h.b16 %v425
      %v468 = vunpack.c.l.b16 %v426
      %v469 = vunpack.c.h.b16 %v426
      %v470 = vunpack.c.l.b16 %v427
      %v471 = vunpack.c.h.b16 %v427
      %v472 = vunpack.c.l.b16 %v428
      %v473 = vunpack.c.h.b16 %v428
      %v474 = vunpack.c.l.b16 %v429
      %v475 = vunpack.c.h.b16 %v429
      %v476 = vunpack.c.l.b16 %v430
      %v477 = vunpack.c.h.b16 %v430
      %v478 = vunpack.c.l.b16 %v431
      %v479 = vunpack.c.h.b16 %v431
      %v480 = vpack.c.b16 %v450, %v448
      %v481 = vpack.c.b16 %v451, %v449
      %v482 = vpack.c.b16 %v454, %v452
      %v483 = vpack.c.b16 %v455, %v453
      %v484 = vpack.c.b16 %v458, %v456
      %v485 = vpack.c.b16 %v459, %v457
      %v486 = vpack.c.b16 %v462, %v460
      %v487 = vpack.c.b16 %v463, %v461
      %v488 = vpack.c.b16 %v466, %v464
      %v489 = vpack.c.b16 %v467, %v465
      %v490 = vpack.c.b16 %v470, %v468
      %v491 = vpack.c.b16 %v471, %v469
      %v492 = vpack.c.b16 %v474, %v472
      %v493 = vpack.c.b16 %v475, %v473
      %v494 = vpack.c.b16 %v478, %v476
      %v495 = vpack.c.b16 %v479, %v477
      %512 = vmatpush.bf16.msra.mxu0 %v494
      %513 = vmatpush.bf16.msra.mxu0 %v492
      %514 = vmatpush.bf16.msra.mxu0 %v490
      %515 = vmatpush.bf16.msra.mxu0 %v488
      %516 = vmatpush.bf16.msra.mxu0 %v486
      %517 = vmatpush.bf16.msra.mxu0 %v484
      %518 = vmatpush.bf16.msra.mxu0 %v482
      %519 = vmatpush.bf16.msra.mxu0 %v480
      %520 = vmatmul.bf16.gmra.mxu0 %v253
      %v521 = vpop.f32.mrf.mxu0
      %v522 = vadd.f32 %v233, %v521
      %v523 = vpop.f32.mrf.mxu0
      %v524 = vadd.f32 %v233, %v523
      %525 = vmatmul.bf16.gmra.mxu0 %v254
      %v526 = vpop.f32.mrf.mxu0
      %v527 = vadd.f32 %v233, %v526
      %v528 = vpop.f32.mrf.mxu0
      %v529 = vadd.f32 %v233, %v528
      %530 = vmatmul.bf16.gmra.mxu0 %v255
      %v531 = vpop.f32.mrf.mxu0
      %v532 = vadd.f32 %v233, %v531
      %v533 = vpop.f32.mrf.mxu0
      %v534 = vadd.f32 %v233, %v533
      %535 = vmatmul.bf16.gmra.mxu0 %v256
      %v536 = vpop.f32.mrf.mxu0
      %v537 = vadd.f32 %v233, %v536
      %v538 = vpop.f32.mrf.mxu0
      %v539 = vadd.f32 %v233, %v538
      %540 = vdwg.mxu0
      %541 = vmatpush.bf16.msra.mxu0 %v495
      %542 = vmatpush.bf16.msra.mxu0 %v493
      %543 = vmatpush.bf16.msra.mxu0 %v491
      %544 = vmatpush.bf16.msra.mxu0 %v489
      %545 = vmatpush.bf16.msra.mxu0 %v487
      %546 = vmatpush.bf16.msra.mxu0 %v485
      %547 = vmatpush.bf16.msra.mxu0 %v483
      %548 = vmatpush.bf16.msra.mxu0 %v481
      %549 = vmatmul.bf16.gmra.mxu0 %v253
      %v550 = vpop.f32.mrf.mxu0
      %v551 = vadd.f32 %v234, %v550
      %v552 = vpop.f32.mrf.mxu0
      %v553 = vadd.f32 %v234, %v552
      %554 = vmatmul.bf16.gmra.mxu0 %v254
      %v555 = vpop.f32.mrf.mxu0
      %v556 = vadd.f32 %v234, %v555
      %v557 = vpop.f32.mrf.mxu0
      %v558 = vadd.f32 %v234, %v557
      %559 = vmatmul.bf16.gmra.mxu0 %v255
      %v560 = vpop.f32.mrf.mxu0
      %v561 = vadd.f32 %v234, %v560
      %v562 = vpop.f32.mrf.mxu0
      %v563 = vadd.f32 %v234, %v562
      %564 = vmatmul.bf16.gmra.mxu0 %v256
      %v565 = vpop.f32.mrf.mxu0
      %v566 = vadd.f32 %v234, %v565
      %v567 = vpop.f32.mrf.mxu0
      %v568 = vadd.f32 %v234, %v567
      %569 = vdwg.mxu0
      %v570 = vpack.c.bf16 %v551, %v522
      %v571 = vpack.c.bf16 %v553, %v524
      %v572 = vpack.c.bf16 %v556, %v527
      %v573 = vpack.c.bf16 %v558, %v529
      %v574 = vpack.c.bf16 %v561, %v532
      %v575 = vpack.c.bf16 %v563, %v534
      %v576 = vpack.c.bf16 %v566, %v537
      %v577 = vpack.c.bf16 %v568, %v539
      %s578 = scalar_lea.vmem %s204, 8
      %579 = vst [vmem:[%s578] sm:$0xff] %v570
      %580 = vst [vmem:[%s578 + $0x10] sm:$0xff] %v571
      %581 = vst [vmem:[%s578 + $0x20] sm:$0xff] %v572
      %582 = vst [vmem:[%s578 + $0x30] sm:$0xff] %v573
      %583 = vst [vmem:[%s578 + $0x40] sm:$0xff] %v574
      %584 = vst [vmem:[%s578 + $0x50] sm:$0xff] %v575
      %585 = vst [vmem:[%s578 + $0x60] sm:$0xff] %v576
      %586 = vst [vmem:[%s578 + $0x70] sm:$0xff] %v577
      %s587 = sadd.s32 %s18, %s19
      %s588 = smul.u32 8, %s587
      %p589 = scmp.lt.s32.totalorder %s588, 15
      %s590 = scalar_select %p589, %s588, 15
      %s591 = smul.addr %s590, 4
      %s592 = smul.addr %s591, 4
      %s593 = scalar_lea.vmem %s3, %s592
      // Predicated region
      $region33: #{up_forward.4} parent=31 // pred_check
        %p594 = pneg %p116
      $region34: #{up_forward.4} parent=31 // pred_check_branch
        %596 = sbr.rel (%p594) target = $region36
      $region35: #{up_forward.4} parent=31 // pred_region
        %s597 = sadd.s32 %s18, %s19
        %s598 = smul.u32 8, %s597
      $region36: #{up_forward.4} parent=31 // pred_fallthru
        _
    $region32: #{up_forward.4} parent=5 // pred_fallthru
      _
    %p599 = scmp.le.s32.totalorder 2, %s9
    // Predicated region
    $region37: #{up_forward.4} parent=5 // pred_check
      %p600 = pneg %p599
    $region38: #{up_forward.4} parent=5 // pred_check_branch
      %602 = sbr.rel (%p600) target = $region40
    $region39: #{up_forward.4} parent=5 // pred_region
      %s603 = ssub.s32 %s9, 2
      // Predicated region
      $region41: #{up_forward.4} parent=39 // pred_check
        %p604 = pneg %p122
      $region42: #{up_forward.4} parent=39 // pred_check_branch
        %606 = sbr.rel (%p604) target = $region44
      $region43: #{up_forward.4} parent=39 // pred_region
        %s607 = sadd.s32 %s20, %s21
        %s608 = smul.u32 8, %s607
        %p609 = scmp.lt.s32.totalorder %s608, 15
        %s610 = scalar_select %p609, %s608, 15
        %s611 = smul.addr %s610, 4
        %s612 = smul.addr %s611, 4
        %s613 = scalar_lea.vmem %s3, %s612
      $region44: #{up_forward.4} parent=39 // pred_fallthru
        _
    $region40: #{up_forward.4} parent=5 // pred_fallthru
      _
  $region6: #{up_forward.4} parent=0 // loop_footer
    %s13 = sadd.s32 1, %s9
  $region7: #{up_forward.4} parent=0 // loop_footer_branch
    %8 = sbr.rel target = $region3
  $region8: #{up_forward.4} parent=0 // loop_exit
    _

// kernel: up_forward.7
$region0: #{up_forward.7}
  #allocation0 [shape = 'u32[]', space=smem, size = 0x4, offset = 0x4, fixed_abs, tag = 'smem constant byte address 0x4 - core index']
  #allocation1 [shape = 'u32[72,128]{1,0:T(1,128)}', space=vmem, size = 0x9000, scoped, tag = 'internal scratch']
  %s0 = inlined_call_operand.vmem [shape: bf16[2,16,16,128], index: 0, kind: input, shape index: {}]
  %s1 = inlined_call_operand.vmem [shape: f32[1,128], index: 1, kind: input, shape index: {}]
  %s2 = inlined_call_operand.vmem [shape: f32[1,128], index: 2, kind: input, shape index: {}]
  %s3 = inlined_call_operand.vmem [shape: f32[2,16,16,8], index: 3, kind: output, shape index: {}]
  %s4 = sld [smem:[#allocation0]]
  $region45: #{up_forward.7} parent=0
    _
  %s6 = ssub.s32 1, %s4
  %s7 = scalar_select 0, %s6, %s4
  loop: start=0, step=1, limit=4
  $region2: #{up_forward.7} parent=0 // loop_pre_header
    _
  $region3: #{up_forward.7} parent=0 // loop_header
    %s9 = sphi 0, %s13
    %p10 = scmp.ge.s32.totalorder %s9, 4
    %s16 = sphi 0, %s28
    %s17 = sphi 0, %s24
    %s18 = sphi 0, %s16
    %s19 = sphi 0, %s17
    %s20 = sphi 0, %s18
    %s21 = sphi 0, %s19
    %s33 = sphi 0, %s35
    %s36 = sphi 0, %s33
    %s37 = sphi 0, %s36
    %s53 = sphi 0, %s37
    %s57 = sphi 0, %s57
    %s59 = sphi 0, %s57
    %s60 = sphi 0, %s59
    %s74 = sphi 0, %s60
    %s78 = sphi 0, %s78
    %s80 = sphi 0, %s78
    %s81 = sphi 0, %s80
    %s95 = sphi 0, %s81
    %s103 = sphi 0, %s105
    %s106 = sphi 0, %s103
    %s107 = sphi 0, %s106
    %s123 = sphi 0, %s107
  $region4: #{up_forward.7} parent=0 // loop_header_branch
    %12 = sbr.rel (%p10) target = $region8
  $region5: #{up_forward.7} parent=0 // loop_body
    %s14 = ssub.s32 %s9, 1
    %s15 = ssub.s32 %s9, 2
    %s22 = sadd.s32 1, %s17
    %p23 = scmp.ge.s32.totalorder %s22, 1
    %s24 = scalar_select %p23, 0, %s22
    %s25 = sadd.s32 1, %s16
    %s26 = scalar_select %p23, %s25, %s16
    %p27 = scmp.ge.s32.totalorder %s26, 2
    %s28 = scalar_select %p27, 0, %s26
    %s29 = ssub.s32 %s16, %s28
    %s30 = ssub.s32 %s17, %s24
    %s31 = sor.u32 %s29, %s30
    %p32 = scmp.eq.s32.totalorder %s31, 0
    %s34 = sadd.s32 %s33, 1
    %s35 = scalar_select %p32, %s33, %s34
    %p38 = pneg %p32
    %p39 = scmp.eq.s32.totalorder %s9, 1
    %p40 = por %p38, %p39
    %p41 = scmp.ne.s32.totalorder %s33, %s36
    %p42 = scmp.eq.s32.totalorder %s9, 0
    %p43 = por %p41, %p42
    %p44 = scmp.ne.s32.totalorder %s33, %s36
    %p45 = scmp.eq.s32.totalorder %s14, 1
    %p46 = por %p44, %p45
    %p47 = scmp.ne.s32.totalorder %s36, %s37
    %p48 = scmp.eq.s32.totalorder %s14, 0
    %p49 = por %p47, %p48
    %p50 = scmp.ne.s32.totalorder %s36, %s37
    %p51 = scmp.eq.s32.totalorder %s15, 1
    %p52 = por %p50, %p51
    %p54 = scmp.ne.s32.totalorder %s37, %s53
    %p55 = scmp.eq.s32.totalorder %s15, 0
    %p56 = por %p54, %p55
    %s58 = sadd.s32 %s57, 1
    %p61 = scmp.eq.s32.totalorder %s9, 1
    %p62 = scmp.ne.s32.totalorder %s57, %s59
    %p63 = scmp.eq.s32.totalorder %s9, 0
    %p64 = por %p62, %p63
    %p65 = scmp.ne.s32.totalorder %s57, %s59
    %p66 = scmp.eq.s32.totalorder %s14, 1
    %p67 = por %p65, %p66
    %p68 = scmp.ne.s32.totalorder %s59, %s60
    %p69 = scmp.eq.s32.totalorder %s14, 0
    %p70 = por %p68, %p69
    %p71 = scmp.ne.s32.totalorder %s59, %s60
    %p72 = scmp.eq.s32.totalorder %s15, 1
    %p73 = por %p71, %p72
    %p75 = scmp.ne.s32.totalorder %s60, %s74
    %p76 = scmp.eq.s32.totalorder %s15, 0
    %p77 = por %p75, %p76
    %s79 = sadd.s32 %s78, 1
    %p82 = scmp.eq.s32.totalorder %s9, 1
    %p83 = scmp.ne.s32.totalorder %s78, %s80
    %p84 = scmp.eq.s32.totalorder %s9, 0
    %p85 = por %p83, %p84
    %p86 = scmp.ne.s32.totalorder %s78, %s80
    %p87 = scmp.eq.s32.totalorder %s14, 1
    %p88 = por %p86, %p87
    %p89 = scmp.ne.s32.totalorder %s80, %s81
    %p90 = scmp.eq.s32.totalorder %s14, 0
    %p91 = por %p89, %p90
    %p92 = scmp.ne.s32.totalorder %s80, %s81
    %p93 = scmp.eq.s32.totalorder %s15, 1
    %p94 = por %p92, %p93
    %p96 = scmp.ne.s32.totalorder %s81, %s95
    %p97 = scmp.eq.s32.totalorder %s15, 0
    %p98 = por %p96, %p97
    %s99 = ssub.s32 %s16, %s28
    %s100 = ssub.s32 %s17, %s24
    %s101 = sor.u32 %s99, %s100
    %p102 = scmp.eq.s32.totalorder %s101, 0
    %s104 = sadd.s32 %s103, 1
    %s105 = scalar_select %p102, %s103, %s104
    %p108 = pneg %p102
    %p109 = scmp.eq.s32.totalorder %s9, 1
    %p110 = por %p108, %p109
    %p111 = scmp.ne.s32.totalorder %s103, %s106
    %p112 = scmp.eq.s32.totalorder %s9, 0
    %p113 = por %p111, %p112
    %p114 = scmp.ne.s32.totalorder %s103, %s106
    %p115 = scmp.eq.s32.totalorder %s14, 1
    %p116 = por %p114, %p115
    %p117 = scmp.ne.s32.totalorder %s106, %s107
    %p118 = scmp.eq.s32.totalorder %s14, 0
    %p119 = por %p117, %p118
    %p120 = scmp.ne.s32.totalorder %s106, %s107
    %p121 = scmp.eq.s32.totalorder %s15, 1
    %p122 = por %p120, %p121
    %p124 = scmp.ne.s32.totalorder %s107, %s123
    %p125 = scmp.eq.s32.totalorder %s15, 0
    %p126 = por %p124, %p125
    %p127 = scmp.le.s32.totalorder 1, %s9
    %p128 = scmp.lt.s32.totalorder %s9, 3
    %p129 = pnand %p127, %p128
    %p130 = pneg %p129
    // Predicated region
    $region9: #{up_forward.7} parent=5 // pred_check
      _
    $region10: #{up_forward.7} parent=5 // pred_check_branch
      %132 = sbr.rel (%p129) target = $region12
    $region11: #{up_forward.7} parent=5 // pred_region
      %s133 = ssub.s32 %s9, 1
      // Predicated region
      $region13: #{up_forward.7} parent=11 // pred_check
        %p134 = pneg %p70
      $region14: #{up_forward.7} parent=11 // pred_check_branch
        %136 = sbr.rel (%p134) target = $region16
      $region15: #{up_forward.7} parent=11 // pred_region
        _
      $region16: #{up_forward.7} parent=11 // pred_fallthru
        _
      // Predicated region
      $region17: #{up_forward.7} parent=11 // pred_check
        %p137 = pneg %p91
      $region18: #{up_forward.7} parent=11 // pred_check_branch
        %139 = sbr.rel (%p137) target = $region20
      $region19: #{up_forward.7} parent=11 // pred_region
        _
      $region20: #{up_forward.7} parent=11 // pred_fallthru
        _
    $region12: #{up_forward.7} parent=5 // pred_fallthru
      _
    %p140 = scmp.lt.s32.totalorder %s9, 2
    // Predicated region
    $region21: #{up_forward.7} parent=5 // pred_check
      %p141 = pneg %p140
    $region22: #{up_forward.7} parent=5 // pred_check_branch
      %143 = sbr.rel (%p141) target = $region24
    $region23: #{up_forward.7} parent=5 // pred_region
      // Predicated region
      $region25: #{up_forward.7} parent=23 // pred_check
        %p144 = pneg %p43
      $region26: #{up_forward.7} parent=23 // pred_check_branch
        %146 = sbr.rel (%p144) target = $region28
      $region27: #{up_forward.7} parent=23 // pred_region
        %s147 = smul.u32 16, %s17
        %p148 = scmp.lt.s32.totalorder %s16, 1
        %s149 = scalar_select %p148, %s16, 1
        %p150 = scmp.lt.s32.totalorder %s147, 15
        %s151 = scalar_select %p150, %s147, 15
        %s152 = smul.addr %s151, 2
        %s153 = smul.addr %s149, 32
        %s154 = sadd.s32 %s152, %s153
        %s155 = smul.addr %s154, 4
        %s156 = scalar_lea.vmem %s0, %s155
        %s157 = smul.u32 16, %s17
      $region28: #{up_forward.7} parent=23 // pred_fallthru
        _
    $region24: #{up_forward.7} parent=5 // pred_fallthru
      _
    %p158 = scmp.le.s32.totalorder 1, %s9
    %p159 = scmp.lt.s32.totalorder %s9, 3
    %p160 = pnand %p158, %p159
    %p161 = pneg %p160
    // Predicated region
    $region29: #{up_forward.7} parent=5 // pred_check
      _
    $region30: #{up_forward.7} parent=5 // pred_check_branch
      %163 = sbr.rel (%p160) target = $region32
    $region31: #{up_forward.7} parent=5 // pred_region
      %s164 = ssub.s32 %s9, 1
      %s165 = smul.u32 16, %s19
      %p166 = scmp.lt.s32.totalorder %s18, 1
      %s167 = scalar_select %p166, %s18, 1
      %p168 = scmp.lt.s32.totalorder %s165, 15
      %s169 = scalar_select %p168, %s165, 15
      %s170 = smul.addr %s169, 2
      %s171 = smul.addr %s167, 32
      %s172 = sadd.s32 %s170, %s171
      %s173 = smul.addr %s172, 4
      %s174 = scalar_lea.vmem %s0, %s173
      %p175 = pneg %p49
      %p176 = pneg %p46
      %p177 = pneg %p70
      %p178 = pneg %p67
      %p179 = pneg %p91
      %p180 = pneg %p88
      %p181 = pneg %p119
      %p182 = pneg %p116
      %s183 = smul.u32 16, %s19
      %p184 = scmp.lt.s32.totalorder %s18, 1
      %s185 = scalar_select %p184, %s18, 1
      %p186 = scmp.lt.s32.totalorder %s183, 15
      %s187 = scalar_select %p186, %s183, 15
      %s188 = smul.addr %s187, 2
      %s189 = smul.addr %s185, 32
      %s190 = sadd.s32 %s188, %s189
      %s191 = smul.addr %s190, 8
      %s192 = scalar_lea.vmem %s3, %s191
      %s193 = smul.u32 16, %s19
      %p194 = scmp.lt.s32.totalorder %s18, 1
      %s195 = scalar_select %p194, %s18, 1
      %p196 = scmp.lt.s32.totalorder %s193, 15
      %s197 = scalar_select %p196, %s193, 15
      %s198 = smul.addr %s197, 2
      %s199 = smul.addr %s195, 32
      %s200 = sadd.s32 %s198, %s199
      %s201 = smul.addr %s200, 4
      %s202 = scalar_lea.vmem %s0, %s201
      %s203 = smul.u32 16, %s19
      %s204 = smul.u32 16, %s19
      %p205 = scmp.lt.s32.totalorder %s18, 1
      %s206 = scalar_select %p205, %s18, 1
      %p207 = scmp.lt.s32.totalorder %s204, 15
      %s208 = scalar_select %p207, %s204, 15
      %s209 = smul.addr %s208, 2
      %s210 = smul.addr %s206, 32
      %s211 = sadd.s32 %s209, %s210
      %s212 = smul.addr %s211, 8
      %s213 = scalar_lea.vmem %s3, %s212
      %s214 = smul.u32 16, %s19
      %v215 = vld [vmem:[%s202] sm:$0xf]
      %v216 = vld [vmem:[%s202 + $0x4] sm:$0xf]
      %v217 = vld [vmem:[%s202 + $0x8] sm:$0xf]
      %v218 = vld [vmem:[%s202 + $0xc] sm:$0xf]
      %v219 = vld [vmem:[%s202 + $0x10] sm:$0xf]
      %v220 = vld [vmem:[%s202 + $0x14] sm:$0xf]
      %v221 = vld [vmem:[%s202 + $0x18] sm:$0xf]
      %v222 = vld [vmem:[%s202 + $0x1c] sm:$0xf]
      %v223 = vld [vmem:[%s202 + $0x20] sm:$0xf]
      %v224 = vld [vmem:[%s202 + $0x24] sm:$0xf]
      %v225 = vld [vmem:[%s202 + $0x28] sm:$0xf]
      %v226 = vld [vmem:[%s202 + $0x2c] sm:$0xf]
      %v227 = vld [vmem:[%s202 + $0x30] sm:$0xf]
      %v228 = vld [vmem:[%s202 + $0x34] sm:$0xf]
      %v229 = vld [vmem:[%s202 + $0x38] sm:$0xf]
      %v230 = vld [vmem:[%s202 + $0x3c] sm:$0xf]
      %v231 = vld [vmem:[%s202 + $0x40] sm:$0xf]
      %v232 = vld [vmem:[%s202 + $0x44] sm:$0xf]
      %v233 = vld [vmem:[%s202 + $0x48] sm:$0xf]
      %v234 = vld [vmem:[%s202 + $0x4c] sm:$0xf]
      %v235 = vld [vmem:[%s202 + $0x50] sm:$0xf]
      %v236 = vld [vmem:[%s202 + $0x54] sm:$0xf]
      %v237 = vld [vmem:[%s202 + $0x58] sm:$0xf]
      %v238 = vld [vmem:[%s202 + $0x5c] sm:$0xf]
      %v239 = vld [vmem:[%s202 + $0x60] sm:$0xf]
      %v240 = vld [vmem:[%s202 + $0x64] sm:$0xf]
      %v241 = vld [vmem:[%s202 + $0x68] sm:$0xf]
      %v242 = vld [vmem:[%s202 + $0x6c] sm:$0xf]
      %v243 = vld [vmem:[%s202 + $0x70] sm:$0xf]
      %v244 = vld [vmem:[%s202 + $0x74] sm:$0xf]
      %v245 = vld [vmem:[%s202 + $0x78] sm:$0xf]
      %v246 = vld [vmem:[%s202 + $0x7c] sm:$0xf]
      %v247 = vunpack.c.l.bf16 %v215
      %v248 = vunpack.c.l.bf16 %v216
      %v249 = vunpack.c.l.bf16 %v217
      %v250 = vunpack.c.l.bf16 %v218
      %v251 = vunpack.c.l.bf16 %v219
      %v252 = vunpack.c.l.bf16 %v220
      %v253 = vunpack.c.l.bf16 %v221
      %v254 = vunpack.c.l.bf16 %v222
      %v255 = vunpack.c.l.bf16 %v223
      %v256 = vunpack.c.l.bf16 %v224
      %v257 = vunpack.c.l.bf16 %v225
      %v258 = vunpack.c.l.bf16 %v226
      %v259 = vunpack.c.l.bf16 %v227
      %v260 = vunpack.c.l.bf16 %v228
      %v261 = vunpack.c.l.bf16 %v229
      %v262 = vunpack.c.l.bf16 %v230
      %v263 = vunpack.c.l.bf16 %v231
      %v264 = vunpack.c.l.bf16 %v232
      %v265 = vunpack.c.l.bf16 %v233
      %v266 = vunpack.c.l.bf16 %v234
      %v267 = vunpack.c.l.bf16 %v235
      %v268 = vunpack.c.l.bf16 %v236
      %v269 = vunpack.c.l.bf16 %v237
      %v270 = vunpack.c.l.bf16 %v238
      %v271 = vunpack.c.l.bf16 %v239
      %v272 = vunpack.c.l.bf16 %v240
      %v273 = vunpack.c.l.bf16 %v241
      %v274 = vunpack.c.l.bf16 %v242
      %v275 = vunpack.c.l.bf16 %v243
      %v276 = vunpack.c.l.bf16 %v244
      %v277 = vunpack.c.l.bf16 %v245
      %v278 = vunpack.c.l.bf16 %v246
      %v279 = vld [vmem:[%s1] sm:$0x1]
      %v281 = vperm.slane %v279, 0
      %v283 = vmul.f32 %v247, %v281
      %v284 = vmul.f32 %v248, %v281
      %v285 = vmul.f32 %v249, %v281
      %v286 = vmul.f32 %v250, %v281
      %v287 = vmul.f32 %v251, %v281
      %v288 = vmul.f32 %v252, %v281
      %v289 = vmul.f32 %v253, %v281
      %v290 = vmul.f32 %v254, %v281
      %v291 = vmul.f32 %v255, %v281
      %v292 = vmul.f32 %v256, %v281
      %v293 = vmul.f32 %v257, %v281
      %v294 = vmul.f32 %v258, %v281
      %v295 = vmul.f32 %v259, %v281
      %v296 = vmul.f32 %v260, %v281
      %v297 = vmul.f32 %v261, %v281
      %v298 = vmul.f32 %v262, %v281
      %v299 = vmul.f32 %v263, %v281
      %v300 = vmul.f32 %v264, %v281
      %v301 = vmul.f32 %v265, %v281
      %v302 = vmul.f32 %v266, %v281
      %v303 = vmul.f32 %v267, %v281
      %v304 = vmul.f32 %v268, %v281
      %v305 = vmul.f32 %v269, %v281
      %v306 = vmul.f32 %v270, %v281
      %v307 = vmul.f32 %v271, %v281
      %v308 = vmul.f32 %v272, %v281
      %v309 = vmul.f32 %v273, %v281
      %v310 = vmul.f32 %v274, %v281
      %v311 = vmul.f32 %v275, %v281
      %v312 = vmul.f32 %v276, %v281
      %v313 = vmul.f32 %v277, %v281
      %v314 = vmul.f32 %v278, %v281
      %v315 = vld [vmem:[%s2] sm:$0x1]
      %v317 = vperm.slane %v315, 0
      %v319 = vadd.f32 %v283, %v317
      %v320 = vadd.f32 %v284, %v317
      %v321 = vadd.f32 %v285, %v317
      %v322 = vadd.f32 %v286, %v317
      %v323 = vadd.f32 %v287, %v317
      %v324 = vadd.f32 %v288, %v317
      %v325 = vadd.f32 %v289, %v317
      %v326 = vadd.f32 %v290, %v317
      %v327 = vadd.f32 %v291, %v317
      %v328 = vadd.f32 %v292, %v317
      %v329 = vadd.f32 %v293, %v317
      %v330 = vadd.f32 %v294, %v317
      %v331 = vadd.f32 %v295, %v317
      %v332 = vadd.f32 %v296, %v317
      %v333 = vadd.f32 %v297, %v317
      %v334 = vadd.f32 %v298, %v317
      %v335 = vadd.f32 %v299, %v317
      %v336 = vadd.f32 %v300, %v317
      %v337 = vadd.f32 %v301, %v317
      %v338 = vadd.f32 %v302, %v317
      %v339 = vadd.f32 %v303, %v317
      %v340 = vadd.f32 %v304, %v317
      %v341 = vadd.f32 %v305, %v317
      %v342 = vadd.f32 %v306, %v317
      %v343 = vadd.f32 %v307, %v317
      %v344 = vadd.f32 %v308, %v317
      %v345 = vadd.f32 %v309, %v317
      %v346 = vadd.f32 %v310, %v317
      %v347 = vadd.f32 %v311, %v317
      %v348 = vadd.f32 %v312, %v317
      %v349 = vadd.f32 %v313, %v317
      %v350 = vadd.f32 %v314, %v317
      %v351 = vmax.f32 %v319, 0.0
      %v352 = vmax.f32 %v320, 0.0
      %v353 = vmax.f32 %v321, 0.0
      %v354 = vmax.f32 %v322, 0.0
      %v355 = vmax.f32 %v323, 0.0
      %v356 = vmax.f32 %v324, 0.0
      %v357 = vmax.f32 %v325, 0.0
      %v358 = vmax.f32 %v326, 0.0
      %v359 = vmax.f32 %v327, 0.0
      %v360 = vmax.f32 %v328, 0.0
      %v361 = vmax.f32 %v329, 0.0
      %v362 = vmax.f32 %v330, 0.0
      %v363 = vmax.f32 %v331, 0.0
      %v364 = vmax.f32 %v332, 0.0
      %v365 = vmax.f32 %v333, 0.0
      %v366 = vmax.f32 %v334, 0.0
      %v367 = vmax.f32 %v335, 0.0
      %v368 = vmax.f32 %v336, 0.0
      %v369 = vmax.f32 %v337, 0.0
      %v370 = vmax.f32 %v338, 0.0
      %v371 = vmax.f32 %v339, 0.0
      %v372 = vmax.f32 %v340, 0.0
      %v373 = vmax.f32 %v341, 0.0
      %v374 = vmax.f32 %v342, 0.0
      %v375 = vmax.f32 %v343, 0.0
      %v376 = vmax.f32 %v344, 0.0
      %v377 = vmax.f32 %v345, 0.0
      %v378 = vmax.f32 %v346, 0.0
      %v379 = vmax.f32 %v347, 0.0
      %v380 = vmax.f32 %v348, 0.0
      %v381 = vmax.f32 %v349, 0.0
      %v382 = vmax.f32 %v350, 0.0
      %vm383 = vcmask 64512
      %384 = vst.msk [vmem:[%s213] sm:$0xff] %vm383, %v351
      %385 = vst.msk [vmem:[%s213 + $0x8] sm:$0xff] %vm383, %v352
      %386 = vst.msk [vmem:[%s213 + $0x10] sm:$0xff] %vm383, %v353
      %387 = vst.msk [vmem:[%s213 + $0x18] sm:$0xff] %vm383, %v354
      %388 = vst.msk [vmem:[%s213 + $0x20] sm:$0xff] %vm383, %v355
      %389 = vst.msk [vmem:[%s213 + $0x28] sm:$0xff] %vm383, %v356
      %390 = vst.msk [vmem:[%s213 + $0x30] sm:$0xff] %vm383, %v357
      %391 = vst.msk [vmem:[%s213 + $0x38] sm:$0xff] %vm383, %v358
      %392 = vst.msk [vmem:[%s213 + $0x40] sm:$0xff] %vm383, %v359
      %393 = vst.msk [vmem:[%s213 + $0x48] sm:$0xff] %vm383, %v360
      %394 = vst.msk [vmem:[%s213 + $0x50] sm:$0xff] %vm383, %v361
      %395 = vst.msk [vmem:[%s213 + $0x58] sm:$0xff] %vm383, %v362
      %396 = vst.msk [vmem:[%s213 + $0x60] sm:$0xff] %vm383, %v363
      %397 = vst.msk [vmem:[%s213 + $0x68] sm:$0xff] %vm383, %v364
      %398 = vst.msk [vmem:[%s213 + $0x70] sm:$0xff] %vm383, %v365
      %399 = vst.msk [vmem:[%s213 + $0x78] sm:$0xff] %vm383, %v366
      %400 = vst.msk [vmem:[%s213 + $0x80] sm:$0xff] %vm383, %v367
      %401 = vst.msk [vmem:[%s213 + $0x88] sm:$0xff] %vm383, %v368
      %402 = vst.msk [vmem:[%s213 + $0x90] sm:$0xff] %vm383, %v369
      %403 = vst.msk [vmem:[%s213 + $0x98] sm:$0xff] %vm383, %v370
      %404 = vst.msk [vmem:[%s213 + $0xa0] sm:$0xff] %vm383, %v371
      %405 = vst.msk [vmem:[%s213 + $0xa8] sm:$0xff] %vm383, %v372
      %406 = vst.msk [vmem:[%s213 + $0xb0] sm:$0xff] %vm383, %v373
      %407 = vst.msk [vmem:[%s213 + $0xb8] sm:$0xff] %vm383, %v374
      %408 = vst.msk [vmem:[%s213 + $0xc0] sm:$0xff] %vm383, %v375
      %409 = vst.msk [vmem:[%s213 + $0xc8] sm:$0xff] %vm383, %v376
      %410 = vst.msk [vmem:[%s213 + $0xd0] sm:$0xff] %vm383, %v377
      %411 = vst.msk [vmem:[%s213 + $0xd8] sm:$0xff] %vm383, %v378
      %412 = vst.msk [vmem:[%s213 + $0xe0] sm:$0xff] %vm383, %v379
      %413 = vst.msk [vmem:[%s213 + $0xe8] sm:$0xff] %vm383, %v380
      %414 = vst.msk [vmem:[%s213 + $0xf0] sm:$0xff] %vm383, %v381
      %415 = vst.msk [vmem:[%s213 + $0xf8] sm:$0xff] %vm383, %v382
      %s416 = smul.u32 16, %s19
      %p417 = scmp.lt.s32.totalorder %s18, 1
      %s418 = scalar_select %p417, %s18, 1
      %p419 = scmp.lt.s32.totalorder %s416, 15
      %s420 = scalar_select %p419, %s416, 15
      %s421 = smul.addr %s420, 2
      %s422 = smul.addr %s418, 32
      %s423 = sadd.s32 %s421, %s422
      %s424 = smul.addr %s423, 8
      %s425 = scalar_lea.vmem %s3, %s424
      // Predicated region
      $region33: #{up_forward.7} parent=31 // pred_check
        %p426 = pneg %p116
      $region34: #{up_forward.7} parent=31 // pred_check_branch
        %428 = sbr.rel (%p426) target = $region36
      $region35: #{up_forward.7} parent=31 // pred_region
        %s429 = smul.u32 16, %s19
      $region36: #{up_forward.7} parent=31 // pred_fallthru
        _
    $region32: #{up_forward.7} parent=5 // pred_fallthru
      _
    %p430 = scmp.le.s32.totalorder 2, %s9
    // Predicated region
    $region37: #{up_forward.7} parent=5 // pred_check
      %p431 = pneg %p430
    $region38: #{up_forward.7} parent=5 // pred_check_branch
      %433 = sbr.rel (%p431) target = $region40
    $region39: #{up_forward.7} parent=5 // pred_region
      %s434 = ssub.s32 %s9, 2
      // Predicated region
      $region41: #{up_forward.7} parent=39 // pred_check
        %p435 = pneg %p122
      $region42: #{up_forward.7} parent=39 // pred_check_branch
        %437 = sbr.rel (%p435) target = $region44
      $region43: #{up_forward.7} parent=39 // pred_region
        %s438 = smul.u32 16, %s21
        %p439 = scmp.lt.s32.totalorder %s20, 1
        %s440 = scalar_select %p439, %s20, 1
        %p441 = scmp.lt.s32.totalorder %s438, 15
        %s442 = scalar_select %p441, %s438, 15
        %s443 = smul.addr %s442, 2
        %s444 = smul.addr %s440, 32
        %s445 = sadd.s32 %s443, %s444
        %s446 = smul.addr %s445, 8
        %s447 = scalar_lea.vmem %s3, %s446
      $region44: #{up_forward.7} parent=39 // pred_fallthru
        _
    $region40: #{up_forward.7} parent=5 // pred_fallthru
      _
  $region6: #{up_forward.7} parent=0 // loop_footer
    %s13 = sadd.s32 1, %s9
  $region7: #{up_forward.7} parent=0 // loop_footer_branch
    %8 = sbr.rel target = $region3
  $region8: #{up_forward.7} parent=0 // loop_exit
    _

// kernel: up_forward.6
$region0: #{up_forward.6}
  #allocation0 [shape = 'u32[]', space=smem, size = 0x4, offset = 0x4, fixed_abs, tag = 'smem constant byte address 0x4 - core index']
  #allocation1 [shape = 'u32[72,128]{1,0:T(1,128)}', space=vmem, size = 0x9000, scoped, tag = 'internal scratch']
  %s0 = inlined_call_operand.vmem [shape: bf16[2,18,18,128], index: 0, kind: input, shape index: {}, may-alias: {0,1}]
  %s1 = inlined_call_operand.vmem [shape: bf16[2,18,18,128], index: 1, kind: input, shape index: {}, may-alias: {0,1}]
  %s2 = inlined_call_operand.vmem [shape: bf16[3,3,128,128], index: 2, kind: input, shape index: {}]
  %s3 = inlined_call_operand.vmem [shape: bf16[2,16,16,128], index: 3, kind: output, shape index: {0}]
  %s4 = inlined_call_operand.vmem [shape: f32[2,2,128], index: 4, kind: output, shape index: {1}]
  %5 = xla_tuple %s3, %s4
  %s6 = sld [smem:[#allocation0]]
  $region53: #{up_forward.6} parent=0
    _
  %s8 = ssub.s32 1, %s6
  %s9 = scalar_select 0, %s8, %s6
  loop: start=0, step=1, limit=4
  $region2: #{up_forward.6} parent=0 // loop_pre_header
    _
  $region3: #{up_forward.6} parent=0 // loop_header
    %s11 = sphi 0, %s15
    %p12 = scmp.ge.s32.totalorder %s11, 4
    %s18 = sphi 0, %s30
    %s19 = sphi 0, %s26
    %s20 = sphi 0, %s18
    %s21 = sphi 0, %s19
    %s22 = sphi 0, %s20
    %s23 = sphi 0, %s21
    %s35 = sphi 0, %s37
    %s38 = sphi 0, %s35
    %s39 = sphi 0, %s38
    %s55 = sphi 0, %s39
    %s67 = sphi 0, %s69
    %s70 = sphi 0, %s67
    %s71 = sphi 0, %s70
    %s87 = sphi 0, %s71
    %s91 = sphi 0, %s91
    %s93 = sphi 0, %s91
    %s94 = sphi 0, %s93
    %s108 = sphi 0, %s94
    %s116 = sphi 0, %s118
    %s119 = sphi 0, %s116
    %s120 = sphi 0, %s119
    %s136 = sphi 0, %s120
    %s144 = sphi 0, %s146
    %s147 = sphi 0, %s144
    %s148 = sphi 0, %s147
    %s164 = sphi 0, %s148
  $region4: #{up_forward.6} parent=0 // loop_header_branch
    %14 = sbr.rel (%p12) target = $region8
  $region5: #{up_forward.6} parent=0 // loop_body
    %s16 = ssub.s32 %s11, 1
    %s17 = ssub.s32 %s11, 2
    %s24 = sadd.s32 1, %s19
    %p25 = scmp.ge.s32.totalorder %s24, 1
    %s26 = scalar_select %p25, 0, %s24
    %s27 = sadd.s32 1, %s18
    %s28 = scalar_select %p25, %s27, %s18
    %p29 = scmp.ge.s32.totalorder %s28, 2
    %s30 = scalar_select %p29, 0, %s28
    %s31 = ssub.s32 %s18, %s30
    %s32 = ssub.s32 %s19, %s26
    %s33 = sor.u32 %s31, %s32
    %p34 = scmp.eq.s32.totalorder %s33, 0
    %s36 = sadd.s32 %s35, 1
    %s37 = scalar_select %p34, %s35, %s36
    %p40 = pneg %p34
    %p41 = scmp.eq.s32.totalorder %s11, 1
    %p42 = por %p40, %p41
    %p43 = scmp.ne.s32.totalorder %s35, %s38
    %p44 = scmp.eq.s32.totalorder %s11, 0
    %p45 = por %p43, %p44
    %p46 = scmp.ne.s32.totalorder %s35, %s38
    %p47 = scmp.eq.s32.totalorder %s16, 1
    %p48 = por %p46, %p47
    %p49 = scmp.ne.s32.totalorder %s38, %s39
    %p50 = scmp.eq.s32.totalorder %s16, 0
    %p51 = por %p49, %p50
    %p52 = scmp.ne.s32.totalorder %s38, %s39
    %p53 = scmp.eq.s32.totalorder %s17, 1
    %p54 = por %p52, %p53
    %p56 = scmp.ne.s32.totalorder %s39, %s55
    %p57 = scmp.eq.s32.totalorder %s17, 0
    %p58 = por %p56, %p57
    %s59 = sadd.s32 %s19, 1
    %s60 = smul.u32 %s59, 8
    %s61 = sadd.s32 %s26, 1
    %s62 = smul.u32 %s61, 8
    %s63 = ssub.s32 %s18, %s30
    %s64 = ssub.s32 %s60, %s62
    %s65 = sor.u32 %s63, %s64
    %p66 = scmp.eq.s32.totalorder %s65, 0
    %s68 = sadd.s32 %s67, 1
    %s69 = scalar_select %p66, %s67, %s68
    %p72 = pneg %p66
    %p73 = scmp.eq.s32.totalorder %s11, 1
    %p74 = por %p72, %p73
    %p75 = scmp.ne.s32.totalorder %s67, %s70
    %p76 = scmp.eq.s32.totalorder %s11, 0
    %p77 = por %p75, %p76
    %p78 = scmp.ne.s32.totalorder %s67, %s70
    %p79 = scmp.eq.s32.totalorder %s16, 1
    %p80 = por %p78, %p79
    %p81 = scmp.ne.s32.totalorder %s70, %s71
    %p82 = scmp.eq.s32.totalorder %s16, 0
    %p83 = por %p81, %p82
    %p84 = scmp.ne.s32.totalorder %s70, %s71
    %p85 = scmp.eq.s32.totalorder %s17, 1
    %p86 = por %p84, %p85
    %p88 = scmp.ne.s32.totalorder %s71, %s87
    %p89 = scmp.eq.s32.totalorder %s17, 0
    %p90 = por %p88, %p89
    %s92 = sadd.s32 %s91, 1
    %p95 = scmp.eq.s32.totalorder %s11, 1
    %p96 = scmp.ne.s32.totalorder %s91, %s93
    %p97 = scmp.eq.s32.totalorder %s11, 0
    %p98 = por %p96, %p97
    %p99 = scmp.ne.s32.totalorder %s91, %s93
    %p100 = scmp.eq.s32.totalorder %s16, 1
    %p101 = por %p99, %p100
    %p102 = scmp.ne.s32.totalorder %s93, %s94
    %p103 = scmp.eq.s32.totalorder %s16, 0
    %p104 = por %p102, %p103
    %p105 = scmp.ne.s32.totalorder %s93, %s94
    %p106 = scmp.eq.s32.totalorder %s17, 1
    %p107 = por %p105, %p106
    %p109 = scmp.ne.s32.totalorder %s94, %s108
    %p110 = scmp.eq.s32.totalorder %s17, 0
    %p111 = por %p109, %p110
    %s112 = ssub.s32 %s18, %s30
    %s113 = ssub.s32 %s19, %s26
    %s114 = sor.u32 %s112, %s113
    %p115 = scmp.eq.s32.totalorder %s114, 0
    %s117 = sadd.s32 %s116, 1
    %s118 = scalar_select %p115, %s116, %s117
    %p121 = pneg %p115
    %p122 = scmp.eq.s32.totalorder %s11, 1
    %p123 = por %p121, %p122
    %p124 = scmp.ne.s32.totalorder %s116, %s119
    %p125 = scmp.eq.s32.totalorder %s11, 0
    %p126 = por %p124, %p125
    %p127 = scmp.ne.s32.totalorder %s116, %s119
    %p128 = scmp.eq.s32.totalorder %s16, 1
    %p129 = por %p127, %p128
    %p130 = scmp.ne.s32.totalorder %s119, %s120
    %p131 = scmp.eq.s32.totalorder %s16, 0
    %p132 = por %p130, %p131
    %p133 = scmp.ne.s32.totalorder %s119, %s120
    %p134 = scmp.eq.s32.totalorder %s17, 1
    %p135 = por %p133, %p134
    %p137 = scmp.ne.s32.totalorder %s120, %s136
    %p138 = scmp.eq.s32.totalorder %s17, 0
    %p139 = por %p137, %p138
    %s140 = sadd.s32 %s18, %s19
    %s141 = sadd.s32 %s30, %s26
    %s142 = ssub.s32 %s140, %s141
    %p143 = scmp.eq.s32.totalorder %s142, 0
    %s145 = sadd.s32 %s144, 1
    %s146 = scalar_select %p143, %s144, %s145
    %p149 = pneg %p143
    %p150 = scmp.eq.s32.totalorder %s11, 1
    %p151 = por %p149, %p150
    %p152 = scmp.ne.s32.totalorder %s144, %s147
    %p153 = scmp.eq.s32.totalorder %s11, 0
    %p154 = por %p152, %p153
    %p155 = scmp.ne.s32.totalorder %s144, %s147
    %p156 = scmp.eq.s32.totalorder %s16, 1
    %p157 = por %p155, %p156
    %p158 = scmp.ne.s32.totalorder %s147, %s148
    %p159 = scmp.eq.s32.totalorder %s16, 0
    %p160 = por %p158, %p159
    %p161 = scmp.ne.s32.totalorder %s147, %s148
    %p162 = scmp.eq.s32.totalorder %s17, 1
    %p163 = por %p161, %p162
    %p165 = scmp.ne.s32.totalorder %s148, %s164
    %p166 = scmp.eq.s32.totalorder %s17, 0
    %p167 = por %p165, %p166
    %p168 = scmp.le.s32.totalorder 1, %s11
    %p169 = scmp.lt.s32.totalorder %s11, 3
    %p170 = pnand %p168, %p169
    %p171 = pneg %p170
    // Predicated region
    $region9: #{up_forward.6} parent=5 // pred_check
      _
    $region10: #{up_forward.6} parent=5 // pred_check_branch
      %173 = sbr.rel (%p170) target = $region12
    $region11: #{up_forward.6} parent=5 // pred_region
      %s174 = ssub.s32 %s11, 1
      // Predicated region
      $region13: #{up_forward.6} parent=11 // pred_check
        %p175 = pneg %p104
      $region14: #{up_forward.6} parent=11 // pred_check_branch
        %177 = sbr.rel (%p175) target = $region16
      $region15: #{up_forward.6} parent=11 // pred_region
        _
      $region16: #{up_forward.6} parent=11 // pred_fallthru
        _
    $region12: #{up_forward.6} parent=5 // pred_fallthru
      _
    %p178 = scmp.lt.s32.totalorder %s11, 2
    // Predicated region
    $region17: #{up_forward.6} parent=5 // pred_check
      %p179 = pneg %p178
    $region18: #{up_forward.6} parent=5 // pred_check_branch
      %181 = sbr.rel (%p179) target = $region20
    $region19: #{up_forward.6} parent=5 // pred_region
      // Predicated region
      $region21: #{up_forward.6} parent=19 // pred_check
        %p182 = pneg %p45
      $region22: #{up_forward.6} parent=19 // pred_check_branch
        %184 = sbr.rel (%p182) target = $region24
      $region23: #{up_forward.6} parent=19 // pred_region
        %s185 = smul.u32 16, %s19
        %s186 = ssub.s32 18, %s185
        %p187 = scmp.lt.s32.totalorder %s186, 16
        %s188 = scalar_select %p187, %s186, 16
        %s189 = smul.u32 4, %s188
        %s190 = smul.u32 %s189, 3
        %p191 = scmp.lt.s32.totalorder %s18, 1
        %s192 = scalar_select %p191, %s18, 1
        %p193 = scmp.lt.s32.totalorder %s185, 17
        %s194 = scalar_select %p193, %s185, 17
        %s195 = smul.addr %s194, 3
        %s196 = smul.addr %s192, 54
        %s197 = sadd.s32 %s195, %s196
        %s198 = smul.addr %s197, 4
        %s199 = scalar_lea.vmem %s0, %s198
        %s200 = smul.u32 16, %s19
        %s201 = ssub.s32 18, %s200
        %p202 = scmp.lt.s32.totalorder %s201, 16
        %s203 = scalar_select %p202, %s201, 16
        %s204 = smul.u32 4, %s203
        %s205 = smul.u32 %s204, 3
      $region24: #{up_forward.6} parent=19 // pred_fallthru
        _
      // Predicated region
      $region25: #{up_forward.6} parent=19 // pred_check
        %p206 = pneg %p77
      $region26: #{up_forward.6} parent=19 // pred_check_branch
        %208 = sbr.rel (%p206) target = $region28
      $region27: #{up_forward.6} parent=19 // pred_region
        %s209 = sadd.s32 %s19, 1
        %s210 = smul.u32 %s209, 8
        %s211 = smul.u32 2, %s210
        %p212 = scmp.lt.s32.totalorder %s18, 1
        %s213 = scalar_select %p212, %s18, 1
        %p214 = scmp.lt.s32.totalorder %s211, 17
        %s215 = scalar_select %p214, %s211, 17
        %s216 = smul.addr %s215, 3
        %s217 = smul.addr %s213, 54
        %s218 = sadd.s32 %s216, %s217
        %s219 = smul.addr %s218, 4
        %s220 = scalar_lea.vmem %s1, %s219
        %s221 = sadd.s32 %s19, 1
        %s222 = smul.u32 %s221, 8
        %s223 = smul.u32 2, %s222
      $region28: #{up_forward.6} parent=19 // pred_fallthru
        _
    $region20: #{up_forward.6} parent=5 // pred_fallthru
      _
    %p224 = scmp.le.s32.totalorder 1, %s11
    %p225 = scmp.lt.s32.totalorder %s11, 3
    %p226 = pnand %p224, %p225
    %p227 = pneg %p226
    // Predicated region
    $region29: #{up_forward.6} parent=5 // pred_check
      _
    $region30: #{up_forward.6} parent=5 // pred_check_branch
      %229 = sbr.rel (%p226) target = $region32
    $region31: #{up_forward.6} parent=5 // pred_region
      %s230 = ssub.s32 %s11, 1
      %s231 = smul.u32 16, %s21
      %s232 = ssub.s32 18, %s231
      %p233 = scmp.lt.s32.totalorder %s232, 16
      %s234 = scalar_select %p233, %s232, 16
      %s235 = smul.u32 4, %s234
      %s236 = smul.u32 %s235, 3
      %p237 = scmp.lt.s32.totalorder %s20, 1
      %s238 = scalar_select %p237, %s20, 1
      %p239 = scmp.lt.s32.totalorder %s231, 17
      %s240 = scalar_select %p239, %s231, 17
      %s241 = smul.addr %s240, 3
      %s242 = smul.addr %s238, 54
      %s243 = sadd.s32 %s241, %s242
      %s244 = smul.addr %s243, 4
      %s245 = scalar_lea.vmem %s0, %s244
      %p246 = pneg %p51
      %p247 = pneg %p48
      %s248 = sadd.s32 %s21, 1
      %s249 = smul.u32 %s248, 8
      %s250 = smul.u32 2, %s249
      %p251 = scmp.lt.s32.totalorder %s20, 1
      %s252 = scalar_select %p251, %s20, 1
      %p253 = scmp.lt.s32.totalorder %s250, 17
      %s254 = scalar_select %p253, %s250, 17
      %s255 = smul.addr %s254, 3
      %s256 = smul.addr %s252, 54
      %s257 = sadd.s32 %s255, %s256
      %s258 = smul.addr %s257, 4
      %s259 = scalar_lea.vmem %s1, %s258
      %p260 = pneg %p83
      %p261 = pneg %p80
      %p262 = pneg %p104
      %p263 = pneg %p101
      %p264 = pneg %p132
      %p265 = pneg %p129
      %s266 = smul.u32 16, %s21
      %p267 = scmp.lt.s32.totalorder %s20, 1
      %s268 = scalar_select %p267, %s20, 1
      %p269 = scmp.lt.s32.totalorder %s266, 15
      %s270 = scalar_select %p269, %s266, 15
      %s271 = smul.addr %s270, 2
      %s272 = smul.addr %s268, 32
      %s273 = sadd.s32 %s271, %s272
      %s274 = smul.addr %s273, 4
      %s275 = scalar_lea.vmem %s3, %s274
      %p276 = pneg %p160
      %p277 = pneg %p157
      %s278 = sadd.s32 %s20, %s21
      %p279 = scmp.lt.s32.totalorder %s278, 1
      %s280 = scalar_select %p279, %s278, 1
      %s281 = smul.addr %s280, 2
      %s282 = scalar_lea.vmem %s4, %s281
      %s283 = smul.u32 16, %s21
      %s284 = ssub.s32 18, %s283
      %p285 = scmp.lt.s32.totalorder %s284, 16
      %s286 = scalar_select %p285, %s284, 16
      %s287 = smul.u32 4, %s286
      %s288 = smul.u32 %s287, 3
      %p289 = scmp.lt.s32.totalorder %s20, 1
      %s290 = scalar_select %p289, %s20, 1
      %p291 = scmp.lt.s32.totalorder %s283, 17
      %s292 = scalar_select %p291, %s283, 17
      %s293 = smul.addr %s292, 3
      %s294 = smul.addr %s290, 54
      %s295 = sadd.s32 %s293, %s294
      %s296 = smul.addr %s295, 4
      %s297 = scalar_lea.vmem %s0, %s296
      %s298 = smul.u32 16, %s21
      %s299 = ssub.s32 18, %s298
      %p300 = scmp.lt.s32.totalorder %s299, 16
      %s301 = scalar_select %p300, %s299, 16
      %s302 = smul.u32 4, %s301
      %s303 = smul.u32 %s302, 3
      %s304 = sadd.s32 %s21, 1
      %s305 = smul.u32 %s304, 8
      %s306 = smul.u32 2, %s305
      %p307 = scmp.lt.s32.totalorder %s20, 1
      %s308 = scalar_select %p307, %s20, 1
      %p309 = scmp.lt.s32.totalorder %s306, 17
      %s310 = scalar_select %p309, %s306, 17
      %s311 = smul.addr %s310, 3
      %s312 = smul.addr %s308, 54
      %s313 = sadd.s32 %s311, %s312
      %s314 = smul.addr %s313, 4
      %s315 = scalar_lea.vmem %s1, %s314
      %s316 = sadd.s32 %s21, 1
      %s317 = smul.u32 %s316, 8
      %s318 = smul.u32 2, %s317
      %s319 = smul.u32 16, %s21
      %p320 = scmp.lt.s32.totalorder %s20, 1
      %s321 = scalar_select %p320, %s20, 1
      %p322 = scmp.lt.s32.totalorder %s319, 15
      %s323 = scalar_select %p322, %s319, 15
      %s324 = smul.addr %s323, 2
      %s325 = smul.addr %s321, 32
      %s326 = sadd.s32 %s324, %s325
      %s327 = smul.addr %s326, 4
      %s328 = scalar_lea.vmem %s3, %s327
      %s329 = smul.u32 16, %s21
      %s330 = sadd.s32 %s20, %s21
      %p331 = scmp.lt.s32.totalorder %s330, 1
      %s332 = scalar_select %p331, %s330, 1
      %s333 = smul.addr %s332, 2
      %s334 = scalar_lea.vmem %s4, %s333
      %s335 = sadd.s32 %s20, %s21
      %v336 = vld [vmem:[%s297] sm:$0xf]
      %v337 = vld [vmem:[%s297 + $0x4] sm:$0xf]
      %v338 = vld [vmem:[%s297 + $0x8] sm:$0x1]
      %v339 = vld [vmem:[%s297 + $0xc] sm:$0xf]
      %v340 = vld [vmem:[%s297 + $0x10] sm:$0xf]
      %v341 = vld [vmem:[%s297 + $0x14] sm:$0x1]
      %v342 = vld [vmem:[%s297 + $0x18] sm:$0xf]
      %v343 = vld [vmem:[%s297 + $0x1c] sm:$0xf]
      %v344 = vld [vmem:[%s297 + $0x20] sm:$0x1]
      %v345 = vld [vmem:[%s297 + $0x24] sm:$0xf]
      %v346 = vld [vmem:[%s297 + $0x28] sm:$0xf]
      %v347 = vld [vmem:[%s297 + $0x2c] sm:$0x1]
      %v348 = vld [vmem:[%s297 + $0x30] sm:$0xf]
      %v349 = vld [vmem:[%s297 + $0x34] sm:$0xf]
      %v350 = vld [vmem:[%s297 + $0x38] sm:$0x1]
      %v351 = vld [vmem:[%s297 + $0x3c] sm:$0xf]
      %v352 = vld [vmem:[%s297 + $0x40] sm:$0xf]
      %v353 = vld [vmem:[%s297 + $0x44] sm:$0x1]
      %v354 = vld [vmem:[%s297 + $0x48] sm:$0xf]
      %v355 = vld [vmem:[%s297 + $0x4c] sm:$0xf]
      %v356 = vld [vmem:[%s297 + $0x50] sm:$0x1]
      %v357 = vld [vmem:[%s297 + $0x54] sm:$0xf]
      %v358 = vld [vmem:[%s297 + $0x58] sm:$0xf]
      %v359 = vld [vmem:[%s297 + $0x5c] sm:$0x1]
      %v360 = vld [vmem:[%s297 + $0x60] sm:$0xf]
      %v361 = vld [vmem:[%s297 + $0x64] sm:$0xf]
      %v362 = vld [vmem:[%s297 + $0x68] sm:$0x1]
      %v363 = vld [vmem:[%s297 + $0x6c] sm:$0xf]
      %v364 = vld [vmem:[%s297 + $0x70] sm:$0xf]
      %v365 = vld [vmem:[%s297 + $0x74] sm:$0x1]
      %v366 = vld [vmem:[%s297 + $0x78] sm:$0xf]
      %v367 = vld [vmem:[%s297 + $0x7c] sm:$0xf]
      %v368 = vld [vmem:[%s297 + $0x80] sm:$0x1]
      %v369 = vld [vmem:[%s297 + $0x84] sm:$0xf]
      %v370 = vld [vmem:[%s297 + $0x88] sm:$0xf]
      %v371 = vld [vmem:[%s297 + $0x8c] sm:$0x1]
      %v372 = vld [vmem:[%s297 + $0x90] sm:$0xf]
      %v373 = vld [vmem:[%s297 + $0x94] sm:$0xf]
      %v374 = vld [vmem:[%s297 + $0x98] sm:$0x1]
      %v375 = vld [vmem:[%s297 + $0x9c] sm:$0xf]
      %v376 = vld [vmem:[%s297 + $0xa0] sm:$0xf]
      %v377 = vld [vmem:[%s297 + $0xa4] sm:$0x1]
      %v378 = vld [vmem:[%s297 + $0xa8] sm:$0xf]
      %v379 = vld [vmem:[%s297 + $0xac] sm:$0xf]
      %v380 = vld [vmem:[%s297 + $0xb0] sm:$0x1]
      %v381 = vld [vmem:[%s297 + $0xb4] sm:$0xf]
      %v382 = vld [vmem:[%s297 + $0xb8] sm:$0xf]
      %v383 = vld [vmem:[%s297 + $0xbc] sm:$0x1]
      %v384 = vld [vmem:[%s315] sm:$0xf]
      %v385 = vld [vmem:[%s315 + $0x4] sm:$0xf]
      %v386 = vld [vmem:[%s315 + $0x8] sm:$0x1]
      %v387 = vld [vmem:[%s315 + $0xc] sm:$0xf]
      %v388 = vld [vmem:[%s315 + $0x10] sm:$0xf]
      %v389 = vld [vmem:[%s315 + $0x14] sm:$0x1]
      %v390 = vld [vmem:[%s2] sm:$0xf]
      %v391 = vld [vmem:[%s2 + $0x4] sm:$0xf]
      %v392 = vld [vmem:[%s2 + $0x8] sm:$0xf]
      %v393 = vld [vmem:[%s2 + $0xc] sm:$0xf]
      %v394 = vld [vmem:[%s2 + $0x10] sm:$0xf]
      %v395 = vld [vmem:[%s2 + $0x14] sm:$0xf]
      %v396 = vld [vmem:[%s2 + $0x18] sm:$0xf]
      %v397 = vld [vmem:[%s2 + $0x1c] sm:$0xf]
      %v398 = vld [vmem:[%s2 + $0x20] sm:$0xf]
      %v399 = vld [vmem:[%s2 + $0x24] sm:$0xf]
      %v400 = vld [vmem:[%s2 + $0x28] sm:$0xf]
      %v401 = vld [vmem:[%s2 + $0x2c] sm:$0xf]
      %v402 = vld [vmem:[%s2 + $0x30] sm:$0xf]
      %v403 = vld [vmem:[%s2 + $0x34] sm:$0xf]
      %v404 = vld [vmem:[%s2 + $0x38] sm:$0xf]
      %v405 = vld [vmem:[%s2 + $0x3c] sm:$0xf]
      %v406 = vld [vmem:[%s2 + $0x40] sm:$0xf]
      %v407 = vld [vmem:[%s2 + $0x44] sm:$0xf]
      %v408 = vld [vmem:[%s2 + $0x48] sm:$0xf]
      %v409 = vld [vmem:[%s2 + $0x4c] sm:$0xf]
      %v410 = vld [vmem:[%s2 + $0x50] sm:$0xf]
      %v411 = vld [vmem:[%s2 + $0x54] sm:$0xf]
      %v412 = vld [vmem:[%s2 + $0x58] sm:$0xf]
      %v413 = vld [vmem:[%s2 + $0x5c] sm:$0xf]
      %v414 = vld [vmem:[%s2 + $0x60] sm:$0xf]
      %v415 = vld [vmem:[%s2 + $0x64] sm:$0xf]
      %v416 = vld [vmem:[%s2 + $0x68] sm:$0xf]
      %v417 = vld [vmem:[%s2 + $0x6c] sm:$0xf]
      %v418 = vld [vmem:[%s2 + $0x70] sm:$0xf]
      %v419 = vld [vmem:[%s2 + $0x74] sm:$0xf]
      %v420 = vld [vmem:[%s2 + $0x78] sm:$0xf]
      %v421 = vld [vmem:[%s2 + $0x7c] sm:$0xf]
      %v422 = vld [vmem:[%s2 + $0x80] sm:$0xf]
      %v423 = vld [vmem:[%s2 + $0x84] sm:$0xf]
      %v424 = vld [vmem:[%s2 + $0x88] sm:$0xf]
      %v425 = vld [vmem:[%s2 + $0x8c] sm:$0xf]
      %v426 = vld [vmem:[%s2 + $0x90] sm:$0xf]
      %v427 = vld [vmem:[%s2 + $0x94] sm:$0xf]
      %v428 = vld [vmem:[%s2 + $0x98] sm:$0xf]
      %v429 = vld [vmem:[%s2 + $0x9c] sm:$0xf]
      %v430 = vld [vmem:[%s2 + $0xa0] sm:$0xf]
      %v431 = vld [vmem:[%s2 + $0xa4] sm:$0xf]
      %v432 = vld [vmem:[%s2 + $0xa8] sm:$0xf]
      %v433 = vld [vmem:[%s2 + $0xac] sm:$0xf]
      %v434 = vld [vmem:[%s2 + $0xb0] sm:$0xf]
      %v435 = vld [vmem:[%s2 + $0xb4] sm:$0xf]
      %v436 = vld [vmem:[%s2 + $0xb8] sm:$0xf]
      %v437 = vld [vmem:[%s2 + $0xbc] sm:$0xf]
      %v438 = vld [vmem:[%s2 + $0xc0] sm:$0xf]
      %v439 = vld [vmem:[%s2 + $0xc4] sm:$0xf]
      %v440 = vld [vmem:[%s2 + $0xc8] sm:$0xf]
      %v441 = vld [vmem:[%s2 + $0xcc] sm:$0xf]
      %v442 = vld [vmem:[%s2 + $0xd0] sm:$0xf]
      %v443 = vld [vmem:[%s2 + $0xd4] sm:$0xf]
      %v444 = vld [vmem:[%s2 + $0xd8] sm:$0xf]
      %v445 = vld [vmem:[%s2 + $0xdc] sm:$0xf]
      %v446 = vld [vmem:[%s2 + $0xe0] sm:$0xf]
      %v447 = vld [vmem:[%s2 + $0xe4] sm:$0xf]
      %v448 = vld [vmem:[%s2 + $0xe8] sm:$0xf]
      %v449 = vld [vmem:[%s2 + $0xec] sm:$0xf]
      %v450 = vld [vmem:[%s2 + $0xf0] sm:$0xf]
      %v451 = vld [vmem:[%s2 + $0xf4] sm:$0xf]
      %v452 = vld [vmem:[%s2 + $0xf8] sm:$0xf]
      %v453 = vld [vmem:[%s2 + $0xfc] sm:$0xf]
      %v454 = vld [vmem:[%s2 + $0x100] sm:$0xf]
      %v455 = vld [vmem:[%s2 + $0x104] sm:$0xf]
      %v456 = vld [vmem:[%s2 + $0x108] sm:$0xf]
      %v457 = vld [vmem:[%s2 + $0x10c] sm:$0xf]
      %v458 = vld [vmem:[%s2 + $0x110] sm:$0xf]
      %v459 = vld [vmem:[%s2 + $0x114] sm:$0xf]
      %v460 = vld [vmem:[%s2 + $0x118] sm:$0xf]
      %v461 = vld [vmem:[%s2 + $0x11c] sm:$0xf]
      %v462 = vld [vmem:[%s2 + $0x120] sm:$0xf]
      %v463 = vld [vmem:[%s2 + $0x124] sm:$0xf]
      %v464 = vld [vmem:[%s2 + $0x128] sm:$0xf]
      %v465 = vld [vmem:[%s2 + $0x12c] sm:$0xf]
      %v466 = vld [vmem:[%s2 + $0x130] sm:$0xf]
      %v467 = vld [vmem:[%s2 + $0x134] sm:$0xf]
      %v468 = vld [vmem:[%s2 + $0x138] sm:$0xf]
      %v469 = vld [vmem:[%s2 + $0x13c] sm:$0xf]
      %v470 = vld [vmem:[%s2 + $0x140] sm:$0xf]
      %v471 = vld [vmem:[%s2 + $0x144] sm:$0xf]
      %v472 = vld [vmem:[%s2 + $0x148] sm:$0xf]
      %v473 = vld [vmem:[%s2 + $0x14c] sm:$0xf]
      %v474 = vld [vmem:[%s2 + $0x150] sm:$0xf]
      %v475 = vld [vmem:[%s2 + $0x154] sm:$0xf]
      %v476 = vld [vmem:[%s2 + $0x158] sm:$0xf]
      %v477 = vld [vmem:[%s2 + $0x15c] sm:$0xf]
      %v478 = vld [vmem:[%s2 + $0x160] sm:$0xf]
      %v479 = vld [vmem:[%s2 + $0x164] sm:$0xf]
      %v480 = vld [vmem:[%s2 + $0x168] sm:$0xf]
      %v481 = vld [vmem:[%s2 + $0x16c] sm:$0xf]
      %v482 = vld [vmem:[%s2 + $0x170] sm:$0xf]
      %v483 = vld [vmem:[%s2 + $0x174] sm:$0xf]
      %v484 = vld [vmem:[%s2 + $0x178] sm:$0xf]
      %v485 = vld [vmem:[%s2 + $0x17c] sm:$0xf]
      %v486 = vld [vmem:[%s2 + $0x180] sm:$0xf]
      %v487 = vld [vmem:[%s2 + $0x184] sm:$0xf]
      %v488 = vld [vmem:[%s2 + $0x188] sm:$0xf]
      %v489 = vld [vmem:[%s2 + $0x18c] sm:$0xf]
      %v490 = vld [vmem:[%s2 + $0x190] sm:$0xf]
      %v491 = vld [vmem:[%s2 + $0x194] sm:$0xf]
      %v492 = vld [vmem:[%s2 + $0x198] sm:$0xf]
      %v493 = vld [vmem:[%s2 + $0x19c] sm:$0xf]
      %v494 = vld [vmem:[%s2 + $0x1a0] sm:$0xf]
      %v495 = vld [vmem:[%s2 + $0x1a4] sm:$0xf]
      %v496 = vld [vmem:[%s2 + $0x1a8] sm:$0xf]
      %v497 = vld [vmem:[%s2 + $0x1ac] sm:$0xf]
      %v498 = vld [vmem:[%s2 + $0x1b0] sm:$0xf]
      %v499 = vld [vmem:[%s2 + $0x1b4] sm:$0xf]
      %v500 = vld [vmem:[%s2 + $0x1b8] sm:$0xf]
      %v501 = vld [vmem:[%s2 + $0x1bc] sm:$0xf]
      %v502 = vld [vmem:[%s2 + $0x1c0] sm:$0xf]
      %v503 = vld [vmem:[%s2 + $0x1c4] sm:$0xf]
      %v504 = vld [vmem:[%s2 + $0x1c8] sm:$0xf]
      %v505 = vld [vmem:[%s2 + $0x1cc] sm:$0xf]
      %v506 = vld [vmem:[%s2 + $0x1d0] sm:$0xf]
      %v507 = vld [vmem:[%s2 + $0x1d4] sm:$0xf]
      %v508 = vld [vmem:[%s2 + $0x1d8] sm:$0xf]
      %v509 = vld [vmem:[%s2 + $0x1dc] sm:$0xf]
      %v510 = vld [vmem:[%s2 + $0x1e0] sm:$0xf]
      %v511 = vld [vmem:[%s2 + $0x1e4] sm:$0xf]
      %v512 = vld [vmem:[%s2 + $0x1e8] sm:$0xf]
      %v513 = vld [vmem:[%s2 + $0x1ec] sm:$0xf]
      %v514 = vld [vmem:[%s2 + $0x1f0] sm:$0xf]
      %v515 = vld [vmem:[%s2 + $0x1f4] sm:$0xf]
      %v516 = vld [vmem:[%s2 + $0x1f8] sm:$0xf]
      %v517 = vld [vmem:[%s2 + $0x1fc] sm:$0xf]
      %v518 = vld [vmem:[%s2 + $0x200] sm:$0xf]
      %v519 = vld [vmem:[%s2 + $0x204] sm:$0xf]
      %v520 = vld [vmem:[%s2 + $0x208] sm:$0xf]
      %v521 = vld [vmem:[%s2 + $0x20c] sm:$0xf]
      %v522 = vld [vmem:[%s2 + $0x210] sm:$0xf]
      %v523 = vld [vmem:[%s2 + $0x214] sm:$0xf]
      %v524 = vld [vmem:[%s2 + $0x218] sm:$0xf]
      %v525 = vld [vmem:[%s2 + $0x21c] sm:$0xf]
      %v526 = vld [vmem:[%s2 + $0x220] sm:$0xf]
      %v527 = vld [vmem:[%s2 + $0x224] sm:$0xf]
      %v528 = vld [vmem:[%s2 + $0x228] sm:$0xf]
      %v529 = vld [vmem:[%s2 + $0x22c] sm:$0xf]
      %v530 = vld [vmem:[%s2 + $0x230] sm:$0xf]
      %v531 = vld [vmem:[%s2 + $0x234] sm:$0xf]
      %v532 = vld [vmem:[%s2 + $0x238] sm:$0xf]
      %v533 = vld [vmem:[%s2 + $0x23c] sm:$0xf]
      %vm534 = vsmask.f32 3328
      %vm535 = vsmask.f32 7440
      %vm536 = vmor %vm534, %vm535
      %v538 = vshrl.u32 %v336, 16
      %v540 = vrot.slane %v538, 4
      %v541 = vshll.u32 %v336, 16
      %v543 = vrot.slane %v541, 5
      %v544 = vor.u32 %v540, %v543
      %v545 = vrot.slane %v544, 4
      %v547 = vshll.u32 %v337, 16
      %v549 = vrot.slane %v547, 5
      %v550 = vsel %vm536, %v545, %v549
      %v551 = vshrl.u32 %v337, 16
      %v553 = vrot.slane %v551, 4
      %v554 = vor.u32 %v553, %v549
      %v555 = vrot.slane %v554, 4
      %v557 = vshll.u32 %v338, 16
      %v559 = vrot.slane %v557, 5
      %v560 = vsel %vm536, %v555, %v559
      %v562 = vshrl.u32 %v339, 16
      %v564 = vrot.slane %v562, 4
      %v565 = vshll.u32 %v339, 16
      %v567 = vrot.slane %v565, 5
      %v568 = vor.u32 %v564, %v567
      %v569 = vrot.slane %v568, 4
      %v571 = vshll.u32 %v340, 16
      %v573 = vrot.slane %v571, 5
      %v574 = vsel %vm536, %v569, %v573
      %v575 = vshrl.u32 %v340, 16
      %v577 = vrot.slane %v575, 4
      %v578 = vor.u32 %v577, %v573
      %v579 = vrot.slane %v578, 4
      %v581 = vshll.u32 %v341, 16
      %v583 = vrot.slane %v581, 5
      %v584 = vsel %vm536, %v579, %v583
      %v586 = vshrl.u32 %v342, 16
      %v588 = vrot.slane %v586, 4
      %v589 = vshll.u32 %v342, 16
      %v591 = vrot.slane %v589, 5
      %v592 = vor.u32 %v588, %v591
      %v593 = vrot.slane %v592, 4
      %v595 = vshll.u32 %v343, 16
      %v597 = vrot.slane %v595, 5
      %v598 = vsel %vm536, %v593, %v597
      %v599 = vshrl.u32 %v343, 16
      %v601 = vrot.slane %v599, 4
      %v602 = vor.u32 %v601, %v597
      %v603 = vrot.slane %v602, 4
      %v605 = vshll.u32 %v344, 16
      %v607 = vrot.slane %v605, 5
      %v608 = vsel %vm536, %v603, %v607
      %v610 = vshrl.u32 %v345, 16
      %v612 = vrot.slane %v610, 4
      %v613 = vshll.u32 %v345, 16
      %v615 = vrot.slane %v613, 5
      %v616 = vor.u32 %v612, %v615
      %v617 = vrot.slane %v616, 4
      %v619 = vshll.u32 %v346, 16
      %v621 = vrot.slane %v619, 5
      %v622 = vsel %vm536, %v617, %v621
      %v623 = vshrl.u32 %v346, 16
      %v625 = vrot.slane %v623, 4
      %v626 = vor.u32 %v625, %v621
      %v627 = vrot.slane %v626, 4
      %v629 = vshll.u32 %v347, 16
      %v631 = vrot.slane %v629, 5
      %v632 = vsel %vm536, %v627, %v631
      %v634 = vshrl.u32 %v348, 16
      %v636 = vrot.slane %v634, 4
      %v637 = vshll.u32 %v348, 16
      %v639 = vrot.slane %v637, 5
      %v640 = vor.u32 %v636, %v639
      %v641 = vrot.slane %v640, 4
      %v643 = vshll.u32 %v349, 16
      %v645 = vrot.slane %v643, 5
      %v646 = vsel %vm536, %v641, %v645
      %v647 = vshrl.u32 %v349, 16
      %v649 = vrot.slane %v647, 4
      %v650 = vor.u32 %v649, %v645
      %v651 = vrot.slane %v650, 4
      %v653 = vshll.u32 %v350, 16
      %v655 = vrot.slane %v653, 5
      %v656 = vsel %vm536, %v651, %v655
      %v658 = vshrl.u32 %v351, 16
      %v660 = vrot.slane %v658, 4
      %v661 = vshll.u32 %v351, 16
      %v663 = vrot.slane %v661, 5
      %v664 = vor.u32 %v660, %v663
      %v665 = vrot.slane %v664, 4
      %v667 = vshll.u32 %v352, 16
      %v669 = vrot.slane %v667, 5
      %v670 = vsel %vm536, %v665, %v669
      %v671 = vshrl.u32 %v352, 16
      %v673 = vrot.slane %v671, 4
      %v674 = vor.u32 %v673, %v669
      %v675 = vrot.slane %v674, 4
      %v677 = vshll.u32 %v353, 16
      %v679 = vrot.slane %v677, 5
      %v680 = vsel %vm536, %v675, %v679
      %v682 = vshrl.u32 %v354, 16
      %v684 = vrot.slane %v682, 4
      %v685 = vshll.u32 %v354, 16
      %v687 = vrot.slane %v685, 5
      %v688 = vor.u32 %v684, %v687
      %v689 = vrot.slane %v688, 4
      %v691 = vshll.u32 %v355, 16
      %v693 = vrot.slane %v691, 5
      %v694 = vsel %vm536, %v689, %v693
      %v695 = vshrl.u32 %v355, 16
      %v697 = vrot.slane %v695, 4
      %v698 = vor.u32 %v697, %v693
      %v699 = vrot.slane %v698, 4
      %v701 = vshll.u32 %v356, 16
      %v703 = vrot.slane %v701, 5
      %v704 = vsel %vm536, %v699, %v703
      %v706 = vshrl.u32 %v357, 16
      %v708 = vrot.slane %v706, 4
      %v709 = vshll.u32 %v357, 16
      %v711 = vrot.slane %v709, 5
      %v712 = vor.u32 %v708, %v711
      %v713 = vrot.slane %v712, 4
      %v715 = vshll.u32 %v358, 16
      %v717 = vrot.slane %v715, 5
      %v718 = vsel %vm536, %v713, %v717
      %v719 = vshrl.u32 %v358, 16
      %v721 = vrot.slane %v719, 4
      %v722 = vor.u32 %v721, %v717
      %v723 = vrot.slane %v722, 4
      %v725 = vshll.u32 %v359, 16
      %v727 = vrot.slane %v725, 5
      %v728 = vsel %vm536, %v723, %v727
      %v730 = vshrl.u32 %v360, 16
      %v732 = vrot.slane %v730, 4
      %v733 = vshll.u32 %v360, 16
      %v735 = vrot.slane %v733, 5
      %v736 = vor.u32 %v732, %v735
      %v737 = vrot.slane %v736, 4
      %v739 = vshll.u32 %v361, 16
      %v741 = vrot.slane %v739, 5
      %v742 = vsel %vm536, %v737, %v741
      %v743 = vshrl.u32 %v361, 16
      %v745 = vrot.slane %v743, 4
      %v746 = vor.u32 %v745, %v741
      %v747 = vrot.slane %v746, 4
      %v749 = vshll.u32 %v362, 16
      %v751 = vrot.slane %v749, 5
      %v752 = vsel %vm536, %v747, %v751
      %v754 = vshrl.u32 %v363, 16
      %v756 = vrot.slane %v754, 4
      %v757 = vshll.u32 %v363, 16
      %v759 = vrot.slane %v757, 5
      %v760 = vor.u32 %v756, %v759
      %v761 = vrot.slane %v760, 4
      %v763 = vshll.u32 %v364, 16
      %v765 = vrot.slane %v763, 5
      %v766 = vsel %vm536, %v761, %v765
      %v767 = vshrl.u32 %v364, 16
      %v769 = vrot.slane %v767, 4
      %v770 = vor.u32 %v769, %v765
      %v771 = vrot.slane %v770, 4
      %v773 = vshll.u32 %v365, 16
      %v775 = vrot.slane %v773, 5
      %v776 = vsel %vm536, %v771, %v775
      %v778 = vshrl.u32 %v366, 16
      %v780 = vrot.slane %v778, 4
      %v781 = vshll.u32 %v366, 16
      %v783 = vrot.slane %v781, 5
      %v784 = vor.u32 %v780, %v783
      %v785 = vrot.slane %v784, 4
      %v787 = vshll.u32 %v367, 16
      %v789 = vrot.slane %v787, 5
      %v790 = vsel %vm536, %v785, %v789
      %v791 = vshrl.u32 %v367, 16
      %v793 = vrot.slane %v791, 4
      %v794 = vor.u32 %v793, %v789
      %v795 = vrot.slane %v794, 4
      %v797 = vshll.u32 %v368, 16
      %v799 = vrot.slane %v797, 5
      %v800 = vsel %vm536, %v795, %v799
      %v802 = vshrl.u32 %v369, 16
      %v804 = vrot.slane %v802, 4
      %v805 = vshll.u32 %v369, 16
      %v807 = vrot.slane %v805, 5
      %v808 = vor.u32 %v804, %v807
      %v809 = vrot.slane %v808, 4
      %v811 = vshll.u32 %v370, 16
      %v813 = vrot.slane %v811, 5
      %v814 = vsel %vm536, %v809, %v813
      %v815 = vshrl.u32 %v370, 16
      %v817 = vrot.slane %v815, 4
      %v818 = vor.u32 %v817, %v813
      %v819 = vrot.slane %v818, 4
      %v821 = vshll.u32 %v371, 16
      %v823 = vrot.slane %v821, 5
      %v824 = vsel %vm536, %v819, %v823
      %v826 = vshrl.u32 %v372, 16
      %v828 = vrot.slane %v826, 4
      %v829 = vshll.u32 %v372, 16
      %v831 = vrot.slane %v829, 5
      %v832 = vor.u32 %v828, %v831
      %v833 = vrot.slane %v832, 4
      %v835 = vshll.u32 %v373, 16
      %v837 = vrot.slane %v835, 5
      %v838 = vsel %vm536, %v833, %v837
      %v839 = vshrl.u32 %v373, 16
      %v841 = vrot.slane %v839, 4
      %v842 = vor.u32 %v841, %v837
      %v843 = vrot.slane %v842, 4
      %v845 = vshll.u32 %v374, 16
      %v847 = vrot.slane %v845, 5
      %v848 = vsel %vm536, %v843, %v847
      %v850 = vshrl.u32 %v375, 16
      %v852 = vrot.slane %v850, 4
      %v853 = vshll.u32 %v375, 16
      %v855 = vrot.slane %v853, 5
      %v856 = vor.u32 %v852, %v855
      %v857 = vrot.slane %v856, 4
      %v859 = vshll.u32 %v376, 16
      %v861 = vrot.slane %v859, 5
      %v862 = vsel %vm536, %v857, %v861
      %v863 = vshrl.u32 %v376, 16
      %v865 = vrot.slane %v863, 4
      %v866 = vor.u32 %v865, %v861
      %v867 = vrot.slane %v866, 4
      %v869 = vshll.u32 %v377, 16
      %v871 = vrot.slane %v869, 5
      %v872 = vsel %vm536, %v867, %v871
      %v874 = vshrl.u32 %v378, 16
      %v876 = vrot.slane %v874, 4
      %v877 = vshll.u32 %v378, 16
      %v879 = vrot.slane %v877, 5
      %v880 = vor.u32 %v876, %v879
      %v881 = vrot.slane %v880, 4
      %v883 = vshll.u32 %v379, 16
      %v885 = vrot.slane %v883, 5
      %v886 = vsel %vm536, %v881, %v885
      %v887 = vshrl.u32 %v379, 16
      %v889 = vrot.slane %v887, 4
      %v890 = vor.u32 %v889, %v885
      %v891 = vrot.slane %v890, 4
      %v893 = vshll.u32 %v380, 16
      %v895 = vrot.slane %v893, 5
      %v896 = vsel %vm536, %v891, %v895
      %v898 = vshrl.u32 %v381, 16
      %v900 = vrot.slane %v898, 4
      %v901 = vshll.u32 %v381, 16
      %v903 = vrot.slane %v901, 5
      %v904 = vor.u32 %v900, %v903
      %v905 = vrot.slane %v904, 4
      %v907 = vshll.u32 %v382, 16
      %v909 = vrot.slane %v907, 5
      %v910 = vsel %vm536, %v905, %v909
      %v911 = vshrl.u32 %v382, 16
      %v913 = vrot.slane %v911, 4
      %v914 = vor.u32 %v913, %v909
      %v915 = vrot.slane %v914, 4
      %v917 = vshll.u32 %v383, 16
      %v919 = vrot.slane %v917, 5
      %v920 = vsel %vm536, %v915, %v919
      %v921 = vunpack.c.l.b16 %v550
      %v922 = vunpack.c.l.b16 %v560
      %v923 = vunpack.c.l.b16 %v574
      %v924 = vunpack.c.l.b16 %v584
      %v925 = vunpack.c.l.b16 %v598
      %v926 = vunpack.c.l.b16 %v608
      %v927 = vunpack.c.l.b16 %v622
      %v928 = vunpack.c.l.b16 %v632
      %v929 = vunpack.c.l.b16 %v646
      %v930 = vunpack.c.l.b16 %v656
      %v931 = vunpack.c.l.b16 %v670
      %v932 = vunpack.c.l.b16 %v680
      %v933 = vunpack.c.l.b16 %v694
      %v934 = vunpack.c.l.b16 %v704
      %v935 = vunpack.c.l.b16 %v718
      %v936 = vunpack.c.l.b16 %v728
      %v937 = vunpack.c.l.b16 %v742
      %v938 = vunpack.c.l.b16 %v752
      %v939 = vunpack.c.l.b16 %v766
      %v940 = vunpack.c.l.b16 %v776
      %v941 = vunpack.c.l.b16 %v790
      %v942 = vunpack.c.l.b16 %v800
      %v943 = vunpack.c.l.b16 %v814
      %v944 = vunpack.c.l.b16 %v824
      %v945 = vunpack.c.l.b16 %v838
      %v946 = vunpack.c.l.b16 %v848
      %v947 = vunpack.c.l.b16 %v862
      %v948 = vunpack.c.l.b16 %v872
      %v949 = vunpack.c.l.b16 %v886
      %v950 = vunpack.c.l.b16 %v896
      %v951 = vunpack.c.l.b16 %v910
      %v952 = vunpack.c.l.b16 %v920
      %v953 = vpack.c.b16 %v922, %v921
      %v954 = vpack.c.b16 %v924, %v923
      %v955 = vpack.c.b16 %v926, %v925
      %v956 = vpack.c.b16 %v928, %v927
      %v957 = vpack.c.b16 %v930, %v929
      %v958 = vpack.c.b16 %v932, %v931
      %v959 = vpack.c.b16 %v934, %v933
      %v960 = vpack.c.b16 %v936, %v935
      %v961 = vpack.c.b16 %v938, %v937
      %v962 = vpack.c.b16 %v940, %v939
      %v963 = vpack.c.b16 %v942, %v941
      %v964 = vpack.c.b16 %v944, %v943
      %v965 = vpack.c.b16 %v946, %v945
      %v966 = vpack.c.b16 %v948, %v947
      %v967 = vpack.c.b16 %v950, %v949
      %v968 = vpack.c.b16 %v952, %v951
      %v1001 = vunpack.c.l.b16 %v406
      %v1002 = vunpack.c.l.b16 %v407
      %v1003 = vunpack.c.l.b16 %v408
      %v1004 = vunpack.c.l.b16 %v409
      %v1005 = vunpack.c.l.b16 %v410
      %v1006 = vunpack.c.l.b16 %v411
      %v1007 = vunpack.c.l.b16 %v412
      %v1008 = vunpack.c.l.b16 %v413
      %v1009 = vunpack.c.l.b16 %v414
      %v1010 = vunpack.c.l.b16 %v415
      %v1011 = vunpack.c.l.b16 %v416
      %v1012 = vunpack.c.l.b16 %v417
      %v1013 = vunpack.c.l.b16 %v418
      %v1014 = vunpack.c.l.b16 %v419
      %v1015 = vunpack.c.l.b16 %v420
      %v1016 = vunpack.c.l.b16 %v421
      %v1017 = vpack.c.b16 %v1002, %v1001
      %v1018 = vpack.c.b16 %v1004, %v1003
      %v1019 = vpack.c.b16 %v1006, %v1005
      %v1020 = vpack.c.b16 %v1008, %v1007
      %v1021 = vpack.c.b16 %v1010, %v1009
      %v1022 = vpack.c.b16 %v1012, %v1011
      %v1023 = vpack.c.b16 %v1014, %v1013
      %v1024 = vpack.c.b16 %v1016, %v1015
      %1033 = vmatpush.bf16.msra.mxu0 %v1024
      %1034 = vmatpush.bf16.msra.mxu0 %v1023
      %1035 = vmatpush.bf16.msra.mxu0 %v1022
      %1036 = vmatpush.bf16.msra.mxu0 %v1021
      %1037 = vmatpush.bf16.msra.mxu0 %v1020
      %1038 = vmatpush.bf16.msra.mxu0 %v1019
      %1039 = vmatpush.bf16.msra.mxu0 %v1018
      %1040 = vmatpush.bf16.msra.mxu0 %v1017
      %1041 = vmatmul.bf16.gmra.mxu0 %v953
      %v1042 = vpop.f32.mrf.mxu0
      %v1043 = vadd.f32 0.0, %v1042
      %v1044 = vpop.f32.mrf.mxu0
      %v1045 = vadd.f32 0.0, %v1044
      %1046 = vmatmul.bf16.gmra.mxu0 %v954
      %v1047 = vpop.f32.mrf.mxu0
      %v1048 = vadd.f32 0.0, %v1047
      %v1049 = vpop.f32.mrf.mxu0
      %v1050 = vadd.f32 0.0, %v1049
      %1051 = vmatmul.bf16.gmra.mxu0 %v955
      %v1052 = vpop.f32.mrf.mxu0
      %v1053 = vadd.f32 0.0, %v1052
      %v1054 = vpop.f32.mrf.mxu0
      %v1055 = vadd.f32 0.0, %v1054
      %1056 = vmatmul.bf16.gmra.mxu0 %v956
      %v1057 = vpop.f32.mrf.mxu0
      %v1058 = vadd.f32 0.0, %v1057
      %v1059 = vpop.f32.mrf.mxu0
      %v1060 = vadd.f32 0.0, %v1059
      %1061 = vmatmul.bf16.gmra.mxu0 %v957
      %v1062 = vpop.f32.mrf.mxu0
      %v1063 = vadd.f32 0.0, %v1062
      %v1064 = vpop.f32.mrf.mxu0
      %v1065 = vadd.f32 0.0, %v1064
      %1066 = vmatmul.bf16.gmra.mxu0 %v958
      %v1067 = vpop.f32.mrf.mxu0
      %v1068 = vadd.f32 0.0, %v1067
      %v1069 = vpop.f32.mrf.mxu0
      %v1070 = vadd.f32 0.0, %v1069
      %1071 = vmatmul.bf16.gmra.mxu0 %v959
      %v1072 = vpop.f32.mrf.mxu0
      %v1073 = vadd.f32 0.0, %v1072
      %v1074 = vpop.f32.mrf.mxu0
      %v1075 = vadd.f32 0.0, %v1074
      %1076 = vmatmul.bf16.gmra.mxu0 %v960
      %v1077 = vpop.f32.mrf.mxu0
      %v1078 = vadd.f32 0.0, %v1077
      %v1079 = vpop.f32.mrf.mxu0
      %v1080 = vadd.f32 0.0, %v1079
      %1081 = vmatmul.bf16.gmra.mxu0 %v961
      %v1082 = vpop.f32.mrf.mxu0
      %v1083 = vadd.f32 0.0, %v1082
      %v1084 = vpop.f32.mrf.mxu0
      %v1085 = vadd.f32 0.0, %v1084
      %1086 = vmatmul.bf16.gmra.mxu0 %v962
      %v1087 = vpop.f32.mrf.mxu0
      %v1088 = vadd.f32 0.0, %v1087
      %v1089 = vpop.f32.mrf.mxu0
      %v1090 = vadd.f32 0.0, %v1089
      %1091 = vmatmul.bf16.gmra.mxu0 %v963
      %v1092 = vpop.f32.mrf.mxu0
      %v1093 = vadd.f32 0.0, %v1092
      %v1094 = vpop.f32.mrf.mxu0
      %v1095 = vadd.f32 0.0, %v1094
      %1096 = vmatmul.bf16.gmra.mxu0 %v964
      %v1097 = vpop.f32.mrf.mxu0
      %v1098 = vadd.f32 0.0, %v1097
      %v1099 = vpop.f32.mrf.mxu0
      %v1100 = vadd.f32 0.0, %v1099
      %1101 = vmatmul.bf16.gmra.mxu0 %v965
      %v1102 = vpop.f32.mrf.mxu0
      %v1103 = vadd.f32 0.0, %v1102
      %v1104 = vpop.f32.mrf.mxu0
      %v1105 = vadd.f32 0.0, %v1104
      %1106 = vmatmul.bf16.gmra.mxu0 %v966
      %v1107 = vpop.f32.mrf.mxu0
      %v1108 = vadd.f32 0.0, %v1107
      %v1109 = vpop.f32.mrf.mxu0
      %v1110 = vadd.f32 0.0, %v1109
      %1111 = vmatmul.bf16.gmra.mxu0 %v967
      %v1112 = vpop.f32.mrf.mxu0
      %v1113 = vadd.f32 0.0, %v1112
      %v1114 = vpop.f32.mrf.mxu0
      %v1115 = vadd.f32 0.0, %v1114
      %1116 = vmatmul.bf16.gmra.mxu0 %v968
      %v1117 = vpop.f32.mrf.mxu0
      %v1118 = vadd.f32 0.0, %v1117
      %v1119 = vpop.f32.mrf.mxu0
      %v1120 = vadd.f32 0.0, %v1119
      %1121 = vdwg.mxu0
      %v1154 = vunpack.c.l.b16 %v336
      %v1155 = vunpack.c.l.b16 %v337
      %v1156 = vunpack.c.l.b16 %v339
      %v1157 = vunpack.c.l.b16 %v340
      %v1158 = vunpack.c.l.b16 %v342
      %v1159 = vunpack.c.l.b16 %v343
      %v1160 = vunpack.c.l.b16 %v345
      %v1161 = vunpack.c.l.b16 %v346
      %v1162 = vunpack.c.l.b16 %v348
      %v1163 = vunpack.c.l.b16 %v349
      %v1164 = vunpack.c.l.b16 %v351
      %v1165 = vunpack.c.l.b16 %v352
      %v1166 = vunpack.c.l.b16 %v354
      %v1167 = vunpack.c.l.b16 %v355
      %v1168 = vunpack.c.l.b16 %v357
      %v1169 = vunpack.c.l.b16 %v358
      %v1170 = vunpack.c.l.b16 %v360
      %v1171 = vunpack.c.l.b16 %v361
      %v1172 = vunpack.c.l.b16 %v363
      %v1173 = vunpack.c.l.b16 %v364
      %v1174 = vunpack.c.l.b16 %v366
      %v1175 = vunpack.c.l.b16 %v367
      %v1176 = vunpack.c.l.b16 %v369
      %v1177 = vunpack.c.l.b16 %v370
      %v1178 = vunpack.c.l.b16 %v372
      %v1179 = vunpack.c.l.b16 %v373
      %v1180 = vunpack.c.l.b16 %v375
      %v1181 = vunpack.c.l.b16 %v376
      %v1182 = vunpack.c.l.b16 %v378
      %v1183 = vunpack.c.l.b16 %v379
      %v1184 = vunpack.c.l.b16 %v381
      %v1185 = vunpack.c.l.b16 %v382
      %v1186 = vpack.c.b16 %v1155, %v1154
      %v1187 = vpack.c.b16 %v1157, %v1156
      %v1188 = vpack.c.b16 %v1159, %v1158
      %v1189 = vpack.c.b16 %v1161, %v1160
      %v1190 = vpack.c.b16 %v1163, %v1162
      %v1191 = vpack.c.b16 %v1165, %v1164
      %v1192 = vpack.c.b16 %v1167, %v1166
      %v1193 = vpack.c.b16 %v1169, %v1168
      %v1194 = vpack.c.b16 %v1171, %v1170
      %v1195 = vpack.c.b16 %v1173, %v1172
      %v1196 = vpack.c.b16 %v1175, %v1174
      %v1197 = vpack.c.b16 %v1177, %v1176
      %v1198 = vpack.c.b16 %v1179, %v1178
      %v1199 = vpack.c.b16 %v1181, %v1180
      %v1200 = vpack.c.b16 %v1183, %v1182
      %v1201 = vpack.c.b16 %v1185, %v1184
      %v1234 = vunpack.c.l.b16 %v390
      %v1235 = vunpack.c.l.b16 %v391
      %v1236 = vunpack.c.l.b16 %v392
      %v1237 = vunpack.c.l.b16 %v393
      %v1238 = vunpack.c.l.b16 %v394
      %v1239 = vunpack.c.l.b16 %v395
      %v1240 = vunpack.c.l.b16 %v396
      %v1241 = vunpack.c.l.b16 %v397
      %v1242 = vunpack.c.l.b16 %v398
      %v1243 = vunpack.c.l.b16 %v399
      %v1244 = vunpack.c.l.b16 %v400
      %v1245 = vunpack.c.l.b16 %v401
      %v1246 = vunpack.c.l.b16 %v402
      %v1247 = vunpack.c.l.b16 %v403
      %v1248 = vunpack.c.l.b16 %v404
      %v1249 = vunpack.c.l.b16 %v405
      %v1250 = vpack.c.b16 %v1235, %v1234
      %v1251 = vpack.c.b16 %v1237, %v1236
      %v1252 = vpack.c.b16 %v1239, %v1238
      %v1253 = vpack.c.b16 %v1241, %v1240
      %v1254 = vpack.c.b16 %v1243, %v1242
      %v1255 = vpack.c.b16 %v1245, %v1244
      %v1256 = vpack.c.b16 %v1247, %v1246
      %v1257 = vpack.c.b16 %v1249, %v1248
      %1266 = vmatpush.bf16.msra.mxu0 %v1257
      %1267 = vmatpush.bf16.msra.mxu0 %v1256
      %1268 = vmatpush.bf16.msra.mxu0 %v1255
      %1269 = vmatpush.bf16.msra.mxu0 %v1254
      %1270 = vmatpush.bf16.msra.mxu0 %v1253
      %1271 = vmatpush.bf16.msra.mxu0 %v1252
      %1272 = vmatpush.bf16.msra.mxu0 %v1251
      %1273 = vmatpush.bf16.msra.mxu0 %v1250
      %1274 = vmatmul.bf16.gmra.mxu0 %v1186
      %v1275 = vpop.f32.mrf.mxu0
      %v1276 = vadd.f32 %v1043, %v1275
      %v1277 = vpop.f32.mrf.mxu0
      %v1278 = vadd.f32 %v1045, %v1277
      %1279 = vmatmul.bf16.gmra.mxu0 %v1187
      %v1280 = vpop.f32.mrf.mxu0
      %v1281 = vadd.f32 %v1048, %v1280
      %v1282 = vpop.f32.mrf.mxu0
      %v1283 = vadd.f32 %v1050, %v1282
      %1284 = vmatmul.bf16.gmra.mxu0 %v1188
      %v1285 = vpop.f32.mrf.mxu0
      %v1286 = vadd.f32 %v1053, %v1285
      %v1287 = vpop.f32.mrf.mxu0
      %v1288 = vadd.f32 %v1055, %v1287
      %1289 = vmatmul.bf16.gmra.mxu0 %v1189
      %v1290 = vpop.f32.mrf.mxu0
      %v1291 = vadd.f32 %v1058, %v1290
      %v1292 = vpop.f32.mrf.mxu0
      %v1293 = vadd.f32 %v1060, %v1292
      %1294 = vmatmul.bf16.gmra.mxu0 %v1190
      %v1295 = vpop.f32.mrf.mxu0
      %v1296 = vadd.f32 %v1063, %v1295
      %v1297 = vpop.f32.mrf.mxu0
      %v1298 = vadd.f32 %v1065, %v1297
      %1299 = vmatmul.bf16.gmra.mxu0 %v1191
      %v1300 = vpop.f32.mrf.mxu0
      %v1301 = vadd.f32 %v1068, %v1300
      %v1302 = vpop.f32.mrf.mxu0
      %v1303 = vadd.f32 %v1070, %v1302
      %1304 = vmatmul.bf16.gmra.mxu0 %v1192
      %v1305 = vpop.f32.mrf.mxu0
      %v1306 = vadd.f32 %v1073, %v1305
      %v1307 = vpop.f32.mrf.mxu0
      %v1308 = vadd.f32 %v1075, %v1307
      %1309 = vmatmul.bf16.gmra.mxu0 %v1193
      %v1310 = vpop.f32.mrf.mxu0
      %v1311 = vadd.f32 %v1078, %v1310
      %v1312 = vpop.f32.mrf.mxu0
      %v1313 = vadd.f32 %v1080, %v1312
      %1314 = vmatmul.bf16.gmra.mxu0 %v1194
      %v1315 = vpop.f32.mrf.mxu0
      %v1316 = vadd.f32 %v1083, %v1315
      %v1317 = vpop.f32.mrf.mxu0
      %v1318 = vadd.f32 %v1085, %v1317
      %1319 = vmatmul.bf16.gmra.mxu0 %v1195
      %v1320 = vpop.f32.mrf.mxu0
      %v1321 = vadd.f32 %v1088, %v1320
      %v1322 = vpop.f32.mrf.mxu0
      %v1323 = vadd.f32 %v1090, %v1322
      %1324 = vmatmul.bf16.gmra.mxu0 %v1196
      %v1325 = vpop.f32.mrf.mxu0
      %v1326 = vadd.f32 %v1093, %v1325
      %v1327 = vpop.f32.mrf.mxu0
      %v1328 = vadd.f32 %v1095, %v1327
      %1329 = vmatmul.bf16.gmra.mxu0 %v1197
      %v1330 = vpop.f32.mrf.mxu0
      %v1331 = vadd.f32 %v1098, %v1330
      %v1332 = vpop.f32.mrf.mxu0
      %v1333 = vadd.f32 %v1100, %v1332
      %1334 = vmatmul.bf16.gmra.mxu0 %v1198
      %v1335 = vpop.f32.mrf.mxu0
      %v1336 = vadd.f32 %v1103, %v1335
      %v1337 = vpop.f32.mrf.mxu0
      %v1338 = vadd.f32 %v1105, %v1337
      %1339 = vmatmul.bf16.gmra.mxu0 %v1199
      %v1340 = vpop.f32.mrf.mxu0
      %v1341 = vadd.f32 %v1108, %v1340
      %v1342 = vpop.f32.mrf.mxu0
      %v1343 = vadd.f32 %v1110, %v1342
      %1344 = vmatmul.bf16.gmra.mxu0 %v1200
      %v1345 = vpop.f32.mrf.mxu0
      %v1346 = vadd.f32 %v1113, %v1345
      %v1347 = vpop.f32.mrf.mxu0
      %v1348 = vadd.f32 %v1115, %v1347
      %1349 = vmatmul.bf16.gmra.mxu0 %v1201
      %v1350 = vpop.f32.mrf.mxu0
      %v1351 = vadd.f32 %v1118, %v1350
      %v1352 = vpop.f32.mrf.mxu0
      %v1353 = vadd.f32 %v1120, %v1352
      %1354 = vdwg.mxu0
      %vm1371 = vcmask 1042432
      %vm1372 = vcmask 1046532
      %vm1373 = vmor %vm1371, %vm1372
      %v1374 = vrot.slane %v336, 5
      %v1375 = vrot.slane %v1374, 4
      %v1376 = vrot.slane %v337, 5
      %v1377 = vsel %vm1373, %v1375, %v1376
      %v1378 = vrot.slane %v1376, 4
      %v1379 = vrot.slane %v338, 5
      %v1380 = vsel %vm1373, %v1378, %v1379
      %v1381 = vrot.slane %v339, 5
      %v1382 = vrot.slane %v1381, 4
      %v1383 = vrot.slane %v340, 5
      %v1384 = vsel %vm1373, %v1382, %v1383
      %v1385 = vrot.slane %v1383, 4
      %v1386 = vrot.slane %v341, 5
      %v1387 = vsel %vm1373, %v1385, %v1386
      %v1388 = vrot.slane %v342, 5
      %v1389 = vrot.slane %v1388, 4
      %v1390 = vrot.slane %v343, 5
      %v1391 = vsel %vm1373, %v1389, %v1390
      %v1392 = vrot.slane %v1390, 4
      %v1393 = vrot.slane %v344, 5
      %v1394 = vsel %vm1373, %v1392, %v1393
      %v1395 = vrot.slane %v345, 5
      %v1396 = vrot.slane %v1395, 4
      %v1397 = vrot.slane %v346, 5
      %v1398 = vsel %vm1373, %v1396, %v1397
      %v1399 = vrot.slane %v1397, 4
      %v1400 = vrot.slane %v347, 5
      %v1401 = vsel %vm1373, %v1399, %v1400
      %v1402 = vrot.slane %v348, 5
      %v1403 = vrot.slane %v1402, 4
      %v1404 = vrot.slane %v349, 5
      %v1405 = vsel %vm1373, %v1403, %v1404
      %v1406 = vrot.slane %v1404, 4
      %v1407 = vrot.slane %v350, 5
      %v1408 = vsel %vm1373, %v1406, %v1407
      %v1409 = vrot.slane %v351, 5
      %v1410 = vrot.slane %v1409, 4
      %v1411 = vrot.slane %v352, 5
      %v1412 = vsel %vm1373, %v1410, %v1411
      %v1413 = vrot.slane %v1411, 4
      %v1414 = vrot.slane %v353, 5
      %v1415 = vsel %vm1373, %v1413, %v1414
      %v1416 = vrot.slane %v354, 5
      %v1417 = vrot.slane %v1416, 4
      %v1418 = vrot.slane %v355, 5
      %v1419 = vsel %vm1373, %v1417, %v1418
      %v1420 = vrot.slane %v1418, 4
      %v1421 = vrot.slane %v356, 5
      %v1422 = vsel %vm1373, %v1420, %v1421
      %v1423 = vrot.slane %v357, 5
      %v1424 = vrot.slane %v1423, 4
      %v1425 = vrot.slane %v358, 5
      %v1426 = vsel %vm1373, %v1424, %v1425
      %v1427 = vrot.slane %v1425, 4
      %v1428 = vrot.slane %v359, 5
      %v1429 = vsel %vm1373, %v1427, %v1428
      %v1430 = vrot.slane %v360, 5
      %v1431 = vrot.slane %v1430, 4
      %v1432 = vrot.slane %v361, 5
      %v1433 = vsel %vm1373, %v1431, %v1432
      %v1434 = vrot.slane %v1432, 4
      %v1435 = vrot.slane %v362, 5
      %v1436 = vsel %vm1373, %v1434, %v1435
      %v1437 = vrot.slane %v363, 5
      %v1438 = vrot.slane %v1437, 4
      %v1439 = vrot.slane %v364, 5
      %v1440 = vsel %vm1373, %v1438, %v1439
      %v1441 = vrot.slane %v1439, 4
      %v1442 = vrot.slane %v365, 5
      %v1443 = vsel %vm1373, %v1441, %v1442
      %v1444 = vrot.slane %v366, 5
      %v1445 = vrot.slane %v1444, 4
      %v1446 = vrot.slane %v367, 5
      %v1447 = vsel %vm1373, %v1445, %v1446
      %v1448 = vrot.slane %v1446, 4
      %v1449 = vrot.slane %v368, 5
      %v1450 = vsel %vm1373, %v1448, %v1449
      %v1451 = vrot.slane %v369, 5
      %v1452 = vrot.slane %v1451, 4
      %v1453 = vrot.slane %v370, 5
      %v1454 = vsel %vm1373, %v1452, %v1453
      %v1455 = vrot.slane %v1453, 4
      %v1456 = vrot.slane %v371, 5
      %v1457 = vsel %vm1373, %v1455, %v1456
      %v1458 = vrot.slane %v372, 5
      %v1459 = vrot.slane %v1458, 4
      %v1460 = vrot.slane %v373, 5
      %v1461 = vsel %vm1373, %v1459, %v1460
      %v1462 = vrot.slane %v1460, 4
      %v1463 = vrot.slane %v374, 5
      %v1464 = vsel %vm1373, %v1462, %v1463
      %v1465 = vrot.slane %v375, 5
      %v1466 = vrot.slane %v1465, 4
      %v1467 = vrot.slane %v376, 5
      %v1468 = vsel %vm1373, %v1466, %v1467
      %v1469 = vrot.slane %v1467, 4
      %v1470 = vrot.slane %v377, 5
      %v1471 = vsel %vm1373, %v1469, %v1470
      %v1472 = vrot.slane %v378, 5
      %v1473 = vrot.slane %v1472, 4
      %v1474 = vrot.slane %v379, 5
      %v1475 = vsel %vm1373, %v1473, %v1474
      %v1476 = vrot.slane %v1474, 4
      %v1477 = vrot.slane %v380, 5
      %v1478 = vsel %vm1373, %v1476, %v1477
      %v1479 = vrot.slane %v381, 5
      %v1480 = vrot.slane %v1479, 4
      %v1481 = vrot.slane %v382, 5
      %v1482 = vsel %vm1373, %v1480, %v1481
      %v1483 = vrot.slane %v1481, 4
      %v1484 = vrot.slane %v383, 5
      %v1485 = vsel %vm1373, %v1483, %v1484
      %v1486 = vunpack.c.l.b16 %v1377
      %v1487 = vunpack.c.l.b16 %v1380
      %v1488 = vunpack.c.l.b16 %v1384
      %v1489 = vunpack.c.l.b16 %v1387
      %v1490 = vunpack.c.l.b16 %v1391
      %v1491 = vunpack.c.l.b16 %v1394
      %v1492 = vunpack.c.l.b16 %v1398
      %v1493 = vunpack.c.l.b16 %v1401
      %v1494 = vunpack.c.l.b16 %v1405
      %v1495 = vunpack.c.l.b16 %v1408
      %v1496 = vunpack.c.l.b16 %v1412
      %v1497 = vunpack.c.l.b16 %v1415
      %v1498 = vunpack.c.l.b16 %v1419
      %v1499 = vunpack.c.l.b16 %v1422
      %v1500 = vunpack.c.l.b16 %v1426
      %v1501 = vunpack.c.l.b16 %v1429
      %v1502 = vunpack.c.l.b16 %v1433
      %v1503 = vunpack.c.l.b16 %v1436
      %v1504 = vunpack.c.l.b16 %v1440
      %v1505 = vunpack.c.l.b16 %v1443
      %v1506 = vunpack.c.l.b16 %v1447
      %v1507 = vunpack.c.l.b16 %v1450
      %v1508 = vunpack.c.l.b16 %v1454
      %v1509 = vunpack.c.l.b16 %v1457
      %v1510 = vunpack.c.l.b16 %v1461
      %v1511 = vunpack.c.l.b16 %v1464
      %v1512 = vunpack.c.l.b16 %v1468
      %v1513 = vunpack.c.l.b16 %v1471
      %v1514 = vunpack.c.l.b16 %v1475
      %v1515 = vunpack.c.l.b16 %v1478
      %v1516 = vunpack.c.l.b16 %v1482
      %v1517 = vunpack.c.l.b16 %v1485
      %v1518 = vpack.c.b16 %v1487, %v1486
      %v1519 = vpack.c.b16 %v1489, %v1488
      %v1520 = vpack.c.b16 %v1491, %v1490
      %v1521 = vpack.c.b16 %v1493, %v1492
      %v1522 = vpack.c.b16 %v1495, %v1494
      %v1523 = vpack.c.b16 %v1497, %v1496
      %v1524 = vpack.c.b16 %v1499, %v1498
      %v1525 = vpack.c.b16 %v1501, %v1500
      %v1526 = vpack.c.b16 %v1503, %v1502
      %v1527 = vpack.c.b16 %v1505, %v1504
      %v1528 = vpack.c.b16 %v1507, %v1506
      %v1529 = vpack.c.b16 %v1509, %v1508
      %v1530 = vpack.c.b16 %v1511, %v1510
      %v1531 = vpack.c.b16 %v1513, %v1512
      %v1532 = vpack.c.b16 %v1515, %v1514
      %v1533 = vpack.c.b16 %v1517, %v1516
      %v1566 = vunpack.c.l.b16 %v422
      %v1567 = vunpack.c.l.b16 %v423
      %v1568 = vunpack.c.l.b16 %v424
      %v1569 = vunpack.c.l.b16 %v425
      %v1570 = vunpack.c.l.b16 %v426
      %v1571 = vunpack.c.l.b16 %v427
      %v1572 = vunpack.c.l.b16 %v428
      %v1573 = vunpack.c.l.b16 %v429
      %v1574 = vunpack.c.l.b16 %v430
      %v1575 = vunpack.c.l.b16 %v431
      %v1576 = vunpack.c.l.b16 %v432
      %v1577 = vunpack.c.l.b16 %v433
      %v1578 = vunpack.c.l.b16 %v434
      %v1579 = vunpack.c.l.b16 %v435
      %v1580 = vunpack.c.l.b16 %v436
      %v1581 = vunpack.c.l.b16 %v437
      %v1582 = vpack.c.b16 %v1567, %v1566
      %v1583 = vpack.c.b16 %v1569, %v1568
      %v1584 = vpack.c.b16 %v1571, %v1570
      %v1585 = vpack.c.b16 %v1573, %v1572
      %v1586 = vpack.c.b16 %v1575, %v1574
      %v1587 = vpack.c.b16 %v1577, %v1576
      %v1588 = vpack.c.b16 %v1579, %v1578
      %v1589 = vpack.c.b16 %v1581, %v1580
      %1598 = vmatpush.bf16.msra.mxu0 %v1589
      %1599 = vmatpush.bf16.msra.mxu0 %v1588
      %1600 = vmatpush.bf16.msra.mxu0 %v1587
      %1601 = vmatpush.bf16.msra.mxu0 %v1586
      %1602 = vmatpush.bf16.msra.mxu0 %v1585
      %1603 = vmatpush.bf16.msra.mxu0 %v1584
      %1604 = vmatpush.bf16.msra.mxu0 %v1583
      %1605 = vmatpush.bf16.msra.mxu0 %v1582
      %1606 = vmatmul.bf16.gmra.mxu0 %v1518
      %v1607 = vpop.f32.mrf.mxu0
      %v1608 = vadd.f32 0.0, %v1607
      %v1609 = vpop.f32.mrf.mxu0
      %v1610 = vadd.f32 0.0, %v1609
      %1611 = vmatmul.bf16.gmra.mxu0 %v1519
      %v1612 = vpop.f32.mrf.mxu0
      %v1613 = vadd.f32 0.0, %v1612
      %v1614 = vpop.f32.mrf.mxu0
      %v1615 = vadd.f32 0.0, %v1614
      %1616 = vmatmul.bf16.gmra.mxu0 %v1520
      %v1617 = vpop.f32.mrf.mxu0
      %v1618 = vadd.f32 0.0, %v1617
      %v1619 = vpop.f32.mrf.mxu0
      %v1620 = vadd.f32 0.0, %v1619
      %1621 = vmatmul.bf16.gmra.mxu0 %v1521
      %v1622 = vpop.f32.mrf.mxu0
      %v1623 = vadd.f32 0.0, %v1622
      %v1624 = vpop.f32.mrf.mxu0
      %v1625 = vadd.f32 0.0, %v1624
      %1626 = vmatmul.bf16.gmra.mxu0 %v1522
      %v1627 = vpop.f32.mrf.mxu0
      %v1628 = vadd.f32 0.0, %v1627
      %v1629 = vpop.f32.mrf.mxu0
      %v1630 = vadd.f32 0.0, %v1629
      %1631 = vmatmul.bf16.gmra.mxu0 %v1523
      %v1632 = vpop.f32.mrf.mxu0
      %v1633 = vadd.f32 0.0, %v1632
      %v1634 = vpop.f32.mrf.mxu0
      %v1635 = vadd.f32 0.0, %v1634
      %1636 = vmatmul.bf16.gmra.mxu0 %v1524
      %v1637 = vpop.f32.mrf.mxu0
      %v1638 = vadd.f32 0.0, %v1637
      %v1639 = vpop.f32.mrf.mxu0
      %v1640 = vadd.f32 0.0, %v1639
      %1641 = vmatmul.bf16.gmra.mxu0 %v1525
      %v1642 = vpop.f32.mrf.mxu0
      %v1643 = vadd.f32 0.0, %v1642
      %v1644 = vpop.f32.mrf.mxu0
      %v1645 = vadd.f32 0.0, %v1644
      %1646 = vmatmul.bf16.gmra.mxu0 %v1526
      %v1647 = vpop.f32.mrf.mxu0
      %v1648 = vadd.f32 0.0, %v1647
      %v1649 = vpop.f32.mrf.mxu0
      %v1650 = vadd.f32 0.0, %v1649
      %1651 = vmatmul.bf16.gmra.mxu0 %v1527
      %v1652 = vpop.f32.mrf.mxu0
      %v1653 = vadd.f32 0.0, %v1652
      %v1654 = vpop.f32.mrf.mxu0
      %v1655 = vadd.f32 0.0, %v1654
      %1656 = vmatmul.bf16.gmra.mxu0 %v1528
      %v1657 = vpop.f32.mrf.mxu0
      %v1658 = vadd.f32 0.0, %v1657
      %v1659 = vpop.f32.mrf.mxu0
      %v1660 = vadd.f32 0.0, %v1659
      %1661 = vmatmul.bf16.gmra.mxu0 %v1529
      %v1662 = vpop.f32.mrf.mxu0
      %v1663 = vadd.f32 0.0, %v1662
      %v1664 = vpop.f32.mrf.mxu0
      %v1665 = vadd.f32 0.0, %v1664
      %1666 = vmatmul.bf16.gmra.mxu0 %v1530
      %v1667 = vpop.f32.mrf.mxu0
      %v1668 = vadd.f32 0.0, %v1667
      %v1669 = vpop.f32.mrf.mxu0
      %v1670 = vadd.f32 0.0, %v1669
      %1671 = vmatmul.bf16.gmra.mxu0 %v1531
      %v1672 = vpop.f32.mrf.mxu0
      %v1673 = vadd.f32 0.0, %v1672
      %v1674 = vpop.f32.mrf.mxu0
      %v1675 = vadd.f32 0.0, %v1674
      %1676 = vmatmul.bf16.gmra.mxu0 %v1532
      %v1677 = vpop.f32.mrf.mxu0
      %v1678 = vadd.f32 0.0, %v1677
      %v1679 = vpop.f32.mrf.mxu0
      %v1680 = vadd.f32 0.0, %v1679
      %1681 = vmatmul.bf16.gmra.mxu0 %v1533
      %v1682 = vpop.f32.mrf.mxu0
      %v1683 = vadd.f32 0.0, %v1682
      %v1684 = vpop.f32.mrf.mxu0
      %v1685 = vadd.f32 0.0, %v1684
      %1686 = vdwg.mxu0
      %v1687 = vadd.f32 %v1276, %v1608
      %v1688 = vadd.f32 %v1278, %v1610
      %v1689 = vadd.f32 %v1281, %v1613
      %v1690 = vadd.f32 %v1283, %v1615
      %v1691 = vadd.f32 %v1286, %v1618
      %v1692 = vadd.f32 %v1288, %v1620
      %v1693 = vadd.f32 %v1291, %v1623
      %v1694 = vadd.f32 %v1293, %v1625
      %v1695 = vadd.f32 %v1296, %v1628
      %v1696 = vadd.f32 %v1298, %v1630
      %v1697 = vadd.f32 %v1301, %v1633
      %v1698 = vadd.f32 %v1303, %v1635
      %v1699 = vadd.f32 %v1306, %v1638
      %v1700 = vadd.f32 %v1308, %v1640
      %v1701 = vadd.f32 %v1311, %v1643
      %v1702 = vadd.f32 %v1313, %v1645
      %v1703 = vadd.f32 %v1316, %v1648
      %v1704 = vadd.f32 %v1318, %v1650
      %v1705 = vadd.f32 %v1321, %v1653
      %v1706 = vadd.f32 %v1323, %v1655
      %v1707 = vadd.f32 %v1326, %v1658
      %v1708 = vadd.f32 %v1328, %v1660
      %v1709 = vadd.f32 %v1331, %v1663
      %v1710 = vadd.f32 %v1333, %v1665
      %v1711 = vadd.f32 %v1336, %v1668
      %v1712 = vadd.f32 %v1338, %v1670
      %v1713 = vadd.f32 %v1341, %v1673
      %v1714 = vadd.f32 %v1343, %v1675
      %v1715 = vadd.f32 %v1346, %v1678
      %v1716 = vadd.f32 %v1348, %v1680
      %v1717 = vadd.f32 %v1351, %v1683
      %v1718 = vadd.f32 %v1353, %v1685
      %v1721 = vunpack.c.l.b16 %v384
      %v1722 = vunpack.c.l.b16 %v385
      %v1723 = vpack.c.b16 %v1722, %v1721
      %v1741 = vunpack.c.l.b16 %v438
      %v1742 = vunpack.c.l.b16 %v439
      %v1743 = vunpack.c.l.b16 %v440
      %v1744 = vunpack.c.l.b16 %v441
      %v1745 = vunpack.c.l.b16 %v442
      %v1746 = vunpack.c.l.b16 %v443
      %v1747 = vunpack.c.l.b16 %v444
      %v1748 = vunpack.c.l.b16 %v445
      %v1749 = vunpack.c.l.b16 %v446
      %v1750 = vunpack.c.l.b16 %v447
      %v1751 = vunpack.c.l.b16 %v448
      %v1752 = vunpack.c.l.b16 %v449
      %v1753 = vunpack.c.l.b16 %v450
      %v1754 = vunpack.c.l.b16 %v451
      %v1755 = vunpack.c.l.b16 %v452
      %v1756 = vunpack.c.l.b16 %v453
      %v1757 = vpack.c.b16 %v1742, %v1741
      %v1758 = vpack.c.b16 %v1744, %v1743
      %v1759 = vpack.c.b16 %v1746, %v1745
      %v1760 = vpack.c.b16 %v1748, %v1747
      %v1761 = vpack.c.b16 %v1750, %v1749
      %v1762 = vpack.c.b16 %v1752, %v1751
      %v1763 = vpack.c.b16 %v1754, %v1753
      %v1764 = vpack.c.b16 %v1756, %v1755
      %1773 = vmatpush.bf16.msra.mxu0 %v1764
      %1774 = vmatpush.bf16.msra.mxu0 %v1763
      %1775 = vmatpush.bf16.msra.mxu0 %v1762
      %1776 = vmatpush.bf16.msra.mxu0 %v1761
      %1777 = vmatpush.bf16.msra.mxu0 %v1760
      %1778 = vmatpush.bf16.msra.mxu0 %v1759
      %1779 = vmatpush.bf16.msra.mxu0 %v1758
      %1780 = vmatpush.bf16.msra.mxu0 %v1757
      %1781 = vmatmul.bf16.gmra.mxu0 %v1187
      %v1782 = vpop.f32.mrf.mxu0
      %v1783 = vadd.f32 0.0, %v1782
      %v1784 = vpop.f32.mrf.mxu0
      %v1785 = vadd.f32 0.0, %v1784
      %1786 = vmatmul.bf16.gmra.mxu0 %v1188
      %v1787 = vpop.f32.mrf.mxu0
      %v1788 = vadd.f32 0.0, %v1787
      %v1789 = vpop.f32.mrf.mxu0
      %v1790 = vadd.f32 0.0, %v1789
      %1791 = vmatmul.bf16.gmra.mxu0 %v1189
      %v1792 = vpop.f32.mrf.mxu0
      %v1793 = vadd.f32 0.0, %v1792
      %v1794 = vpop.f32.mrf.mxu0
      %v1795 = vadd.f32 0.0, %v1794
      %1796 = vmatmul.bf16.gmra.mxu0 %v1190
      %v1797 = vpop.f32.mrf.mxu0
      %v1798 = vadd.f32 0.0, %v1797
      %v1799 = vpop.f32.mrf.mxu0
      %v1800 = vadd.f32 0.0, %v1799
      %1801 = vmatmul.bf16.gmra.mxu0 %v1191
      %v1802 = vpop.f32.mrf.mxu0
      %v1803 = vadd.f32 0.0, %v1802
      %v1804 = vpop.f32.mrf.mxu0
      %v1805 = vadd.f32 0.0, %v1804
      %1806 = vmatmul.bf16.gmra.mxu0 %v1192
      %v1807 = vpop.f32.mrf.mxu0
      %v1808 = vadd.f32 0.0, %v1807
      %v1809 = vpop.f32.mrf.mxu0
      %v1810 = vadd.f32 0.0, %v1809
      %1811 = vmatmul.bf16.gmra.mxu0 %v1193
      %v1812 = vpop.f32.mrf.mxu0
      %v1813 = vadd.f32 0.0, %v1812
      %v1814 = vpop.f32.mrf.mxu0
      %v1815 = vadd.f32 0.0, %v1814
      %1816 = vmatmul.bf16.gmra.mxu0 %v1194
      %v1817 = vpop.f32.mrf.mxu0
      %v1818 = vadd.f32 0.0, %v1817
      %v1819 = vpop.f32.mrf.mxu0
      %v1820 = vadd.f32 0.0, %v1819
      %1821 = vmatmul.bf16.gmra.mxu0 %v1195
      %v1822 = vpop.f32.mrf.mxu0
      %v1823 = vadd.f32 0.0, %v1822
      %v1824 = vpop.f32.mrf.mxu0
      %v1825 = vadd.f32 0.0, %v1824
      %1826 = vmatmul.bf16.gmra.mxu0 %v1196
      %v1827 = vpop.f32.mrf.mxu0
      %v1828 = vadd.f32 0.0, %v1827
      %v1829 = vpop.f32.mrf.mxu0
      %v1830 = vadd.f32 0.0, %v1829
      %1831 = vmatmul.bf16.gmra.mxu0 %v1197
      %v1832 = vpop.f32.mrf.mxu0
      %v1833 = vadd.f32 0.0, %v1832
      %v1834 = vpop.f32.mrf.mxu0
      %v1835 = vadd.f32 0.0, %v1834
      %1836 = vmatmul.bf16.gmra.mxu0 %v1198
      %v1837 = vpop.f32.mrf.mxu0
      %v1838 = vadd.f32 0.0, %v1837
      %v1839 = vpop.f32.mrf.mxu0
      %v1840 = vadd.f32 0.0, %v1839
      %1841 = vmatmul.bf16.gmra.mxu0 %v1199
      %v1842 = vpop.f32.mrf.mxu0
      %v1843 = vadd.f32 0.0, %v1842
      %v1844 = vpop.f32.mrf.mxu0
      %v1845 = vadd.f32 0.0, %v1844
      %1846 = vmatmul.bf16.gmra.mxu0 %v1200
      %v1847 = vpop.f32.mrf.mxu0
      %v1848 = vadd.f32 0.0, %v1847
      %v1849 = vpop.f32.mrf.mxu0
      %v1850 = vadd.f32 0.0, %v1849
      %1851 = vmatmul.bf16.gmra.mxu0 %v1201
      %v1852 = vpop.f32.mrf.mxu0
      %v1853 = vadd.f32 0.0, %v1852
      %v1854 = vpop.f32.mrf.mxu0
      %v1855 = vadd.f32 0.0, %v1854
      %1856 = vmatmul.bf16.gmra.mxu0 %v1723
      %v1857 = vpop.f32.mrf.mxu0
      %v1858 = vadd.f32 0.0, %v1857
      %v1859 = vpop.f32.mrf.mxu0
      %v1860 = vadd.f32 0.0, %v1859
      %1861 = vdwg.mxu0
      %v1862 = vadd.f32 %v1687, %v1783
      %v1863 = vadd.f32 %v1688, %v1785
      %v1864 = vadd.f32 %v1689, %v1788
      %v1865 = vadd.f32 %v1690, %v1790
      %v1866 = vadd.f32 %v1691, %v1793
      %v1867 = vadd.f32 %v1692, %v1795
      %v1868 = vadd.f32 %v1693, %v1798
      %v1869 = vadd.f32 %v1694, %v1800
      %v1870 = vadd.f32 %v1695, %v1803
      %v1871 = vadd.f32 %v1696, %v1805
      %v1872 = vadd.f32 %v1697, %v1808
      %v1873 = vadd.f32 %v1698, %v1810
      %v1874 = vadd.f32 %v1699, %v1813
      %v1875 = vadd.f32 %v1700, %v1815
      %v1876 = vadd.f32 %v1701, %v1818
      %v1877 = vadd.f32 %v1702, %v1820
      %v1878 = vadd.f32 %v1703, %v1823
      %v1879 = vadd.f32 %v1704, %v1825
      %v1880 = vadd.f32 %v1705, %v1828
      %v1881 = vadd.f32 %v1706, %v1830
      %v1882 = vadd.f32 %v1707, %v1833
      %v1883 = vadd.f32 %v1708, %v1835
      %v1884 = vadd.f32 %v1709, %v1838
      %v1885 = vadd.f32 %v1710, %v1840
      %v1886 = vadd.f32 %v1711, %v1843
      %v1887 = vadd.f32 %v1712, %v1845
      %v1888 = vadd.f32 %v1713, %v1848
      %v1889 = vadd.f32 %v1714, %v1850
      %v1890 = vadd.f32 %v1715, %v1853
      %v1891 = vadd.f32 %v1716, %v1855
      %v1892 = vadd.f32 %v1717, %v1858
      %v1893 = vadd.f32 %v1718, %v1860
      %v1895 = vshrl.u32 %v384, 16
      %v1897 = vrot.slane %v1895, 4
      %v1898 = vshll.u32 %v384, 16
      %v1900 = vrot.slane %v1898, 5
      %v1901 = vor.u32 %v1897, %v1900
      %v1902 = vrot.slane %v1901, 4
      %v1904 = vshll.u32 %v385, 16
      %v1906 = vrot.slane %v1904, 5
      %v1907 = vsel %vm536, %v1902, %v1906
      %v1908 = vshrl.u32 %v385, 16
      %v1910 = vrot.slane %v1908, 4
      %v1911 = vor.u32 %v1910, %v1906
      %v1912 = vrot.slane %v1911, 4
      %v1914 = vshll.u32 %v386, 16
      %v1916 = vrot.slane %v1914, 5
      %v1917 = vsel %vm536, %v1912, %v1916
      %v1918 = vunpack.c.l.b16 %v1907
      %v1919 = vunpack.c.l.b16 %v1917
      %v1920 = vpack.c.b16 %v1919, %v1918
      %v1938 = vunpack.c.l.b16 %v454
      %v1939 = vunpack.c.l.b16 %v455
      %v1940 = vunpack.c.l.b16 %v456
      %v1941 = vunpack.c.l.b16 %v457
      %v1942 = vunpack.c.l.b16 %v458
      %v1943 = vunpack.c.l.b16 %v459
      %v1944 = vunpack.c.l.b16 %v460
      %v1945 = vunpack.c.l.b16 %v461
      %v1946 = vunpack.c.l.b16 %v462
      %v1947 = vunpack.c.l.b16 %v463
      %v1948 = vunpack.c.l.b16 %v464
      %v1949 = vunpack.c.l.b16 %v465
      %v1950 = vunpack.c.l.b16 %v466
      %v1951 = vunpack.c.l.b16 %v467
      %v1952 = vunpack.c.l.b16 %v468
      %v1953 = vunpack.c.l.b16 %v469
      %v1954 = vpack.c.b16 %v1939, %v1938
      %v1955 = vpack.c.b16 %v1941, %v1940
      %v1956 = vpack.c.b16 %v1943, %v1942
      %v1957 = vpack.c.b16 %v1945, %v1944
      %v1958 = vpack.c.b16 %v1947, %v1946
      %v1959 = vpack.c.b16 %v1949, %v1948
      %v1960 = vpack.c.b16 %v1951, %v1950
      %v1961 = vpack.c.b16 %v1953, %v1952
      %1970 = vmatpush.bf16.msra.mxu0 %v1961
      %1971 = vmatpush.bf16.msra.mxu0 %v1960
      %1972 = vmatpush.bf16.msra.mxu0 %v1959
      %1973 = vmatpush.bf16.msra.mxu0 %v1958
      %1974 = vmatpush.bf16.msra.mxu0 %v1957
      %1975 = vmatpush.bf16.msra.mxu0 %v1956
      %1976 = vmatpush.bf16.msra.mxu0 %v1955
      %1977 = vmatpush.bf16.msra.mxu0 %v1954
      %1978 = vmatmul.bf16.gmra.mxu0 %v954
      %v1979 = vpop.f32.mrf.mxu0
      %v1980 = vadd.f32 0.0, %v1979
      %v1981 = vpop.f32.mrf.mxu0
      %v1982 = vadd.f32 0.0, %v1981
      %1983 = vmatmul.bf16.gmra.mxu0 %v955
      %v1984 = vpop.f32.mrf.mxu0
      %v1985 = vadd.f32 0.0, %v1984
      %v1986 = vpop.f32.mrf.mxu0
      %v1987 = vadd.f32 0.0, %v1986
      %1988 = vmatmul.bf16.gmra.mxu0 %v956
      %v1989 = vpop.f32.mrf.mxu0
      %v1990 = vadd.f32 0.0, %v1989
      %v1991 = vpop.f32.mrf.mxu0
      %v1992 = vadd.f32 0.0, %v1991
      %1993 = vmatmul.bf16.gmra.mxu0 %v957
      %v1994 = vpop.f32.mrf.mxu0
      %v1995 = vadd.f32 0.0, %v1994
      %v1996 = vpop.f32.mrf.mxu0
      %v1997 = vadd.f32 0.0, %v1996
      %1998 = vmatmul.bf16.gmra.mxu0 %v958
      %v1999 = vpop.f32.mrf.mxu0
      %v2000 = vadd.f32 0.0, %v1999
      %v2001 = vpop.f32.mrf.mxu0
      %v2002 = vadd.f32 0.0, %v2001
      %2003 = vmatmul.bf16.gmra.mxu0 %v959
      %v2004 = vpop.f32.mrf.mxu0
      %v2005 = vadd.f32 0.0, %v2004
      %v2006 = vpop.f32.mrf.mxu0
      %v2007 = vadd.f32 0.0, %v2006
      %2008 = vmatmul.bf16.gmra.mxu0 %v960
      %v2009 = vpop.f32.mrf.mxu0
      %v2010 = vadd.f32 0.0, %v2009
      %v2011 = vpop.f32.mrf.mxu0
      %v2012 = vadd.f32 0.0, %v2011
      %2013 = vmatmul.bf16.gmra.mxu0 %v961
      %v2014 = vpop.f32.mrf.mxu0
      %v2015 = vadd.f32 0.0, %v2014
      %v2016 = vpop.f32.mrf.mxu0
      %v2017 = vadd.f32 0.0, %v2016
      %2018 = vmatmul.bf16.gmra.mxu0 %v962
      %v2019 = vpop.f32.mrf.mxu0
      %v2020 = vadd.f32 0.0, %v2019
      %v2021 = vpop.f32.mrf.mxu0
      %v2022 = vadd.f32 0.0, %v2021
      %2023 = vmatmul.bf16.gmra.mxu0 %v963
      %v2024 = vpop.f32.mrf.mxu0
      %v2025 = vadd.f32 0.0, %v2024
      %v2026 = vpop.f32.mrf.mxu0
      %v2027 = vadd.f32 0.0, %v2026
      %2028 = vmatmul.bf16.gmra.mxu0 %v964
      %v2029 = vpop.f32.mrf.mxu0
      %v2030 = vadd.f32 0.0, %v2029
      %v2031 = vpop.f32.mrf.mxu0
      %v2032 = vadd.f32 0.0, %v2031
      %2033 = vmatmul.bf16.gmra.mxu0 %v965
      %v2034 = vpop.f32.mrf.mxu0
      %v2035 = vadd.f32 0.0, %v2034
      %v2036 = vpop.f32.mrf.mxu0
      %v2037 = vadd.f32 0.0, %v2036
      %2038 = vmatmul.bf16.gmra.mxu0 %v966
      %v2039 = vpop.f32.mrf.mxu0
      %v2040 = vadd.f32 0.0, %v2039
      %v2041 = vpop.f32.mrf.mxu0
      %v2042 = vadd.f32 0.0, %v2041
      %2043 = vmatmul.bf16.gmra.mxu0 %v967
      %v2044 = vpop.f32.mrf.mxu0
      %v2045 = vadd.f32 0.0, %v2044
      %v2046 = vpop.f32.mrf.mxu0
      %v2047 = vadd.f32 0.0, %v2046
      %2048 = vmatmul.bf16.gmra.mxu0 %v968
      %v2049 = vpop.f32.mrf.mxu0
      %v2050 = vadd.f32 0.0, %v2049
      %v2051 = vpop.f32.mrf.mxu0
      %v2052 = vadd.f32 0.0, %v2051
      %2053 = vmatmul.bf16.gmra.mxu0 %v1920
      %v2054 = vpop.f32.mrf.mxu0
      %v2055 = vadd.f32 0.0, %v2054
      %v2056 = vpop.f32.mrf.mxu0
      %v2057 = vadd.f32 0.0, %v2056
      %2058 = vdwg.mxu0
      %v2059 = vadd.f32 %v1862, %v1980
      %v2060 = vadd.f32 %v1863, %v1982
      %v2061 = vadd.f32 %v1864, %v1985
      %v2062 = vadd.f32 %v1865, %v1987
      %v2063 = vadd.f32 %v1866, %v1990
      %v2064 = vadd.f32 %v1867, %v1992
      %v2065 = vadd.f32 %v1868, %v1995
      %v2066 = vadd.f32 %v1869, %v1997
      %v2067 = vadd.f32 %v1870, %v2000
      %v2068 = vadd.f32 %v1871, %v2002
      %v2069 = vadd.f32 %v1872, %v2005
      %v2070 = vadd.f32 %v1873, %v2007
      %v2071 = vadd.f32 %v1874, %v2010
      %v2072 = vadd.f32 %v1875, %v2012
      %v2073 = vadd.f32 %v1876, %v2015
      %v2074 = vadd.f32 %v1877, %v2017
      %v2075 = vadd.f32 %v1878, %v2020
      %v2076 = vadd.f32 %v1879, %v2022
      %v2077 = vadd.f32 %v1880, %v2025
      %v2078 = vadd.f32 %v1881, %v2027
      %v2079 = vadd.f32 %v1882, %v2030
      %v2080 = vadd.f32 %v1883, %v2032
      %v2081 = vadd.f32 %v1884, %v2035
      %v2082 = vadd.f32 %v1885, %v2037
      %v2083 = vadd.f32 %v1886, %v2040
      %v2084 = vadd.f32 %v1887, %v2042
      %v2085 = vadd.f32 %v1888, %v2045
      %v2086 = vadd.f32 %v1889, %v2047
      %v2087 = vadd.f32 %v1890, %v2050
      %v2088 = vadd.f32 %v1891, %v2052
      %v2089 = vadd.f32 %v1892, %v2055
      %v2090 = vadd.f32 %v1893, %v2057
      %v2092 = vrot.slane %v384, 5
      %v2093 = vrot.slane %v2092, 4
      %v2094 = vrot.slane %v385, 5
      %v2095 = vsel %vm1373, %v2093, %v2094
      %v2096 = vrot.slane %v2094, 4
      %v2097 = vrot.slane %v386, 5
      %v2098 = vsel %vm1373, %v2096, %v2097
      %v2099 = vunpack.c.l.b16 %v2095
      %v2100 = vunpack.c.l.b16 %v2098
      %v2101 = vpack.c.b16 %v2100, %v2099
      %v2119 = vunpack.c.l.b16 %v470
      %v2120 = vunpack.c.l.b16 %v471
      %v2121 = vunpack.c.l.b16 %v472
      %v2122 = vunpack.c.l.b16 %v473
      %v2123 = vunpack.c.l.b16 %v474
      %v2124 = vunpack.c.l.b16 %v475
      %v2125 = vunpack.c.l.b16 %v476
      %v2126 = vunpack.c.l.b16 %v477
      %v2127 = vunpack.c.l.b16 %v478
      %v2128 = vunpack.c.l.b16 %v479
      %v2129 = vunpack.c.l.b16 %v480
      %v2130 = vunpack.c.l.b16 %v481
      %v2131 = vunpack.c.l.b16 %v482
      %v2132 = vunpack.c.l.b16 %v483
      %v2133 = vunpack.c.l.b16 %v484
      %v2134 = vunpack.c.l.b16 %v485
      %v2135 = vpack.c.b16 %v2120, %v2119
      %v2136 = vpack.c.b16 %v2122, %v2121
      %v2137 = vpack.c.b16 %v2124, %v2123
      %v2138 = vpack.c.b16 %v2126, %v2125
      %v2139 = vpack.c.b16 %v2128, %v2127
      %v2140 = vpack.c.b16 %v2130, %v2129
      %v2141 = vpack.c.b16 %v2132, %v2131
      %v2142 = vpack.c.b16 %v2134, %v2133
      %2151 = vmatpush.bf16.msra.mxu0 %v2142
      %2152 = vmatpush.bf16.msra.mxu0 %v2141
      %2153 = vmatpush.bf16.msra.mxu0 %v2140
      %2154 = vmatpush.bf16.msra.mxu0 %v2139
      %2155 = vmatpush.bf16.msra.mxu0 %v2138
      %2156 = vmatpush.bf16.msra.mxu0 %v2137
      %2157 = vmatpush.bf16.msra.mxu0 %v2136
      %2158 = vmatpush.bf16.msra.mxu0 %v2135
      %2159 = vmatmul.bf16.gmra.mxu0 %v1519
      %v2160 = vpop.f32.mrf.mxu0
      %v2161 = vadd.f32 0.0, %v2160
      %v2162 = vpop.f32.mrf.mxu0
      %v2163 = vadd.f32 0.0, %v2162
      %2164 = vmatmul.bf16.gmra.mxu0 %v1520
      %v2165 = vpop.f32.mrf.mxu0
      %v2166 = vadd.f32 0.0, %v2165
      %v2167 = vpop.f32.mrf.mxu0
      %v2168 = vadd.f32 0.0, %v2167
      %2169 = vmatmul.bf16.gmra.mxu0 %v1521
      %v2170 = vpop.f32.mrf.mxu0
      %v2171 = vadd.f32 0.0, %v2170
      %v2172 = vpop.f32.mrf.mxu0
      %v2173 = vadd.f32 0.0, %v2172
      %2174 = vmatmul.bf16.gmra.mxu0 %v1522
      %v2175 = vpop.f32.mrf.mxu0
      %v2176 = vadd.f32 0.0, %v2175
      %v2177 = vpop.f32.mrf.mxu0
      %v2178 = vadd.f32 0.0, %v2177
      %2179 = vmatmul.bf16.gmra.mxu0 %v1523
      %v2180 = vpop.f32.mrf.mxu0
      %v2181 = vadd.f32 0.0, %v2180
      %v2182 = vpop.f32.mrf.mxu0
      %v2183 = vadd.f32 0.0, %v2182
      %2184 = vmatmul.bf16.gmra.mxu0 %v1524
      %v2185 = vpop.f32.mrf.mxu0
      %v2186 = vadd.f32 0.0, %v2185
      %v2187 = vpop.f32.mrf.mxu0
      %v2188 = vadd.f32 0.0, %v2187
      %2189 = vmatmul.bf16.gmra.mxu0 %v1525
      %v2190 = vpop.f32.mrf.mxu0
      %v2191 = vadd.f32 0.0, %v2190
      %v2192 = vpop.f32.mrf.mxu0
      %v2193 = vadd.f32 0.0, %v2192
      %2194 = vmatmul.bf16.gmra.mxu0 %v1526
      %v2195 = vpop.f32.mrf.mxu0
      %v2196 = vadd.f32 0.0, %v2195
      %v2197 = vpop.f32.mrf.mxu0
      %v2198 = vadd.f32 0.0, %v2197
      %2199 = vmatmul.bf16.gmra.mxu0 %v1527
      %v2200 = vpop.f32.mrf.mxu0
      %v2201 = vadd.f32 0.0, %v2200
      %v2202 = vpop.f32.mrf.mxu0
      %v2203 = vadd.f32 0.0, %v2202
      %2204 = vmatmul.bf16.gmra.mxu0 %v1528
      %v2205 = vpop.f32.mrf.mxu0
      %v2206 = vadd.f32 0.0, %v2205
      %v2207 = vpop.f32.mrf.mxu0
      %v2208 = vadd.f32 0.0, %v2207
      %2209 = vmatmul.bf16.gmra.mxu0 %v1529
      %v2210 = vpop.f32.mrf.mxu0
      %v2211 = vadd.f32 0.0, %v2210
      %v2212 = vpop.f32.mrf.mxu0
      %v2213 = vadd.f32 0.0, %v2212
      %2214 = vmatmul.bf16.gmra.mxu0 %v1530
      %v2215 = vpop.f32.mrf.mxu0
      %v2216 = vadd.f32 0.0, %v2215
      %v2217 = vpop.f32.mrf.mxu0
      %v2218 = vadd.f32 0.0, %v2217
      %2219 = vmatmul.bf16.gmra.mxu0 %v1531
      %v2220 = vpop.f32.mrf.mxu0
      %v2221 = vadd.f32 0.0, %v2220
      %v2222 = vpop.f32.mrf.mxu0
      %v2223 = vadd.f32 0.0, %v2222
      %2224 = vmatmul.bf16.gmra.mxu0 %v1532
      %v2225 = vpop.f32.mrf.mxu0
      %v2226 = vadd.f32 0.0, %v2225
      %v2227 = vpop.f32.mrf.mxu0
      %v2228 = vadd.f32 0.0, %v2227
      %2229 = vmatmul.bf16.gmra.mxu0 %v1533
      %v2230 = vpop.f32.mrf.mxu0
      %v2231 = vadd.f32 0.0, %v2230
      %v2232 = vpop.f32.mrf.mxu0
      %v2233 = vadd.f32 0.0, %v2232
      %2234 = vmatmul.bf16.gmra.mxu0 %v2101
      %v2235 = vpop.f32.mrf.mxu0
      %v2236 = vadd.f32 0.0, %v2235
      %v2237 = vpop.f32.mrf.mxu0
      %v2238 = vadd.f32 0.0, %v2237
      %2239 = vdwg.mxu0
      %v2240 = vadd.f32 %v2059, %v2161
      %v2241 = vadd.f32 %v2060, %v2163
      %v2242 = vadd.f32 %v2061, %v2166
      %v2243 = vadd.f32 %v2062, %v2168
      %v2244 = vadd.f32 %v2063, %v2171
      %v2245 = vadd.f32 %v2064, %v2173
      %v2246 = vadd.f32 %v2065, %v2176
      %v2247 = vadd.f32 %v2066, %v2178
      %v2248 = vadd.f32 %v2067, %v2181
      %v2249 = vadd.f32 %v2068, %v2183
      %v2250 = vadd.f32 %v2069, %v2186
      %v2251 = vadd.f32 %v2070, %v2188
      %v2252 = vadd.f32 %v2071, %v2191
      %v2253 = vadd.f32 %v2072, %v2193
      %v2254 = vadd.f32 %v2073, %v2196
      %v2255 = vadd.f32 %v2074, %v2198
      %v2256 = vadd.f32 %v2075, %v2201
      %v2257 = vadd.f32 %v2076, %v2203
      %v2258 = vadd.f32 %v2077, %v2206
      %v2259 = vadd.f32 %v2078, %v2208
      %v2260 = vadd.f32 %v2079, %v2211
      %v2261 = vadd.f32 %v2080, %v2213
      %v2262 = vadd.f32 %v2081, %v2216
      %v2263 = vadd.f32 %v2082, %v2218
      %v2264 = vadd.f32 %v2083, %v2221
      %v2265 = vadd.f32 %v2084, %v2223
      %v2266 = vadd.f32 %v2085, %v2226
      %v2267 = vadd.f32 %v2086, %v2228
      %v2268 = vadd.f32 %v2087, %v2231
      %v2269 = vadd.f32 %v2088, %v2233
      %v2270 = vadd.f32 %v2089, %v2236
      %v2271 = vadd.f32 %v2090, %v2238
      %v2274 = vunpack.c.l.b16 %v387
      %v2275 = vunpack.c.l.b16 %v388
      %v2276 = vpack.c.b16 %v2275, %v2274
      %v2294 = vunpack.c.l.b16 %v486
      %v2295 = vunpack.c.l.b16 %v487
      %v2296 = vunpack.c.l.b16 %v488
      %v2297 = vunpack.c.l.b16 %v489
      %v2298 = vunpack.c.l.b16 %v490
      %v2299 = vunpack.c.l.b16 %v491
      %v2300 = vunpack.c.l.b16 %v492
      %v2301 = vunpack.c.l.b16 %v493
      %v2302 = vunpack.c.l.b16 %v494
      %v2303 = vunpack.c.l.b16 %v495
      %v2304 = vunpack.c.l.b16 %v496
      %v2305 = vunpack.c.l.b16 %v497
      %v2306 = vunpack.c.l.b16 %v498
      %v2307 = vunpack.c.l.b16 %v499
      %v2308 = vunpack.c.l.b16 %v500
      %v2309 = vunpack.c.l.b16 %v501
      %v2310 = vpack.c.b16 %v2295, %v2294
      %v2311 = vpack.c.b16 %v2297, %v2296
      %v2312 = vpack.c.b16 %v2299, %v2298
      %v2313 = vpack.c.b16 %v2301, %v2300
      %v2314 = vpack.c.b16 %v2303, %v2302
      %v2315 = vpack.c.b16 %v2305, %v2304
      %v2316 = vpack.c.b16 %v2307, %v2306
      %v2317 = vpack.c.b16 %v2309, %v2308
      %2326 = vmatpush.bf16.msra.mxu0 %v2317
      %2327 = vmatpush.bf16.msra.mxu0 %v2316
      %2328 = vmatpush.bf16.msra.mxu0 %v2315
      %2329 = vmatpush.bf16.msra.mxu0 %v2314
      %2330 = vmatpush.bf16.msra.mxu0 %v2313
      %2331 = vmatpush.bf16.msra.mxu0 %v2312
      %2332 = vmatpush.bf16.msra.mxu0 %v2311
      %2333 = vmatpush.bf16.msra.mxu0 %v2310
      %2334 = vmatmul.bf16.gmra.mxu0 %v1188
      %v2335 = vpop.f32.mrf.mxu0
      %v2336 = vadd.f32 0.0, %v2335
      %v2337 = vpop.f32.mrf.mxu0
      %v2338 = vadd.f32 0.0, %v2337
      %2339 = vmatmul.bf16.gmra.mxu0 %v1189
      %v2340 = vpop.f32.mrf.mxu0
      %v2341 = vadd.f32 0.0, %v2340
      %v2342 = vpop.f32.mrf.mxu0
      %v2343 = vadd.f32 0.0, %v2342
      %2344 = vmatmul.bf16.gmra.mxu0 %v1190
      %v2345 = vpop.f32.mrf.mxu0
      %v2346 = vadd.f32 0.0, %v2345
      %v2347 = vpop.f32.mrf.mxu0
      %v2348 = vadd.f32 0.0, %v2347
      %2349 = vmatmul.bf16.gmra.mxu0 %v1191
      %v2350 = vpop.f32.mrf.mxu0
      %v2351 = vadd.f32 0.0, %v2350
      %v2352 = vpop.f32.mrf.mxu0
      %v2353 = vadd.f32 0.0, %v2352
      %2354 = vmatmul.bf16.gmra.mxu0 %v1192
      %v2355 = vpop.f32.mrf.mxu0
      %v2356 = vadd.f32 0.0, %v2355
      %v2357 = vpop.f32.mrf.mxu0
      %v2358 = vadd.f32 0.0, %v2357
      %2359 = vmatmul.bf16.gmra.mxu0 %v1193
      %v2360 = vpop.f32.mrf.mxu0
      %v2361 = vadd.f32 0.0, %v2360
      %v2362 = vpop.f32.mrf.mxu0
      %v2363 = vadd.f32 0.0, %v2362
      %2364 = vmatmul.bf16.gmra.mxu0 %v1194
      %v2365 = vpop.f32.mrf.mxu0
      %v2366 = vadd.f32 0.0, %v2365
      %v2367 = vpop.f32.mrf.mxu0
      %v2368 = vadd.f32 0.0, %v2367
      %2369 = vmatmul.bf16.gmra.mxu0 %v1195
      %v2370 = vpop.f32.mrf.mxu0
      %v2371 = vadd.f32 0.0, %v2370
      %v2372 = vpop.f32.mrf.mxu0
      %v2373 = vadd.f32 0.0, %v2372
      %2374 = vmatmul.bf16.gmra.mxu0 %v1196
      %v2375 = vpop.f32.mrf.mxu0
      %v2376 = vadd.f32 0.0, %v2375
      %v2377 = vpop.f32.mrf.mxu0
      %v2378 = vadd.f32 0.0, %v2377
      %2379 = vmatmul.bf16.gmra.mxu0 %v1197
      %v2380 = vpop.f32.mrf.mxu0
      %v2381 = vadd.f32 0.0, %v2380
      %v2382 = vpop.f32.mrf.mxu0
      %v2383 = vadd.f32 0.0, %v2382
      %2384 = vmatmul.bf16.gmra.mxu0 %v1198
      %v2385 = vpop.f32.mrf.mxu0
      %v2386 = vadd.f32 0.0, %v2385
      %v2387 = vpop.f32.mrf.mxu0
      %v2388 = vadd.f32 0.0, %v2387
      %2389 = vmatmul.bf16.gmra.mxu0 %v1199
      %v2390 = vpop.f32.mrf.mxu0
      %v2391 = vadd.f32 0.0, %v2390
      %v2392 = vpop.f32.mrf.mxu0
      %v2393 = vadd.f32 0.0, %v2392
      %2394 = vmatmul.bf16.gmra.mxu0 %v1200
      %v2395 = vpop.f32.mrf.mxu0
      %v2396 = vadd.f32 0.0, %v2395
      %v2397 = vpop.f32.mrf.mxu0
      %v2398 = vadd.f32 0.0, %v2397
      %2399 = vmatmul.bf16.gmra.mxu0 %v1201
      %v2400 = vpop.f32.mrf.mxu0
      %v2401 = vadd.f32 0.0, %v2400
      %v2402 = vpop.f32.mrf.mxu0
      %v2403 = vadd.f32 0.0, %v2402
      %2404 = vmatmul.bf16.gmra.mxu0 %v1723
      %v2405 = vpop.f32.mrf.mxu0
      %v2406 = vadd.f32 0.0, %v2405
      %v2407 = vpop.f32.mrf.mxu0
      %v2408 = vadd.f32 0.0, %v2407
      %2409 = vmatmul.bf16.gmra.mxu0 %v2276
      %v2410 = vpop.f32.mrf.mxu0
      %v2411 = vadd.f32 0.0, %v2410
      %v2412 = vpop.f32.mrf.mxu0
      %v2413 = vadd.f32 0.0, %v2412
      %2414 = vdwg.mxu0
      %v2415 = vadd.f32 %v2240, %v2336
      %v2416 = vadd.f32 %v2241, %v2338
      %v2417 = vadd.f32 %v2242, %v2341
      %v2418 = vadd.f32 %v2243, %v2343
      %v2419 = vadd.f32 %v2244, %v2346
      %v2420 = vadd.f32 %v2245, %v2348
      %v2421 = vadd.f32 %v2246, %v2351
      %v2422 = vadd.f32 %v2247, %v2353
      %v2423 = vadd.f32 %v2248, %v2356
      %v2424 = vadd.f32 %v2249, %v2358
      %v2425 = vadd.f32 %v2250, %v2361
      %v2426 = vadd.f32 %v2251, %v2363
      %v2427 = vadd.f32 %v2252, %v2366
      %v2428 = vadd.f32 %v2253, %v2368
      %v2429 = vadd.f32 %v2254, %v2371
      %v2430 = vadd.f32 %v2255, %v2373
      %v2431 = vadd.f32 %v2256, %v2376
      %v2432 = vadd.f32 %v2257, %v2378
      %v2433 = vadd.f32 %v2258, %v2381
      %v2434 = vadd.f32 %v2259, %v2383
      %v2435 = vadd.f32 %v2260, %v2386
      %v2436 = vadd.f32 %v2261, %v2388
      %v2437 = vadd.f32 %v2262, %v2391
      %v2438 = vadd.f32 %v2263, %v2393
      %v2439 = vadd.f32 %v2264, %v2396
      %v2440 = vadd.f32 %v2265, %v2398
      %v2441 = vadd.f32 %v2266, %v2401
      %v2442 = vadd.f32 %v2267, %v2403
      %v2443 = vadd.f32 %v2268, %v2406
      %v2444 = vadd.f32 %v2269, %v2408
      %v2445 = vadd.f32 %v2270, %v2411
      %v2446 = vadd.f32 %v2271, %v2413
      %v2448 = vshrl.u32 %v387, 16
      %v2450 = vrot.slane %v2448, 4
      %v2451 = vshll.u32 %v387, 16
      %v2453 = vrot.slane %v2451, 5
      %v2454 = vor.u32 %v2450, %v2453
      %v2455 = vrot.slane %v2454, 4
      %v2457 = vshll.u32 %v388, 16
      %v2459 = vrot.slane %v2457, 5
      %v2460 = vsel %vm536, %v2455, %v2459
      %v2461 = vshrl.u32 %v388, 16
      %v2463 = vrot.slane %v2461, 4
      %v2464 = vor.u32 %v2463, %v2459
      %v2465 = vrot.slane %v2464, 4
      %v2467 = vshll.u32 %v389, 16
      %v2469 = vrot.slane %v2467, 5
      %v2470 = vsel %vm536, %v2465, %v2469
      %v2471 = vunpack.c.l.b16 %v2460
      %v2472 = vunpack.c.l.b16 %v2470
      %v2473 = vpack.c.b16 %v2472, %v2471
      %v2491 = vunpack.c.l.b16 %v502
      %v2492 = vunpack.c.l.b16 %v503
      %v2493 = vunpack.c.l.b16 %v504
      %v2494 = vunpack.c.l.b16 %v505
      %v2495 = vunpack.c.l.b16 %v506
      %v2496 = vunpack.c.l.b16 %v507
      %v2497 = vunpack.c.l.b16 %v508
      %v2498 = vunpack.c.l.b16 %v509
      %v2499 = vunpack.c.l.b16 %v510
      %v2500 = vunpack.c.l.b16 %v511
      %v2501 = vunpack.c.l.b16 %v512
      %v2502 = vunpack.c.l.b16 %v513
      %v2503 = vunpack.c.l.b16 %v514
      %v2504 = vunpack.c.l.b16 %v515
      %v2505 = vunpack.c.l.b16 %v516
      %v2506 = vunpack.c.l.b16 %v517
      %v2507 = vpack.c.b16 %v2492, %v2491
      %v2508 = vpack.c.b16 %v2494, %v2493
      %v2509 = vpack.c.b16 %v2496, %v2495
      %v2510 = vpack.c.b16 %v2498, %v2497
      %v2511 = vpack.c.b16 %v2500, %v2499
      %v2512 = vpack.c.b16 %v2502, %v2501
      %v2513 = vpack.c.b16 %v2504, %v2503
      %v2514 = vpack.c.b16 %v2506, %v2505
      %2523 = vmatpush.bf16.msra.mxu0 %v2514
      %2524 = vmatpush.bf16.msra.mxu0 %v2513
      %2525 = vmatpush.bf16.msra.mxu0 %v2512
      %2526 = vmatpush.bf16.msra.mxu0 %v2511
      %2527 = vmatpush.bf16.msra.mxu0 %v2510
      %2528 = vmatpush.bf16.msra.mxu0 %v2509
      %2529 = vmatpush.bf16.msra.mxu0 %v2508
      %2530 = vmatpush.bf16.msra.mxu0 %v2507
      %2531 = vmatmul.bf16.gmra.mxu0 %v955
      %v2532 = vpop.f32.mrf.mxu0
      %v2533 = vadd.f32 0.0, %v2532
      %v2534 = vpop.f32.mrf.mxu0
      %v2535 = vadd.f32 0.0, %v2534
      %2536 = vmatmul.bf16.gmra.mxu0 %v956
      %v2537 = vpop.f32.mrf.mxu0
      %v2538 = vadd.f32 0.0, %v2537
      %v2539 = vpop.f32.mrf.mxu0
      %v2540 = vadd.f32 0.0, %v2539
      %2541 = vmatmul.bf16.gmra.mxu0 %v957
      %v2542 = vpop.f32.mrf.mxu0
      %v2543 = vadd.f32 0.0, %v2542
      %v2544 = vpop.f32.mrf.mxu0
      %v2545 = vadd.f32 0.0, %v2544
      %2546 = vmatmul.bf16.gmra.mxu0 %v958
      %v2547 = vpop.f32.mrf.mxu0
      %v2548 = vadd.f32 0.0, %v2547
      %v2549 = vpop.f32.mrf.mxu0
      %v2550 = vadd.f32 0.0, %v2549
      %2551 = vmatmul.bf16.gmra.mxu0 %v959
      %v2552 = vpop.f32.mrf.mxu0
      %v2553 = vadd.f32 0.0, %v2552
      %v2554 = vpop.f32.mrf.mxu0
      %v2555 = vadd.f32 0.0, %v2554
      %2556 = vmatmul.bf16.gmra.mxu0 %v960
      %v2557 = vpop.f32.mrf.mxu0
      %v2558 = vadd.f32 0.0, %v2557
      %v2559 = vpop.f32.mrf.mxu0
      %v2560 = vadd.f32 0.0, %v2559
      %2561 = vmatmul.bf16.gmra.mxu0 %v961
      %v2562 = vpop.f32.mrf.mxu0
      %v2563 = vadd.f32 0.0, %v2562
      %v2564 = vpop.f32.mrf.mxu0
      %v2565 = vadd.f32 0.0, %v2564
      %2566 = vmatmul.bf16.gmra.mxu0 %v962
      %v2567 = vpop.f32.mrf.mxu0
      %v2568 = vadd.f32 0.0, %v2567
      %v2569 = vpop.f32.mrf.mxu0
      %v2570 = vadd.f32 0.0, %v2569
      %2571 = vmatmul.bf16.gmra.mxu0 %v963
      %v2572 = vpop.f32.mrf.mxu0
      %v2573 = vadd.f32 0.0, %v2572
      %v2574 = vpop.f32.mrf.mxu0
      %v2575 = vadd.f32 0.0, %v2574
      %2576 = vmatmul.bf16.gmra.mxu0 %v964
      %v2577 = vpop.f32.mrf.mxu0
      %v2578 = vadd.f32 0.0, %v2577
      %v2579 = vpop.f32.mrf.mxu0
      %v2580 = vadd.f32 0.0, %v2579
      %2581 = vmatmul.bf16.gmra.mxu0 %v965
      %v2582 = vpop.f32.mrf.mxu0
      %v2583 = vadd.f32 0.0, %v2582
      %v2584 = vpop.f32.mrf.mxu0
      %v2585 = vadd.f32 0.0, %v2584
      %2586 = vmatmul.bf16.gmra.mxu0 %v966
      %v2587 = vpop.f32.mrf.mxu0
      %v2588 = vadd.f32 0.0, %v2587
      %v2589 = vpop.f32.mrf.mxu0
      %v2590 = vadd.f32 0.0, %v2589
      %2591 = vmatmul.bf16.gmra.mxu0 %v967
      %v2592 = vpop.f32.mrf.mxu0
      %v2593 = vadd.f32 0.0, %v2592
      %v2594 = vpop.f32.mrf.mxu0
      %v2595 = vadd.f32 0.0, %v2594
      %2596 = vmatmul.bf16.gmra.mxu0 %v968
      %v2597 = vpop.f32.mrf.mxu0
      %v2598 = vadd.f32 0.0, %v2597
      %v2599 = vpop.f32.mrf.mxu0
      %v2600 = vadd.f32 0.0, %v2599
      %2601 = vmatmul.bf16.gmra.mxu0 %v1920
      %v2602 = vpop.f32.mrf.mxu0
      %v2603 = vadd.f32 0.0, %v2602
      %v2604 = vpop.f32.mrf.mxu0
      %v2605 = vadd.f32 0.0, %v2604
      %2606 = vmatmul.bf16.gmra.mxu0 %v2473
      %v2607 = vpop.f32.mrf.mxu0
      %v2608 = vadd.f32 0.0, %v2607
      %v2609 = vpop.f32.mrf.mxu0
      %v2610 = vadd.f32 0.0, %v2609
      %2611 = vdwg.mxu0
      %v2612 = vadd.f32 %v2415, %v2533
      %v2613 = vadd.f32 %v2416, %v2535
      %v2614 = vadd.f32 %v2417, %v2538
      %v2615 = vadd.f32 %v2418, %v2540
      %v2616 = vadd.f32 %v2419, %v2543
      %v2617 = vadd.f32 %v2420, %v2545
      %v2618 = vadd.f32 %v2421, %v2548
      %v2619 = vadd.f32 %v2422, %v2550
      %v2620 = vadd.f32 %v2423, %v2553
      %v2621 = vadd.f32 %v2424, %v2555
      %v2622 = vadd.f32 %v2425, %v2558
      %v2623 = vadd.f32 %v2426, %v2560
      %v2624 = vadd.f32 %v2427, %v2563
      %v2625 = vadd.f32 %v2428, %v2565
      %v2626 = vadd.f32 %v2429, %v2568
      %v2627 = vadd.f32 %v2430, %v2570
      %v2628 = vadd.f32 %v2431, %v2573
      %v2629 = vadd.f32 %v2432, %v2575
      %v2630 = vadd.f32 %v2433, %v2578
      %v2631 = vadd.f32 %v2434, %v2580
      %v2632 = vadd.f32 %v2435, %v2583
      %v2633 = vadd.f32 %v2436, %v2585
      %v2634 = vadd.f32 %v2437, %v2588
      %v2635 = vadd.f32 %v2438, %v2590
      %v2636 = vadd.f32 %v2439, %v2593
      %v2637 = vadd.f32 %v2440, %v2595
      %v2638 = vadd.f32 %v2441, %v2598
      %v2639 = vadd.f32 %v2442, %v2600
      %v2640 = vadd.f32 %v2443, %v2603
      %v2641 = vadd.f32 %v2444, %v2605
      %v2642 = vadd.f32 %v2445, %v2608
      %v2643 = vadd.f32 %v2446, %v2610
      %v2645 = vrot.slane %v387, 5
      %v2646 = vrot.slane %v2645, 4
      %v2647 = vrot.slane %v388, 5
      %v2648 = vsel %vm1373, %v2646, %v2647
      %v2649 = vrot.slane %v2647, 4
      %v2650 = vrot.slane %v389, 5
      %v2651 = vsel %vm1373, %v2649, %v2650
      %v2652 = vunpack.c.l.b16 %v2648
      %v2653 = vunpack.c.l.b16 %v2651
      %v2654 = vpack.c.b16 %v2653, %v2652
      %v2672 = vunpack.c.l.b16 %v518
      %v2673 = vunpack.c.l.b16 %v519
      %v2674 = vunpack.c.l.b16 %v520
      %v2675 = vunpack.c.l.b16 %v521
      %v2676 = vunpack.c.l.b16 %v522
      %v2677 = vunpack.c.l.b16 %v523
      %v2678 = vunpack.c.l.b16 %v524
      %v2679 = vunpack.c.l.b16 %v525
      %v2680 = vunpack.c.l.b16 %v526
      %v2681 = vunpack.c.l.b16 %v527
      %v2682 = vunpack.c.l.b16 %v528
      %v2683 = vunpack.c.l.b16 %v529
      %v2684 = vunpack.c.l.b16 %v530
      %v2685 = vunpack.c.l.b16 %v531
      %v2686 = vunpack.c.l.b16 %v532
      %v2687 = vunpack.c.l.b16 %v533
      %v2688 = vpack.c.b16 %v2673, %v2672
      %v2689 = vpack.c.b16 %v2675, %v2674
      %v2690 = vpack.c.b16 %v2677, %v2676
      %v2691 = vpack.c.b16 %v2679, %v2678
      %v2692 = vpack.c.b16 %v2681, %v2680
      %v2693 = vpack.c.b16 %v2683, %v2682
      %v2694 = vpack.c.b16 %v2685, %v2684
      %v2695 = vpack.c.b16 %v2687, %v2686
      %2704 = vmatpush.bf16.msra.mxu0 %v2695
      %2705 = vmatpush.bf16.msra.mxu0 %v2694
      %2706 = vmatpush.bf16.msra.mxu0 %v2693
      %2707 = vmatpush.bf16.msra.mxu0 %v2692
      %2708 = vmatpush.bf16.msra.mxu0 %v2691
      %2709 = vmatpush.bf16.msra.mxu0 %v2690
      %2710 = vmatpush.bf16.msra.mxu0 %v2689
      %2711 = vmatpush.bf16.msra.mxu0 %v2688
      %2712 = vmatmul.bf16.gmra.mxu0 %v1520
      %v2713 = vpop.f32.mrf.mxu0
      %v2714 = vadd.f32 0.0, %v2713
      %v2715 = vpop.f32.mrf.mxu0
      %v2716 = vadd.f32 0.0, %v2715
      %2717 = vmatmul.bf16.gmra.mxu0 %v1521
      %v2718 = vpop.f32.mrf.mxu0
      %v2719 = vadd.f32 0.0, %v2718
      %v2720 = vpop.f32.mrf.mxu0
      %v2721 = vadd.f32 0.0, %v2720
      %2722 = vmatmul.bf16.gmra.mxu0 %v1522
      %v2723 = vpop.f32.mrf.mxu0
      %v2724 = vadd.f32 0.0, %v2723
      %v2725 = vpop.f32.mrf.mxu0
      %v2726 = vadd.f32 0.0, %v2725
      %2727 = vmatmul.bf16.gmra.mxu0 %v1523
      %v2728 = vpop.f32.mrf.mxu0
      %v2729 = vadd.f32 0.0, %v2728
      %v2730 = vpop.f32.mrf.mxu0
      %v2731 = vadd.f32 0.0, %v2730
      %2732 = vmatmul.bf16.gmra.mxu0 %v1524
      %v2733 = vpop.f32.mrf.mxu0
      %v2734 = vadd.f32 0.0, %v2733
      %v2735 = vpop.f32.mrf.mxu0
      %v2736 = vadd.f32 0.0, %v2735
      %2737 = vmatmul.bf16.gmra.mxu0 %v1525
      %v2738 = vpop.f32.mrf.mxu0
      %v2739 = vadd.f32 0.0, %v2738
      %v2740 = vpop.f32.mrf.mxu0
      %v2741 = vadd.f32 0.0, %v2740
      %2742 = vmatmul.bf16.gmra.mxu0 %v1526
      %v2743 = vpop.f32.mrf.mxu0
      %v2744 = vadd.f32 0.0, %v2743
      %v2745 = vpop.f32.mrf.mxu0
      %v2746 = vadd.f32 0.0, %v2745
      %2747 = vmatmul.bf16.gmra.mxu0 %v1527
      %v2748 = vpop.f32.mrf.mxu0
      %v2749 = vadd.f32 0.0, %v2748
      %v2750 = vpop.f32.mrf.mxu0
      %v2751 = vadd.f32 0.0, %v2750
      %2752 = vmatmul.bf16.gmra.mxu0 %v1528
      %v2753 = vpop.f32.mrf.mxu0
      %v2754 = vadd.f32 0.0, %v2753
      %v2755 = vpop.f32.mrf.mxu0
      %v2756 = vadd.f32 0.0, %v2755
      %2757 = vmatmul.bf16.gmra.mxu0 %v1529
      %v2758 = vpop.f32.mrf.mxu0
      %v2759 = vadd.f32 0.0, %v2758
      %v2760 = vpop.f32.mrf.mxu0
      %v2761 = vadd.f32 0.0, %v2760
      %2762 = vmatmul.bf16.gmra.mxu0 %v1530
      %v2763 = vpop.f32.mrf.mxu0
      %v2764 = vadd.f32 0.0, %v2763
      %v2765 = vpop.f32.mrf.mxu0
      %v2766 = vadd.f32 0.0, %v2765
      %2767 = vmatmul.bf16.gmra.mxu0 %v1531
      %v2768 = vpop.f32.mrf.mxu0
      %v2769 = vadd.f32 0.0, %v2768
      %v2770 = vpop.f32.mrf.mxu0
      %v2771 = vadd.f32 0.0, %v2770
      %2772 = vmatmul.bf16.gmra.mxu0 %v1532
      %v2773 = vpop.f32.mrf.mxu0
      %v2774 = vadd.f32 0.0, %v2773
      %v2775 = vpop.f32.mrf.mxu0
      %v2776 = vadd.f32 0.0, %v2775
      %2777 = vmatmul.bf16.gmra.mxu0 %v1533
      %v2778 = vpop.f32.mrf.mxu0
      %v2779 = vadd.f32 0.0, %v2778
      %v2780 = vpop.f32.mrf.mxu0
      %v2781 = vadd.f32 0.0, %v2780
      %2782 = vmatmul.bf16.gmra.mxu0 %v2101
      %v2783 = vpop.f32.mrf.mxu0
      %v2784 = vadd.f32 0.0, %v2783
      %v2785 = vpop.f32.mrf.mxu0
      %v2786 = vadd.f32 0.0, %v2785
      %2787 = vmatmul.bf16.gmra.mxu0 %v2654
      %v2788 = vpop.f32.mrf.mxu0
      %v2789 = vadd.f32 0.0, %v2788
      %v2790 = vpop.f32.mrf.mxu0
      %v2791 = vadd.f32 0.0, %v2790
      %2792 = vdwg.mxu0
      %v2793 = vadd.f32 %v2612, %v2714
      %v2794 = vadd.f32 %v2613, %v2716
      %v2795 = vadd.f32 %v2614, %v2719
      %v2796 = vadd.f32 %v2615, %v2721
      %v2797 = vadd.f32 %v2616, %v2724
      %v2798 = vadd.f32 %v2617, %v2726
      %v2799 = vadd.f32 %v2618, %v2729
      %v2800 = vadd.f32 %v2619, %v2731
      %v2801 = vadd.f32 %v2620, %v2734
      %v2802 = vadd.f32 %v2621, %v2736
      %v2803 = vadd.f32 %v2622, %v2739
      %v2804 = vadd.f32 %v2623, %v2741
      %v2805 = vadd.f32 %v2624, %v2744
      %v2806 = vadd.f32 %v2625, %v2746
      %v2807 = vadd.f32 %v2626, %v2749
      %v2808 = vadd.f32 %v2627, %v2751
      %v2809 = vadd.f32 %v2628, %v2754
      %v2810 = vadd.f32 %v2629, %v2756
      %v2811 = vadd.f32 %v2630, %v2759
      %v2812 = vadd.f32 %v2631, %v2761
      %v2813 = vadd.f32 %v2632, %v2764
      %v2814 = vadd.f32 %v2633, %v2766
      %v2815 = vadd.f32 %v2634, %v2769
      %v2816 = vadd.f32 %v2635, %v2771
      %v2817 = vadd.f32 %v2636, %v2774
      %v2818 = vadd.f32 %v2637, %v2776
      %v2819 = vadd.f32 %v2638, %v2779
      %v2820 = vadd.f32 %v2639, %v2781
      %v2821 = vadd.f32 %v2640, %v2784
      %v2822 = vadd.f32 %v2641, %v2786
      %v2823 = vadd.f32 %v2642, %v2789
      %v2824 = vadd.f32 %v2643, %v2791
      %v2825 = vpack.c.bf16 %v2793, %v2793
      %v2826 = vpack.c.bf16 %v2794, %v2794
      %v2827 = vpack.c.bf16 %v2795, %v2795
      %v2828 = vpack.c.bf16 %v2796, %v2796
      %v2829 = vpack.c.bf16 %v2797, %v2797
      %v2830 = vpack.c.bf16 %v2798, %v2798
      %v2831 = vpack.c.bf16 %v2799, %v2799
      %v2832 = vpack.c.bf16 %v2800, %v2800
      %v2833 = vpack.c.bf16 %v2801, %v2801
      %v2834 = vpack.c.bf16 %v2802, %v2802
      %v2835 = vpack.c.bf16 %v2803, %v2803
      %v2836 = vpack.c.bf16 %v2804, %v2804
      %v2837 = vpack.c.bf16 %v2805, %v2805
      %v2838 = vpack.c.bf16 %v2806, %v2806
      %v2839 = vpack.c.bf16 %v2807, %v2807
      %v2840 = vpack.c.bf16 %v2808, %v2808
      %v2841 = vpack.c.bf16 %v2809, %v2809
      %v2842 = vpack.c.bf16 %v2810, %v2810
      %v2843 = vpack.c.bf16 %v2811, %v2811
      %v2844 = vpack.c.bf16 %v2812, %v2812
      %v2845 = vpack.c.bf16 %v2813, %v2813
      %v2846 = vpack.c.bf16 %v2814, %v2814
      %v2847 = vpack.c.bf16 %v2815, %v2815
      %v2848 = vpack.c.bf16 %v2816, %v2816
      %v2849 = vpack.c.bf16 %v2817, %v2817
      %v2850 = vpack.c.bf16 %v2818, %v2818
      %v2851 = vpack.c.bf16 %v2819, %v2819
      %v2852 = vpack.c.bf16 %v2820, %v2820
      %v2853 = vpack.c.bf16 %v2821, %v2821
      %v2854 = vpack.c.bf16 %v2822, %v2822
      %v2855 = vpack.c.bf16 %v2823, %v2823
      %v2856 = vpack.c.bf16 %v2824, %v2824
      %2857 = vst [vmem:[%s328] sm:$0xf] %v2825
      %2858 = vst [vmem:[%s328 + $0x4] sm:$0xf] %v2826
      %2859 = vst [vmem:[%s328 + $0x8] sm:$0xf] %v2827
      %2860 = vst [vmem:[%s328 + $0xc] sm:$0xf] %v2828
      %2861 = vst [vmem:[%s328 + $0x10] sm:$0xf] %v2829
      %2862 = vst [vmem:[%s328 + $0x14] sm:$0xf] %v2830
      %2863 = vst [vmem:[%s328 + $0x18] sm:$0xf] %v2831
      %2864 = vst [vmem:[%s328 + $0x1c] sm:$0xf] %v2832
      %2865 = vst [vmem:[%s328 + $0x20] sm:$0xf] %v2833
      %2866 = vst [vmem:[%s328 + $0x24] sm:$0xf] %v2834
      %2867 = vst [vmem:[%s328 + $0x28] sm:$0xf] %v2835
      %2868 = vst [vmem:[%s328 + $0x2c] sm:$0xf] %v2836
      %2869 = vst [vmem:[%s328 + $0x30] sm:$0xf] %v2837
      %2870 = vst [vmem:[%s328 + $0x34] sm:$0xf] %v2838
      %2871 = vst [vmem:[%s328 + $0x38] sm:$0xf] %v2839
      %2872 = vst [vmem:[%s328 + $0x3c] sm:$0xf] %v2840
      %2873 = vst [vmem:[%s328 + $0x40] sm:$0xf] %v2841
      %2874 = vst [vmem:[%s328 + $0x44] sm:$0xf] %v2842
      %2875 = vst [vmem:[%s328 + $0x48] sm:$0xf] %v2843
      %2876 = vst [vmem:[%s328 + $0x4c] sm:$0xf] %v2844
      %2877 = vst [vmem:[%s328 + $0x50] sm:$0xf] %v2845
      %2878 = vst [vmem:[%s328 + $0x54] sm:$0xf] %v2846
      %2879 = vst [vmem:[%s328 + $0x58] sm:$0xf] %v2847
      %2880 = vst [vmem:[%s328 + $0x5c] sm:$0xf] %v2848
      %2881 = vst [vmem:[%s328 + $0x60] sm:$0xf] %v2849
      %2882 = vst [vmem:[%s328 + $0x64] sm:$0xf] %v2850
      %2883 = vst [vmem:[%s328 + $0x68] sm:$0xf] %v2851
      %2884 = vst [vmem:[%s328 + $0x6c] sm:$0xf] %v2852
      %2885 = vst [vmem:[%s328 + $0x70] sm:$0xf] %v2853
      %2886 = vst [vmem:[%s328 + $0x74] sm:$0xf] %v2854
      %2887 = vst [vmem:[%s328 + $0x78] sm:$0xf] %v2855
      %2888 = vst [vmem:[%s328 + $0x7c] sm:$0xf] %v2856
      %v2889 = vadd.f32 %v2793, %v2794
      %v2890 = vadd.f32 %v2889, %v2795
      %v2891 = vadd.f32 %v2890, %v2796
      %v2892 = vadd.f32 %v2891, %v2797
      %v2893 = vadd.f32 %v2892, %v2798
      %v2894 = vadd.f32 %v2893, %v2799
      %v2895 = vadd.f32 %v2894, %v2800
      %v2896 = vadd.f32 %v2895, %v2801
      %v2897 = vadd.f32 %v2896, %v2802
      %v2898 = vadd.f32 %v2897, %v2803
      %v2899 = vadd.f32 %v2898, %v2804
      %v2900 = vadd.f32 %v2899, %v2805
      %v2901 = vadd.f32 %v2900, %v2806
      %v2902 = vadd.f32 %v2901, %v2807
      %v2903 = vadd.f32 %v2902, %v2808
      %v2904 = vadd.f32 %v2903, %v2809
      %v2905 = vadd.f32 %v2904, %v2810
      %v2906 = vadd.f32 %v2905, %v2811
      %v2907 = vadd.f32 %v2906, %v2812
      %v2908 = vadd.f32 %v2907, %v2813
      %v2909 = vadd.f32 %v2908, %v2814
      %v2910 = vadd.f32 %v2909, %v2815
      %v2911 = vadd.f32 %v2910, %v2816
      %v2912 = vadd.f32 %v2911, %v2817
      %v2913 = vadd.f32 %v2912, %v2818
      %v2914 = vadd.f32 %v2913, %v2819
      %v2915 = vadd.f32 %v2914, %v2820
      %v2916 = vadd.f32 %v2915, %v2821
      %v2917 = vadd.f32 %v2916, %v2822
      %v2918 = vadd.f32 %v2917, %v2823
      %v2919 = vadd.f32 %v2918, %v2824
      %v2920 = vrot.slane %v2919, 4
      %v2921 = vadd.f32 %v2919, %v2920
      %v2922 = vrot.slane %v2921, 2
      %v2923 = vadd.f32 %v2921, %v2922
      %v2924 = vrot.slane %v2923, 1
      %v2925 = vadd.f32 %v2923, %v2924
      %v2926 = vmul.f32 %v2793, %v2793
      %v2927 = vmul.f32 %v2794, %v2794
      %v2928 = vmul.f32 %v2795, %v2795
      %v2929 = vmul.f32 %v2796, %v2796
      %v2930 = vmul.f32 %v2797, %v2797
      %v2931 = vmul.f32 %v2798, %v2798
      %v2932 = vmul.f32 %v2799, %v2799
      %v2933 = vmul.f32 %v2800, %v2800
      %v2934 = vmul.f32 %v2801, %v2801
      %v2935 = vmul.f32 %v2802, %v2802
      %v2936 = vmul.f32 %v2803, %v2803
      %v2937 = vmul.f32 %v2804, %v2804
      %v2938 = vmul.f32 %v2805, %v2805
      %v2939 = vmul.f32 %v2806, %v2806
      %v2940 = vmul.f32 %v2807, %v2807
      %v2941 = vmul.f32 %v2808, %v2808
      %v2942 = vmul.f32 %v2809, %v2809
      %v2943 = vmul.f32 %v2810, %v2810
      %v2944 = vmul.f32 %v2811, %v2811
      %v2945 = vmul.f32 %v2812, %v2812
      %v2946 = vmul.f32 %v2813, %v2813
      %v2947 = vmul.f32 %v2814, %v2814
      %v2948 = vmul.f32 %v2815, %v2815
      %v2949 = vmul.f32 %v2816, %v2816
      %v2950 = vmul.f32 %v2817, %v2817
      %v2951 = vmul.f32 %v2818, %v2818
      %v2952 = vmul.f32 %v2819, %v2819
      %v2953 = vmul.f32 %v2820, %v2820
      %v2954 = vmul.f32 %v2821, %v2821
      %v2955 = vmul.f32 %v2822, %v2822
      %v2956 = vmul.f32 %v2823, %v2823
      %v2957 = vmul.f32 %v2824, %v2824
      %v2958 = vadd.f32 %v2926, %v2927
      %v2959 = vadd.f32 %v2958, %v2928
      %v2960 = vadd.f32 %v2959, %v2929
      %v2961 = vadd.f32 %v2960, %v2930
      %v2962 = vadd.f32 %v2961, %v2931
      %v2963 = vadd.f32 %v2962, %v2932
      %v2964 = vadd.f32 %v2963, %v2933
      %v2965 = vadd.f32 %v2964, %v2934
      %v2966 = vadd.f32 %v2965, %v2935
      %v2967 = vadd.f32 %v2966, %v2936
      %v2968 = vadd.f32 %v2967, %v2937
      %v2969 = vadd.f32 %v2968, %v2938
      %v2970 = vadd.f32 %v2969, %v2939
      %v2971 = vadd.f32 %v2970, %v2940
      %v2972 = vadd.f32 %v2971, %v2941
      %v2973 = vadd.f32 %v2972, %v2942
      %v2974 = vadd.f32 %v2973, %v2943
      %v2975 = vadd.f32 %v2974, %v2944
      %v2976 = vadd.f32 %v2975, %v2945
      %v2977 = vadd.f32 %v2976, %v2946
      %v2978 = vadd.f32 %v2977, %v2947
      %v2979 = vadd.f32 %v2978, %v2948
      %v2980 = vadd.f32 %v2979, %v2949
      %v2981 = vadd.f32 %v2980, %v2950
      %v2982 = vadd.f32 %v2981, %v2951
      %v2983 = vadd.f32 %v2982, %v2952
      %v2984 = vadd.f32 %v2983, %v2953
      %v2985 = vadd.f32 %v2984, %v2954
      %v2986 = vadd.f32 %v2985, %v2955
      %v2987 = vadd.f32 %v2986, %v2956
      %v2988 = vadd.f32 %v2987, %v2957
      %v2989 = vrot.slane %v2988, 4
      %v2990 = vadd.f32 %v2988, %v2989
      %v2991 = vrot.slane %v2990, 2
      %v2992 = vadd.f32 %v2990, %v2991
      %v2993 = vrot.slane %v2992, 1
      %v2994 = vadd.f32 %v2992, %v2993
      %vm2995 = vcmask 1040384
      %v2996 = vsel %vm2995, %v2925, %v2994
      %2997 = vst [vmem:[%s334] sm:$0x3] %v2996
      %s2998 = smul.u32 16, %s21
      %p2999 = scmp.lt.s32.totalorder %s20, 1
      %s3000 = scalar_select %p2999, %s20, 1
      %p3001 = scmp.lt.s32.totalorder %s2998, 15
      %s3002 = scalar_select %p3001, %s2998, 15
      %s3003 = smul.addr %s3002, 2
      %s3004 = smul.addr %s3000, 32
      %s3005 = sadd.s32 %s3003, %s3004
      %s3006 = smul.addr %s3005, 4
      %s3007 = scalar_lea.vmem %s3, %s3006
      %s3008 = sadd.s32 %s20, %s21
      %p3009 = scmp.lt.s32.totalorder %s3008, 1
      %s3010 = scalar_select %p3009, %s3008, 1
      %s3011 = smul.addr %s3010, 2
      %s3012 = scalar_lea.vmem %s4, %s3011
      // Predicated region
      $region33: #{up_forward.6} parent=31 // pred_check
        %p3013 = pneg %p129
      $region34: #{up_forward.6} parent=31 // pred_check_branch
        %3015 = sbr.rel (%p3013) target = $region36
      $region35: #{up_forward.6} parent=31 // pred_region
        %s3016 = smul.u32 16, %s21
      $region36: #{up_forward.6} parent=31 // pred_fallthru
        _
      // Predicated region
      $region37: #{up_forward.6} parent=31 // pred_check
        %p3017 = pneg %p157
      $region38: #{up_forward.6} parent=31 // pred_check_branch
        %3019 = sbr.rel (%p3017) target = $region40
      $region39: #{up_forward.6} parent=31 // pred_region
        %s3020 = sadd.s32 %s20, %s21
      $region40: #{up_forward.6} parent=31 // pred_fallthru
        _
    $region32: #{up_forward.6} parent=5 // pred_fallthru
      _
    %p3021 = scmp.le.s32.totalorder 2, %s11
    // Predicated region
    $region41: #{up_forward.6} parent=5 // pred_check
      %p3022 = pneg %p3021
    $region42: #{up_forward.6} parent=5 // pred_check_branch
      %3024 = sbr.rel (%p3022) target = $region44
    $region43: #{up_forward.6} parent=5 // pred_region
      %s3025 = ssub.s32 %s11, 2
      // Predicated region
      $region45: #{up_forward.6} parent=43 // pred_check
        %p3026 = pneg %p135
      $region46: #{up_forward.6} parent=43 // pred_check_branch
        %3028 = sbr.rel (%p3026) target = $region48
      $region47: #{up_forward.6} parent=43 // pred_region
        %s3029 = smul.u32 16, %s23
        %p3030 = scmp.lt.s32.totalorder %s22, 1
        %s3031 = scalar_select %p3030, %s22, 1
        %p3032 = scmp.lt.s32.totalorder %s3029, 15
        %s3033 = scalar_select %p3032, %s3029, 15
        %s3034 = smul.addr %s3033, 2
        %s3035 = smul.addr %s3031, 32
        %s3036 = sadd.s32 %s3034, %s3035
        %s3037 = smul.addr %s3036, 4
        %s3038 = scalar_lea.vmem %s3, %s3037
      $region48: #{up_forward.6} parent=43 // pred_fallthru
        _
      // Predicated region
      $region49: #{up_forward.6} parent=43 // pred_check
        %p3039 = pneg %p163
      $region50: #{up_forward.6} parent=43 // pred_check_branch
        %3041 = sbr.rel (%p3039) target = $region52
      $region51: #{up_forward.6} parent=43 // pred_region
        %s3042 = sadd.s32 %s22, %s23
        %p3043 = scmp.lt.s32.totalorder %s3042, 1
        %s3044 = scalar_select %p3043, %s3042, 1
        %s3045 = smul.addr %s3044, 2
        %s3046 = scalar_lea.vmem %s4, %s3045
      $region52: #{up_forward.6} parent=43 // pred_fallthru
        _
    $region44: #{up_forward.6} parent=5 // pred_fallthru
      _
  $region6: #{up_forward.6} parent=0 // loop_footer
    %s15 = sadd.s32 1, %s11
  $region7: #{up_forward.6} parent=0 // loop_footer_branch
    %10 = sbr.rel target = $region3
  $region8: #{up_forward.6} parent=0 // loop_exit
    _

// kernel: up_forward.5
$region0: #{up_forward.5}
  #allocation0 [shape = 'u32[]', space=smem, size = 0x4, offset = 0x4, fixed_abs, tag = 'smem constant byte address 0x4 - core index']
  #allocation1 [shape = 'u32[72,128]{1,0:T(1,128)}', space=vmem, size = 0x9000, scoped, tag = 'internal scratch']
  %s0 = inlined_call_operand.vmem [shape: bf16[2,18,18,128], index: 0, kind: input, shape index: {}, may-alias: {0,1}]
  %s1 = inlined_call_operand.vmem [shape: bf16[2,18,18,128], index: 1, kind: input, shape index: {}, may-alias: {0,1}]
  %s2 = inlined_call_operand.vmem [shape: bf16[2,18,18,128], index: 2, kind: input, shape index: {}, may-alias: {2,3}]
  %s3 = inlined_call_operand.vmem [shape: bf16[2,18,18,128], index: 3, kind: input, shape index: {}, may-alias: {2,3}]
  %s4 = inlined_call_operand.vmem [shape: bf16[3,3,128,128], index: 4, kind: input, shape index: {}]
  %s5 = inlined_call_operand.vmem [shape: bf16[3,3,128,128], index: 5, kind: input, shape index: {}]
  %s6 = inlined_call_operand.vmem [shape: bf16[2,16,16,128], index: 6, kind: output, shape index: {0}]
  %s7 = inlined_call_operand.vmem [shape: f32[2,2,128], index: 7, kind: output, shape index: {1}]
  %8 = xla_tuple %s6, %s7
  %s9 = sld [smem:[#allocation0]]
  $region65: #{up_forward.5} parent=0
    _
  %s11 = ssub.s32 1, %s9
  %s12 = scalar_select 0, %s11, %s9
  loop: start=0, step=1, limit=4
  $region2: #{up_forward.5} parent=0 // loop_pre_header
    _
  $region3: #{up_forward.5} parent=0 // loop_header
    %s14 = sphi 0, %s18
    %p15 = scmp.ge.s32.totalorder %s14, 4
    %s21 = sphi 0, %s33
    %s22 = sphi 0, %s29
    %s23 = sphi 0, %s21
    %s24 = sphi 0, %s22
    %s25 = sphi 0, %s23
    %s26 = sphi 0, %s24
    %s38 = sphi 0, %s40
    %s41 = sphi 0, %s38
    %s42 = sphi 0, %s41
    %s58 = sphi 0, %s42
    %s70 = sphi 0, %s72
    %s73 = sphi 0, %s70
    %s74 = sphi 0, %s73
    %s90 = sphi 0, %s74
    %s98 = sphi 0, %s100
    %s101 = sphi 0, %s98
    %s102 = sphi 0, %s101
    %s118 = sphi 0, %s102
    %s130 = sphi 0, %s132
    %s133 = sphi 0, %s130
    %s134 = sphi 0, %s133
    %s150 = sphi 0, %s134
    %s154 = sphi 0, %s154
    %s156 = sphi 0, %s154
    %s157 = sphi 0, %s156
    %s171 = sphi 0, %s157
    %s175 = sphi 0, %s175
    %s177 = sphi 0, %s175
    %s178 = sphi 0, %s177
    %s192 = sphi 0, %s178
    %s200 = sphi 0, %s202
    %s203 = sphi 0, %s200
    %s204 = sphi 0, %s203
    %s220 = sphi 0, %s204
    %s228 = sphi 0, %s230
    %s231 = sphi 0, %s228
    %s232 = sphi 0, %s231
    %s248 = sphi 0, %s232
  $region4: #{up_forward.5} parent=0 // loop_header_branch
    %17 = sbr.rel (%p15) target = $region8
  $region5: #{up_forward.5} parent=0 // loop_body
    %s19 = ssub.s32 %s14, 1
    %s20 = ssub.s32 %s14, 2
    %s27 = sadd.s32 1, %s22
    %p28 = scmp.ge.s32.totalorder %s27, 1
    %s29 = scalar_select %p28, 0, %s27
    %s30 = sadd.s32 1, %s21
    %s31 = scalar_select %p28, %s30, %s21
    %p32 = scmp.ge.s32.totalorder %s31, 2
    %s33 = scalar_select %p32, 0, %s31
    %s34 = ssub.s32 %s21, %s33
    %s35 = ssub.s32 %s22, %s29
    %s36 = sor.u32 %s34, %s35
    %p37 = scmp.eq.s32.totalorder %s36, 0
    %s39 = sadd.s32 %s38, 1
    %s40 = scalar_select %p37, %s38, %s39
    %p43 = pneg %p37
    %p44 = scmp.eq.s32.totalorder %s14, 1
    %p45 = por %p43, %p44
    %p46 = scmp.ne.s32.totalorder %s38, %s41
    %p47 = scmp.eq.s32.totalorder %s14, 0
    %p48 = por %p46, %p47
    %p49 = scmp.ne.s32.totalorder %s38, %s41
    %p50 = scmp.eq.s32.totalorder %s19, 1
    %p51 = por %p49, %p50
    %p52 = scmp.ne.s32.totalorder %s41, %s42
    %p53 = scmp.eq.s32.totalorder %s19, 0
    %p54 = por %p52, %p53
    %p55 = scmp.ne.s32.totalorder %s41, %s42
    %p56 = scmp.eq.s32.totalorder %s20, 1
    %p57 = por %p55, %p56
    %p59 = scmp.ne.s32.totalorder %s42, %s58
    %p60 = scmp.eq.s32.totalorder %s20, 0
    %p61 = por %p59, %p60
    %s62 = sadd.s32 %s22, 1
    %s63 = smul.u32 %s62, 8
    %s64 = sadd.s32 %s29, 1
    %s65 = smul.u32 %s64, 8
    %s66 = ssub.s32 %s21, %s33
    %s67 = ssub.s32 %s63, %s65
    %s68 = sor.u32 %s66, %s67
    %p69 = scmp.eq.s32.totalorder %s68, 0
    %s71 = sadd.s32 %s70, 1
    %s72 = scalar_select %p69, %s70, %s71
    %p75 = pneg %p69
    %p76 = scmp.eq.s32.totalorder %s14, 1
    %p77 = por %p75, %p76
    %p78 = scmp.ne.s32.totalorder %s70, %s73
    %p79 = scmp.eq.s32.totalorder %s14, 0
    %p80 = por %p78, %p79
    %p81 = scmp.ne.s32.totalorder %s70, %s73
    %p82 = scmp.eq.s32.totalorder %s19, 1
    %p83 = por %p81, %p82
    %p84 = scmp.ne.s32.totalorder %s73, %s74
    %p85 = scmp.eq.s32.totalorder %s19, 0
    %p86 = por %p84, %p85
    %p87 = scmp.ne.s32.totalorder %s73, %s74
    %p88 = scmp.eq.s32.totalorder %s20, 1
    %p89 = por %p87, %p88
    %p91 = scmp.ne.s32.totalorder %s74, %s90
    %p92 = scmp.eq.s32.totalorder %s20, 0
    %p93 = por %p91, %p92
    %s94 = ssub.s32 %s21, %s33
    %s95 = ssub.s32 %s22, %s29
    %s96 = sor.u32 %s94, %s95
    %p97 = scmp.eq.s32.totalorder %s96, 0
    %s99 = sadd.s32 %s98, 1
    %s100 = scalar_select %p97, %s98, %s99
    %p103 = pneg %p97
    %p104 = scmp.eq.s32.totalorder %s14, 1
    %p105 = por %p103, %p104
    %p106 = scmp.ne.s32.totalorder %s98, %s101
    %p107 = scmp.eq.s32.totalorder %s14, 0
    %p108 = por %p106, %p107
    %p109 = scmp.ne.s32.totalorder %s98, %s101
    %p110 = scmp.eq.s32.totalorder %s19, 1
    %p111 = por %p109, %p110
    %p112 = scmp.ne.s32.totalorder %s101, %s102
    %p113 = scmp.eq.s32.totalorder %s19, 0
    %p114 = por %p112, %p113
    %p115 = scmp.ne.s32.totalorder %s101, %s102
    %p116 = scmp.eq.s32.totalorder %s20, 1
    %p117 = por %p115, %p116
    %p119 = scmp.ne.s32.totalorder %s102, %s118
    %p120 = scmp.eq.s32.totalorder %s20, 0
    %p121 = por %p119, %p120
    %s122 = sadd.s32 %s22, 1
    %s123 = smul.u32 %s122, 8
    %s124 = sadd.s32 %s29, 1
    %s125 = smul.u32 %s124, 8
    %s126 = ssub.s32 %s21, %s33
    %s127 = ssub.s32 %s123, %s125
    %s128 = sor.u32 %s126, %s127
    %p129 = scmp.eq.s32.totalorder %s128, 0
    %s131 = sadd.s32 %s130, 1
    %s132 = scalar_select %p129, %s130, %s131
    %p135 = pneg %p129
    %p136 = scmp.eq.s32.totalorder %s14, 1
    %p137 = por %p135, %p136
    %p138 = scmp.ne.s32.totalorder %s130, %s133
    %p139 = scmp.eq.s32.totalorder %s14, 0
    %p140 = por %p138, %p139
    %p141 = scmp.ne.s32.totalorder %s130, %s133
    %p142 = scmp.eq.s32.totalorder %s19, 1
    %p143 = por %p141, %p142
    %p144 = scmp.ne.s32.totalorder %s133, %s134
    %p145 = scmp.eq.s32.totalorder %s19, 0
    %p146 = por %p144, %p145
    %p147 = scmp.ne.s32.totalorder %s133, %s134
    %p148 = scmp.eq.s32.totalorder %s20, 1
    %p149 = por %p147, %p148
    %p151 = scmp.ne.s32.totalorder %s134, %s150
    %p152 = scmp.eq.s32.totalorder %s20, 0
    %p153 = por %p151, %p152
    %s155 = sadd.s32 %s154, 1
    %p158 = scmp.eq.s32.totalorder %s14, 1
    %p159 = scmp.ne.s32.totalorder %s154, %s156
    %p160 = scmp.eq.s32.totalorder %s14, 0
    %p161 = por %p159, %p160
    %p162 = scmp.ne.s32.totalorder %s154, %s156
    %p163 = scmp.eq.s32.totalorder %s19, 1
    %p164 = por %p162, %p163
    %p165 = scmp.ne.s32.totalorder %s156, %s157
    %p166 = scmp.eq.s32.totalorder %s19, 0
    %p167 = por %p165, %p166
    %p168 = scmp.ne.s32.totalorder %s156, %s157
    %p169 = scmp.eq.s32.totalorder %s20, 1
    %p170 = por %p168, %p169
    %p172 = scmp.ne.s32.totalorder %s157, %s171
    %p173 = scmp.eq.s32.totalorder %s20, 0
    %p174 = por %p172, %p173
    %s176 = sadd.s32 %s175, 1
    %p179 = scmp.eq.s32.totalorder %s14, 1
    %p180 = scmp.ne.s32.totalorder %s175, %s177
    %p181 = scmp.eq.s32.totalorder %s14, 0
    %p182 = por %p180, %p181
    %p183 = scmp.ne.s32.totalorder %s175, %s177
    %p184 = scmp.eq.s32.totalorder %s19, 1
    %p185 = por %p183, %p184
    %p186 = scmp.ne.s32.totalorder %s177, %s178
    %p187 = scmp.eq.s32.totalorder %s19, 0
    %p188 = por %p186, %p187
    %p189 = scmp.ne.s32.totalorder %s177, %s178
    %p190 = scmp.eq.s32.totalorder %s20, 1
    %p191 = por %p189, %p190
    %p193 = scmp.ne.s32.totalorder %s178, %s192
    %p194 = scmp.eq.s32.totalorder %s20, 0
    %p195 = por %p193, %p194
    %s196 = ssub.s32 %s21, %s33
    %s197 = ssub.s32 %s22, %s29
    %s198 = sor.u32 %s196, %s197
    %p199 = scmp.eq.s32.totalorder %s198, 0
    %s201 = sadd.s32 %s200, 1
    %s202 = scalar_select %p199, %s200, %s201
    %p205 = pneg %p199
    %p206 = scmp.eq.s32.totalorder %s14, 1
    %p207 = por %p205, %p206
    %p208 = scmp.ne.s32.totalorder %s200, %s203
    %p209 = scmp.eq.s32.totalorder %s14, 0
    %p210 = por %p208, %p209
    %p211 = scmp.ne.s32.totalorder %s200, %s203
    %p212 = scmp.eq.s32.totalorder %s19, 1
    %p213 = por %p211, %p212
    %p214 = scmp.ne.s32.totalorder %s203, %s204
    %p215 = scmp.eq.s32.totalorder %s19, 0
    %p216 = por %p214, %p215
    %p217 = scmp.ne.s32.totalorder %s203, %s204
    %p218 = scmp.eq.s32.totalorder %s20, 1
    %p219 = por %p217, %p218
    %p221 = scmp.ne.s32.totalorder %s204, %s220
    %p222 = scmp.eq.s32.totalorder %s20, 0
    %p223 = por %p221, %p222
    %s224 = sadd.s32 %s21, %s22
    %s225 = sadd.s32 %s33, %s29
    %s226 = ssub.s32 %s224, %s225
    %p227 = scmp.eq.s32.totalorder %s226, 0
    %s229 = sadd.s32 %s228, 1
    %s230 = scalar_select %p227, %s228, %s229
    %p233 = pneg %p227
    %p234 = scmp.eq.s32.totalorder %s14, 1
    %p235 = por %p233, %p234
    %p236 = scmp.ne.s32.totalorder %s228, %s231
    %p237 = scmp.eq.s32.totalorder %s14, 0
    %p238 = por %p236, %p237
    %p239 = scmp.ne.s32.totalorder %s228, %s231
    %p240 = scmp.eq.s32.totalorder %s19, 1
    %p241 = por %p239, %p240
    %p242 = scmp.ne.s32.totalorder %s231, %s232
    %p243 = scmp.eq.s32.totalorder %s19, 0
    %p244 = por %p242, %p243
    %p245 = scmp.ne.s32.totalorder %s231, %s232
    %p246 = scmp.eq.s32.totalorder %s20, 1
    %p247 = por %p245, %p246
    %p249 = scmp.ne.s32.totalorder %s232, %s248
    %p250 = scmp.eq.s32.totalorder %s20, 0
    %p251 = por %p249, %p250
    %p252 = scmp.le.s32.totalorder 1, %s14
    %p253 = scmp.lt.s32.totalorder %s14, 3
    %p254 = pnand %p252, %p253
    %p255 = pneg %p254
    // Predicated region
    $region9: #{up_forward.5} parent=5 // pred_check
      _
    $region10: #{up_forward.5} parent=5 // pred_check_branch
      %257 = sbr.rel (%p254) target = $region12
    $region11: #{up_forward.5} parent=5 // pred_region
      %s258 = ssub.s32 %s14, 1
      // Predicated region
      $region13: #{up_forward.5} parent=11 // pred_check
        %p259 = pneg %p167
      $region14: #{up_forward.5} parent=11 // pred_check_branch
        %261 = sbr.rel (%p259) target = $region16
      $region15: #{up_forward.5} parent=11 // pred_region
        _
      $region16: #{up_forward.5} parent=11 // pred_fallthru
        _
      // Predicated region
      $region17: #{up_forward.5} parent=11 // pred_check
        %p262 = pneg %p188
      $region18: #{up_forward.5} parent=11 // pred_check_branch
        %264 = sbr.rel (%p262) target = $region20
      $region19: #{up_forward.5} parent=11 // pred_region
        _
      $region20: #{up_forward.5} parent=11 // pred_fallthru
        _
    $region12: #{up_forward.5} parent=5 // pred_fallthru
      _
    %p265 = scmp.lt.s32.totalorder %s14, 2
    // Predicated region
    $region21: #{up_forward.5} parent=5 // pred_check
      %p266 = pneg %p265
    $region22: #{up_forward.5} parent=5 // pred_check_branch
      %268 = sbr.rel (%p266) target = $region24
    $region23: #{up_forward.5} parent=5 // pred_region
      // Predicated region
      $region25: #{up_forward.5} parent=23 // pred_check
        %p269 = pneg %p48
      $region26: #{up_forward.5} parent=23 // pred_check_branch
        %271 = sbr.rel (%p269) target = $region28
      $region27: #{up_forward.5} parent=23 // pred_region
        %s272 = smul.u32 16, %s22
        %s273 = ssub.s32 18, %s272
        %p274 = scmp.lt.s32.totalorder %s273, 16
        %s275 = scalar_select %p274, %s273, 16
        %s276 = smul.u32 4, %s275
        %s277 = smul.u32 %s276, 3
        %p278 = scmp.lt.s32.totalorder %s21, 1
        %s279 = scalar_select %p278, %s21, 1
        %p280 = scmp.lt.s32.totalorder %s272, 17
        %s281 = scalar_select %p280, %s272, 17
        %s282 = smul.addr %s281, 3
        %s283 = smul.addr %s279, 54
        %s284 = sadd.s32 %s282, %s283
        %s285 = smul.addr %s284, 4
        %s286 = scalar_lea.vmem %s0, %s285
        %s287 = smul.u32 16, %s22
        %s288 = ssub.s32 18, %s287
        %p289 = scmp.lt.s32.totalorder %s288, 16
        %s290 = scalar_select %p289, %s288, 16
        %s291 = smul.u32 4, %s290
        %s292 = smul.u32 %s291, 3
      $region28: #{up_forward.5} parent=23 // pred_fallthru
        _
      // Predicated region
      $region29: #{up_forward.5} parent=23 // pred_check
        %p293 = pneg %p80
      $region30: #{up_forward.5} parent=23 // pred_check_branch
        %295 = sbr.rel (%p293) target = $region32
      $region31: #{up_forward.5} parent=23 // pred_region
        %s296 = sadd.s32 %s22, 1
        %s297 = smul.u32 %s296, 8
        %s298 = smul.u32 2, %s297
        %p299 = scmp.lt.s32.totalorder %s21, 1
        %s300 = scalar_select %p299, %s21, 1
        %p301 = scmp.lt.s32.totalorder %s298, 17
        %s302 = scalar_select %p301, %s298, 17
        %s303 = smul.addr %s302, 3
        %s304 = smul.addr %s300, 54
        %s305 = sadd.s32 %s303, %s304
        %s306 = smul.addr %s305, 4
        %s307 = scalar_lea.vmem %s1, %s306
        %s308 = sadd.s32 %s22, 1
        %s309 = smul.u32 %s308, 8
        %s310 = smul.u32 2, %s309
      $region32: #{up_forward.5} parent=23 // pred_fallthru
        _
      // Predicated region
      $region33: #{up_forward.5} parent=23 // pred_check
        %p311 = pneg %p108
      $region34: #{up_forward.5} parent=23 // pred_check_branch
        %313 = sbr.rel (%p311) target = $region36
      $region35: #{up_forward.5} parent=23 // pred_region
        %s314 = smul.u32 16, %s22
        %s315 = ssub.s32 18, %s314
        %p316 = scmp.lt.s32.totalorder %s315, 16
        %s317 = scalar_select %p316, %s315, 16
        %s318 = smul.u32 4, %s317
        %s319 = smul.u32 %s318, 3
        %p320 = scmp.lt.s32.totalorder %s21, 1
        %s321 = scalar_select %p320, %s21, 1
        %p322 = scmp.lt.s32.totalorder %s314, 17
        %s323 = scalar_select %p322, %s314, 17
        %s324 = smul.addr %s323, 3
        %s325 = smul.addr %s321, 54
        %s326 = sadd.s32 %s324, %s325
        %s327 = smul.addr %s326, 4
        %s328 = scalar_lea.vmem %s2, %s327
        %s329 = smul.u32 16, %s22
        %s330 = ssub.s32 18, %s329
        %p331 = scmp.lt.s32.totalorder %s330, 16
        %s332 = scalar_select %p331, %s330, 16
        %s333 = smul.u32 4, %s332
        %s334 = smul.u32 %s333, 3
      $region36: #{up_forward.5} parent=23 // pred_fallthru
        _
      // Predicated region
      $region37: #{up_forward.5} parent=23 // pred_check
        %p335 = pneg %p140
      $region38: #{up_forward.5} parent=23 // pred_check_branch
        %337 = sbr.rel (%p335) target = $region40
      $region39: #{up_forward.5} parent=23 // pred_region
        %s338 = sadd.s32 %s22, 1
        %s339 = smul.u32 %s338, 8
        %s340 = smul.u32 2, %s339
        %p341 = scmp.lt.s32.totalorder %s21, 1
        %s342 = scalar_select %p341, %s21, 1
        %p343 = scmp.lt.s32.totalorder %s340, 17
        %s344 = scalar_select %p343, %s340, 17
        %s345 = smul.addr %s344, 3
        %s346 = smul.addr %s342, 54
        %s347 = sadd.s32 %s345, %s346
        %s348 = smul.addr %s347, 4
        %s349 = scalar_lea.vmem %s3, %s348
        %s350 = sadd.s32 %s22, 1
        %s351 = smul.u32 %s350, 8
        %s352 = smul.u32 2, %s351
      $region40: #{up_forward.5} parent=23 // pred_fallthru
        _
    $region24: #{up_forward.5} parent=5 // pred_fallthru
      _
    %p353 = scmp.le.s32.totalorder 1, %s14
    %p354 = scmp.lt.s32.totalorder %s14, 3
    %p355 = pnand %p353, %p354
    %p356 = pneg %p355
    // Predicated region
    $region41: #{up_forward.5} parent=5 // pred_check
      _
    $region42: #{up_forward.5} parent=5 // pred_check_branch
      %358 = sbr.rel (%p355) target = $region44
    $region43: #{up_forward.5} parent=5 // pred_region
      %s359 = ssub.s32 %s14, 1
      %s360 = smul.u32 16, %s24
      %s361 = ssub.s32 18, %s360
      %p362 = scmp.lt.s32.totalorder %s361, 16
      %s363 = scalar_select %p362, %s361, 16
      %s364 = smul.u32 4, %s363
      %s365 = smul.u32 %s364, 3
      %p366 = scmp.lt.s32.totalorder %s23, 1
      %s367 = scalar_select %p366, %s23, 1
      %p368 = scmp.lt.s32.totalorder %s360, 17
      %s369 = scalar_select %p368, %s360, 17
      %s370 = smul.addr %s369, 3
      %s371 = smul.addr %s367, 54
      %s372 = sadd.s32 %s370, %s371
      %s373 = smul.addr %s372, 4
      %s374 = scalar_lea.vmem %s0, %s373
      %p375 = pneg %p54
      %p376 = pneg %p51
      %s377 = sadd.s32 %s24, 1
      %s378 = smul.u32 %s377, 8
      %s379 = smul.u32 2, %s378
      %p380 = scmp.lt.s32.totalorder %s23, 1
      %s381 = scalar_select %p380, %s23, 1
      %p382 = scmp.lt.s32.totalorder %s379, 17
      %s383 = scalar_select %p382, %s379, 17
      %s384 = smul.addr %s383, 3
      %s385 = smul.addr %s381, 54
      %s386 = sadd.s32 %s384, %s385
      %s387 = smul.addr %s386, 4
      %s388 = scalar_lea.vmem %s1, %s387
      %p389 = pneg %p86
      %p390 = pneg %p83
      %s391 = smul.u32 16, %s24
      %s392 = ssub.s32 18, %s391
      %p393 = scmp.lt.s32.totalorder %s392, 16
      %s394 = scalar_select %p393, %s392, 16
      %s395 = smul.u32 4, %s394
      %s396 = smul.u32 %s395, 3
      %p397 = scmp.lt.s32.totalorder %s23, 1
      %s398 = scalar_select %p397, %s23, 1
      %p399 = scmp.lt.s32.totalorder %s391, 17
      %s400 = scalar_select %p399, %s391, 17
      %s401 = smul.addr %s400, 3
      %s402 = smul.addr %s398, 54
      %s403 = sadd.s32 %s401, %s402
      %s404 = smul.addr %s403, 4
      %s405 = scalar_lea.vmem %s2, %s404
      %p406 = pneg %p114
      %p407 = pneg %p111
      %s408 = sadd.s32 %s24, 1
      %s409 = smul.u32 %s408, 8
      %s410 = smul.u32 2, %s409
      %p411 = scmp.lt.s32.totalorder %s23, 1
      %s412 = scalar_select %p411, %s23, 1
      %p413 = scmp.lt.s32.totalorder %s410, 17
      %s414 = scalar_select %p413, %s410, 17
      %s415 = smul.addr %s414, 3
      %s416 = smul.addr %s412, 54
      %s417 = sadd.s32 %s415, %s416
      %s418 = smul.addr %s417, 4
      %s419 = scalar_lea.vmem %s3, %s418
      %p420 = pneg %p146
      %p421 = pneg %p143
      %p422 = pneg %p167
      %p423 = pneg %p164
      %p424 = pneg %p188
      %p425 = pneg %p185
      %p426 = pneg %p216
      %p427 = pneg %p213
      %s428 = smul.u32 16, %s24
      %p429 = scmp.lt.s32.totalorder %s23, 1
      %s430 = scalar_select %p429, %s23, 1
      %p431 = scmp.lt.s32.totalorder %s428, 15
      %s432 = scalar_select %p431, %s428, 15
      %s433 = smul.addr %s432, 2
      %s434 = smul.addr %s430, 32
      %s435 = sadd.s32 %s433, %s434
      %s436 = smul.addr %s435, 4
      %s437 = scalar_lea.vmem %s6, %s436
      %p438 = pneg %p244
      %p439 = pneg %p241
      %s440 = sadd.s32 %s23, %s24
      %p441 = scmp.lt.s32.totalorder %s440, 1
      %s442 = scalar_select %p441, %s440, 1
      %s443 = smul.addr %s442, 2
      %s444 = scalar_lea.vmem %s7, %s443
      %s445 = smul.u32 16, %s24
      %s446 = ssub.s32 18, %s445
      %p447 = scmp.lt.s32.totalorder %s446, 16
      %s448 = scalar_select %p447, %s446, 16
      %s449 = smul.u32 4, %s448
      %s450 = smul.u32 %s449, 3
      %p451 = scmp.lt.s32.totalorder %s23, 1
      %s452 = scalar_select %p451, %s23, 1
      %p453 = scmp.lt.s32.totalorder %s445, 17
      %s454 = scalar_select %p453, %s445, 17
      %s455 = smul.addr %s454, 3
      %s456 = smul.addr %s452, 54
      %s457 = sadd.s32 %s455, %s456
      %s458 = smul.addr %s457, 4
      %s459 = scalar_lea.vmem %s0, %s458
      %s460 = smul.u32 16, %s24
      %s461 = ssub.s32 18, %s460
      %p462 = scmp.lt.s32.totalorder %s461, 16
      %s463 = scalar_select %p462, %s461, 16
      %s464 = smul.u32 4, %s463
      %s465 = smul.u32 %s464, 3
      %s466 = sadd.s32 %s24, 1
      %s467 = smul.u32 %s466, 8
      %s468 = smul.u32 2, %s467
      %p469 = scmp.lt.s32.totalorder %s23, 1
      %s470 = scalar_select %p469, %s23, 1
      %p471 = scmp.lt.s32.totalorder %s468, 17
      %s472 = scalar_select %p471, %s468, 17
      %s473 = smul.addr %s472, 3
      %s474 = smul.addr %s470, 54
      %s475 = sadd.s32 %s473, %s474
      %s476 = smul.addr %s475, 4
      %s477 = scalar_lea.vmem %s1, %s476
      %s478 = sadd.s32 %s24, 1
      %s479 = smul.u32 %s478, 8
      %s480 = smul.u32 2, %s479
      %s481 = smul.u32 16, %s24
      %s482 = ssub.s32 18, %s481
      %p483 = scmp.lt.s32.totalorder %s482, 16
      %s484 = scalar_select %p483, %s482, 16
      %s485 = smul.u32 4, %s484
      %s486 = smul.u32 %s485, 3
      %p487 = scmp.lt.s32.totalorder %s23, 1
      %s488 = scalar_select %p487, %s23, 1
      %p489 = scmp.lt.s32.totalorder %s481, 17
      %s490 = scalar_select %p489, %s481, 17
      %s491 = smul.addr %s490, 3
      %s492 = smul.addr %s488, 54
      %s493 = sadd.s32 %s491, %s492
      %s494 = smul.addr %s493, 4
      %s495 = scalar_lea.vmem %s2, %s494
      %s496 = smul.u32 16, %s24
      %s497 = ssub.s32 18, %s496
      %p498 = scmp.lt.s32.totalorder %s497, 16
      %s499 = scalar_select %p498, %s497, 16
      %s500 = smul.u32 4, %s499
      %s501 = smul.u32 %s500, 3
      %s502 = sadd.s32 %s24, 1
      %s503 = smul.u32 %s502, 8
      %s504 = smul.u32 2, %s503
      %p505 = scmp.lt.s32.totalorder %s23, 1
      %s506 = scalar_select %p505, %s23, 1
      %p507 = scmp.lt.s32.totalorder %s504, 17
      %s508 = scalar_select %p507, %s504, 17
      %s509 = smul.addr %s508, 3
      %s510 = smul.addr %s506, 54
      %s511 = sadd.s32 %s509, %s510
      %s512 = smul.addr %s511, 4
      %s513 = scalar_lea.vmem %s3, %s512
      %s514 = sadd.s32 %s24, 1
      %s515 = smul.u32 %s514, 8
      %s516 = smul.u32 2, %s515
      %s517 = smul.u32 16, %s24
      %p518 = scmp.lt.s32.totalorder %s23, 1
      %s519 = scalar_select %p518, %s23, 1
      %p520 = scmp.lt.s32.totalorder %s517, 15
      %s521 = scalar_select %p520, %s517, 15
      %s522 = smul.addr %s521, 2
      %s523 = smul.addr %s519, 32
      %s524 = sadd.s32 %s522, %s523
      %s525 = smul.addr %s524, 4
      %s526 = scalar_lea.vmem %s6, %s525
      %s527 = smul.u32 16, %s24
      %s528 = sadd.s32 %s23, %s24
      %p529 = scmp.lt.s32.totalorder %s528, 1
      %s530 = scalar_select %p529, %s528, 1
      %s531 = smul.addr %s530, 2
      %s532 = scalar_lea.vmem %s7, %s531
      %s533 = sadd.s32 %s23, %s24
      %v534 = vld [vmem:[%s459] sm:$0xf]
      %v535 = vld [vmem:[%s459 + $0x4] sm:$0xf]
      %v536 = vld [vmem:[%s459 + $0x8] sm:$0x1]
      %v537 = vld [vmem:[%s459 + $0xc] sm:$0xf]
      %v538 = vld [vmem:[%s459 + $0x10] sm:$0xf]
      %v539 = vld [vmem:[%s459 + $0x14] sm:$0x1]
      %v540 = vld [vmem:[%s459 + $0x18] sm:$0xf]
      %v541 = vld [vmem:[%s459 + $0x1c] sm:$0xf]
      %v542 = vld [vmem:[%s459 + $0x20] sm:$0x1]
      %v543 = vld [vmem:[%s459 + $0x24] sm:$0xf]
      %v544 = vld [vmem:[%s459 + $0x28] sm:$0xf]
      %v545 = vld [vmem:[%s459 + $0x2c] sm:$0x1]
      %v546 = vld [vmem:[%s459 + $0x30] sm:$0xf]
      %v547 = vld [vmem:[%s459 + $0x34] sm:$0xf]
      %v548 = vld [vmem:[%s459 + $0x38] sm:$0x1]
      %v549 = vld [vmem:[%s459 + $0x3c] sm:$0xf]
      %v550 = vld [vmem:[%s459 + $0x40] sm:$0xf]
      %v551 = vld [vmem:[%s459 + $0x44] sm:$0x1]
      %v552 = vld [vmem:[%s459 + $0x48] sm:$0xf]
      %v553 = vld [vmem:[%s459 + $0x4c] sm:$0xf]
      %v554 = vld [vmem:[%s459 + $0x50] sm:$0x1]
      %v555 = vld [vmem:[%s459 + $0x54] sm:$0xf]
      %v556 = vld [vmem:[%s459 + $0x58] sm:$0xf]
      %v557 = vld [vmem:[%s459 + $0x5c] sm:$0x1]
      %v558 = vld [vmem:[%s459 + $0x60] sm:$0xf]
      %v559 = vld [vmem:[%s459 + $0x64] sm:$0xf]
      %v560 = vld [vmem:[%s459 + $0x68] sm:$0x1]
      %v561 = vld [vmem:[%s459 + $0x6c] sm:$0xf]
      %v562 = vld [vmem:[%s459 + $0x70] sm:$0xf]
      %v563 = vld [vmem:[%s459 + $0x74] sm:$0x1]
      %v564 = vld [vmem:[%s459 + $0x78] sm:$0xf]
      %v565 = vld [vmem:[%s459 + $0x7c] sm:$0xf]
      %v566 = vld [vmem:[%s459 + $0x80] sm:$0x1]
      %v567 = vld [vmem:[%s459 + $0x84] sm:$0xf]
      %v568 = vld [vmem:[%s459 + $0x88] sm:$0xf]
      %v569 = vld [vmem:[%s459 + $0x8c] sm:$0x1]
      %v570 = vld [vmem:[%s459 + $0x90] sm:$0xf]
      %v571 = vld [vmem:[%s459 + $0x94] sm:$0xf]
      %v572 = vld [vmem:[%s459 + $0x98] sm:$0x1]
      %v573 = vld [vmem:[%s459 + $0x9c] sm:$0xf]
      %v574 = vld [vmem:[%s459 + $0xa0] sm:$0xf]
      %v575 = vld [vmem:[%s459 + $0xa4] sm:$0x1]
      %v576 = vld [vmem:[%s459 + $0xa8] sm:$0xf]
      %v577 = vld [vmem:[%s459 + $0xac] sm:$0xf]
      %v578 = vld [vmem:[%s459 + $0xb0] sm:$0x1]
      %v579 = vld [vmem:[%s459 + $0xb4] sm:$0xf]
      %v580 = vld [vmem:[%s459 + $0xb8] sm:$0xf]
      %v581 = vld [vmem:[%s459 + $0xbc] sm:$0x1]
      %v582 = vld [vmem:[%s477] sm:$0xf]
      %v583 = vld [vmem:[%s477 + $0x4] sm:$0xf]
      %v584 = vld [vmem:[%s477 + $0x8] sm:$0x1]
      %v585 = vld [vmem:[%s477 + $0xc] sm:$0xf]
      %v586 = vld [vmem:[%s477 + $0x10] sm:$0xf]
      %v587 = vld [vmem:[%s477 + $0x14] sm:$0x1]
      %v588 = vld [vmem:[%s4] sm:$0xf]
      %v589 = vld [vmem:[%s4 + $0x4] sm:$0xf]
      %v590 = vld [vmem:[%s4 + $0x8] sm:$0xf]
      %v591 = vld [vmem:[%s4 + $0xc] sm:$0xf]
      %v592 = vld [vmem:[%s4 + $0x10] sm:$0xf]
      %v593 = vld [vmem:[%s4 + $0x14] sm:$0xf]
      %v594 = vld [vmem:[%s4 + $0x18] sm:$0xf]
      %v595 = vld [vmem:[%s4 + $0x1c] sm:$0xf]
      %v596 = vld [vmem:[%s4 + $0x20] sm:$0xf]
      %v597 = vld [vmem:[%s4 + $0x24] sm:$0xf]
      %v598 = vld [vmem:[%s4 + $0x28] sm:$0xf]
      %v599 = vld [vmem:[%s4 + $0x2c] sm:$0xf]
      %v600 = vld [vmem:[%s4 + $0x30] sm:$0xf]
      %v601 = vld [vmem:[%s4 + $0x34] sm:$0xf]
      %v602 = vld [vmem:[%s4 + $0x38] sm:$0xf]
      %v603 = vld [vmem:[%s4 + $0x3c] sm:$0xf]
      %v604 = vld [vmem:[%s4 + $0x40] sm:$0xf]
      %v605 = vld [vmem:[%s4 + $0x44] sm:$0xf]
      %v606 = vld [vmem:[%s4 + $0x48] sm:$0xf]
      %v607 = vld [vmem:[%s4 + $0x4c] sm:$0xf]
      %v608 = vld [vmem:[%s4 + $0x50] sm:$0xf]
      %v609 = vld [vmem:[%s4 + $0x54] sm:$0xf]
      %v610 = vld [vmem:[%s4 + $0x58] sm:$0xf]
      %v611 = vld [vmem:[%s4 + $0x5c] sm:$0xf]
      %v612 = vld [vmem:[%s4 + $0x60] sm:$0xf]
      %v613 = vld [vmem:[%s4 + $0x64] sm:$0xf]
      %v614 = vld [vmem:[%s4 + $0x68] sm:$0xf]
      %v615 = vld [vmem:[%s4 + $0x6c] sm:$0xf]
      %v616 = vld [vmem:[%s4 + $0x70] sm:$0xf]
      %v617 = vld [vmem:[%s4 + $0x74] sm:$0xf]
      %v618 = vld [vmem:[%s4 + $0x78] sm:$0xf]
      %v619 = vld [vmem:[%s4 + $0x7c] sm:$0xf]
      %v620 = vld [vmem:[%s4 + $0x80] sm:$0xf]
      %v621 = vld [vmem:[%s4 + $0x84] sm:$0xf]
      %v622 = vld [vmem:[%s4 + $0x88] sm:$0xf]
      %v623 = vld [vmem:[%s4 + $0x8c] sm:$0xf]
      %v624 = vld [vmem:[%s4 + $0x90] sm:$0xf]
      %v625 = vld [vmem:[%s4 + $0x94] sm:$0xf]
      %v626 = vld [vmem:[%s4 + $0x98] sm:$0xf]
      %v627 = vld [vmem:[%s4 + $0x9c] sm:$0xf]
      %v628 = vld [vmem:[%s4 + $0xa0] sm:$0xf]
      %v629 = vld [vmem:[%s4 + $0xa4] sm:$0xf]
      %v630 = vld [vmem:[%s4 + $0xa8] sm:$0xf]
      %v631 = vld [vmem:[%s4 + $0xac] sm:$0xf]
      %v632 = vld [vmem:[%s4 + $0xb0] sm:$0xf]
      %v633 = vld [vmem:[%s4 + $0xb4] sm:$0xf]
      %v634 = vld [vmem:[%s4 + $0xb8] sm:$0xf]
      %v635 = vld [vmem:[%s4 + $0xbc] sm:$0xf]
      %v636 = vld [vmem:[%s4 + $0xc0] sm:$0xf]
      %v637 = vld [vmem:[%s4 + $0xc4] sm:$0xf]
      %v638 = vld [vmem:[%s4 + $0xc8] sm:$0xf]
      %v639 = vld [vmem:[%s4 + $0xcc] sm:$0xf]
      %v640 = vld [vmem:[%s4 + $0xd0] sm:$0xf]
      %v641 = vld [vmem:[%s4 + $0xd4] sm:$0xf]
      %v642 = vld [vmem:[%s4 + $0xd8] sm:$0xf]
      %v643 = vld [vmem:[%s4 + $0xdc] sm:$0xf]
      %v644 = vld [vmem:[%s4 + $0xe0] sm:$0xf]
      %v645 = vld [vmem:[%s4 + $0xe4] sm:$0xf]
      %v646 = vld [vmem:[%s4 + $0xe8] sm:$0xf]
      %v647 = vld [vmem:[%s4 + $0xec] sm:$0xf]
      %v648 = vld [vmem:[%s4 + $0xf0] sm:$0xf]
      %v649 = vld [vmem:[%s4 + $0xf4] sm:$0xf]
      %v650 = vld [vmem:[%s4 + $0xf8] sm:$0xf]
      %v651 = vld [vmem:[%s4 + $0xfc] sm:$0xf]
      %v652 = vld [vmem:[%s4 + $0x100] sm:$0xf]
      %v653 = vld [vmem:[%s4 + $0x104] sm:$0xf]
      %v654 = vld [vmem:[%s4 + $0x108] sm:$0xf]
      %v655 = vld [vmem:[%s4 + $0x10c] sm:$0xf]
      %v656 = vld [vmem:[%s4 + $0x110] sm:$0xf]
      %v657 = vld [vmem:[%s4 + $0x114] sm:$0xf]
      %v658 = vld [vmem:[%s4 + $0x118] sm:$0xf]
      %v659 = vld [vmem:[%s4 + $0x11c] sm:$0xf]
      %v660 = vld [vmem:[%s4 + $0x120] sm:$0xf]
      %v661 = vld [vmem:[%s4 + $0x124] sm:$0xf]
      %v662 = vld [vmem:[%s4 + $0x128] sm:$0xf]
      %v663 = vld [vmem:[%s4 + $0x12c] sm:$0xf]
      %v664 = vld [vmem:[%s4 + $0x130] sm:$0xf]
      %v665 = vld [vmem:[%s4 + $0x134] sm:$0xf]
      %v666 = vld [vmem:[%s4 + $0x138] sm:$0xf]
      %v667 = vld [vmem:[%s4 + $0x13c] sm:$0xf]
      %v668 = vld [vmem:[%s4 + $0x140] sm:$0xf]
      %v669 = vld [vmem:[%s4 + $0x144] sm:$0xf]
      %v670 = vld [vmem:[%s4 + $0x148] sm:$0xf]
      %v671 = vld [vmem:[%s4 + $0x14c] sm:$0xf]
      %v672 = vld [vmem:[%s4 + $0x150] sm:$0xf]
      %v673 = vld [vmem:[%s4 + $0x154] sm:$0xf]
      %v674 = vld [vmem:[%s4 + $0x158] sm:$0xf]
      %v675 = vld [vmem:[%s4 + $0x15c] sm:$0xf]
      %v676 = vld [vmem:[%s4 + $0x160] sm:$0xf]
      %v677 = vld [vmem:[%s4 + $0x164] sm:$0xf]
      %v678 = vld [vmem:[%s4 + $0x168] sm:$0xf]
      %v679 = vld [vmem:[%s4 + $0x16c] sm:$0xf]
      %v680 = vld [vmem:[%s4 + $0x170] sm:$0xf]
      %v681 = vld [vmem:[%s4 + $0x174] sm:$0xf]
      %v682 = vld [vmem:[%s4 + $0x178] sm:$0xf]
      %v683 = vld [vmem:[%s4 + $0x17c] sm:$0xf]
      %v684 = vld [vmem:[%s4 + $0x180] sm:$0xf]
      %v685 = vld [vmem:[%s4 + $0x184] sm:$0xf]
      %v686 = vld [vmem:[%s4 + $0x188] sm:$0xf]
      %v687 = vld [vmem:[%s4 + $0x18c] sm:$0xf]
      %v688 = vld [vmem:[%s4 + $0x190] sm:$0xf]
      %v689 = vld [vmem:[%s4 + $0x194] sm:$0xf]
      %v690 = vld [vmem:[%s4 + $0x198] sm:$0xf]
      %v691 = vld [vmem:[%s4 + $0x19c] sm:$0xf]
      %v692 = vld [vmem:[%s4 + $0x1a0] sm:$0xf]
      %v693 = vld [vmem:[%s4 + $0x1a4] sm:$0xf]
      %v694 = vld [vmem:[%s4 + $0x1a8] sm:$0xf]
      %v695 = vld [vmem:[%s4 + $0x1ac] sm:$0xf]
      %v696 = vld [vmem:[%s4 + $0x1b0] sm:$0xf]
      %v697 = vld [vmem:[%s4 + $0x1b4] sm:$0xf]
      %v698 = vld [vmem:[%s4 + $0x1b8] sm:$0xf]
      %v699 = vld [vmem:[%s4 + $0x1bc] sm:$0xf]
      %v700 = vld [vmem:[%s4 + $0x1c0] sm:$0xf]
      %v701 = vld [vmem:[%s4 + $0x1c4] sm:$0xf]
      %v702 = vld [vmem:[%s4 + $0x1c8] sm:$0xf]
      %v703 = vld [vmem:[%s4 + $0x1cc] sm:$0xf]
      %v704 = vld [vmem:[%s4 + $0x1d0] sm:$0xf]
      %v705 = vld [vmem:[%s4 + $0x1d4] sm:$0xf]
      %v706 = vld [vmem:[%s4 + $0x1d8] sm:$0xf]
      %v707 = vld [vmem:[%s4 + $0x1dc] sm:$0xf]
      %v708 = vld [vmem:[%s4 + $0x1e0] sm:$0xf]
      %v709 = vld [vmem:[%s4 + $0x1e4] sm:$0xf]
      %v710 = vld [vmem:[%s4 + $0x1e8] sm:$0xf]
      %v711 = vld [vmem:[%s4 + $0x1ec] sm:$0xf]
      %v712 = vld [vmem:[%s4 + $0x1f0] sm:$0xf]
      %v713 = vld [vmem:[%s4 + $0x1f4] sm:$0xf]
      %v714 = vld [vmem:[%s4 + $0x1f8] sm:$0xf]
      %v715 = vld [vmem:[%s4 + $0x1fc] sm:$0xf]
      %v716 = vld [vmem:[%s4 + $0x200] sm:$0xf]
      %v717 = vld [vmem:[%s4 + $0x204] sm:$0xf]
      %v718 = vld [vmem:[%s4 + $0x208] sm:$0xf]
      %v719 = vld [vmem:[%s4 + $0x20c] sm:$0xf]
      %v720 = vld [vmem:[%s4 + $0x210] sm:$0xf]
      %v721 = vld [vmem:[%s4 + $0x214] sm:$0xf]
      %v722 = vld [vmem:[%s4 + $0x218] sm:$0xf]
      %v723 = vld [vmem:[%s4 + $0x21c] sm:$0xf]
      %v724 = vld [vmem:[%s4 + $0x220] sm:$0xf]
      %v725 = vld [vmem:[%s4 + $0x224] sm:$0xf]
      %v726 = vld [vmem:[%s4 + $0x228] sm:$0xf]
      %v727 = vld [vmem:[%s4 + $0x22c] sm:$0xf]
      %v728 = vld [vmem:[%s4 + $0x230] sm:$0xf]
      %v729 = vld [vmem:[%s4 + $0x234] sm:$0xf]
      %v730 = vld [vmem:[%s4 + $0x238] sm:$0xf]
      %v731 = vld [vmem:[%s4 + $0x23c] sm:$0xf]
      %vm732 = vsmask.f32 3328
      %vm733 = vsmask.f32 7440
      %vm734 = vmor %vm732, %vm733
      %v736 = vshrl.u32 %v534, 16
      %v738 = vrot.slane %v736, 4
      %v739 = vshll.u32 %v534, 16
      %v741 = vrot.slane %v739, 5
      %v742 = vor.u32 %v738, %v741
      %v743 = vrot.slane %v742, 4
      %v745 = vshll.u32 %v535, 16
      %v747 = vrot.slane %v745, 5
      %v748 = vsel %vm734, %v743, %v747
      %v749 = vshrl.u32 %v535, 16
      %v751 = vrot.slane %v749, 4
      %v752 = vor.u32 %v751, %v747
      %v753 = vrot.slane %v752, 4
      %v755 = vshll.u32 %v536, 16
      %v757 = vrot.slane %v755, 5
      %v758 = vsel %vm734, %v753, %v757
      %v760 = vshrl.u32 %v537, 16
      %v762 = vrot.slane %v760, 4
      %v763 = vshll.u32 %v537, 16
      %v765 = vrot.slane %v763, 5
      %v766 = vor.u32 %v762, %v765
      %v767 = vrot.slane %v766, 4
      %v769 = vshll.u32 %v538, 16
      %v771 = vrot.slane %v769, 5
      %v772 = vsel %vm734, %v767, %v771
      %v773 = vshrl.u32 %v538, 16
      %v775 = vrot.slane %v773, 4
      %v776 = vor.u32 %v775, %v771
      %v777 = vrot.slane %v776, 4
      %v779 = vshll.u32 %v539, 16
      %v781 = vrot.slane %v779, 5
      %v782 = vsel %vm734, %v777, %v781
      %v784 = vshrl.u32 %v540, 16
      %v786 = vrot.slane %v784, 4
      %v787 = vshll.u32 %v540, 16
      %v789 = vrot.slane %v787, 5
      %v790 = vor.u32 %v786, %v789
      %v791 = vrot.slane %v790, 4
      %v793 = vshll.u32 %v541, 16
      %v795 = vrot.slane %v793, 5
      %v796 = vsel %vm734, %v791, %v795
      %v797 = vshrl.u32 %v541, 16
      %v799 = vrot.slane %v797, 4
      %v800 = vor.u32 %v799, %v795
      %v801 = vrot.slane %v800, 4
      %v803 = vshll.u32 %v542, 16
      %v805 = vrot.slane %v803, 5
      %v806 = vsel %vm734, %v801, %v805
      %v808 = vshrl.u32 %v543, 16
      %v810 = vrot.slane %v808, 4
      %v811 = vshll.u32 %v543, 16
      %v813 = vrot.slane %v811, 5
      %v814 = vor.u32 %v810, %v813
      %v815 = vrot.slane %v814, 4
      %v817 = vshll.u32 %v544, 16
      %v819 = vrot.slane %v817, 5
      %v820 = vsel %vm734, %v815, %v819
      %v821 = vshrl.u32 %v544, 16
      %v823 = vrot.slane %v821, 4
      %v824 = vor.u32 %v823, %v819
      %v825 = vrot.slane %v824, 4
      %v827 = vshll.u32 %v545, 16
      %v829 = vrot.slane %v827, 5
      %v830 = vsel %vm734, %v825, %v829
      %v832 = vshrl.u32 %v546, 16
      %v834 = vrot.slane %v832, 4
      %v835 = vshll.u32 %v546, 16
      %v837 = vrot.slane %v835, 5
      %v838 = vor.u32 %v834, %v837
      %v839 = vrot.slane %v838, 4
      %v841 = vshll.u32 %v547, 16
      %v843 = vrot.slane %v841, 5
      %v844 = vsel %vm734, %v839, %v843
      %v845 = vshrl.u32 %v547, 16
      %v847 = vrot.slane %v845, 4
      %v848 = vor.u32 %v847, %v843
      %v849 = vrot.slane %v848, 4
      %v851 = vshll.u32 %v548, 16
      %v853 = vrot.slane %v851, 5
      %v854 = vsel %vm734, %v849, %v853
      %v856 = vshrl.u32 %v549, 16
      %v858 = vrot.slane %v856, 4
      %v859 = vshll.u32 %v549, 16
      %v861 = vrot.slane %v859, 5
      %v862 = vor.u32 %v858, %v861
      %v863 = vrot.slane %v862, 4
      %v865 = vshll.u32 %v550, 16
      %v867 = vrot.slane %v865, 5
      %v868 = vsel %vm734, %v863, %v867
      %v869 = vshrl.u32 %v550, 16
      %v871 = vrot.slane %v869, 4
      %v872 = vor.u32 %v871, %v867
      %v873 = vrot.slane %v872, 4
      %v875 = vshll.u32 %v551, 16
      %v877 = vrot.slane %v875, 5
      %v878 = vsel %vm734, %v873, %v877
      %v880 = vshrl.u32 %v552, 16
      %v882 = vrot.slane %v880, 4
      %v883 = vshll.u32 %v552, 16
      %v885 = vrot.slane %v883, 5
      %v886 = vor.u32 %v882, %v885
      %v887 = vrot.slane %v886, 4
      %v889 = vshll.u32 %v553, 16
      %v891 = vrot.slane %v889, 5
      %v892 = vsel %vm734, %v887, %v891
      %v893 = vshrl.u32 %v553, 16
      %v895 = vrot.slane %v893, 4
      %v896 = vor.u32 %v895, %v891
      %v897 = vrot.slane %v896, 4
      %v899 = vshll.u32 %v554, 16
      %v901 = vrot.slane %v899, 5
      %v902 = vsel %vm734, %v897, %v901
      %v904 = vshrl.u32 %v555, 16
      %v906 = vrot.slane %v904, 4
      %v907 = vshll.u32 %v555, 16
      %v909 = vrot.slane %v907, 5
      %v910 = vor.u32 %v906, %v909
      %v911 = vrot.slane %v910, 4
      %v913 = vshll.u32 %v556, 16
      %v915 = vrot.slane %v913, 5
      %v916 = vsel %vm734, %v911, %v915
      %v917 = vshrl.u32 %v556, 16
      %v919 = vrot.slane %v917, 4
      %v920 = vor.u32 %v919, %v915
      %v921 = vrot.slane %v920, 4
      %v923 = vshll.u32 %v557, 16
      %v925 = vrot.slane %v923, 5
      %v926 = vsel %vm734, %v921, %v925
      %v928 = vshrl.u32 %v558, 16
      %v930 = vrot.slane %v928, 4
      %v931 = vshll.u32 %v558, 16
      %v933 = vrot.slane %v931, 5
      %v934 = vor.u32 %v930, %v933
      %v935 = vrot.slane %v934, 4
      %v937 = vshll.u32 %v559, 16
      %v939 = vrot.slane %v937, 5
      %v940 = vsel %vm734, %v935, %v939
      %v941 = vshrl.u32 %v559, 16
      %v943 = vrot.slane %v941, 4
      %v944 = vor.u32 %v943, %v939
      %v945 = vrot.slane %v944, 4
      %v947 = vshll.u32 %v560, 16
      %v949 = vrot.slane %v947, 5
      %v950 = vsel %vm734, %v945, %v949
      %v952 = vshrl.u32 %v561, 16
      %v954 = vrot.slane %v952, 4
      %v955 = vshll.u32 %v561, 16
      %v957 = vrot.slane %v955, 5
      %v958 = vor.u32 %v954, %v957
      %v959 = vrot.slane %v958, 4
      %v961 = vshll.u32 %v562, 16
      %v963 = vrot.slane %v961, 5
      %v964 = vsel %vm734, %v959, %v963
      %v965 = vshrl.u32 %v562, 16
      %v967 = vrot.slane %v965, 4
      %v968 = vor.u32 %v967, %v963
      %v969 = vrot.slane %v968, 4
      %v971 = vshll.u32 %v563, 16
      %v973 = vrot.slane %v971, 5
      %v974 = vsel %vm734, %v969, %v973
      %v976 = vshrl.u32 %v564, 16
      %v978 = vrot.slane %v976, 4
      %v979 = vshll.u32 %v564, 16
      %v981 = vrot.slane %v979, 5
      %v982 = vor.u32 %v978, %v981
      %v983 = vrot.slane %v982, 4
      %v985 = vshll.u32 %v565, 16
      %v987 = vrot.slane %v985, 5
      %v988 = vsel %vm734, %v983, %v987
      %v989 = vshrl.u32 %v565, 16
      %v991 = vrot.slane %v989, 4
      %v992 = vor.u32 %v991, %v987
      %v993 = vrot.slane %v992, 4
      %v995 = vshll.u32 %v566, 16
      %v997 = vrot.slane %v995, 5
      %v998 = vsel %vm734, %v993, %v997
      %v1000 = vshrl.u32 %v567, 16
      %v1002 = vrot.slane %v1000, 4
      %v1003 = vshll.u32 %v567, 16
      %v1005 = vrot.slane %v1003, 5
      %v1006 = vor.u32 %v1002, %v1005
      %v1007 = vrot.slane %v1006, 4
      %v1009 = vshll.u32 %v568, 16
      %v1011 = vrot.slane %v1009, 5
      %v1012 = vsel %vm734, %v1007, %v1011
      %v1013 = vshrl.u32 %v568, 16
      %v1015 = vrot.slane %v1013, 4
      %v1016 = vor.u32 %v1015, %v1011
      %v1017 = vrot.slane %v1016, 4
      %v1019 = vshll.u32 %v569, 16
      %v1021 = vrot.slane %v1019, 5
      %v1022 = vsel %vm734, %v1017, %v1021
      %v1024 = vshrl.u32 %v570, 16
      %v1026 = vrot.slane %v1024, 4
      %v1027 = vshll.u32 %v570, 16
      %v1029 = vrot.slane %v1027, 5
      %v1030 = vor.u32 %v1026, %v1029
      %v1031 = vrot.slane %v1030, 4
      %v1033 = vshll.u32 %v571, 16
      %v1035 = vrot.slane %v1033, 5
      %v1036 = vsel %vm734, %v1031, %v1035
      %v1037 = vshrl.u32 %v571, 16
      %v1039 = vrot.slane %v1037, 4
      %v1040 = vor.u32 %v1039, %v1035
      %v1041 = vrot.slane %v1040, 4
      %v1043 = vshll.u32 %v572, 16
      %v1045 = vrot.slane %v1043, 5
      %v1046 = vsel %vm734, %v1041, %v1045
      %v1048 = vshrl.u32 %v573, 16
      %v1050 = vrot.slane %v1048, 4
      %v1051 = vshll.u32 %v573, 16
      %v1053 = vrot.slane %v1051, 5
      %v1054 = vor.u32 %v1050, %v1053
      %v1055 = vrot.slane %v1054, 4
      %v1057 = vshll.u32 %v574, 16
      %v1059 = vrot.slane %v1057, 5
      %v1060 = vsel %vm734, %v1055, %v1059
      %v1061 = vshrl.u32 %v574, 16
      %v1063 = vrot.slane %v1061, 4
      %v1064 = vor.u32 %v1063, %v1059
      %v1065 = vrot.slane %v1064, 4
      %v1067 = vshll.u32 %v575, 16
      %v1069 = vrot.slane %v1067, 5
      %v1070 = vsel %vm734, %v1065, %v1069
      %v1072 = vshrl.u32 %v576, 16
      %v1074 = vrot.slane %v1072, 4
      %v1075 = vshll.u32 %v576, 16
      %v1077 = vrot.slane %v1075, 5
      %v1078 = vor.u32 %v1074, %v1077
      %v1079 = vrot.slane %v1078, 4
      %v1081 = vshll.u32 %v577, 16
      %v1083 = vrot.slane %v1081, 5
      %v1084 = vsel %vm734, %v1079, %v1083
      %v1085 = vshrl.u32 %v577, 16
      %v1087 = vrot.slane %v1085, 4
      %v1088 = vor.u32 %v1087, %v1083
      %v1089 = vrot.slane %v1088, 4
      %v1091 = vshll.u32 %v578, 16
      %v1093 = vrot.slane %v1091, 5
      %v1094 = vsel %vm734, %v1089, %v1093
      %v1096 = vshrl.u32 %v579, 16
      %v1098 = vrot.slane %v1096, 4
      %v1099 = vshll.u32 %v579, 16
      %v1101 = vrot.slane %v1099, 5
      %v1102 = vor.u32 %v1098, %v1101
      %v1103 = vrot.slane %v1102, 4
      %v1105 = vshll.u32 %v580, 16
      %v1107 = vrot.slane %v1105, 5
      %v1108 = vsel %vm734, %v1103, %v1107
      %v1109 = vshrl.u32 %v580, 16
      %v1111 = vrot.slane %v1109, 4
      %v1112 = vor.u32 %v1111, %v1107
      %v1113 = vrot.slane %v1112, 4
      %v1115 = vshll.u32 %v581, 16
      %v1117 = vrot.slane %v1115, 5
      %v1118 = vsel %vm734, %v1113, %v1117
      %v1119 = vunpack.c.l.b16 %v748
      %v1120 = vunpack.c.l.b16 %v758
      %v1121 = vunpack.c.l.b16 %v772
      %v1122 = vunpack.c.l.b16 %v782
      %v1123 = vunpack.c.l.b16 %v796
      %v1124 = vunpack.c.l.b16 %v806
      %v1125 = vunpack.c.l.b16 %v820
      %v1126 = vunpack.c.l.b16 %v830
      %v1127 = vunpack.c.l.b16 %v844
      %v1128 = vunpack.c.l.b16 %v854
      %v1129 = vunpack.c.l.b16 %v868
      %v1130 = vunpack.c.l.b16 %v878
      %v1131 = vunpack.c.l.b16 %v892
      %v1132 = vunpack.c.l.b16 %v902
      %v1133 = vunpack.c.l.b16 %v916
      %v1134 = vunpack.c.l.b16 %v926
      %v1135 = vunpack.c.l.b16 %v940
      %v1136 = vunpack.c.l.b16 %v950
      %v1137 = vunpack.c.l.b16 %v964
      %v1138 = vunpack.c.l.b16 %v974
      %v1139 = vunpack.c.l.b16 %v988
      %v1140 = vunpack.c.l.b16 %v998
      %v1141 = vunpack.c.l.b16 %v1012
      %v1142 = vunpack.c.l.b16 %v1022
      %v1143 = vunpack.c.l.b16 %v1036
      %v1144 = vunpack.c.l.b16 %v1046
      %v1145 = vunpack.c.l.b16 %v1060
      %v1146 = vunpack.c.l.b16 %v1070
      %v1147 = vunpack.c.l.b16 %v1084
      %v1148 = vunpack.c.l.b16 %v1094
      %v1149 = vunpack.c.l.b16 %v1108
      %v1150 = vunpack.c.l.b16 %v1118
      %v1151 = vpack.c.b16 %v1120, %v1119
      %v1152 = vpack.c.b16 %v1122, %v1121
      %v1153 = vpack.c.b16 %v1124, %v1123
      %v1154 = vpack.c.b16 %v1126, %v1125
      %v1155 = vpack.c.b16 %v1128, %v1127
      %v1156 = vpack.c.b16 %v1130, %v1129
      %v1157 = vpack.c.b16 %v1132, %v1131
      %v1158 = vpack.c.b16 %v1134, %v1133
      %v1159 = vpack.c.b16 %v1136, %v1135
      %v1160 = vpack.c.b16 %v1138, %v1137
      %v1161 = vpack.c.b16 %v1140, %v1139
      %v1162 = vpack.c.b16 %v1142, %v1141
      %v1163 = vpack.c.b16 %v1144, %v1143
      %v1164 = vpack.c.b16 %v1146, %v1145
      %v1165 = vpack.c.b16 %v1148, %v1147
      %v1166 = vpack.c.b16 %v1150, %v1149
      %v1199 = vunpack.c.l.b16 %v604
      %v1200 = vunpack.c.l.b16 %v605
      %v1201 = vunpack.c.l.b16 %v606
      %v1202 = vunpack.c.l.b16 %v607
      %v1203 = vunpack.c.l.b16 %v608
      %v1204 = vunpack.c.l.b16 %v609
      %v1205 = vunpack.c.l.b16 %v610
      %v1206 = vunpack.c.l.b16 %v611
      %v1207 = vunpack.c.l.b16 %v612
      %v1208 = vunpack.c.l.b16 %v613
      %v1209 = vunpack.c.l.b16 %v614
      %v1210 = vunpack.c.l.b16 %v615
      %v1211 = vunpack.c.l.b16 %v616
      %v1212 = vunpack.c.l.b16 %v617
      %v1213 = vunpack.c.l.b16 %v618
      %v1214 = vunpack.c.l.b16 %v619
      %v1215 = vpack.c.b16 %v1200, %v1199
      %v1216 = vpack.c.b16 %v1202, %v1201
      %v1217 = vpack.c.b16 %v1204, %v1203
      %v1218 = vpack.c.b16 %v1206, %v1205
      %v1219 = vpack.c.b16 %v1208, %v1207
      %v1220 = vpack.c.b16 %v1210, %v1209
      %v1221 = vpack.c.b16 %v1212, %v1211
      %v1222 = vpack.c.b16 %v1214, %v1213
      %1231 = vmatpush.bf16.msra.mxu0 %v1222
      %1232 = vmatpush.bf16.msra.mxu0 %v1221
      %1233 = vmatpush.bf16.msra.mxu0 %v1220
      %1234 = vmatpush.bf16.msra.mxu0 %v1219
      %1235 = vmatpush.bf16.msra.mxu0 %v1218
      %1236 = vmatpush.bf16.msra.mxu0 %v1217
      %1237 = vmatpush.bf16.msra.mxu0 %v1216
      %1238 = vmatpush.bf16.msra.mxu0 %v1215
      %1239 = vmatmul.bf16.gmra.mxu0 %v1151
      %v1240 = vpop.f32.mrf.mxu0
      %v1241 = vadd.f32 0.0, %v1240
      %v1242 = vpop.f32.mrf.mxu0
      %v1243 = vadd.f32 0.0, %v1242
      %1244 = vmatmul.bf16.gmra.mxu0 %v1152
      %v1245 = vpop.f32.mrf.mxu0
      %v1246 = vadd.f32 0.0, %v1245
      %v1247 = vpop.f32.mrf.mxu0
      %v1248 = vadd.f32 0.0, %v1247
      %1249 = vmatmul.bf16.gmra.mxu0 %v1153
      %v1250 = vpop.f32.mrf.mxu0
      %v1251 = vadd.f32 0.0, %v1250
      %v1252 = vpop.f32.mrf.mxu0
      %v1253 = vadd.f32 0.0, %v1252
      %1254 = vmatmul.bf16.gmra.mxu0 %v1154
      %v1255 = vpop.f32.mrf.mxu0
      %v1256 = vadd.f32 0.0, %v1255
      %v1257 = vpop.f32.mrf.mxu0
      %v1258 = vadd.f32 0.0, %v1257
      %1259 = vmatmul.bf16.gmra.mxu0 %v1155
      %v1260 = vpop.f32.mrf.mxu0
      %v1261 = vadd.f32 0.0, %v1260
      %v1262 = vpop.f32.mrf.mxu0
      %v1263 = vadd.f32 0.0, %v1262
      %1264 = vmatmul.bf16.gmra.mxu0 %v1156
      %v1265 = vpop.f32.mrf.mxu0
      %v1266 = vadd.f32 0.0, %v1265
      %v1267 = vpop.f32.mrf.mxu0
      %v1268 = vadd.f32 0.0, %v1267
      %1269 = vmatmul.bf16.gmra.mxu0 %v1157
      %v1270 = vpop.f32.mrf.mxu0
      %v1271 = vadd.f32 0.0, %v1270
      %v1272 = vpop.f32.mrf.mxu0
      %v1273 = vadd.f32 0.0, %v1272
      %1274 = vmatmul.bf16.gmra.mxu0 %v1158
      %v1275 = vpop.f32.mrf.mxu0
      %v1276 = vadd.f32 0.0, %v1275
      %v1277 = vpop.f32.mrf.mxu0
      %v1278 = vadd.f32 0.0, %v1277
      %1279 = vmatmul.bf16.gmra.mxu0 %v1159
      %v1280 = vpop.f32.mrf.mxu0
      %v1281 = vadd.f32 0.0, %v1280
      %v1282 = vpop.f32.mrf.mxu0
      %v1283 = vadd.f32 0.0, %v1282
      %1284 = vmatmul.bf16.gmra.mxu0 %v1160
      %v1285 = vpop.f32.mrf.mxu0
      %v1286 = vadd.f32 0.0, %v1285
      %v1287 = vpop.f32.mrf.mxu0
      %v1288 = vadd.f32 0.0, %v1287
      %1289 = vmatmul.bf16.gmra.mxu0 %v1161
      %v1290 = vpop.f32.mrf.mxu0
      %v1291 = vadd.f32 0.0, %v1290
      %v1292 = vpop.f32.mrf.mxu0
      %v1293 = vadd.f32 0.0, %v1292
      %1294 = vmatmul.bf16.gmra.mxu0 %v1162
      %v1295 = vpop.f32.mrf.mxu0
      %v1296 = vadd.f32 0.0, %v1295
      %v1297 = vpop.f32.mrf.mxu0
      %v1298 = vadd.f32 0.0, %v1297
      %1299 = vmatmul.bf16.gmra.mxu0 %v1163
      %v1300 = vpop.f32.mrf.mxu0
      %v1301 = vadd.f32 0.0, %v1300
      %v1302 = vpop.f32.mrf.mxu0
      %v1303 = vadd.f32 0.0, %v1302
      %1304 = vmatmul.bf16.gmra.mxu0 %v1164
      %v1305 = vpop.f32.mrf.mxu0
      %v1306 = vadd.f32 0.0, %v1305
      %v1307 = vpop.f32.mrf.mxu0
      %v1308 = vadd.f32 0.0, %v1307
      %1309 = vmatmul.bf16.gmra.mxu0 %v1165
      %v1310 = vpop.f32.mrf.mxu0
      %v1311 = vadd.f32 0.0, %v1310
      %v1312 = vpop.f32.mrf.mxu0
      %v1313 = vadd.f32 0.0, %v1312
      %1314 = vmatmul.bf16.gmra.mxu0 %v1166
      %v1315 = vpop.f32.mrf.mxu0
      %v1316 = vadd.f32 0.0, %v1315
      %v1317 = vpop.f32.mrf.mxu0
      %v1318 = vadd.f32 0.0, %v1317
      %1319 = vdwg.mxu0
      %v1352 = vunpack.c.l.b16 %v534
      %v1353 = vunpack.c.l.b16 %v535
      %v1354 = vunpack.c.l.b16 %v537
      %v1355 = vunpack.c.l.b16 %v538
      %v1356 = vunpack.c.l.b16 %v540
      %v1357 = vunpack.c.l.b16 %v541
      %v1358 = vunpack.c.l.b16 %v543
      %v1359 = vunpack.c.l.b16 %v544
      %v1360 = vunpack.c.l.b16 %v546
      %v1361 = vunpack.c.l.b16 %v547
      %v1362 = vunpack.c.l.b16 %v549
      %v1363 = vunpack.c.l.b16 %v550
      %v1364 = vunpack.c.l.b16 %v552
      %v1365 = vunpack.c.l.b16 %v553
      %v1366 = vunpack.c.l.b16 %v555
      %v1367 = vunpack.c.l.b16 %v556
      %v1368 = vunpack.c.l.b16 %v558
      %v1369 = vunpack.c.l.b16 %v559
      %v1370 = vunpack.c.l.b16 %v561
      %v1371 = vunpack.c.l.b16 %v562
      %v1372 = vunpack.c.l.b16 %v564
      %v1373 = vunpack.c.l.b16 %v565
      %v1374 = vunpack.c.l.b16 %v567
      %v1375 = vunpack.c.l.b16 %v568
      %v1376 = vunpack.c.l.b16 %v570
      %v1377 = vunpack.c.l.b16 %v571
      %v1378 = vunpack.c.l.b16 %v573
      %v1379 = vunpack.c.l.b16 %v574
      %v1380 = vunpack.c.l.b16 %v576
      %v1381 = vunpack.c.l.b16 %v577
      %v1382 = vunpack.c.l.b16 %v579
      %v1383 = vunpack.c.l.b16 %v580
      %v1384 = vpack.c.b16 %v1353, %v1352
      %v1385 = vpack.c.b16 %v1355, %v1354
      %v1386 = vpack.c.b16 %v1357, %v1356
      %v1387 = vpack.c.b16 %v1359, %v1358
      %v1388 = vpack.c.b16 %v1361, %v1360
      %v1389 = vpack.c.b16 %v1363, %v1362
      %v1390 = vpack.c.b16 %v1365, %v1364
      %v1391 = vpack.c.b16 %v1367, %v1366
      %v1392 = vpack.c.b16 %v1369, %v1368
      %v1393 = vpack.c.b16 %v1371, %v1370
      %v1394 = vpack.c.b16 %v1373, %v1372
      %v1395 = vpack.c.b16 %v1375, %v1374
      %v1396 = vpack.c.b16 %v1377, %v1376
      %v1397 = vpack.c.b16 %v1379, %v1378
      %v1398 = vpack.c.b16 %v1381, %v1380
      %v1399 = vpack.c.b16 %v1383, %v1382
      %v1432 = vunpack.c.l.b16 %v588
      %v1433 = vunpack.c.l.b16 %v589
      %v1434 = vunpack.c.l.b16 %v590
      %v1435 = vunpack.c.l.b16 %v591
      %v1436 = vunpack.c.l.b16 %v592
      %v1437 = vunpack.c.l.b16 %v593
      %v1438 = vunpack.c.l.b16 %v594
      %v1439 = vunpack.c.l.b16 %v595
      %v1440 = vunpack.c.l.b16 %v596
      %v1441 = vunpack.c.l.b16 %v597
      %v1442 = vunpack.c.l.b16 %v598
      %v1443 = vunpack.c.l.b16 %v599
      %v1444 = vunpack.c.l.b16 %v600
      %v1445 = vunpack.c.l.b16 %v601
      %v1446 = vunpack.c.l.b16 %v602
      %v1447 = vunpack.c.l.b16 %v603
      %v1448 = vpack.c.b16 %v1433, %v1432
      %v1449 = vpack.c.b16 %v1435, %v1434
      %v1450 = vpack.c.b16 %v1437, %v1436
      %v1451 = vpack.c.b16 %v1439, %v1438
      %v1452 = vpack.c.b16 %v1441, %v1440
      %v1453 = vpack.c.b16 %v1443, %v1442
      %v1454 = vpack.c.b16 %v1445, %v1444
      %v1455 = vpack.c.b16 %v1447, %v1446
      %1464 = vmatpush.bf16.msra.mxu0 %v1455
      %1465 = vmatpush.bf16.msra.mxu0 %v1454
      %1466 = vmatpush.bf16.msra.mxu0 %v1453
      %1467 = vmatpush.bf16.msra.mxu0 %v1452
      %1468 = vmatpush.bf16.msra.mxu0 %v1451
      %1469 = vmatpush.bf16.msra.mxu0 %v1450
      %1470 = vmatpush.bf16.msra.mxu0 %v1449
      %1471 = vmatpush.bf16.msra.mxu0 %v1448
      %1472 = vmatmul.bf16.gmra.mxu0 %v1384
      %v1473 = vpop.f32.mrf.mxu0
      %v1474 = vadd.f32 %v1241, %v1473
      %v1475 = vpop.f32.mrf.mxu0
      %v1476 = vadd.f32 %v1243, %v1475
      %1477 = vmatmul.bf16.gmra.mxu0 %v1385
      %v1478 = vpop.f32.mrf.mxu0
      %v1479 = vadd.f32 %v1246, %v1478
      %v1480 = vpop.f32.mrf.mxu0
      %v1481 = vadd.f32 %v1248, %v1480
      %1482 = vmatmul.bf16.gmra.mxu0 %v1386
      %v1483 = vpop.f32.mrf.mxu0
      %v1484 = vadd.f32 %v1251, %v1483
      %v1485 = vpop.f32.mrf.mxu0
      %v1486 = vadd.f32 %v1253, %v1485
      %1487 = vmatmul.bf16.gmra.mxu0 %v1387
      %v1488 = vpop.f32.mrf.mxu0
      %v1489 = vadd.f32 %v1256, %v1488
      %v1490 = vpop.f32.mrf.mxu0
      %v1491 = vadd.f32 %v1258, %v1490
      %1492 = vmatmul.bf16.gmra.mxu0 %v1388
      %v1493 = vpop.f32.mrf.mxu0
      %v1494 = vadd.f32 %v1261, %v1493
      %v1495 = vpop.f32.mrf.mxu0
      %v1496 = vadd.f32 %v1263, %v1495
      %1497 = vmatmul.bf16.gmra.mxu0 %v1389
      %v1498 = vpop.f32.mrf.mxu0
      %v1499 = vadd.f32 %v1266, %v1498
      %v1500 = vpop.f32.mrf.mxu0
      %v1501 = vadd.f32 %v1268, %v1500
      %1502 = vmatmul.bf16.gmra.mxu0 %v1390
      %v1503 = vpop.f32.mrf.mxu0
      %v1504 = vadd.f32 %v1271, %v1503
      %v1505 = vpop.f32.mrf.mxu0
      %v1506 = vadd.f32 %v1273, %v1505
      %1507 = vmatmul.bf16.gmra.mxu0 %v1391
      %v1508 = vpop.f32.mrf.mxu0
      %v1509 = vadd.f32 %v1276, %v1508
      %v1510 = vpop.f32.mrf.mxu0
      %v1511 = vadd.f32 %v1278, %v1510
      %1512 = vmatmul.bf16.gmra.mxu0 %v1392
      %v1513 = vpop.f32.mrf.mxu0
      %v1514 = vadd.f32 %v1281, %v1513
      %v1515 = vpop.f32.mrf.mxu0
      %v1516 = vadd.f32 %v1283, %v1515
      %1517 = vmatmul.bf16.gmra.mxu0 %v1393
      %v1518 = vpop.f32.mrf.mxu0
      %v1519 = vadd.f32 %v1286, %v1518
      %v1520 = vpop.f32.mrf.mxu0
      %v1521 = vadd.f32 %v1288, %v1520
      %1522 = vmatmul.bf16.gmra.mxu0 %v1394
      %v1523 = vpop.f32.mrf.mxu0
      %v1524 = vadd.f32 %v1291, %v1523
      %v1525 = vpop.f32.mrf.mxu0
      %v1526 = vadd.f32 %v1293, %v1525
      %1527 = vmatmul.bf16.gmra.mxu0 %v1395
      %v1528 = vpop.f32.mrf.mxu0
      %v1529 = vadd.f32 %v1296, %v1528
      %v1530 = vpop.f32.mrf.mxu0
      %v1531 = vadd.f32 %v1298, %v1530
      %1532 = vmatmul.bf16.gmra.mxu0 %v1396
      %v1533 = vpop.f32.mrf.mxu0
      %v1534 = vadd.f32 %v1301, %v1533
      %v1535 = vpop.f32.mrf.mxu0
      %v1536 = vadd.f32 %v1303, %v1535
      %1537 = vmatmul.bf16.gmra.mxu0 %v1397
      %v1538 = vpop.f32.mrf.mxu0
      %v1539 = vadd.f32 %v1306, %v1538
      %v1540 = vpop.f32.mrf.mxu0
      %v1541 = vadd.f32 %v1308, %v1540
      %1542 = vmatmul.bf16.gmra.mxu0 %v1398
      %v1543 = vpop.f32.mrf.mxu0
      %v1544 = vadd.f32 %v1311, %v1543
      %v1545 = vpop.f32.mrf.mxu0
      %v1546 = vadd.f32 %v1313, %v1545
      %1547 = vmatmul.bf16.gmra.mxu0 %v1399
      %v1548 = vpop.f32.mrf.mxu0
      %v1549 = vadd.f32 %v1316, %v1548
      %v1550 = vpop.f32.mrf.mxu0
      %v1551 = vadd.f32 %v1318, %v1550
      %1552 = vdwg.mxu0
      %vm1569 = vcmask 1042432
      %vm1570 = vcmask 1046532
      %vm1571 = vmor %vm1569, %vm1570
      %v1572 = vrot.slane %v534, 5
      %v1573 = vrot.slane %v1572, 4
      %v1574 = vrot.slane %v535, 5
      %v1575 = vsel %vm1571, %v1573, %v1574
      %v1576 = vrot.slane %v1574, 4
      %v1577 = vrot.slane %v536, 5
      %v1578 = vsel %vm1571, %v1576, %v1577
      %v1579 = vrot.slane %v537, 5
      %v1580 = vrot.slane %v1579, 4
      %v1581 = vrot.slane %v538, 5
      %v1582 = vsel %vm1571, %v1580, %v1581
      %v1583 = vrot.slane %v1581, 4
      %v1584 = vrot.slane %v539, 5
      %v1585 = vsel %vm1571, %v1583, %v1584
      %v1586 = vrot.slane %v540, 5
      %v1587 = vrot.slane %v1586, 4
      %v1588 = vrot.slane %v541, 5
      %v1589 = vsel %vm1571, %v1587, %v1588
      %v1590 = vrot.slane %v1588, 4
      %v1591 = vrot.slane %v542, 5
      %v1592 = vsel %vm1571, %v1590, %v1591
      %v1593 = vrot.slane %v543, 5
      %v1594 = vrot.slane %v1593, 4
      %v1595 = vrot.slane %v544, 5
      %v1596 = vsel %vm1571, %v1594, %v1595
      %v1597 = vrot.slane %v1595, 4
      %v1598 = vrot.slane %v545, 5
      %v1599 = vsel %vm1571, %v1597, %v1598
      %v1600 = vrot.slane %v546, 5
      %v1601 = vrot.slane %v1600, 4
      %v1602 = vrot.slane %v547, 5
      %v1603 = vsel %vm1571, %v1601, %v1602
      %v1604 = vrot.slane %v1602, 4
      %v1605 = vrot.slane %v548, 5
      %v1606 = vsel %vm1571, %v1604, %v1605
      %v1607 = vrot.slane %v549, 5
      %v1608 = vrot.slane %v1607, 4
      %v1609 = vrot.slane %v550, 5
      %v1610 = vsel %vm1571, %v1608, %v1609
      %v1611 = vrot.slane %v1609, 4
      %v1612 = vrot.slane %v551, 5
      %v1613 = vsel %vm1571, %v1611, %v1612
      %v1614 = vrot.slane %v552, 5
      %v1615 = vrot.slane %v1614, 4
      %v1616 = vrot.slane %v553, 5
      %v1617 = vsel %vm1571, %v1615, %v1616
      %v1618 = vrot.slane %v1616, 4
      %v1619 = vrot.slane %v554, 5
      %v1620 = vsel %vm1571, %v1618, %v1619
      %v1621 = vrot.slane %v555, 5
      %v1622 = vrot.slane %v1621, 4
      %v1623 = vrot.slane %v556, 5
      %v1624 = vsel %vm1571, %v1622, %v1623
      %v1625 = vrot.slane %v1623, 4
      %v1626 = vrot.slane %v557, 5
      %v1627 = vsel %vm1571, %v1625, %v1626
      %v1628 = vrot.slane %v558, 5
      %v1629 = vrot.slane %v1628, 4
      %v1630 = vrot.slane %v559, 5
      %v1631 = vsel %vm1571, %v1629, %v1630
      %v1632 = vrot.slane %v1630, 4
      %v1633 = vrot.slane %v560, 5
      %v1634 = vsel %vm1571, %v1632, %v1633
      %v1635 = vrot.slane %v561, 5
      %v1636 = vrot.slane %v1635, 4
      %v1637 = vrot.slane %v562, 5
      %v1638 = vsel %vm1571, %v1636, %v1637
      %v1639 = vrot.slane %v1637, 4
      %v1640 = vrot.slane %v563, 5
      %v1641 = vsel %vm1571, %v1639, %v1640
      %v1642 = vrot.slane %v564, 5
      %v1643 = vrot.slane %v1642, 4
      %v1644 = vrot.slane %v565, 5
      %v1645 = vsel %vm1571, %v1643, %v1644
      %v1646 = vrot.slane %v1644, 4
      %v1647 = vrot.slane %v566, 5
      %v1648 = vsel %vm1571, %v1646, %v1647
      %v1649 = vrot.slane %v567, 5
      %v1650 = vrot.slane %v1649, 4
      %v1651 = vrot.slane %v568, 5
      %v1652 = vsel %vm1571, %v1650, %v1651
      %v1653 = vrot.slane %v1651, 4
      %v1654 = vrot.slane %v569, 5
      %v1655 = vsel %vm1571, %v1653, %v1654
      %v1656 = vrot.slane %v570, 5
      %v1657 = vrot.slane %v1656, 4
      %v1658 = vrot.slane %v571, 5
      %v1659 = vsel %vm1571, %v1657, %v1658
      %v1660 = vrot.slane %v1658, 4
      %v1661 = vrot.slane %v572, 5
      %v1662 = vsel %vm1571, %v1660, %v1661
      %v1663 = vrot.slane %v573, 5
      %v1664 = vrot.slane %v1663, 4
      %v1665 = vrot.slane %v574, 5
      %v1666 = vsel %vm1571, %v1664, %v1665
      %v1667 = vrot.slane %v1665, 4
      %v1668 = vrot.slane %v575, 5
      %v1669 = vsel %vm1571, %v1667, %v1668
      %v1670 = vrot.slane %v576, 5
      %v1671 = vrot.slane %v1670, 4
      %v1672 = vrot.slane %v577, 5
      %v1673 = vsel %vm1571, %v1671, %v1672
      %v1674 = vrot.slane %v1672, 4
      %v1675 = vrot.slane %v578, 5
      %v1676 = vsel %vm1571, %v1674, %v1675
      %v1677 = vrot.slane %v579, 5
      %v1678 = vrot.slane %v1677, 4
      %v1679 = vrot.slane %v580, 5
      %v1680 = vsel %vm1571, %v1678, %v1679
      %v1681 = vrot.slane %v1679, 4
      %v1682 = vrot.slane %v581, 5
      %v1683 = vsel %vm1571, %v1681, %v1682
      %v1684 = vunpack.c.l.b16 %v1575
      %v1685 = vunpack.c.l.b16 %v1578
      %v1686 = vunpack.c.l.b16 %v1582
      %v1687 = vunpack.c.l.b16 %v1585
      %v1688 = vunpack.c.l.b16 %v1589
      %v1689 = vunpack.c.l.b16 %v1592
      %v1690 = vunpack.c.l.b16 %v1596
      %v1691 = vunpack.c.l.b16 %v1599
      %v1692 = vunpack.c.l.b16 %v1603
      %v1693 = vunpack.c.l.b16 %v1606
      %v1694 = vunpack.c.l.b16 %v1610
      %v1695 = vunpack.c.l.b16 %v1613
      %v1696 = vunpack.c.l.b16 %v1617
      %v1697 = vunpack.c.l.b16 %v1620
      %v1698 = vunpack.c.l.b16 %v1624
      %v1699 = vunpack.c.l.b16 %v1627
      %v1700 = vunpack.c.l.b16 %v1631
      %v1701 = vunpack.c.l.b16 %v1634
      %v1702 = vunpack.c.l.b16 %v1638
      %v1703 = vunpack.c.l.b16 %v1641
      %v1704 = vunpack.c.l.b16 %v1645
      %v1705 = vunpack.c.l.b16 %v1648
      %v1706 = vunpack.c.l.b16 %v1652
      %v1707 = vunpack.c.l.b16 %v1655
      %v1708 = vunpack.c.l.b16 %v1659
      %v1709 = vunpack.c.l.b16 %v1662
      %v1710 = vunpack.c.l.b16 %v1666
      %v1711 = vunpack.c.l.b16 %v1669
      %v1712 = vunpack.c.l.b16 %v1673
      %v1713 = vunpack.c.l.b16 %v1676
      %v1714 = vunpack.c.l.b16 %v1680
      %v1715 = vunpack.c.l.b16 %v1683
      %v1716 = vpack.c.b16 %v1685, %v1684
      %v1717 = vpack.c.b16 %v1687, %v1686
      %v1718 = vpack.c.b16 %v1689, %v1688
      %v1719 = vpack.c.b16 %v1691, %v1690
      %v1720 = vpack.c.b16 %v1693, %v1692
      %v1721 = vpack.c.b16 %v1695, %v1694
      %v1722 = vpack.c.b16 %v1697, %v1696
      %v1723 = vpack.c.b16 %v1699, %v1698
      %v1724 = vpack.c.b16 %v1701, %v1700
      %v1725 = vpack.c.b16 %v1703, %v1702
      %v1726 = vpack.c.b16 %v1705, %v1704
      %v1727 = vpack.c.b16 %v1707, %v1706
      %v1728 = vpack.c.b16 %v1709, %v1708
      %v1729 = vpack.c.b16 %v1711, %v1710
      %v1730 = vpack.c.b16 %v1713, %v1712
      %v1731 = vpack.c.b16 %v1715, %v1714
      %v1764 = vunpack.c.l.b16 %v620
      %v1765 = vunpack.c.l.b16 %v621
      %v1766 = vunpack.c.l.b16 %v622
      %v1767 = vunpack.c.l.b16 %v623
      %v1768 = vunpack.c.l.b16 %v624
      %v1769 = vunpack.c.l.b16 %v625
      %v1770 = vunpack.c.l.b16 %v626
      %v1771 = vunpack.c.l.b16 %v627
      %v1772 = vunpack.c.l.b16 %v628
      %v1773 = vunpack.c.l.b16 %v629
      %v1774 = vunpack.c.l.b16 %v630
      %v1775 = vunpack.c.l.b16 %v631
      %v1776 = vunpack.c.l.b16 %v632
      %v1777 = vunpack.c.l.b16 %v633
      %v1778 = vunpack.c.l.b16 %v634
      %v1779 = vunpack.c.l.b16 %v635
      %v1780 = vpack.c.b16 %v1765, %v1764
      %v1781 = vpack.c.b16 %v1767, %v1766
      %v1782 = vpack.c.b16 %v1769, %v1768
      %v1783 = vpack.c.b16 %v1771, %v1770
      %v1784 = vpack.c.b16 %v1773, %v1772
      %v1785 = vpack.c.b16 %v1775, %v1774
      %v1786 = vpack.c.b16 %v1777, %v1776
      %v1787 = vpack.c.b16 %v1779, %v1778
      %1796 = vmatpush.bf16.msra.mxu0 %v1787
      %1797 = vmatpush.bf16.msra.mxu0 %v1786
      %1798 = vmatpush.bf16.msra.mxu0 %v1785
      %1799 = vmatpush.bf16.msra.mxu0 %v1784
      %1800 = vmatpush.bf16.msra.mxu0 %v1783
      %1801 = vmatpush.bf16.msra.mxu0 %v1782
      %1802 = vmatpush.bf16.msra.mxu0 %v1781
      %1803 = vmatpush.bf16.msra.mxu0 %v1780
      %1804 = vmatmul.bf16.gmra.mxu0 %v1716
      %v1805 = vpop.f32.mrf.mxu0
      %v1806 = vadd.f32 0.0, %v1805
      %v1807 = vpop.f32.mrf.mxu0
      %v1808 = vadd.f32 0.0, %v1807
      %1809 = vmatmul.bf16.gmra.mxu0 %v1717
      %v1810 = vpop.f32.mrf.mxu0
      %v1811 = vadd.f32 0.0, %v1810
      %v1812 = vpop.f32.mrf.mxu0
      %v1813 = vadd.f32 0.0, %v1812
      %1814 = vmatmul.bf16.gmra.mxu0 %v1718
      %v1815 = vpop.f32.mrf.mxu0
      %v1816 = vadd.f32 0.0, %v1815
      %v1817 = vpop.f32.mrf.mxu0
      %v1818 = vadd.f32 0.0, %v1817
      %1819 = vmatmul.bf16.gmra.mxu0 %v1719
      %v1820 = vpop.f32.mrf.mxu0
      %v1821 = vadd.f32 0.0, %v1820
      %v1822 = vpop.f32.mrf.mxu0
      %v1823 = vadd.f32 0.0, %v1822
      %1824 = vmatmul.bf16.gmra.mxu0 %v1720
      %v1825 = vpop.f32.mrf.mxu0
      %v1826 = vadd.f32 0.0, %v1825
      %v1827 = vpop.f32.mrf.mxu0
      %v1828 = vadd.f32 0.0, %v1827
      %1829 = vmatmul.bf16.gmra.mxu0 %v1721
      %v1830 = vpop.f32.mrf.mxu0
      %v1831 = vadd.f32 0.0, %v1830
      %v1832 = vpop.f32.mrf.mxu0
      %v1833 = vadd.f32 0.0, %v1832
      %1834 = vmatmul.bf16.gmra.mxu0 %v1722
      %v1835 = vpop.f32.mrf.mxu0
      %v1836 = vadd.f32 0.0, %v1835
      %v1837 = vpop.f32.mrf.mxu0
      %v1838 = vadd.f32 0.0, %v1837
      %1839 = vmatmul.bf16.gmra.mxu0 %v1723
      %v1840 = vpop.f32.mrf.mxu0
      %v1841 = vadd.f32 0.0, %v1840
      %v1842 = vpop.f32.mrf.mxu0
      %v1843 = vadd.f32 0.0, %v1842
      %1844 = vmatmul.bf16.gmra.mxu0 %v1724
      %v1845 = vpop.f32.mrf.mxu0
      %v1846 = vadd.f32 0.0, %v1845
      %v1847 = vpop.f32.mrf.mxu0
      %v1848 = vadd.f32 0.0, %v1847
      %1849 = vmatmul.bf16.gmra.mxu0 %v1725
      %v1850 = vpop.f32.mrf.mxu0
      %v1851 = vadd.f32 0.0, %v1850
      %v1852 = vpop.f32.mrf.mxu0
      %v1853 = vadd.f32 0.0, %v1852
      %1854 = vmatmul.bf16.gmra.mxu0 %v1726
      %v1855 = vpop.f32.mrf.mxu0
      %v1856 = vadd.f32 0.0, %v1855
      %v1857 = vpop.f32.mrf.mxu0
      %v1858 = vadd.f32 0.0, %v1857
      %1859 = vmatmul.bf16.gmra.mxu0 %v1727
      %v1860 = vpop.f32.mrf.mxu0
      %v1861 = vadd.f32 0.0, %v1860
      %v1862 = vpop.f32.mrf.mxu0
      %v1863 = vadd.f32 0.0, %v1862
      %1864 = vmatmul.bf16.gmra.mxu0 %v1728
      %v1865 = vpop.f32.mrf.mxu0
      %v1866 = vadd.f32 0.0, %v1865
      %v1867 = vpop.f32.mrf.mxu0
      %v1868 = vadd.f32 0.0, %v1867
      %1869 = vmatmul.bf16.gmra.mxu0 %v1729
      %v1870 = vpop.f32.mrf.mxu0
      %v1871 = vadd.f32 0.0, %v1870
      %v1872 = vpop.f32.mrf.mxu0
      %v1873 = vadd.f32 0.0, %v1872
      %1874 = vmatmul.bf16.gmra.mxu0 %v1730
      %v1875 = vpop.f32.mrf.mxu0
      %v1876 = vadd.f32 0.0, %v1875
      %v1877 = vpop.f32.mrf.mxu0
      %v1878 = vadd.f32 0.0, %v1877
      %1879 = vmatmul.bf16.gmra.mxu0 %v1731
      %v1880 = vpop.f32.mrf.mxu0
      %v1881 = vadd.f32 0.0, %v1880
      %v1882 = vpop.f32.mrf.mxu0
      %v1883 = vadd.f32 0.0, %v1882
      %1884 = vdwg.mxu0
      %v1885 = vadd.f32 %v1474, %v1806
      %v1886 = vadd.f32 %v1476, %v1808
      %v1887 = vadd.f32 %v1479, %v1811
      %v1888 = vadd.f32 %v1481, %v1813
      %v1889 = vadd.f32 %v1484, %v1816
      %v1890 = vadd.f32 %v1486, %v1818
      %v1891 = vadd.f32 %v1489, %v1821
      %v1892 = vadd.f32 %v1491, %v1823
      %v1893 = vadd.f32 %v1494, %v1826
      %v1894 = vadd.f32 %v1496, %v1828
      %v1895 = vadd.f32 %v1499, %v1831
      %v1896 = vadd.f32 %v1501, %v1833
      %v1897 = vadd.f32 %v1504, %v1836
      %v1898 = vadd.f32 %v1506, %v1838
      %v1899 = vadd.f32 %v1509, %v1841
      %v1900 = vadd.f32 %v1511, %v1843
      %v1901 = vadd.f32 %v1514, %v1846
      %v1902 = vadd.f32 %v1516, %v1848
      %v1903 = vadd.f32 %v1519, %v1851
      %v1904 = vadd.f32 %v1521, %v1853
      %v1905 = vadd.f32 %v1524, %v1856
      %v1906 = vadd.f32 %v1526, %v1858
      %v1907 = vadd.f32 %v1529, %v1861
      %v1908 = vadd.f32 %v1531, %v1863
      %v1909 = vadd.f32 %v1534, %v1866
      %v1910 = vadd.f32 %v1536, %v1868
      %v1911 = vadd.f32 %v1539, %v1871
      %v1912 = vadd.f32 %v1541, %v1873
      %v1913 = vadd.f32 %v1544, %v1876
      %v1914 = vadd.f32 %v1546, %v1878
      %v1915 = vadd.f32 %v1549, %v1881
      %v1916 = vadd.f32 %v1551, %v1883
      %v1919 = vunpack.c.l.b16 %v582
      %v1920 = vunpack.c.l.b16 %v583
      %v1921 = vpack.c.b16 %v1920, %v1919
      %v1939 = vunpack.c.l.b16 %v636
      %v1940 = vunpack.c.l.b16 %v637
      %v1941 = vunpack.c.l.b16 %v638
      %v1942 = vunpack.c.l.b16 %v639
      %v1943 = vunpack.c.l.b16 %v640
      %v1944 = vunpack.c.l.b16 %v641
      %v1945 = vunpack.c.l.b16 %v642
      %v1946 = vunpack.c.l.b16 %v643
      %v1947 = vunpack.c.l.b16 %v644
      %v1948 = vunpack.c.l.b16 %v645
      %v1949 = vunpack.c.l.b16 %v646
      %v1950 = vunpack.c.l.b16 %v647
      %v1951 = vunpack.c.l.b16 %v648
      %v1952 = vunpack.c.l.b16 %v649
      %v1953 = vunpack.c.l.b16 %v650
      %v1954 = vunpack.c.l.b16 %v651
      %v1955 = vpack.c.b16 %v1940, %v1939
      %v1956 = vpack.c.b16 %v1942, %v1941
      %v1957 = vpack.c.b16 %v1944, %v1943
      %v1958 = vpack.c.b16 %v1946, %v1945
      %v1959 = vpack.c.b16 %v1948, %v1947
      %v1960 = vpack.c.b16 %v1950, %v1949
      %v1961 = vpack.c.b16 %v1952, %v1951
      %v1962 = vpack.c.b16 %v1954, %v1953
      %1971 = vmatpush.bf16.msra.mxu0 %v1962
      %1972 = vmatpush.bf16.msra.mxu0 %v1961
      %1973 = vmatpush.bf16.msra.mxu0 %v1960
      %1974 = vmatpush.bf16.msra.mxu0 %v1959
      %1975 = vmatpush.bf16.msra.mxu0 %v1958
      %1976 = vmatpush.bf16.msra.mxu0 %v1957
      %1977 = vmatpush.bf16.msra.mxu0 %v1956
      %1978 = vmatpush.bf16.msra.mxu0 %v1955
      %1979 = vmatmul.bf16.gmra.mxu0 %v1385
      %v1980 = vpop.f32.mrf.mxu0
      %v1981 = vadd.f32 0.0, %v1980
      %v1982 = vpop.f32.mrf.mxu0
      %v1983 = vadd.f32 0.0, %v1982
      %1984 = vmatmul.bf16.gmra.mxu0 %v1386
      %v1985 = vpop.f32.mrf.mxu0
      %v1986 = vadd.f32 0.0, %v1985
      %v1987 = vpop.f32.mrf.mxu0
      %v1988 = vadd.f32 0.0, %v1987
      %1989 = vmatmul.bf16.gmra.mxu0 %v1387
      %v1990 = vpop.f32.mrf.mxu0
      %v1991 = vadd.f32 0.0, %v1990
      %v1992 = vpop.f32.mrf.mxu0
      %v1993 = vadd.f32 0.0, %v1992
      %1994 = vmatmul.bf16.gmra.mxu0 %v1388
      %v1995 = vpop.f32.mrf.mxu0
      %v1996 = vadd.f32 0.0, %v1995
      %v1997 = vpop.f32.mrf.mxu0
      %v1998 = vadd.f32 0.0, %v1997
      %1999 = vmatmul.bf16.gmra.mxu0 %v1389
      %v2000 = vpop.f32.mrf.mxu0
      %v2001 = vadd.f32 0.0, %v2000
      %v2002 = vpop.f32.mrf.mxu0
      %v2003 = vadd.f32 0.0, %v2002
      %2004 = vmatmul.bf16.gmra.mxu0 %v1390
      %v2005 = vpop.f32.mrf.mxu0
      %v2006 = vadd.f32 0.0, %v2005
      %v2007 = vpop.f32.mrf.mxu0
      %v2008 = vadd.f32 0.0, %v2007
      %2009 = vmatmul.bf16.gmra.mxu0 %v1391
      %v2010 = vpop.f32.mrf.mxu0
      %v2011 = vadd.f32 0.0, %v2010
      %v2012 = vpop.f32.mrf.mxu0
      %v2013 = vadd.f32 0.0, %v2012
      %2014 = vmatmul.bf16.gmra.mxu0 %v1392
      %v2015 = vpop.f32.mrf.mxu0
      %v2016 = vadd.f32 0.0, %v2015
      %v2017 = vpop.f32.mrf.mxu0
      %v2018 = vadd.f32 0.0, %v2017
      %2019 = vmatmul.bf16.gmra.mxu0 %v1393
      %v2020 = vpop.f32.mrf.mxu0
      %v2021 = vadd.f32 0.0, %v2020
      %v2022 = vpop.f32.mrf.mxu0
      %v2023 = vadd.f32 0.0, %v2022
      %2024 = vmatmul.bf16.gmra.mxu0 %v1394
      %v2025 = vpop.f32.mrf.mxu0
      %v2026 = vadd.f32 0.0, %v2025
      %v2027 = vpop.f32.mrf.mxu0
      %v2028 = vadd.f32 0.0, %v2027
      %2029 = vmatmul.bf16.gmra.mxu0 %v1395
      %v2030 = vpop.f32.mrf.mxu0
      %v2031 = vadd.f32 0.0, %v2030
      %v2032 = vpop.f32.mrf.mxu0
      %v2033 = vadd.f32 0.0, %v2032
      %2034 = vmatmul.bf16.gmra.mxu0 %v1396
      %v2035 = vpop.f32.mrf.mxu0
      %v2036 = vadd.f32 0.0, %v2035
      %v2037 = vpop.f32.mrf.mxu0
      %v2038 = vadd.f32 0.0, %v2037
      %2039 = vmatmul.bf16.gmra.mxu0 %v1397
      %v2040 = vpop.f32.mrf.mxu0
      %v2041 = vadd.f32 0.0, %v2040
      %v2042 = vpop.f32.mrf.mxu0
      %v2043 = vadd.f32 0.0, %v2042
      %2044 = vmatmul.bf16.gmra.mxu0 %v1398
      %v2045 = vpop.f32.mrf.mxu0
      %v2046 = vadd.f32 0.0, %v2045
      %v2047 = vpop.f32.mrf.mxu0
      %v2048 = vadd.f32 0.0, %v2047
      %2049 = vmatmul.bf16.gmra.mxu0 %v1399
      %v2050 = vpop.f32.mrf.mxu0
      %v2051 = vadd.f32 0.0, %v2050
      %v2052 = vpop.f32.mrf.mxu0
      %v2053 = vadd.f32 0.0, %v2052
      %2054 = vmatmul.bf16.gmra.mxu0 %v1921
      %v2055 = vpop.f32.mrf.mxu0
      %v2056 = vadd.f32 0.0, %v2055
      %v2057 = vpop.f32.mrf.mxu0
      %v2058 = vadd.f32 0.0, %v2057
      %2059 = vdwg.mxu0
      %v2060 = vadd.f32 %v1885, %v1981
      %v2061 = vadd.f32 %v1886, %v1983
      %v2062 = vadd.f32 %v1887, %v1986
      %v2063 = vadd.f32 %v1888, %v1988
      %v2064 = vadd.f32 %v1889, %v1991
      %v2065 = vadd.f32 %v1890, %v1993
      %v2066 = vadd.f32 %v1891, %v1996
      %v2067 = vadd.f32 %v1892, %v1998
      %v2068 = vadd.f32 %v1893, %v2001
      %v2069 = vadd.f32 %v1894, %v2003
      %v2070 = vadd.f32 %v1895, %v2006
      %v2071 = vadd.f32 %v1896, %v2008
      %v2072 = vadd.f32 %v1897, %v2011
      %v2073 = vadd.f32 %v1898, %v2013
      %v2074 = vadd.f32 %v1899, %v2016
      %v2075 = vadd.f32 %v1900, %v2018
      %v2076 = vadd.f32 %v1901, %v2021
      %v2077 = vadd.f32 %v1902, %v2023
      %v2078 = vadd.f32 %v1903, %v2026
      %v2079 = vadd.f32 %v1904, %v2028
      %v2080 = vadd.f32 %v1905, %v2031
      %v2081 = vadd.f32 %v1906, %v2033
      %v2082 = vadd.f32 %v1907, %v2036
      %v2083 = vadd.f32 %v1908, %v2038
      %v2084 = vadd.f32 %v1909, %v2041
      %v2085 = vadd.f32 %v1910, %v2043
      %v2086 = vadd.f32 %v1911, %v2046
      %v2087 = vadd.f32 %v1912, %v2048
      %v2088 = vadd.f32 %v1913, %v2051
      %v2089 = vadd.f32 %v1914, %v2053
      %v2090 = vadd.f32 %v1915, %v2056
      %v2091 = vadd.f32 %v1916, %v2058
      %v2093 = vshrl.u32 %v582, 16
      %v2095 = vrot.slane %v2093, 4
      %v2096 = vshll.u32 %v582, 16
      %v2098 = vrot.slane %v2096, 5
      %v2099 = vor.u32 %v2095, %v2098
      %v2100 = vrot.slane %v2099, 4
      %v2102 = vshll.u32 %v583, 16
      %v2104 = vrot.slane %v2102, 5
      %v2105 = vsel %vm734, %v2100, %v2104
      %v2106 = vshrl.u32 %v583, 16
      %v2108 = vrot.slane %v2106, 4
      %v2109 = vor.u32 %v2108, %v2104
      %v2110 = vrot.slane %v2109, 4
      %v2112 = vshll.u32 %v584, 16
      %v2114 = vrot.slane %v2112, 5
      %v2115 = vsel %vm734, %v2110, %v2114
      %v2116 = vunpack.c.l.b16 %v2105
      %v2117 = vunpack.c.l.b16 %v2115
      %v2118 = vpack.c.b16 %v2117, %v2116
      %v2136 = vunpack.c.l.b16 %v652
      %v2137 = vunpack.c.l.b16 %v653
      %v2138 = vunpack.c.l.b16 %v654
      %v2139 = vunpack.c.l.b16 %v655
      %v2140 = vunpack.c.l.b16 %v656
      %v2141 = vunpack.c.l.b16 %v657
      %v2142 = vunpack.c.l.b16 %v658
      %v2143 = vunpack.c.l.b16 %v659
      %v2144 = vunpack.c.l.b16 %v660
      %v2145 = vunpack.c.l.b16 %v661
      %v2146 = vunpack.c.l.b16 %v662
      %v2147 = vunpack.c.l.b16 %v663
      %v2148 = vunpack.c.l.b16 %v664
      %v2149 = vunpack.c.l.b16 %v665
      %v2150 = vunpack.c.l.b16 %v666
      %v2151 = vunpack.c.l.b16 %v667
      %v2152 = vpack.c.b16 %v2137, %v2136
      %v2153 = vpack.c.b16 %v2139, %v2138
      %v2154 = vpack.c.b16 %v2141, %v2140
      %v2155 = vpack.c.b16 %v2143, %v2142
      %v2156 = vpack.c.b16 %v2145, %v2144
      %v2157 = vpack.c.b16 %v2147, %v2146
      %v2158 = vpack.c.b16 %v2149, %v2148
      %v2159 = vpack.c.b16 %v2151, %v2150
      %2168 = vmatpush.bf16.msra.mxu0 %v2159
      %2169 = vmatpush.bf16.msra.mxu0 %v2158
      %2170 = vmatpush.bf16.msra.mxu0 %v2157
      %2171 = vmatpush.bf16.msra.mxu0 %v2156
      %2172 = vmatpush.bf16.msra.mxu0 %v2155
      %2173 = vmatpush.bf16.msra.mxu0 %v2154
      %2174 = vmatpush.bf16.msra.mxu0 %v2153
      %2175 = vmatpush.bf16.msra.mxu0 %v2152
      %2176 = vmatmul.bf16.gmra.mxu0 %v1152
      %v2177 = vpop.f32.mrf.mxu0
      %v2178 = vadd.f32 0.0, %v2177
      %v2179 = vpop.f32.mrf.mxu0
      %v2180 = vadd.f32 0.0, %v2179
      %2181 = vmatmul.bf16.gmra.mxu0 %v1153
      %v2182 = vpop.f32.mrf.mxu0
      %v2183 = vadd.f32 0.0, %v2182
      %v2184 = vpop.f32.mrf.mxu0
      %v2185 = vadd.f32 0.0, %v2184
      %2186 = vmatmul.bf16.gmra.mxu0 %v1154
      %v2187 = vpop.f32.mrf.mxu0
      %v2188 = vadd.f32 0.0, %v2187
      %v2189 = vpop.f32.mrf.mxu0
      %v2190 = vadd.f32 0.0, %v2189
      %2191 = vmatmul.bf16.gmra.mxu0 %v1155
      %v2192 = vpop.f32.mrf.mxu0
      %v2193 = vadd.f32 0.0, %v2192
      %v2194 = vpop.f32.mrf.mxu0
      %v2195 = vadd.f32 0.0, %v2194
      %2196 = vmatmul.bf16.gmra.mxu0 %v1156
      %v2197 = vpop.f32.mrf.mxu0
      %v2198 = vadd.f32 0.0, %v2197
      %v2199 = vpop.f32.mrf.mxu0
      %v2200 = vadd.f32 0.0, %v2199
      %2201 = vmatmul.bf16.gmra.mxu0 %v1157
      %v2202 = vpop.f32.mrf.mxu0
      %v2203 = vadd.f32 0.0, %v2202
      %v2204 = vpop.f32.mrf.mxu0
      %v2205 = vadd.f32 0.0, %v2204
      %2206 = vmatmul.bf16.gmra.mxu0 %v1158
      %v2207 = vpop.f32.mrf.mxu0
      %v2208 = vadd.f32 0.0, %v2207
      %v2209 = vpop.f32.mrf.mxu0
      %v2210 = vadd.f32 0.0, %v2209
      %2211 = vmatmul.bf16.gmra.mxu0 %v1159
      %v2212 = vpop.f32.mrf.mxu0
      %v2213 = vadd.f32 0.0, %v2212
      %v2214 = vpop.f32.mrf.mxu0
      %v2215 = vadd.f32 0.0, %v2214
      %2216 = vmatmul.bf16.gmra.mxu0 %v1160
      %v2217 = vpop.f32.mrf.mxu0
      %v2218 = vadd.f32 0.0, %v2217
      %v2219 = vpop.f32.mrf.mxu0
      %v2220 = vadd.f32 0.0, %v2219
      %2221 = vmatmul.bf16.gmra.mxu0 %v1161
      %v2222 = vpop.f32.mrf.mxu0
      %v2223 = vadd.f32 0.0, %v2222
      %v2224 = vpop.f32.mrf.mxu0
      %v2225 = vadd.f32 0.0, %v2224
      %2226 = vmatmul.bf16.gmra.mxu0 %v1162
      %v2227 = vpop.f32.mrf.mxu0
      %v2228 = vadd.f32 0.0, %v2227
      %v2229 = vpop.f32.mrf.mxu0
      %v2230 = vadd.f32 0.0, %v2229
      %2231 = vmatmul.bf16.gmra.mxu0 %v1163
      %v2232 = vpop.f32.mrf.mxu0
      %v2233 = vadd.f32 0.0, %v2232
      %v2234 = vpop.f32.mrf.mxu0
      %v2235 = vadd.f32 0.0, %v2234
      %2236 = vmatmul.bf16.gmra.mxu0 %v1164
      %v2237 = vpop.f32.mrf.mxu0
      %v2238 = vadd.f32 0.0, %v2237
      %v2239 = vpop.f32.mrf.mxu0
      %v2240 = vadd.f32 0.0, %v2239
      %2241 = vmatmul.bf16.gmra.mxu0 %v1165
      %v2242 = vpop.f32.mrf.mxu0
      %v2243 = vadd.f32 0.0, %v2242
      %v2244 = vpop.f32.mrf.mxu0
      %v2245 = vadd.f32 0.0, %v2244
      %2246 = vmatmul.bf16.gmra.mxu0 %v1166
      %v2247 = vpop.f32.mrf.mxu0
      %v2248 = vadd.f32 0.0, %v2247
      %v2249 = vpop.f32.mrf.mxu0
      %v2250 = vadd.f32 0.0, %v2249
      %2251 = vmatmul.bf16.gmra.mxu0 %v2118
      %v2252 = vpop.f32.mrf.mxu0
      %v2253 = vadd.f32 0.0, %v2252
      %v2254 = vpop.f32.mrf.mxu0
      %v2255 = vadd.f32 0.0, %v2254
      %2256 = vdwg.mxu0
      %v2257 = vadd.f32 %v2060, %v2178
      %v2258 = vadd.f32 %v2061, %v2180
      %v2259 = vadd.f32 %v2062, %v2183
      %v2260 = vadd.f32 %v2063, %v2185
      %v2261 = vadd.f32 %v2064, %v2188
      %v2262 = vadd.f32 %v2065, %v2190
      %v2263 = vadd.f32 %v2066, %v2193
      %v2264 = vadd.f32 %v2067, %v2195
      %v2265 = vadd.f32 %v2068, %v2198
      %v2266 = vadd.f32 %v2069, %v2200
      %v2267 = vadd.f32 %v2070, %v2203
      %v2268 = vadd.f32 %v2071, %v2205
      %v2269 = vadd.f32 %v2072, %v2208
      %v2270 = vadd.f32 %v2073, %v2210
      %v2271 = vadd.f32 %v2074, %v2213
      %v2272 = vadd.f32 %v2075, %v2215
      %v2273 = vadd.f32 %v2076, %v2218
      %v2274 = vadd.f32 %v2077, %v2220
      %v2275 = vadd.f32 %v2078, %v2223
      %v2276 = vadd.f32 %v2079, %v2225
      %v2277 = vadd.f32 %v2080, %v2228
      %v2278 = vadd.f32 %v2081, %v2230
      %v2279 = vadd.f32 %v2082, %v2233
      %v2280 = vadd.f32 %v2083, %v2235
      %v2281 = vadd.f32 %v2084, %v2238
      %v2282 = vadd.f32 %v2085, %v2240
      %v2283 = vadd.f32 %v2086, %v2243
      %v2284 = vadd.f32 %v2087, %v2245
      %v2285 = vadd.f32 %v2088, %v2248
      %v2286 = vadd.f32 %v2089, %v2250
      %v2287 = vadd.f32 %v2090, %v2253
      %v2288 = vadd.f32 %v2091, %v2255
      %v2290 = vrot.slane %v582, 5
      %v2291 = vrot.slane %v2290, 4
      %v2292 = vrot.slane %v583, 5
      %v2293 = vsel %vm1571, %v2291, %v2292
      %v2294 = vrot.slane %v2292, 4
      %v2295 = vrot.slane %v584, 5
      %v2296 = vsel %vm1571, %v2294, %v2295
      %v2297 = vunpack.c.l.b16 %v2293
      %v2298 = vunpack.c.l.b16 %v2296
      %v2299 = vpack.c.b16 %v2298, %v2297
      %v2317 = vunpack.c.l.b16 %v668
      %v2318 = vunpack.c.l.b16 %v669
      %v2319 = vunpack.c.l.b16 %v670
      %v2320 = vunpack.c.l.b16 %v671
      %v2321 = vunpack.c.l.b16 %v672
      %v2322 = vunpack.c.l.b16 %v673
      %v2323 = vunpack.c.l.b16 %v674
      %v2324 = vunpack.c.l.b16 %v675
      %v2325 = vunpack.c.l.b16 %v676
      %v2326 = vunpack.c.l.b16 %v677
      %v2327 = vunpack.c.l.b16 %v678
      %v2328 = vunpack.c.l.b16 %v679
      %v2329 = vunpack.c.l.b16 %v680
      %v2330 = vunpack.c.l.b16 %v681
      %v2331 = vunpack.c.l.b16 %v682
      %v2332 = vunpack.c.l.b16 %v683
      %v2333 = vpack.c.b16 %v2318, %v2317
      %v2334 = vpack.c.b16 %v2320, %v2319
      %v2335 = vpack.c.b16 %v2322, %v2321
      %v2336 = vpack.c.b16 %v2324, %v2323
      %v2337 = vpack.c.b16 %v2326, %v2325
      %v2338 = vpack.c.b16 %v2328, %v2327
      %v2339 = vpack.c.b16 %v2330, %v2329
      %v2340 = vpack.c.b16 %v2332, %v2331
      %2349 = vmatpush.bf16.msra.mxu0 %v2340
      %2350 = vmatpush.bf16.msra.mxu0 %v2339
      %2351 = vmatpush.bf16.msra.mxu0 %v2338
      %2352 = vmatpush.bf16.msra.mxu0 %v2337
      %2353 = vmatpush.bf16.msra.mxu0 %v2336
      %2354 = vmatpush.bf16.msra.mxu0 %v2335
      %2355 = vmatpush.bf16.msra.mxu0 %v2334
      %2356 = vmatpush.bf16.msra.mxu0 %v2333
      %2357 = vmatmul.bf16.gmra.mxu0 %v1717
      %v2358 = vpop.f32.mrf.mxu0
      %v2359 = vadd.f32 0.0, %v2358
      %v2360 = vpop.f32.mrf.mxu0
      %v2361 = vadd.f32 0.0, %v2360
      %2362 = vmatmul.bf16.gmra.mxu0 %v1718
      %v2363 = vpop.f32.mrf.mxu0
      %v2364 = vadd.f32 0.0, %v2363
      %v2365 = vpop.f32.mrf.mxu0
      %v2366 = vadd.f32 0.0, %v2365
      %2367 = vmatmul.bf16.gmra.mxu0 %v1719
      %v2368 = vpop.f32.mrf.mxu0
      %v2369 = vadd.f32 0.0, %v2368
      %v2370 = vpop.f32.mrf.mxu0
      %v2371 = vadd.f32 0.0, %v2370
      %2372 = vmatmul.bf16.gmra.mxu0 %v1720
      %v2373 = vpop.f32.mrf.mxu0
      %v2374 = vadd.f32 0.0, %v2373
      %v2375 = vpop.f32.mrf.mxu0
      %v2376 = vadd.f32 0.0, %v2375
      %2377 = vmatmul.bf16.gmra.mxu0 %v1721
      %v2378 = vpop.f32.mrf.mxu0
      %v2379 = vadd.f32 0.0, %v2378
      %v2380 = vpop.f32.mrf.mxu0
      %v2381 = vadd.f32 0.0, %v2380
      %2382 = vmatmul.bf16.gmra.mxu0 %v1722
      %v2383 = vpop.f32.mrf.mxu0
      %v2384 = vadd.f32 0.0, %v2383
      %v2385 = vpop.f32.mrf.mxu0
      %v2386 = vadd.f32 0.0, %v2385
      %2387 = vmatmul.bf16.gmra.mxu0 %v1723
      %v2388 = vpop.f32.mrf.mxu0
      %v2389 = vadd.f32 0.0, %v2388
      %v2390 = vpop.f32.mrf.mxu0
      %v2391 = vadd.f32 0.0, %v2390
      %2392 = vmatmul.bf16.gmra.mxu0 %v1724
      %v2393 = vpop.f32.mrf.mxu0
      %v2394 = vadd.f32 0.0, %v2393
      %v2395 = vpop.f32.mrf.mxu0
      %v2396 = vadd.f32 0.0, %v2395
      %2397 = vmatmul.bf16.gmra.mxu0 %v1725
      %v2398 = vpop.f32.mrf.mxu0
      %v2399 = vadd.f32 0.0, %v2398
      %v2400 = vpop.f32.mrf.mxu0
      %v2401 = vadd.f32 0.0, %v2400
      %2402 = vmatmul.bf16.gmra.mxu0 %v1726
      %v2403 = vpop.f32.mrf.mxu0
      %v2404 = vadd.f32 0.0, %v2403
      %v2405 = vpop.f32.mrf.mxu0
      %v2406 = vadd.f32 0.0, %v2405
      %2407 = vmatmul.bf16.gmra.mxu0 %v1727
      %v2408 = vpop.f32.mrf.mxu0
      %v2409 = vadd.f32 0.0, %v2408
      %v2410 = vpop.f32.mrf.mxu0
      %v2411 = vadd.f32 0.0, %v2410
      %2412 = vmatmul.bf16.gmra.mxu0 %v1728
      %v2413 = vpop.f32.mrf.mxu0
      %v2414 = vadd.f32 0.0, %v2413
      %v2415 = vpop.f32.mrf.mxu0
      %v2416 = vadd.f32 0.0, %v2415
      %2417 = vmatmul.bf16.gmra.mxu0 %v1729
      %v2418 = vpop.f32.mrf.mxu0
      %v2419 = vadd.f32 0.0, %v2418
      %v2420 = vpop.f32.mrf.mxu0
      %v2421 = vadd.f32 0.0, %v2420
      %2422 = vmatmul.bf16.gmra.mxu0 %v1730
      %v2423 = vpop.f32.mrf.mxu0
      %v2424 = vadd.f32 0.0, %v2423
      %v2425 = vpop.f32.mrf.mxu0
      %v2426 = vadd.f32 0.0, %v2425
      %2427 = vmatmul.bf16.gmra.mxu0 %v1731
      %v2428 = vpop.f32.mrf.mxu0
      %v2429 = vadd.f32 0.0, %v2428
      %v2430 = vpop.f32.mrf.mxu0
      %v2431 = vadd.f32 0.0, %v2430
      %2432 = vmatmul.bf16.gmra.mxu0 %v2299
      %v2433 = vpop.f32.mrf.mxu0
      %v2434 = vadd.f32 0.0, %v2433
      %v2435 = vpop.f32.mrf.mxu0
      %v2436 = vadd.f32 0.0, %v2435
      %2437 = vdwg.mxu0
      %v2438 = vadd.f32 %v2257, %v2359
      %v2439 = vadd.f32 %v2258, %v2361
      %v2440 = vadd.f32 %v2259, %v2364
      %v2441 = vadd.f32 %v2260, %v2366
      %v2442 = vadd.f32 %v2261, %v2369
      %v2443 = vadd.f32 %v2262, %v2371
      %v2444 = vadd.f32 %v2263, %v2374
      %v2445 = vadd.f32 %v2264, %v2376
      %v2446 = vadd.f32 %v2265, %v2379
      %v2447 = vadd.f32 %v2266, %v2381
      %v2448 = vadd.f32 %v2267, %v2384
      %v2449 = vadd.f32 %v2268, %v2386
      %v2450 = vadd.f32 %v2269, %v2389
      %v2451 = vadd.f32 %v2270, %v2391
      %v2452 = vadd.f32 %v2271, %v2394
      %v2453 = vadd.f32 %v2272, %v2396
      %v2454 = vadd.f32 %v2273, %v2399
      %v2455 = vadd.f32 %v2274, %v2401
      %v2456 = vadd.f32 %v2275, %v2404
      %v2457 = vadd.f32 %v2276, %v2406
      %v2458 = vadd.f32 %v2277, %v2409
      %v2459 = vadd.f32 %v2278, %v2411
      %v2460 = vadd.f32 %v2279, %v2414
      %v2461 = vadd.f32 %v2280, %v2416
      %v2462 = vadd.f32 %v2281, %v2419
      %v2463 = vadd.f32 %v2282, %v2421
      %v2464 = vadd.f32 %v2283, %v2424
      %v2465 = vadd.f32 %v2284, %v2426
      %v2466 = vadd.f32 %v2285, %v2429
      %v2467 = vadd.f32 %v2286, %v2431
      %v2468 = vadd.f32 %v2287, %v2434
      %v2469 = vadd.f32 %v2288, %v2436
      %v2472 = vunpack.c.l.b16 %v585
      %v2473 = vunpack.c.l.b16 %v586
      %v2474 = vpack.c.b16 %v2473, %v2472
      %v2492 = vunpack.c.l.b16 %v684
      %v2493 = vunpack.c.l.b16 %v685
      %v2494 = vunpack.c.l.b16 %v686
      %v2495 = vunpack.c.l.b16 %v687
      %v2496 = vunpack.c.l.b16 %v688
      %v2497 = vunpack.c.l.b16 %v689
      %v2498 = vunpack.c.l.b16 %v690
      %v2499 = vunpack.c.l.b16 %v691
      %v2500 = vunpack.c.l.b16 %v692
      %v2501 = vunpack.c.l.b16 %v693
      %v2502 = vunpack.c.l.b16 %v694
      %v2503 = vunpack.c.l.b16 %v695
      %v2504 = vunpack.c.l.b16 %v696
      %v2505 = vunpack.c.l.b16 %v697
      %v2506 = vunpack.c.l.b16 %v698
      %v2507 = vunpack.c.l.b16 %v699
      %v2508 = vpack.c.b16 %v2493, %v2492
      %v2509 = vpack.c.b16 %v2495, %v2494
      %v2510 = vpack.c.b16 %v2497, %v2496
      %v2511 = vpack.c.b16 %v2499, %v2498
      %v2512 = vpack.c.b16 %v2501, %v2500
      %v2513 = vpack.c.b16 %v2503, %v2502
      %v2514 = vpack.c.b16 %v2505, %v2504
      %v2515 = vpack.c.b16 %v2507, %v2506
      %2524 = vmatpush.bf16.msra.mxu0 %v2515
      %2525 = vmatpush.bf16.msra.mxu0 %v2514
      %2526 = vmatpush.bf16.msra.mxu0 %v2513
      %2527 = vmatpush.bf16.msra.mxu0 %v2512
      %2528 = vmatpush.bf16.msra.mxu0 %v2511
      %2529 = vmatpush.bf16.msra.mxu0 %v2510
      %2530 = vmatpush.bf16.msra.mxu0 %v2509
      %2531 = vmatpush.bf16.msra.mxu0 %v2508
      %2532 = vmatmul.bf16.gmra.mxu0 %v1386
      %v2533 = vpop.f32.mrf.mxu0
      %v2534 = vadd.f32 0.0, %v2533
      %v2535 = vpop.f32.mrf.mxu0
      %v2536 = vadd.f32 0.0, %v2535
      %2537 = vmatmul.bf16.gmra.mxu0 %v1387
      %v2538 = vpop.f32.mrf.mxu0
      %v2539 = vadd.f32 0.0, %v2538
      %v2540 = vpop.f32.mrf.mxu0
      %v2541 = vadd.f32 0.0, %v2540
      %2542 = vmatmul.bf16.gmra.mxu0 %v1388
      %v2543 = vpop.f32.mrf.mxu0
      %v2544 = vadd.f32 0.0, %v2543
      %v2545 = vpop.f32.mrf.mxu0
      %v2546 = vadd.f32 0.0, %v2545
      %2547 = vmatmul.bf16.gmra.mxu0 %v1389
      %v2548 = vpop.f32.mrf.mxu0
      %v2549 = vadd.f32 0.0, %v2548
      %v2550 = vpop.f32.mrf.mxu0
      %v2551 = vadd.f32 0.0, %v2550
      %2552 = vmatmul.bf16.gmra.mxu0 %v1390
      %v2553 = vpop.f32.mrf.mxu0
      %v2554 = vadd.f32 0.0, %v2553
      %v2555 = vpop.f32.mrf.mxu0
      %v2556 = vadd.f32 0.0, %v2555
      %2557 = vmatmul.bf16.gmra.mxu0 %v1391
      %v2558 = vpop.f32.mrf.mxu0
      %v2559 = vadd.f32 0.0, %v2558
      %v2560 = vpop.f32.mrf.mxu0
      %v2561 = vadd.f32 0.0, %v2560
      %2562 = vmatmul.bf16.gmra.mxu0 %v1392
      %v2563 = vpop.f32.mrf.mxu0
      %v2564 = vadd.f32 0.0, %v2563
      %v2565 = vpop.f32.mrf.mxu0
      %v2566 = vadd.f32 0.0, %v2565
      %2567 = vmatmul.bf16.gmra.mxu0 %v1393
      %v2568 = vpop.f32.mrf.mxu0
      %v2569 = vadd.f32 0.0, %v2568
      %v2570 = vpop.f32.mrf.mxu0
      %v2571 = vadd.f32 0.0, %v2570
      %2572 = vmatmul.bf16.gmra.mxu0 %v1394
      %v2573 = vpop.f32.mrf.mxu0
      %v2574 = vadd.f32 0.0, %v2573
      %v2575 = vpop.f32.mrf.mxu0
      %v2576 = vadd.f32 0.0, %v2575
      %2577 = vmatmul.bf16.gmra.mxu0 %v1395
      %v2578 = vpop.f32.mrf.mxu0
      %v2579 = vadd.f32 0.0, %v2578
      %v2580 = vpop.f32.mrf.mxu0
      %v2581 = vadd.f32 0.0, %v2580
      %2582 = vmatmul.bf16.gmra.mxu0 %v1396
      %v2583 = vpop.f32.mrf.mxu0
      %v2584 = vadd.f32 0.0, %v2583
      %v2585 = vpop.f32.mrf.mxu0
      %v2586 = vadd.f32 0.0, %v2585
      %2587 = vmatmul.bf16.gmra.mxu0 %v1397
      %v2588 = vpop.f32.mrf.mxu0
      %v2589 = vadd.f32 0.0, %v2588
      %v2590 = vpop.f32.mrf.mxu0
      %v2591 = vadd.f32 0.0, %v2590
      %2592 = vmatmul.bf16.gmra.mxu0 %v1398
      %v2593 = vpop.f32.mrf.mxu0
      %v2594 = vadd.f32 0.0, %v2593
      %v2595 = vpop.f32.mrf.mxu0
      %v2596 = vadd.f32 0.0, %v2595
      %2597 = vmatmul.bf16.gmra.mxu0 %v1399
      %v2598 = vpop.f32.mrf.mxu0
      %v2599 = vadd.f32 0.0, %v2598
      %v2600 = vpop.f32.mrf.mxu0
      %v2601 = vadd.f32 0.0, %v2600
      %2602 = vmatmul.bf16.gmra.mxu0 %v1921
      %v2603 = vpop.f32.mrf.mxu0
      %v2604 = vadd.f32 0.0, %v2603
      %v2605 = vpop.f32.mrf.mxu0
      %v2606 = vadd.f32 0.0, %v2605
      %2607 = vmatmul.bf16.gmra.mxu0 %v2474
      %v2608 = vpop.f32.mrf.mxu0
      %v2609 = vadd.f32 0.0, %v2608
      %v2610 = vpop.f32.mrf.mxu0
      %v2611 = vadd.f32 0.0, %v2610
      %2612 = vdwg.mxu0
      %v2613 = vadd.f32 %v2438, %v2534
      %v2614 = vadd.f32 %v2439, %v2536
      %v2615 = vadd.f32 %v2440, %v2539
      %v2616 = vadd.f32 %v2441, %v2541
      %v2617 = vadd.f32 %v2442, %v2544
      %v2618 = vadd.f32 %v2443, %v2546
      %v2619 = vadd.f32 %v2444, %v2549
      %v2620 = vadd.f32 %v2445, %v2551
      %v2621 = vadd.f32 %v2446, %v2554
      %v2622 = vadd.f32 %v2447, %v2556
      %v2623 = vadd.f32 %v2448, %v2559
      %v2624 = vadd.f32 %v2449, %v2561
      %v2625 = vadd.f32 %v2450, %v2564
      %v2626 = vadd.f32 %v2451, %v2566
      %v2627 = vadd.f32 %v2452, %v2569
      %v2628 = vadd.f32 %v2453, %v2571
      %v2629 = vadd.f32 %v2454, %v2574
      %v2630 = vadd.f32 %v2455, %v2576
      %v2631 = vadd.f32 %v2456, %v2579
      %v2632 = vadd.f32 %v2457, %v2581
      %v2633 = vadd.f32 %v2458, %v2584
      %v2634 = vadd.f32 %v2459, %v2586
      %v2635 = vadd.f32 %v2460, %v2589
      %v2636 = vadd.f32 %v2461, %v2591
      %v2637 = vadd.f32 %v2462, %v2594
      %v2638 = vadd.f32 %v2463, %v2596
      %v2639 = vadd.f32 %v2464, %v2599
      %v2640 = vadd.f32 %v2465, %v2601
      %v2641 = vadd.f32 %v2466, %v2604
      %v2642 = vadd.f32 %v2467, %v2606
      %v2643 = vadd.f32 %v2468, %v2609
      %v2644 = vadd.f32 %v2469, %v2611
      %v2646 = vshrl.u32 %v585, 16
      %v2648 = vrot.slane %v2646, 4
      %v2649 = vshll.u32 %v585, 16
      %v2651 = vrot.slane %v2649, 5
      %v2652 = vor.u32 %v2648, %v2651
      %v2653 = vrot.slane %v2652, 4
      %v2655 = vshll.u32 %v586, 16
      %v2657 = vrot.slane %v2655, 5
      %v2658 = vsel %vm734, %v2653, %v2657
      %v2659 = vshrl.u32 %v586, 16
      %v2661 = vrot.slane %v2659, 4
      %v2662 = vor.u32 %v2661, %v2657
      %v2663 = vrot.slane %v2662, 4
      %v2665 = vshll.u32 %v587, 16
      %v2667 = vrot.slane %v2665, 5
      %v2668 = vsel %vm734, %v2663, %v2667
      %v2669 = vunpack.c.l.b16 %v2658
      %v2670 = vunpack.c.l.b16 %v2668
      %v2671 = vpack.c.b16 %v2670, %v2669
      %v2689 = vunpack.c.l.b16 %v700
      %v2690 = vunpack.c.l.b16 %v701
      %v2691 = vunpack.c.l.b16 %v702
      %v2692 = vunpack.c.l.b16 %v703
      %v2693 = vunpack.c.l.b16 %v704
      %v2694 = vunpack.c.l.b16 %v705
      %v2695 = vunpack.c.l.b16 %v706
      %v2696 = vunpack.c.l.b16 %v707
      %v2697 = vunpack.c.l.b16 %v708
      %v2698 = vunpack.c.l.b16 %v709
      %v2699 = vunpack.c.l.b16 %v710
      %v2700 = vunpack.c.l.b16 %v711
      %v2701 = vunpack.c.l.b16 %v712
      %v2702 = vunpack.c.l.b16 %v713
      %v2703 = vunpack.c.l.b16 %v714
      %v2704 = vunpack.c.l.b16 %v715
      %v2705 = vpack.c.b16 %v2690, %v2689
      %v2706 = vpack.c.b16 %v2692, %v2691
      %v2707 = vpack.c.b16 %v2694, %v2693
      %v2708 = vpack.c.b16 %v2696, %v2695
      %v2709 = vpack.c.b16 %v2698, %v2697
      %v2710 = vpack.c.b16 %v2700, %v2699
      %v2711 = vpack.c.b16 %v2702, %v2701
      %v2712 = vpack.c.b16 %v2704, %v2703
      %2721 = vmatpush.bf16.msra.mxu0 %v2712
      %2722 = vmatpush.bf16.msra.mxu0 %v2711
      %2723 = vmatpush.bf16.msra.mxu0 %v2710
      %2724 = vmatpush.bf16.msra.mxu0 %v2709
      %2725 = vmatpush.bf16.msra.mxu0 %v2708
      %2726 = vmatpush.bf16.msra.mxu0 %v2707
      %2727 = vmatpush.bf16.msra.mxu0 %v2706
      %2728 = vmatpush.bf16.msra.mxu0 %v2705
      %2729 = vmatmul.bf16.gmra.mxu0 %v1153
      %v2730 = vpop.f32.mrf.mxu0
      %v2731 = vadd.f32 0.0, %v2730
      %v2732 = vpop.f32.mrf.mxu0
      %v2733 = vadd.f32 0.0, %v2732
      %2734 = vmatmul.bf16.gmra.mxu0 %v1154
      %v2735 = vpop.f32.mrf.mxu0
      %v2736 = vadd.f32 0.0, %v2735
      %v2737 = vpop.f32.mrf.mxu0
      %v2738 = vadd.f32 0.0, %v2737
      %2739 = vmatmul.bf16.gmra.mxu0 %v1155
      %v2740 = vpop.f32.mrf.mxu0
      %v2741 = vadd.f32 0.0, %v2740
      %v2742 = vpop.f32.mrf.mxu0
      %v2743 = vadd.f32 0.0, %v2742
      %2744 = vmatmul.bf16.gmra.mxu0 %v1156
      %v2745 = vpop.f32.mrf.mxu0
      %v2746 = vadd.f32 0.0, %v2745
      %v2747 = vpop.f32.mrf.mxu0
      %v2748 = vadd.f32 0.0, %v2747
      %2749 = vmatmul.bf16.gmra.mxu0 %v1157
      %v2750 = vpop.f32.mrf.mxu0
      %v2751 = vadd.f32 0.0, %v2750
      %v2752 = vpop.f32.mrf.mxu0
      %v2753 = vadd.f32 0.0, %v2752
      %2754 = vmatmul.bf16.gmra.mxu0 %v1158
      %v2755 = vpop.f32.mrf.mxu0
      %v2756 = vadd.f32 0.0, %v2755
      %v2757 = vpop.f32.mrf.mxu0
      %v2758 = vadd.f32 0.0, %v2757
      %2759 = vmatmul.bf16.gmra.mxu0 %v1159
      %v2760 = vpop.f32.mrf.mxu0
      %v2761 = vadd.f32 0.0, %v2760
      %v2762 = vpop.f32.mrf.mxu0
      %v2763 = vadd.f32 0.0, %v2762
      %2764 = vmatmul.bf16.gmra.mxu0 %v1160
      %v2765 = vpop.f32.mrf.mxu0
      %v2766 = vadd.f32 0.0, %v2765
      %v2767 = vpop.f32.mrf.mxu0
      %v2768 = vadd.f32 0.0, %v2767
      %2769 = vmatmul.bf16.gmra.mxu0 %v1161
      %v2770 = vpop.f32.mrf.mxu0
      %v2771 = vadd.f32 0.0, %v2770
      %v2772 = vpop.f32.mrf.mxu0
      %v2773 = vadd.f32 0.0, %v2772
      %2774 = vmatmul.bf16.gmra.mxu0 %v1162
      %v2775 = vpop.f32.mrf.mxu0
      %v2776 = vadd.f32 0.0, %v2775
      %v2777 = vpop.f32.mrf.mxu0
      %v2778 = vadd.f32 0.0, %v2777
      %2779 = vmatmul.bf16.gmra.mxu0 %v1163
      %v2780 = vpop.f32.mrf.mxu0
      %v2781 = vadd.f32 0.0, %v2780
      %v2782 = vpop.f32.mrf.mxu0
      %v2783 = vadd.f32 0.0, %v2782
      %2784 = vmatmul.bf16.gmra.mxu0 %v1164
      %v2785 = vpop.f32.mrf.mxu0
      %v2786 = vadd.f32 0.0, %v2785
      %v2787 = vpop.f32.mrf.mxu0
      %v2788 = vadd.f32 0.0, %v2787
      %2789 = vmatmul.bf16.gmra.mxu0 %v1165
      %v2790 = vpop.f32.mrf.mxu0
      %v2791 = vadd.f32 0.0, %v2790
      %v2792 = vpop.f32.mrf.mxu0
      %v2793 = vadd.f32 0.0, %v2792
      %2794 = vmatmul.bf16.gmra.mxu0 %v1166
      %v2795 = vpop.f32.mrf.mxu0
      %v2796 = vadd.f32 0.0, %v2795
      %v2797 = vpop.f32.mrf.mxu0
      %v2798 = vadd.f32 0.0, %v2797
      %2799 = vmatmul.bf16.gmra.mxu0 %v2118
      %v2800 = vpop.f32.mrf.mxu0
      %v2801 = vadd.f32 0.0, %v2800
      %v2802 = vpop.f32.mrf.mxu0
      %v2803 = vadd.f32 0.0, %v2802
      %2804 = vmatmul.bf16.gmra.mxu0 %v2671
      %v2805 = vpop.f32.mrf.mxu0
      %v2806 = vadd.f32 0.0, %v2805
      %v2807 = vpop.f32.mrf.mxu0
      %v2808 = vadd.f32 0.0, %v2807
      %2809 = vdwg.mxu0
      %v2810 = vadd.f32 %v2613, %v2731
      %v2811 = vadd.f32 %v2614, %v2733
      %v2812 = vadd.f32 %v2615, %v2736
      %v2813 = vadd.f32 %v2616, %v2738
      %v2814 = vadd.f32 %v2617, %v2741
      %v2815 = vadd.f32 %v2618, %v2743
      %v2816 = vadd.f32 %v2619, %v2746
      %v2817 = vadd.f32 %v2620, %v2748
      %v2818 = vadd.f32 %v2621, %v2751
      %v2819 = vadd.f32 %v2622, %v2753
      %v2820 = vadd.f32 %v2623, %v2756
      %v2821 = vadd.f32 %v2624, %v2758
      %v2822 = vadd.f32 %v2625, %v2761
      %v2823 = vadd.f32 %v2626, %v2763
      %v2824 = vadd.f32 %v2627, %v2766
      %v2825 = vadd.f32 %v2628, %v2768
      %v2826 = vadd.f32 %v2629, %v2771
      %v2827 = vadd.f32 %v2630, %v2773
      %v2828 = vadd.f32 %v2631, %v2776
      %v2829 = vadd.f32 %v2632, %v2778
      %v2830 = vadd.f32 %v2633, %v2781
      %v2831 = vadd.f32 %v2634, %v2783
      %v2832 = vadd.f32 %v2635, %v2786
      %v2833 = vadd.f32 %v2636, %v2788
      %v2834 = vadd.f32 %v2637, %v2791
      %v2835 = vadd.f32 %v2638, %v2793
      %v2836 = vadd.f32 %v2639, %v2796
      %v2837 = vadd.f32 %v2640, %v2798
      %v2838 = vadd.f32 %v2641, %v2801
      %v2839 = vadd.f32 %v2642, %v2803
      %v2840 = vadd.f32 %v2643, %v2806
      %v2841 = vadd.f32 %v2644, %v2808
      %v2843 = vrot.slane %v585, 5
      %v2844 = vrot.slane %v2843, 4
      %v2845 = vrot.slane %v586, 5
      %v2846 = vsel %vm1571, %v2844, %v2845
      %v2847 = vrot.slane %v2845, 4
      %v2848 = vrot.slane %v587, 5
      %v2849 = vsel %vm1571, %v2847, %v2848
      %v2850 = vunpack.c.l.b16 %v2846
      %v2851 = vunpack.c.l.b16 %v2849
      %v2852 = vpack.c.b16 %v2851, %v2850
      %v2870 = vunpack.c.l.b16 %v716
      %v2871 = vunpack.c.l.b16 %v717
      %v2872 = vunpack.c.l.b16 %v718
      %v2873 = vunpack.c.l.b16 %v719
      %v2874 = vunpack.c.l.b16 %v720
      %v2875 = vunpack.c.l.b16 %v721
      %v2876 = vunpack.c.l.b16 %v722
      %v2877 = vunpack.c.l.b16 %v723
      %v2878 = vunpack.c.l.b16 %v724
      %v2879 = vunpack.c.l.b16 %v725
      %v2880 = vunpack.c.l.b16 %v726
      %v2881 = vunpack.c.l.b16 %v727
      %v2882 = vunpack.c.l.b16 %v728
      %v2883 = vunpack.c.l.b16 %v729
      %v2884 = vunpack.c.l.b16 %v730
      %v2885 = vunpack.c.l.b16 %v731
      %v2886 = vpack.c.b16 %v2871, %v2870
      %v2887 = vpack.c.b16 %v2873, %v2872
      %v2888 = vpack.c.b16 %v2875, %v2874
      %v2889 = vpack.c.b16 %v2877, %v2876
      %v2890 = vpack.c.b16 %v2879, %v2878
      %v2891 = vpack.c.b16 %v2881, %v2880
      %v2892 = vpack.c.b16 %v2883, %v2882
      %v2893 = vpack.c.b16 %v2885, %v2884
      %2902 = vmatpush.bf16.msra.mxu0 %v2893
      %2903 = vmatpush.bf16.msra.mxu0 %v2892
      %2904 = vmatpush.bf16.msra.mxu0 %v2891
      %2905 = vmatpush.bf16.msra.mxu0 %v2890
      %2906 = vmatpush.bf16.msra.mxu0 %v2889
      %2907 = vmatpush.bf16.msra.mxu0 %v2888
      %2908 = vmatpush.bf16.msra.mxu0 %v2887
      %2909 = vmatpush.bf16.msra.mxu0 %v2886
      %2910 = vmatmul.bf16.gmra.mxu0 %v1718
      %v2911 = vpop.f32.mrf.mxu0
      %v2912 = vadd.f32 0.0, %v2911
      %v2913 = vpop.f32.mrf.mxu0
      %v2914 = vadd.f32 0.0, %v2913
      %2915 = vmatmul.bf16.gmra.mxu0 %v1719
      %v2916 = vpop.f32.mrf.mxu0
      %v2917 = vadd.f32 0.0, %v2916
      %v2918 = vpop.f32.mrf.mxu0
      %v2919 = vadd.f32 0.0, %v2918
      %2920 = vmatmul.bf16.gmra.mxu0 %v1720
      %v2921 = vpop.f32.mrf.mxu0
      %v2922 = vadd.f32 0.0, %v2921
      %v2923 = vpop.f32.mrf.mxu0
      %v2924 = vadd.f32 0.0, %v2923
      %2925 = vmatmul.bf16.gmra.mxu0 %v1721
      %v2926 = vpop.f32.mrf.mxu0
      %v2927 = vadd.f32 0.0, %v2926
      %v2928 = vpop.f32.mrf.mxu0
      %v2929 = vadd.f32 0.0, %v2928
      %2930 = vmatmul.bf16.gmra.mxu0 %v1722
      %v2931 = vpop.f32.mrf.mxu0
      %v2932 = vadd.f32 0.0, %v2931
      %v2933 = vpop.f32.mrf.mxu0
      %v2934 = vadd.f32 0.0, %v2933
      %2935 = vmatmul.bf16.gmra.mxu0 %v1723
      %v2936 = vpop.f32.mrf.mxu0
      %v2937 = vadd.f32 0.0, %v2936
      %v2938 = vpop.f32.mrf.mxu0
      %v2939 = vadd.f32 0.0, %v2938
      %2940 = vmatmul.bf16.gmra.mxu0 %v1724
      %v2941 = vpop.f32.mrf.mxu0
      %v2942 = vadd.f32 0.0, %v2941
      %v2943 = vpop.f32.mrf.mxu0
      %v2944 = vadd.f32 0.0, %v2943
      %2945 = vmatmul.bf16.gmra.mxu0 %v1725
      %v2946 = vpop.f32.mrf.mxu0
      %v2947 = vadd.f32 0.0, %v2946
      %v2948 = vpop.f32.mrf.mxu0
      %v2949 = vadd.f32 0.0, %v2948
      %2950 = vmatmul.bf16.gmra.mxu0 %v1726
      %v2951 = vpop.f32.mrf.mxu0
      %v2952 = vadd.f32 0.0, %v2951
      %v2953 = vpop.f32.mrf.mxu0
      %v2954 = vadd.f32 0.0, %v2953
      %2955 = vmatmul.bf16.gmra.mxu0 %v1727
      %v2956 = vpop.f32.mrf.mxu0
      %v2957 = vadd.f32 0.0, %v2956
      %v2958 = vpop.f32.mrf.mxu0
      %v2959 = vadd.f32 0.0, %v2958
      %2960 = vmatmul.bf16.gmra.mxu0 %v1728
      %v2961 = vpop.f32.mrf.mxu0
      %v2962 = vadd.f32 0.0, %v2961
      %v2963 = vpop.f32.mrf.mxu0
      %v2964 = vadd.f32 0.0, %v2963
      %2965 = vmatmul.bf16.gmra.mxu0 %v1729
      %v2966 = vpop.f32.mrf.mxu0
      %v2967 = vadd.f32 0.0, %v2966
      %v2968 = vpop.f32.mrf.mxu0
      %v2969 = vadd.f32 0.0, %v2968
      %2970 = vmatmul.bf16.gmra.mxu0 %v1730
      %v2971 = vpop.f32.mrf.mxu0
      %v2972 = vadd.f32 0.0, %v2971
      %v2973 = vpop.f32.mrf.mxu0
      %v2974 = vadd.f32 0.0, %v2973
      %2975 = vmatmul.bf16.gmra.mxu0 %v1731
      %v2976 = vpop.f32.mrf.mxu0
      %v2977 = vadd.f32 0.0, %v2976
      %v2978 = vpop.f32.mrf.mxu0
      %v2979 = vadd.f32 0.0, %v2978
      %2980 = vmatmul.bf16.gmra.mxu0 %v2299
      %v2981 = vpop.f32.mrf.mxu0
      %v2982 = vadd.f32 0.0, %v2981
      %v2983 = vpop.f32.mrf.mxu0
      %v2984 = vadd.f32 0.0, %v2983
      %2985 = vmatmul.bf16.gmra.mxu0 %v2852
      %v2986 = vpop.f32.mrf.mxu0
      %v2987 = vadd.f32 0.0, %v2986
      %v2988 = vpop.f32.mrf.mxu0
      %v2989 = vadd.f32 0.0, %v2988
      %2990 = vdwg.mxu0
      %v2991 = vadd.f32 %v2810, %v2912
      %v2992 = vadd.f32 %v2811, %v2914
      %v2993 = vadd.f32 %v2812, %v2917
      %v2994 = vadd.f32 %v2813, %v2919
      %v2995 = vadd.f32 %v2814, %v2922
      %v2996 = vadd.f32 %v2815, %v2924
      %v2997 = vadd.f32 %v2816, %v2927
      %v2998 = vadd.f32 %v2817, %v2929
      %v2999 = vadd.f32 %v2818, %v2932
      %v3000 = vadd.f32 %v2819, %v2934
      %v3001 = vadd.f32 %v2820, %v2937
      %v3002 = vadd.f32 %v2821, %v2939
      %v3003 = vadd.f32 %v2822, %v2942
      %v3004 = vadd.f32 %v2823, %v2944
      %v3005 = vadd.f32 %v2824, %v2947
      %v3006 = vadd.f32 %v2825, %v2949
      %v3007 = vadd.f32 %v2826, %v2952
      %v3008 = vadd.f32 %v2827, %v2954
      %v3009 = vadd.f32 %v2828, %v2957
      %v3010 = vadd.f32 %v2829, %v2959
      %v3011 = vadd.f32 %v2830, %v2962
      %v3012 = vadd.f32 %v2831, %v2964
      %v3013 = vadd.f32 %v2832, %v2967
      %v3014 = vadd.f32 %v2833, %v2969
      %v3015 = vadd.f32 %v2834, %v2972
      %v3016 = vadd.f32 %v2835, %v2974
      %v3017 = vadd.f32 %v2836, %v2977
      %v3018 = vadd.f32 %v2837, %v2979
      %v3019 = vadd.f32 %v2838, %v2982
      %v3020 = vadd.f32 %v2839, %v2984
      %v3021 = vadd.f32 %v2840, %v2987
      %v3022 = vadd.f32 %v2841, %v2989
      %v3023 = vld [vmem:[%s495] sm:$0xf]
      %v3024 = vld [vmem:[%s495 + $0x4] sm:$0xf]
      %v3025 = vld [vmem:[%s495 + $0x8] sm:$0x1]
      %v3026 = vld [vmem:[%s495 + $0xc] sm:$0xf]
      %v3027 = vld [vmem:[%s495 + $0x10] sm:$0xf]
      %v3028 = vld [vmem:[%s495 + $0x14] sm:$0x1]
      %v3029 = vld [vmem:[%s495 + $0x18] sm:$0xf]
      %v3030 = vld [vmem:[%s495 + $0x1c] sm:$0xf]
      %v3031 = vld [vmem:[%s495 + $0x20] sm:$0x1]
      %v3032 = vld [vmem:[%s495 + $0x24] sm:$0xf]
      %v3033 = vld [vmem:[%s495 + $0x28] sm:$0xf]
      %v3034 = vld [vmem:[%s495 + $0x2c] sm:$0x1]
      %v3035 = vld [vmem:[%s495 + $0x30] sm:$0xf]
      %v3036 = vld [vmem:[%s495 + $0x34] sm:$0xf]
      %v3037 = vld [vmem:[%s495 + $0x38] sm:$0x1]
      %v3038 = vld [vmem:[%s495 + $0x3c] sm:$0xf]
      %v3039 = vld [vmem:[%s495 + $0x40] sm:$0xf]
      %v3040 = vld [vmem:[%s495 + $0x44] sm:$0x1]
      %v3041 = vld [vmem:[%s495 + $0x48] sm:$0xf]
      %v3042 = vld [vmem:[%s495 + $0x4c] sm:$0xf]
      %v3043 = vld [vmem:[%s495 + $0x50] sm:$0x1]
      %v3044 = vld [vmem:[%s495 + $0x54] sm:$0xf]
      %v3045 = vld [vmem:[%s495 + $0x58] sm:$0xf]
      %v3046 = vld [vmem:[%s495 + $0x5c] sm:$0x1]
      %v3047 = vld [vmem:[%s495 + $0x60] sm:$0xf]
      %v3048 = vld [vmem:[%s495 + $0x64] sm:$0xf]
      %v3049 = vld [vmem:[%s495 + $0x68] sm:$0x1]
      %v3050 = vld [vmem:[%s495 + $0x6c] sm:$0xf]
      %v3051 = vld [vmem:[%s495 + $0x70] sm:$0xf]
      %v3052 = vld [vmem:[%s495 + $0x74] sm:$0x1]
      %v3053 = vld [vmem:[%s495 + $0x78] sm:$0xf]
      %v3054 = vld [vmem:[%s495 + $0x7c] sm:$0xf]
      %v3055 = vld [vmem:[%s495 + $0x80] sm:$0x1]
      %v3056 = vld [vmem:[%s495 + $0x84] sm:$0xf]
      %v3057 = vld [vmem:[%s495 + $0x88] sm:$0xf]
      %v3058 = vld [vmem:[%s495 + $0x8c] sm:$0x1]
      %v3059 = vld [vmem:[%s495 + $0x90] sm:$0xf]
      %v3060 = vld [vmem:[%s495 + $0x94] sm:$0xf]
      %v3061 = vld [vmem:[%s495 + $0x98] sm:$0x1]
      %v3062 = vld [vmem:[%s495 + $0x9c] sm:$0xf]
      %v3063 = vld [vmem:[%s495 + $0xa0] sm:$0xf]
      %v3064 = vld [vmem:[%s495 + $0xa4] sm:$0x1]
      %v3065 = vld [vmem:[%s495 + $0xa8] sm:$0xf]
      %v3066 = vld [vmem:[%s495 + $0xac] sm:$0xf]
      %v3067 = vld [vmem:[%s495 + $0xb0] sm:$0x1]
      %v3068 = vld [vmem:[%s495 + $0xb4] sm:$0xf]
      %v3069 = vld [vmem:[%s495 + $0xb8] sm:$0xf]
      %v3070 = vld [vmem:[%s495 + $0xbc] sm:$0x1]
      %v3071 = vld [vmem:[%s513] sm:$0xf]
      %v3072 = vld [vmem:[%s513 + $0x4] sm:$0xf]
      %v3073 = vld [vmem:[%s513 + $0x8] sm:$0x1]
      %v3074 = vld [vmem:[%s513 + $0xc] sm:$0xf]
      %v3075 = vld [vmem:[%s513 + $0x10] sm:$0xf]
      %v3076 = vld [vmem:[%s513 + $0x14] sm:$0x1]
      %v3077 = vld [vmem:[%s5] sm:$0xf]
      %v3078 = vld [vmem:[%s5 + $0x4] sm:$0xf]
      %v3079 = vld [vmem:[%s5 + $0x8] sm:$0xf]
      %v3080 = vld [vmem:[%s5 + $0xc] sm:$0xf]
      %v3081 = vld [vmem:[%s5 + $0x10] sm:$0xf]
      %v3082 = vld [vmem:[%s5 + $0x14] sm:$0xf]
      %v3083 = vld [vmem:[%s5 + $0x18] sm:$0xf]
      %v3084 = vld [vmem:[%s5 + $0x1c] sm:$0xf]
      %v3085 = vld [vmem:[%s5 + $0x20] sm:$0xf]
      %v3086 = vld [vmem:[%s5 + $0x24] sm:$0xf]
      %v3087 = vld [vmem:[%s5 + $0x28] sm:$0xf]
      %v3088 = vld [vmem:[%s5 + $0x2c] sm:$0xf]
      %v3089 = vld [vmem:[%s5 + $0x30] sm:$0xf]
      %v3090 = vld [vmem:[%s5 + $0x34] sm:$0xf]
      %v3091 = vld [vmem:[%s5 + $0x38] sm:$0xf]
      %v3092 = vld [vmem:[%s5 + $0x3c] sm:$0xf]
      %v3093 = vld [vmem:[%s5 + $0x40] sm:$0xf]
      %v3094 = vld [vmem:[%s5 + $0x44] sm:$0xf]
      %v3095 = vld [vmem:[%s5 + $0x48] sm:$0xf]
      %v3096 = vld [vmem:[%s5 + $0x4c] sm:$0xf]
      %v3097 = vld [vmem:[%s5 + $0x50] sm:$0xf]
      %v3098 = vld [vmem:[%s5 + $0x54] sm:$0xf]
      %v3099 = vld [vmem:[%s5 + $0x58] sm:$0xf]
      %v3100 = vld [vmem:[%s5 + $0x5c] sm:$0xf]
      %v3101 = vld [vmem:[%s5 + $0x60] sm:$0xf]
      %v3102 = vld [vmem:[%s5 + $0x64] sm:$0xf]
      %v3103 = vld [vmem:[%s5 + $0x68] sm:$0xf]
      %v3104 = vld [vmem:[%s5 + $0x6c] sm:$0xf]
      %v3105 = vld [vmem:[%s5 + $0x70] sm:$0xf]
      %v3106 = vld [vmem:[%s5 + $0x74] sm:$0xf]
      %v3107 = vld [vmem:[%s5 + $0x78] sm:$0xf]
      %v3108 = vld [vmem:[%s5 + $0x7c] sm:$0xf]
      %v3109 = vld [vmem:[%s5 + $0x80] sm:$0xf]
      %v3110 = vld [vmem:[%s5 + $0x84] sm:$0xf]
      %v3111 = vld [vmem:[%s5 + $0x88] sm:$0xf]
      %v3112 = vld [vmem:[%s5 + $0x8c] sm:$0xf]
      %v3113 = vld [vmem:[%s5 + $0x90] sm:$0xf]
      %v3114 = vld [vmem:[%s5 + $0x94] sm:$0xf]
      %v3115 = vld [vmem:[%s5 + $0x98] sm:$0xf]
      %v3116 = vld [vmem:[%s5 + $0x9c] sm:$0xf]
      %v3117 = vld [vmem:[%s5 + $0xa0] sm:$0xf]
      %v3118 = vld [vmem:[%s5 + $0xa4] sm:$0xf]
      %v3119 = vld [vmem:[%s5 + $0xa8] sm:$0xf]
      %v3120 = vld [vmem:[%s5 + $0xac] sm:$0xf]
      %v3121 = vld [vmem:[%s5 + $0xb0] sm:$0xf]
      %v3122 = vld [vmem:[%s5 + $0xb4] sm:$0xf]
      %v3123 = vld [vmem:[%s5 + $0xb8] sm:$0xf]
      %v3124 = vld [vmem:[%s5 + $0xbc] sm:$0xf]
      %v3125 = vld [vmem:[%s5 + $0xc0] sm:$0xf]
      %v3126 = vld [vmem:[%s5 + $0xc4] sm:$0xf]
      %v3127 = vld [vmem:[%s5 + $0xc8] sm:$0xf]
      %v3128 = vld [vmem:[%s5 + $0xcc] sm:$0xf]
      %v3129 = vld [vmem:[%s5 + $0xd0] sm:$0xf]
      %v3130 = vld [vmem:[%s5 + $0xd4] sm:$0xf]
      %v3131 = vld [vmem:[%s5 + $0xd8] sm:$0xf]
      %v3132 = vld [vmem:[%s5 + $0xdc] sm:$0xf]
      %v3133 = vld [vmem:[%s5 + $0xe0] sm:$0xf]
      %v3134 = vld [vmem:[%s5 + $0xe4] sm:$0xf]
      %v3135 = vld [vmem:[%s5 + $0xe8] sm:$0xf]
      %v3136 = vld [vmem:[%s5 + $0xec] sm:$0xf]
      %v3137 = vld [vmem:[%s5 + $0xf0] sm:$0xf]
      %v3138 = vld [vmem:[%s5 + $0xf4] sm:$0xf]
      %v3139 = vld [vmem:[%s5 + $0xf8] sm:$0xf]
      %v3140 = vld [vmem:[%s5 + $0xfc] sm:$0xf]
      %v3141 = vld [vmem:[%s5 + $0x100] sm:$0xf]
      %v3142 = vld [vmem:[%s5 + $0x104] sm:$0xf]
      %v3143 = vld [vmem:[%s5 + $0x108] sm:$0xf]
      %v3144 = vld [vmem:[%s5 + $0x10c] sm:$0xf]
      %v3145 = vld [vmem:[%s5 + $0x110] sm:$0xf]
      %v3146 = vld [vmem:[%s5 + $0x114] sm:$0xf]
      %v3147 = vld [vmem:[%s5 + $0x118] sm:$0xf]
      %v3148 = vld [vmem:[%s5 + $0x11c] sm:$0xf]
      %v3149 = vld [vmem:[%s5 + $0x120] sm:$0xf]
      %v3150 = vld [vmem:[%s5 + $0x124] sm:$0xf]
      %v3151 = vld [vmem:[%s5 + $0x128] sm:$0xf]
      %v3152 = vld [vmem:[%s5 + $0x12c] sm:$0xf]
      %v3153 = vld [vmem:[%s5 + $0x130] sm:$0xf]
      %v3154 = vld [vmem:[%s5 + $0x134] sm:$0xf]
      %v3155 = vld [vmem:[%s5 + $0x138] sm:$0xf]
      %v3156 = vld [vmem:[%s5 + $0x13c] sm:$0xf]
      %v3157 = vld [vmem:[%s5 + $0x140] sm:$0xf]
      %v3158 = vld [vmem:[%s5 + $0x144] sm:$0xf]
      %v3159 = vld [vmem:[%s5 + $0x148] sm:$0xf]
      %v3160 = vld [vmem:[%s5 + $0x14c] sm:$0xf]
      %v3161 = vld [vmem:[%s5 + $0x150] sm:$0xf]
      %v3162 = vld [vmem:[%s5 + $0x154] sm:$0xf]
      %v3163 = vld [vmem:[%s5 + $0x158] sm:$0xf]
      %v3164 = vld [vmem:[%s5 + $0x15c] sm:$0xf]
      %v3165 = vld [vmem:[%s5 + $0x160] sm:$0xf]
      %v3166 = vld [vmem:[%s5 + $0x164] sm:$0xf]
      %v3167 = vld [vmem:[%s5 + $0x168] sm:$0xf]
      %v3168 = vld [vmem:[%s5 + $0x16c] sm:$0xf]
      %v3169 = vld [vmem:[%s5 + $0x170] sm:$0xf]
      %v3170 = vld [vmem:[%s5 + $0x174] sm:$0xf]
      %v3171 = vld [vmem:[%s5 + $0x178] sm:$0xf]
      %v3172 = vld [vmem:[%s5 + $0x17c] sm:$0xf]
      %v3173 = vld [vmem:[%s5 + $0x180] sm:$0xf]
      %v3174 = vld [vmem:[%s5 + $0x184] sm:$0xf]
      %v3175 = vld [vmem:[%s5 + $0x188] sm:$0xf]
      %v3176 = vld [vmem:[%s5 + $0x18c] sm:$0xf]
      %v3177 = vld [vmem:[%s5 + $0x190] sm:$0xf]
      %v3178 = vld [vmem:[%s5 + $0x194] sm:$0xf]
      %v3179 = vld [vmem:[%s5 + $0x198] sm:$0xf]
      %v3180 = vld [vmem:[%s5 + $0x19c] sm:$0xf]
      %v3181 = vld [vmem:[%s5 + $0x1a0] sm:$0xf]
      %v3182 = vld [vmem:[%s5 + $0x1a4] sm:$0xf]
      %v3183 = vld [vmem:[%s5 + $0x1a8] sm:$0xf]
      %v3184 = vld [vmem:[%s5 + $0x1ac] sm:$0xf]
      %v3185 = vld [vmem:[%s5 + $0x1b0] sm:$0xf]
      %v3186 = vld [vmem:[%s5 + $0x1b4] sm:$0xf]
      %v3187 = vld [vmem:[%s5 + $0x1b8] sm:$0xf]
      %v3188 = vld [vmem:[%s5 + $0x1bc] sm:$0xf]
      %v3189 = vld [vmem:[%s5 + $0x1c0] sm:$0xf]
      %v3190 = vld [vmem:[%s5 + $0x1c4] sm:$0xf]
      %v3191 = vld [vmem:[%s5 + $0x1c8] sm:$0xf]
      %v3192 = vld [vmem:[%s5 + $0x1cc] sm:$0xf]
      %v3193 = vld [vmem:[%s5 + $0x1d0] sm:$0xf]
      %v3194 = vld [vmem:[%s5 + $0x1d4] sm:$0xf]
      %v3195 = vld [vmem:[%s5 + $0x1d8] sm:$0xf]
      %v3196 = vld [vmem:[%s5 + $0x1dc] sm:$0xf]
      %v3197 = vld [vmem:[%s5 + $0x1e0] sm:$0xf]
      %v3198 = vld [vmem:[%s5 + $0x1e4] sm:$0xf]
      %v3199 = vld [vmem:[%s5 + $0x1e8] sm:$0xf]
      %v3200 = vld [vmem:[%s5 + $0x1ec] sm:$0xf]
      %v3201 = vld [vmem:[%s5 + $0x1f0] sm:$0xf]
      %v3202 = vld [vmem:[%s5 + $0x1f4] sm:$0xf]
      %v3203 = vld [vmem:[%s5 + $0x1f8] sm:$0xf]
      %v3204 = vld [vmem:[%s5 + $0x1fc] sm:$0xf]
      %v3205 = vld [vmem:[%s5 + $0x200] sm:$0xf]
      %v3206 = vld [vmem:[%s5 + $0x204] sm:$0xf]
      %v3207 = vld [vmem:[%s5 + $0x208] sm:$0xf]
      %v3208 = vld [vmem:[%s5 + $0x20c] sm:$0xf]
      %v3209 = vld [vmem:[%s5 + $0x210] sm:$0xf]
      %v3210 = vld [vmem:[%s5 + $0x214] sm:$0xf]
      %v3211 = vld [vmem:[%s5 + $0x218] sm:$0xf]
      %v3212 = vld [vmem:[%s5 + $0x21c] sm:$0xf]
      %v3213 = vld [vmem:[%s5 + $0x220] sm:$0xf]
      %v3214 = vld [vmem:[%s5 + $0x224] sm:$0xf]
      %v3215 = vld [vmem:[%s5 + $0x228] sm:$0xf]
      %v3216 = vld [vmem:[%s5 + $0x22c] sm:$0xf]
      %v3217 = vld [vmem:[%s5 + $0x230] sm:$0xf]
      %v3218 = vld [vmem:[%s5 + $0x234] sm:$0xf]
      %v3219 = vld [vmem:[%s5 + $0x238] sm:$0xf]
      %v3220 = vld [vmem:[%s5 + $0x23c] sm:$0xf]
      %v3253 = vunpack.c.l.b16 %v3023
      %v3254 = vunpack.c.l.b16 %v3024
      %v3255 = vunpack.c.l.b16 %v3026
      %v3256 = vunpack.c.l.b16 %v3027
      %v3257 = vunpack.c.l.b16 %v3029
      %v3258 = vunpack.c.l.b16 %v3030
      %v3259 = vunpack.c.l.b16 %v3032
      %v3260 = vunpack.c.l.b16 %v3033
      %v3261 = vunpack.c.l.b16 %v3035
      %v3262 = vunpack.c.l.b16 %v3036
      %v3263 = vunpack.c.l.b16 %v3038
      %v3264 = vunpack.c.l.b16 %v3039
      %v3265 = vunpack.c.l.b16 %v3041
      %v3266 = vunpack.c.l.b16 %v3042
      %v3267 = vunpack.c.l.b16 %v3044
      %v3268 = vunpack.c.l.b16 %v3045
      %v3269 = vunpack.c.l.b16 %v3047
      %v3270 = vunpack.c.l.b16 %v3048
      %v3271 = vunpack.c.l.b16 %v3050
      %v3272 = vunpack.c.l.b16 %v3051
      %v3273 = vunpack.c.l.b16 %v3053
      %v3274 = vunpack.c.l.b16 %v3054
      %v3275 = vunpack.c.l.b16 %v3056
      %v3276 = vunpack.c.l.b16 %v3057
      %v3277 = vunpack.c.l.b16 %v3059
      %v3278 = vunpack.c.l.b16 %v3060
      %v3279 = vunpack.c.l.b16 %v3062
      %v3280 = vunpack.c.l.b16 %v3063
      %v3281 = vunpack.c.l.b16 %v3065
      %v3282 = vunpack.c.l.b16 %v3066
      %v3283 = vunpack.c.l.b16 %v3068
      %v3284 = vunpack.c.l.b16 %v3069
      %v3285 = vpack.c.b16 %v3254, %v3253
      %v3286 = vpack.c.b16 %v3256, %v3255
      %v3287 = vpack.c.b16 %v3258, %v3257
      %v3288 = vpack.c.b16 %v3260, %v3259
      %v3289 = vpack.c.b16 %v3262, %v3261
      %v3290 = vpack.c.b16 %v3264, %v3263
      %v3291 = vpack.c.b16 %v3266, %v3265
      %v3292 = vpack.c.b16 %v3268, %v3267
      %v3293 = vpack.c.b16 %v3270, %v3269
      %v3294 = vpack.c.b16 %v3272, %v3271
      %v3295 = vpack.c.b16 %v3274, %v3273
      %v3296 = vpack.c.b16 %v3276, %v3275
      %v3297 = vpack.c.b16 %v3278, %v3277
      %v3298 = vpack.c.b16 %v3280, %v3279
      %v3299 = vpack.c.b16 %v3282, %v3281
      %v3300 = vpack.c.b16 %v3284, %v3283
      %v3333 = vunpack.c.l.b16 %v3077
      %v3334 = vunpack.c.l.b16 %v3078
      %v3335 = vunpack.c.l.b16 %v3079
      %v3336 = vunpack.c.l.b16 %v3080
      %v3337 = vunpack.c.l.b16 %v3081
      %v3338 = vunpack.c.l.b16 %v3082
      %v3339 = vunpack.c.l.b16 %v3083
      %v3340 = vunpack.c.l.b16 %v3084
      %v3341 = vunpack.c.l.b16 %v3085
      %v3342 = vunpack.c.l.b16 %v3086
      %v3343 = vunpack.c.l.b16 %v3087
      %v3344 = vunpack.c.l.b16 %v3088
      %v3345 = vunpack.c.l.b16 %v3089
      %v3346 = vunpack.c.l.b16 %v3090
      %v3347 = vunpack.c.l.b16 %v3091
      %v3348 = vunpack.c.l.b16 %v3092
      %v3349 = vpack.c.b16 %v3334, %v3333
      %v3350 = vpack.c.b16 %v3336, %v3335
      %v3351 = vpack.c.b16 %v3338, %v3337
      %v3352 = vpack.c.b16 %v3340, %v3339
      %v3353 = vpack.c.b16 %v3342, %v3341
      %v3354 = vpack.c.b16 %v3344, %v3343
      %v3355 = vpack.c.b16 %v3346, %v3345
      %v3356 = vpack.c.b16 %v3348, %v3347
      %3365 = vmatpush.bf16.msra.mxu0 %v3356
      %3366 = vmatpush.bf16.msra.mxu0 %v3355
      %3367 = vmatpush.bf16.msra.mxu0 %v3354
      %3368 = vmatpush.bf16.msra.mxu0 %v3353
      %3369 = vmatpush.bf16.msra.mxu0 %v3352
      %3370 = vmatpush.bf16.msra.mxu0 %v3351
      %3371 = vmatpush.bf16.msra.mxu0 %v3350
      %3372 = vmatpush.bf16.msra.mxu0 %v3349
      %3373 = vmatmul.bf16.gmra.mxu0 %v3285
      %v3374 = vpop.f32.mrf.mxu0
      %v3375 = vadd.f32 0.0, %v3374
      %v3376 = vpop.f32.mrf.mxu0
      %v3377 = vadd.f32 0.0, %v3376
      %3378 = vmatmul.bf16.gmra.mxu0 %v3286
      %v3379 = vpop.f32.mrf.mxu0
      %v3380 = vadd.f32 0.0, %v3379
      %v3381 = vpop.f32.mrf.mxu0
      %v3382 = vadd.f32 0.0, %v3381
      %3383 = vmatmul.bf16.gmra.mxu0 %v3287
      %v3384 = vpop.f32.mrf.mxu0
      %v3385 = vadd.f32 0.0, %v3384
      %v3386 = vpop.f32.mrf.mxu0
      %v3387 = vadd.f32 0.0, %v3386
      %3388 = vmatmul.bf16.gmra.mxu0 %v3288
      %v3389 = vpop.f32.mrf.mxu0
      %v3390 = vadd.f32 0.0, %v3389
      %v3391 = vpop.f32.mrf.mxu0
      %v3392 = vadd.f32 0.0, %v3391
      %3393 = vmatmul.bf16.gmra.mxu0 %v3289
      %v3394 = vpop.f32.mrf.mxu0
      %v3395 = vadd.f32 0.0, %v3394
      %v3396 = vpop.f32.mrf.mxu0
      %v3397 = vadd.f32 0.0, %v3396
      %3398 = vmatmul.bf16.gmra.mxu0 %v3290
      %v3399 = vpop.f32.mrf.mxu0
      %v3400 = vadd.f32 0.0, %v3399
      %v3401 = vpop.f32.mrf.mxu0
      %v3402 = vadd.f32 0.0, %v3401
      %3403 = vmatmul.bf16.gmra.mxu0 %v3291
      %v3404 = vpop.f32.mrf.mxu0
      %v3405 = vadd.f32 0.0, %v3404
      %v3406 = vpop.f32.mrf.mxu0
      %v3407 = vadd.f32 0.0, %v3406
      %3408 = vmatmul.bf16.gmra.mxu0 %v3292
      %v3409 = vpop.f32.mrf.mxu0
      %v3410 = vadd.f32 0.0, %v3409
      %v3411 = vpop.f32.mrf.mxu0
      %v3412 = vadd.f32 0.0, %v3411
      %3413 = vmatmul.bf16.gmra.mxu0 %v3293
      %v3414 = vpop.f32.mrf.mxu0
      %v3415 = vadd.f32 0.0, %v3414
      %v3416 = vpop.f32.mrf.mxu0
      %v3417 = vadd.f32 0.0, %v3416
      %3418 = vmatmul.bf16.gmra.mxu0 %v3294
      %v3419 = vpop.f32.mrf.mxu0
      %v3420 = vadd.f32 0.0, %v3419
      %v3421 = vpop.f32.mrf.mxu0
      %v3422 = vadd.f32 0.0, %v3421
      %3423 = vmatmul.bf16.gmra.mxu0 %v3295
      %v3424 = vpop.f32.mrf.mxu0
      %v3425 = vadd.f32 0.0, %v3424
      %v3426 = vpop.f32.mrf.mxu0
      %v3427 = vadd.f32 0.0, %v3426
      %3428 = vmatmul.bf16.gmra.mxu0 %v3296
      %v3429 = vpop.f32.mrf.mxu0
      %v3430 = vadd.f32 0.0, %v3429
      %v3431 = vpop.f32.mrf.mxu0
      %v3432 = vadd.f32 0.0, %v3431
      %3433 = vmatmul.bf16.gmra.mxu0 %v3297
      %v3434 = vpop.f32.mrf.mxu0
      %v3435 = vadd.f32 0.0, %v3434
      %v3436 = vpop.f32.mrf.mxu0
      %v3437 = vadd.f32 0.0, %v3436
      %3438 = vmatmul.bf16.gmra.mxu0 %v3298
      %v3439 = vpop.f32.mrf.mxu0
      %v3440 = vadd.f32 0.0, %v3439
      %v3441 = vpop.f32.mrf.mxu0
      %v3442 = vadd.f32 0.0, %v3441
      %3443 = vmatmul.bf16.gmra.mxu0 %v3299
      %v3444 = vpop.f32.mrf.mxu0
      %v3445 = vadd.f32 0.0, %v3444
      %v3446 = vpop.f32.mrf.mxu0
      %v3447 = vadd.f32 0.0, %v3446
      %3448 = vmatmul.bf16.gmra.mxu0 %v3300
      %v3449 = vpop.f32.mrf.mxu0
      %v3450 = vadd.f32 0.0, %v3449
      %v3451 = vpop.f32.mrf.mxu0
      %v3452 = vadd.f32 0.0, %v3451
      %3453 = vdwg.mxu0
      %v3454 = vadd.f32 %v2991, %v3375
      %v3455 = vadd.f32 %v2992, %v3377
      %v3456 = vadd.f32 %v2993, %v3380
      %v3457 = vadd.f32 %v2994, %v3382
      %v3458 = vadd.f32 %v2995, %v3385
      %v3459 = vadd.f32 %v2996, %v3387
      %v3460 = vadd.f32 %v2997, %v3390
      %v3461 = vadd.f32 %v2998, %v3392
      %v3462 = vadd.f32 %v2999, %v3395
      %v3463 = vadd.f32 %v3000, %v3397
      %v3464 = vadd.f32 %v3001, %v3400
      %v3465 = vadd.f32 %v3002, %v3402
      %v3466 = vadd.f32 %v3003, %v3405
      %v3467 = vadd.f32 %v3004, %v3407
      %v3468 = vadd.f32 %v3005, %v3410
      %v3469 = vadd.f32 %v3006, %v3412
      %v3470 = vadd.f32 %v3007, %v3415
      %v3471 = vadd.f32 %v3008, %v3417
      %v3472 = vadd.f32 %v3009, %v3420
      %v3473 = vadd.f32 %v3010, %v3422
      %v3474 = vadd.f32 %v3011, %v3425
      %v3475 = vadd.f32 %v3012, %v3427
      %v3476 = vadd.f32 %v3013, %v3430
      %v3477 = vadd.f32 %v3014, %v3432
      %v3478 = vadd.f32 %v3015, %v3435
      %v3479 = vadd.f32 %v3016, %v3437
      %v3480 = vadd.f32 %v3017, %v3440
      %v3481 = vadd.f32 %v3018, %v3442
      %v3482 = vadd.f32 %v3019, %v3445
      %v3483 = vadd.f32 %v3020, %v3447
      %v3484 = vadd.f32 %v3021, %v3450
      %v3485 = vadd.f32 %v3022, %v3452
      %v3487 = vshrl.u32 %v3023, 16
      %v3489 = vrot.slane %v3487, 4
      %v3490 = vshll.u32 %v3023, 16
      %v3492 = vrot.slane %v3490, 5
      %v3493 = vor.u32 %v3489, %v3492
      %v3494 = vrot.slane %v3493, 4
      %v3496 = vshll.u32 %v3024, 16
      %v3498 = vrot.slane %v3496, 5
      %v3499 = vsel %vm734, %v3494, %v3498
      %v3500 = vshrl.u32 %v3024, 16
      %v3502 = vrot.slane %v3500, 4
      %v3503 = vor.u32 %v3502, %v3498
      %v3504 = vrot.slane %v3503, 4
      %v3506 = vshll.u32 %v3025, 16
      %v3508 = vrot.slane %v3506, 5
      %v3509 = vsel %vm734, %v3504, %v3508
      %v3511 = vshrl.u32 %v3026, 16
      %v3513 = vrot.slane %v3511, 4
      %v3514 = vshll.u32 %v3026, 16
      %v3516 = vrot.slane %v3514, 5
      %v3517 = vor.u32 %v3513, %v3516
      %v3518 = vrot.slane %v3517, 4
      %v3520 = vshll.u32 %v3027, 16
      %v3522 = vrot.slane %v3520, 5
      %v3523 = vsel %vm734, %v3518, %v3522
      %v3524 = vshrl.u32 %v3027, 16
      %v3526 = vrot.slane %v3524, 4
      %v3527 = vor.u32 %v3526, %v3522
      %v3528 = vrot.slane %v3527, 4
      %v3530 = vshll.u32 %v3028, 16
      %v3532 = vrot.slane %v3530, 5
      %v3533 = vsel %vm734, %v3528, %v3532
      %v3535 = vshrl.u32 %v3029, 16
      %v3537 = vrot.slane %v3535, 4
      %v3538 = vshll.u32 %v3029, 16
      %v3540 = vrot.slane %v3538, 5
      %v3541 = vor.u32 %v3537, %v3540
      %v3542 = vrot.slane %v3541, 4
      %v3544 = vshll.u32 %v3030, 16
      %v3546 = vrot.slane %v3544, 5
      %v3547 = vsel %vm734, %v3542, %v3546
      %v3548 = vshrl.u32 %v3030, 16
      %v3550 = vrot.slane %v3548, 4
      %v3551 = vor.u32 %v3550, %v3546
      %v3552 = vrot.slane %v3551, 4
      %v3554 = vshll.u32 %v3031, 16
      %v3556 = vrot.slane %v3554, 5
      %v3557 = vsel %vm734, %v3552, %v3556
      %v3559 = vshrl.u32 %v3032, 16
      %v3561 = vrot.slane %v3559, 4
      %v3562 = vshll.u32 %v3032, 16
      %v3564 = vrot.slane %v3562, 5
      %v3565 = vor.u32 %v3561, %v3564
      %v3566 = vrot.slane %v3565, 4
      %v3568 = vshll.u32 %v3033, 16
      %v3570 = vrot.slane %v3568, 5
      %v3571 = vsel %vm734, %v3566, %v3570
      %v3572 = vshrl.u32 %v3033, 16
      %v3574 = vrot.slane %v3572, 4
      %v3575 = vor.u32 %v3574, %v3570
      %v3576 = vrot.slane %v3575, 4
      %v3578 = vshll.u32 %v3034, 16
      %v3580 = vrot.slane %v3578, 5
      %v3581 = vsel %vm734, %v3576, %v3580
      %v3583 = vshrl.u32 %v3035, 16
      %v3585 = vrot.slane %v3583, 4
      %v3586 = vshll.u32 %v3035, 16
      %v3588 = vrot.slane %v3586, 5
      %v3589 = vor.u32 %v3585, %v3588
      %v3590 = vrot.slane %v3589, 4
      %v3592 = vshll.u32 %v3036, 16
      %v3594 = vrot.slane %v3592, 5
      %v3595 = vsel %vm734, %v3590, %v3594
      %v3596 = vshrl.u32 %v3036, 16
      %v3598 = vrot.slane %v3596, 4
      %v3599 = vor.u32 %v3598, %v3594
      %v3600 = vrot.slane %v3599, 4
      %v3602 = vshll.u32 %v3037, 16
      %v3604 = vrot.slane %v3602, 5
      %v3605 = vsel %vm734, %v3600, %v3604
      %v3607 = vshrl.u32 %v3038, 16
      %v3609 = vrot.slane %v3607, 4
      %v3610 = vshll.u32 %v3038, 16
      %v3612 = vrot.slane %v3610, 5
      %v3613 = vor.u32 %v3609, %v3612
      %v3614 = vrot.slane %v3613, 4
      %v3616 = vshll.u32 %v3039, 16
      %v3618 = vrot.slane %v3616, 5
      %v3619 = vsel %vm734, %v3614, %v3618
      %v3620 = vshrl.u32 %v3039, 16
      %v3622 = vrot.slane %v3620, 4
      %v3623 = vor.u32 %v3622, %v3618
      %v3624 = vrot.slane %v3623, 4
      %v3626 = vshll.u32 %v3040, 16
      %v3628 = vrot.slane %v3626, 5
      %v3629 = vsel %vm734, %v3624, %v3628
      %v3631 = vshrl.u32 %v3041, 16
      %v3633 = vrot.slane %v3631, 4
      %v3634 = vshll.u32 %v3041, 16
      %v3636 = vrot.slane %v3634, 5
      %v3637 = vor.u32 %v3633, %v3636
      %v3638 = vrot.slane %v3637, 4
      %v3640 = vshll.u32 %v3042, 16
      %v3642 = vrot.slane %v3640, 5
      %v3643 = vsel %vm734, %v3638, %v3642
      %v3644 = vshrl.u32 %v3042, 16
      %v3646 = vrot.slane %v3644, 4
      %v3647 = vor.u32 %v3646, %v3642
      %v3648 = vrot.slane %v3647, 4
      %v3650 = vshll.u32 %v3043, 16
      %v3652 = vrot.slane %v3650, 5
      %v3653 = vsel %vm734, %v3648, %v3652
      %v3655 = vshrl.u32 %v3044, 16
      %v3657 = vrot.slane %v3655, 4
      %v3658 = vshll.u32 %v3044, 16
      %v3660 = vrot.slane %v3658, 5
      %v3661 = vor.u32 %v3657, %v3660
      %v3662 = vrot.slane %v3661, 4
      %v3664 = vshll.u32 %v3045, 16
      %v3666 = vrot.slane %v3664, 5
      %v3667 = vsel %vm734, %v3662, %v3666
      %v3668 = vshrl.u32 %v3045, 16
      %v3670 = vrot.slane %v3668, 4
      %v3671 = vor.u32 %v3670, %v3666
      %v3672 = vrot.slane %v3671, 4
      %v3674 = vshll.u32 %v3046, 16
      %v3676 = vrot.slane %v3674, 5
      %v3677 = vsel %vm734, %v3672, %v3676
      %v3679 = vshrl.u32 %v3047, 16
      %v3681 = vrot.slane %v3679, 4
      %v3682 = vshll.u32 %v3047, 16
      %v3684 = vrot.slane %v3682, 5
      %v3685 = vor.u32 %v3681, %v3684
      %v3686 = vrot.slane %v3685, 4
      %v3688 = vshll.u32 %v3048, 16
      %v3690 = vrot.slane %v3688, 5
      %v3691 = vsel %vm734, %v3686, %v3690
      %v3692 = vshrl.u32 %v3048, 16
      %v3694 = vrot.slane %v3692, 4
      %v3695 = vor.u32 %v3694, %v3690
      %v3696 = vrot.slane %v3695, 4
      %v3698 = vshll.u32 %v3049, 16
      %v3700 = vrot.slane %v3698, 5
      %v3701 = vsel %vm734, %v3696, %v3700
      %v3703 = vshrl.u32 %v3050, 16
      %v3705 = vrot.slane %v3703, 4
      %v3706 = vshll.u32 %v3050, 16
      %v3708 = vrot.slane %v3706, 5
      %v3709 = vor.u32 %v3705, %v3708
      %v3710 = vrot.slane %v3709, 4
      %v3712 = vshll.u32 %v3051, 16
      %v3714 = vrot.slane %v3712, 5
      %v3715 = vsel %vm734, %v3710, %v3714
      %v3716 = vshrl.u32 %v3051, 16
      %v3718 = vrot.slane %v3716, 4
      %v3719 = vor.u32 %v3718, %v3714
      %v3720 = vrot.slane %v3719, 4
      %v3722 = vshll.u32 %v3052, 16
      %v3724 = vrot.slane %v3722, 5
      %v3725 = vsel %vm734, %v3720, %v3724
      %v3727 = vshrl.u32 %v3053, 16
      %v3729 = vrot.slane %v3727, 4
      %v3730 = vshll.u32 %v3053, 16
      %v3732 = vrot.slane %v3730, 5
      %v3733 = vor.u32 %v3729, %v3732
      %v3734 = vrot.slane %v3733, 4
      %v3736 = vshll.u32 %v3054, 16
      %v3738 = vrot.slane %v3736, 5
      %v3739 = vsel %vm734, %v3734, %v3738
      %v3740 = vshrl.u32 %v3054, 16
      %v3742 = vrot.slane %v3740, 4
      %v3743 = vor.u32 %v3742, %v3738
      %v3744 = vrot.slane %v3743, 4
      %v3746 = vshll.u32 %v3055, 16
      %v3748 = vrot.slane %v3746, 5
      %v3749 = vsel %vm734, %v3744, %v3748
      %v3751 = vshrl.u32 %v3056, 16
      %v3753 = vrot.slane %v3751, 4
      %v3754 = vshll.u32 %v3056, 16
      %v3756 = vrot.slane %v3754, 5
      %v3757 = vor.u32 %v3753, %v3756
      %v3758 = vrot.slane %v3757, 4
      %v3760 = vshll.u32 %v3057, 16
      %v3762 = vrot.slane %v3760, 5
      %v3763 = vsel %vm734, %v3758, %v3762
      %v3764 = vshrl.u32 %v3057, 16
      %v3766 = vrot.slane %v3764, 4
      %v3767 = vor.u32 %v3766, %v3762
      %v3768 = vrot.slane %v3767, 4
      %v3770 = vshll.u32 %v3058, 16
      %v3772 = vrot.slane %v3770, 5
      %v3773 = vsel %vm734, %v3768, %v3772
      %v3775 = vshrl.u32 %v3059, 16
      %v3777 = vrot.slane %v3775, 4
      %v3778 = vshll.u32 %v3059, 16
      %v3780 = vrot.slane %v3778, 5
      %v3781 = vor.u32 %v3777, %v3780
      %v3782 = vrot.slane %v3781, 4
      %v3784 = vshll.u32 %v3060, 16
      %v3786 = vrot.slane %v3784, 5
      %v3787 = vsel %vm734, %v3782, %v3786
      %v3788 = vshrl.u32 %v3060, 16
      %v3790 = vrot.slane %v3788, 4
      %v3791 = vor.u32 %v3790, %v3786
      %v3792 = vrot.slane %v3791, 4
      %v3794 = vshll.u32 %v3061, 16
      %v3796 = vrot.slane %v3794, 5
      %v3797 = vsel %vm734, %v3792, %v3796
      %v3799 = vshrl.u32 %v3062, 16
      %v3801 = vrot.slane %v3799, 4
      %v3802 = vshll.u32 %v3062, 16
      %v3804 = vrot.slane %v3802, 5
      %v3805 = vor.u32 %v3801, %v3804
      %v3806 = vrot.slane %v3805, 4
      %v3808 = vshll.u32 %v3063, 16
      %v3810 = vrot.slane %v3808, 5
      %v3811 = vsel %vm734, %v3806, %v3810
      %v3812 = vshrl.u32 %v3063, 16
      %v3814 = vrot.slane %v3812, 4
      %v3815 = vor.u32 %v3814, %v3810
      %v3816 = vrot.slane %v3815, 4
      %v3818 = vshll.u32 %v3064, 16
      %v3820 = vrot.slane %v3818, 5
      %v3821 = vsel %vm734, %v3816, %v3820
      %v3823 = vshrl.u32 %v3065, 16
      %v3825 = vrot.slane %v3823, 4
      %v3826 = vshll.u32 %v3065, 16
      %v3828 = vrot.slane %v3826, 5
      %v3829 = vor.u32 %v3825, %v3828
      %v3830 = vrot.slane %v3829, 4
      %v3832 = vshll.u32 %v3066, 16
      %v3834 = vrot.slane %v3832, 5
      %v3835 = vsel %vm734, %v3830, %v3834
      %v3836 = vshrl.u32 %v3066, 16
      %v3838 = vrot.slane %v3836, 4
      %v3839 = vor.u32 %v3838, %v3834
      %v3840 = vrot.slane %v3839, 4
      %v3842 = vshll.u32 %v3067, 16
      %v3844 = vrot.slane %v3842, 5
      %v3845 = vsel %vm734, %v3840, %v3844
      %v3847 = vshrl.u32 %v3068, 16
      %v3849 = vrot.slane %v3847, 4
      %v3850 = vshll.u32 %v3068, 16
      %v3852 = vrot.slane %v3850, 5
      %v3853 = vor.u32 %v3849, %v3852
      %v3854 = vrot.slane %v3853, 4
      %v3856 = vshll.u32 %v3069, 16
      %v3858 = vrot.slane %v3856, 5
      %v3859 = vsel %vm734, %v3854, %v3858
      %v3860 = vshrl.u32 %v3069, 16
      %v3862 = vrot.slane %v3860, 4
      %v3863 = vor.u32 %v3862, %v3858
      %v3864 = vrot.slane %v3863, 4
      %v3866 = vshll.u32 %v3070, 16
      %v3868 = vrot.slane %v3866, 5
      %v3869 = vsel %vm734, %v3864, %v3868
      %v3870 = vunpack.c.l.b16 %v3499
      %v3871 = vunpack.c.l.b16 %v3509
      %v3872 = vunpack.c.l.b16 %v3523
      %v3873 = vunpack.c.l.b16 %v3533
      %v3874 = vunpack.c.l.b16 %v3547
      %v3875 = vunpack.c.l.b16 %v3557
      %v3876 = vunpack.c.l.b16 %v3571
      %v3877 = vunpack.c.l.b16 %v3581
      %v3878 = vunpack.c.l.b16 %v3595
      %v3879 = vunpack.c.l.b16 %v3605
      %v3880 = vunpack.c.l.b16 %v3619
      %v3881 = vunpack.c.l.b16 %v3629
      %v3882 = vunpack.c.l.b16 %v3643
      %v3883 = vunpack.c.l.b16 %v3653
      %v3884 = vunpack.c.l.b16 %v3667
      %v3885 = vunpack.c.l.b16 %v3677
      %v3886 = vunpack.c.l.b16 %v3691
      %v3887 = vunpack.c.l.b16 %v3701
      %v3888 = vunpack.c.l.b16 %v3715
      %v3889 = vunpack.c.l.b16 %v3725
      %v3890 = vunpack.c.l.b16 %v3739
      %v3891 = vunpack.c.l.b16 %v3749
      %v3892 = vunpack.c.l.b16 %v3763
      %v3893 = vunpack.c.l.b16 %v3773
      %v3894 = vunpack.c.l.b16 %v3787
      %v3895 = vunpack.c.l.b16 %v3797
      %v3896 = vunpack.c.l.b16 %v3811
      %v3897 = vunpack.c.l.b16 %v3821
      %v3898 = vunpack.c.l.b16 %v3835
      %v3899 = vunpack.c.l.b16 %v3845
      %v3900 = vunpack.c.l.b16 %v3859
      %v3901 = vunpack.c.l.b16 %v3869
      %v3902 = vpack.c.b16 %v3871, %v3870
      %v3903 = vpack.c.b16 %v3873, %v3872
      %v3904 = vpack.c.b16 %v3875, %v3874
      %v3905 = vpack.c.b16 %v3877, %v3876
      %v3906 = vpack.c.b16 %v3879, %v3878
      %v3907 = vpack.c.b16 %v3881, %v3880
      %v3908 = vpack.c.b16 %v3883, %v3882
      %v3909 = vpack.c.b16 %v3885, %v3884
      %v3910 = vpack.c.b16 %v3887, %v3886
      %v3911 = vpack.c.b16 %v3889, %v3888
      %v3912 = vpack.c.b16 %v3891, %v3890
      %v3913 = vpack.c.b16 %v3893, %v3892
      %v3914 = vpack.c.b16 %v3895, %v3894
      %v3915 = vpack.c.b16 %v3897, %v3896
      %v3916 = vpack.c.b16 %v3899, %v3898
      %v3917 = vpack.c.b16 %v3901, %v3900
      %v3950 = vunpack.c.l.b16 %v3093
      %v3951 = vunpack.c.l.b16 %v3094
      %v3952 = vunpack.c.l.b16 %v3095
      %v3953 = vunpack.c.l.b16 %v3096
      %v3954 = vunpack.c.l.b16 %v3097
      %v3955 = vunpack.c.l.b16 %v3098
      %v3956 = vunpack.c.l.b16 %v3099
      %v3957 = vunpack.c.l.b16 %v3100
      %v3958 = vunpack.c.l.b16 %v3101
      %v3959 = vunpack.c.l.b16 %v3102
      %v3960 = vunpack.c.l.b16 %v3103
      %v3961 = vunpack.c.l.b16 %v3104
      %v3962 = vunpack.c.l.b16 %v3105
      %v3963 = vunpack.c.l.b16 %v3106
      %v3964 = vunpack.c.l.b16 %v3107
      %v3965 = vunpack.c.l.b16 %v3108
      %v3966 = vpack.c.b16 %v3951, %v3950
      %v3967 = vpack.c.b16 %v3953, %v3952
      %v3968 = vpack.c.b16 %v3955, %v3954
      %v3969 = vpack.c.b16 %v3957, %v3956
      %v3970 = vpack.c.b16 %v3959, %v3958
      %v3971 = vpack.c.b16 %v3961, %v3960
      %v3972 = vpack.c.b16 %v3963, %v3962
      %v3973 = vpack.c.b16 %v3965, %v3964
      %3982 = vmatpush.bf16.msra.mxu0 %v3973
      %3983 = vmatpush.bf16.msra.mxu0 %v3972
      %3984 = vmatpush.bf16.msra.mxu0 %v3971
      %3985 = vmatpush.bf16.msra.mxu0 %v3970
      %3986 = vmatpush.bf16.msra.mxu0 %v3969
      %3987 = vmatpush.bf16.msra.mxu0 %v3968
      %3988 = vmatpush.bf16.msra.mxu0 %v3967
      %3989 = vmatpush.bf16.msra.mxu0 %v3966
      %3990 = vmatmul.bf16.gmra.mxu0 %v3902
      %v3991 = vpop.f32.mrf.mxu0
      %v3992 = vadd.f32 0.0, %v3991
      %v3993 = vpop.f32.mrf.mxu0
      %v3994 = vadd.f32 0.0, %v3993
      %3995 = vmatmul.bf16.gmra.mxu0 %v3903
      %v3996 = vpop.f32.mrf.mxu0
      %v3997 = vadd.f32 0.0, %v3996
      %v3998 = vpop.f32.mrf.mxu0
      %v3999 = vadd.f32 0.0, %v3998
      %4000 = vmatmul.bf16.gmra.mxu0 %v3904
      %v4001 = vpop.f32.mrf.mxu0
      %v4002 = vadd.f32 0.0, %v4001
      %v4003 = vpop.f32.mrf.mxu0
      %v4004 = vadd.f32 0.0, %v4003
      %4005 = vmatmul.bf16.gmra.mxu0 %v3905
      %v4006 = vpop.f32.mrf.mxu0
      %v4007 = vadd.f32 0.0, %v4006
      %v4008 = vpop.f32.mrf.mxu0
      %v4009 = vadd.f32 0.0, %v4008
      %4010 = vmatmul.bf16.gmra.mxu0 %v3906
      %v4011 = vpop.f32.mrf.mxu0
      %v4012 = vadd.f32 0.0, %v4011
      %v4013 = vpop.f32.mrf.mxu0
      %v4014 = vadd.f32 0.0, %v4013
      %4015 = vmatmul.bf16.gmra.mxu0 %v3907
      %v4016 = vpop.f32.mrf.mxu0
      %v4017 = vadd.f32 0.0, %v4016
      %v4018 = vpop.f32.mrf.mxu0
      %v4019 = vadd.f32 0.0, %v4018
      %4020 = vmatmul.bf16.gmra.mxu0 %v3908
      %v4021 = vpop.f32.mrf.mxu0
      %v4022 = vadd.f32 0.0, %v4021
      %v4023 = vpop.f32.mrf.mxu0
      %v4024 = vadd.f32 0.0, %v4023
      %4025 = vmatmul.bf16.gmra.mxu0 %v3909
      %v4026 = vpop.f32.mrf.mxu0
      %v4027 = vadd.f32 0.0, %v4026
      %v4028 = vpop.f32.mrf.mxu0
      %v4029 = vadd.f32 0.0, %v4028
      %4030 = vmatmul.bf16.gmra.mxu0 %v3910
      %v4031 = vpop.f32.mrf.mxu0
      %v4032 = vadd.f32 0.0, %v4031
      %v4033 = vpop.f32.mrf.mxu0
      %v4034 = vadd.f32 0.0, %v4033
      %4035 = vmatmul.bf16.gmra.mxu0 %v3911
      %v4036 = vpop.f32.mrf.mxu0
      %v4037 = vadd.f32 0.0, %v4036
      %v4038 = vpop.f32.mrf.mxu0
      %v4039 = vadd.f32 0.0, %v4038
      %4040 = vmatmul.bf16.gmra.mxu0 %v3912
      %v4041 = vpop.f32.mrf.mxu0
      %v4042 = vadd.f32 0.0, %v4041
      %v4043 = vpop.f32.mrf.mxu0
      %v4044 = vadd.f32 0.0, %v4043
      %4045 = vmatmul.bf16.gmra.mxu0 %v3913
      %v4046 = vpop.f32.mrf.mxu0
      %v4047 = vadd.f32 0.0, %v4046
      %v4048 = vpop.f32.mrf.mxu0
      %v4049 = vadd.f32 0.0, %v4048
      %4050 = vmatmul.bf16.gmra.mxu0 %v3914
      %v4051 = vpop.f32.mrf.mxu0
      %v4052 = vadd.f32 0.0, %v4051
      %v4053 = vpop.f32.mrf.mxu0
      %v4054 = vadd.f32 0.0, %v4053
      %4055 = vmatmul.bf16.gmra.mxu0 %v3915
      %v4056 = vpop.f32.mrf.mxu0
      %v4057 = vadd.f32 0.0, %v4056
      %v4058 = vpop.f32.mrf.mxu0
      %v4059 = vadd.f32 0.0, %v4058
      %4060 = vmatmul.bf16.gmra.mxu0 %v3916
      %v4061 = vpop.f32.mrf.mxu0
      %v4062 = vadd.f32 0.0, %v4061
      %v4063 = vpop.f32.mrf.mxu0
      %v4064 = vadd.f32 0.0, %v4063
      %4065 = vmatmul.bf16.gmra.mxu0 %v3917
      %v4066 = vpop.f32.mrf.mxu0
      %v4067 = vadd.f32 0.0, %v4066
      %v4068 = vpop.f32.mrf.mxu0
      %v4069 = vadd.f32 0.0, %v4068
      %4070 = vdwg.mxu0
      %v4071 = vadd.f32 %v3454, %v3992
      %v4072 = vadd.f32 %v3455, %v3994
      %v4073 = vadd.f32 %v3456, %v3997
      %v4074 = vadd.f32 %v3457, %v3999
      %v4075 = vadd.f32 %v3458, %v4002
      %v4076 = vadd.f32 %v3459, %v4004
      %v4077 = vadd.f32 %v3460, %v4007
      %v4078 = vadd.f32 %v3461, %v4009
      %v4079 = vadd.f32 %v3462, %v4012
      %v4080 = vadd.f32 %v3463, %v4014
      %v4081 = vadd.f32 %v3464, %v4017
      %v4082 = vadd.f32 %v3465, %v4019
      %v4083 = vadd.f32 %v3466, %v4022
      %v4084 = vadd.f32 %v3467, %v4024
      %v4085 = vadd.f32 %v3468, %v4027
      %v4086 = vadd.f32 %v3469, %v4029
      %v4087 = vadd.f32 %v3470, %v4032
      %v4088 = vadd.f32 %v3471, %v4034
      %v4089 = vadd.f32 %v3472, %v4037
      %v4090 = vadd.f32 %v3473, %v4039
      %v4091 = vadd.f32 %v3474, %v4042
      %v4092 = vadd.f32 %v3475, %v4044
      %v4093 = vadd.f32 %v3476, %v4047
      %v4094 = vadd.f32 %v3477, %v4049
      %v4095 = vadd.f32 %v3478, %v4052
      %v4096 = vadd.f32 %v3479, %v4054
      %v4097 = vadd.f32 %v3480, %v4057
      %v4098 = vadd.f32 %v3481, %v4059
      %v4099 = vadd.f32 %v3482, %v4062
      %v4100 = vadd.f32 %v3483, %v4064
      %v4101 = vadd.f32 %v3484, %v4067
      %v4102 = vadd.f32 %v3485, %v4069
      %v4119 = vrot.slane %v3023, 5
      %v4120 = vrot.slane %v4119, 4
      %v4121 = vrot.slane %v3024, 5
      %v4122 = vsel %vm1571, %v4120, %v4121
      %v4123 = vrot.slane %v4121, 4
      %v4124 = vrot.slane %v3025, 5
      %v4125 = vsel %vm1571, %v4123, %v4124
      %v4126 = vrot.slane %v3026, 5
      %v4127 = vrot.slane %v4126, 4
      %v4128 = vrot.slane %v3027, 5
      %v4129 = vsel %vm1571, %v4127, %v4128
      %v4130 = vrot.slane %v4128, 4
      %v4131 = vrot.slane %v3028, 5
      %v4132 = vsel %vm1571, %v4130, %v4131
      %v4133 = vrot.slane %v3029, 5
      %v4134 = vrot.slane %v4133, 4
      %v4135 = vrot.slane %v3030, 5
      %v4136 = vsel %vm1571, %v4134, %v4135
      %v4137 = vrot.slane %v4135, 4
      %v4138 = vrot.slane %v3031, 5
      %v4139 = vsel %vm1571, %v4137, %v4138
      %v4140 = vrot.slane %v3032, 5
      %v4141 = vrot.slane %v4140, 4
      %v4142 = vrot.slane %v3033, 5
      %v4143 = vsel %vm1571, %v4141, %v4142
      %v4144 = vrot.slane %v4142, 4
      %v4145 = vrot.slane %v3034, 5
      %v4146 = vsel %vm1571, %v4144, %v4145
      %v4147 = vrot.slane %v3035, 5
      %v4148 = vrot.slane %v4147, 4
      %v4149 = vrot.slane %v3036, 5
      %v4150 = vsel %vm1571, %v4148, %v4149
      %v4151 = vrot.slane %v4149, 4
      %v4152 = vrot.slane %v3037, 5
      %v4153 = vsel %vm1571, %v4151, %v4152
      %v4154 = vrot.slane %v3038, 5
      %v4155 = vrot.slane %v4154, 4
      %v4156 = vrot.slane %v3039, 5
      %v4157 = vsel %vm1571, %v4155, %v4156
      %v4158 = vrot.slane %v4156, 4
      %v4159 = vrot.slane %v3040, 5
      %v4160 = vsel %vm1571, %v4158, %v4159
      %v4161 = vrot.slane %v3041, 5
      %v4162 = vrot.slane %v4161, 4
      %v4163 = vrot.slane %v3042, 5
      %v4164 = vsel %vm1571, %v4162, %v4163
      %v4165 = vrot.slane %v4163, 4
      %v4166 = vrot.slane %v3043, 5
      %v4167 = vsel %vm1571, %v4165, %v4166
      %v4168 = vrot.slane %v3044, 5
      %v4169 = vrot.slane %v4168, 4
      %v4170 = vrot.slane %v3045, 5
      %v4171 = vsel %vm1571, %v4169, %v4170
      %v4172 = vrot.slane %v4170, 4
      %v4173 = vrot.slane %v3046, 5
      %v4174 = vsel %vm1571, %v4172, %v4173
      %v4175 = vrot.slane %v3047, 5
      %v4176 = vrot.slane %v4175, 4
      %v4177 = vrot.slane %v3048, 5
      %v4178 = vsel %vm1571, %v4176, %v4177
      %v4179 = vrot.slane %v4177, 4
      %v4180 = vrot.slane %v3049, 5
      %v4181 = vsel %vm1571, %v4179, %v4180
      %v4182 = vrot.slane %v3050, 5
      %v4183 = vrot.slane %v4182, 4
      %v4184 = vrot.slane %v3051, 5
      %v4185 = vsel %vm1571, %v4183, %v4184
      %v4186 = vrot.slane %v4184, 4
      %v4187 = vrot.slane %v3052, 5
      %v4188 = vsel %vm1571, %v4186, %v4187
      %v4189 = vrot.slane %v3053, 5
      %v4190 = vrot.slane %v4189, 4
      %v4191 = vrot.slane %v3054, 5
      %v4192 = vsel %vm1571, %v4190, %v4191
      %v4193 = vrot.slane %v4191, 4
      %v4194 = vrot.slane %v3055, 5
      %v4195 = vsel %vm1571, %v4193, %v4194
      %v4196 = vrot.slane %v3056, 5
      %v4197 = vrot.slane %v4196, 4
      %v4198 = vrot.slane %v3057, 5
      %v4199 = vsel %vm1571, %v4197, %v4198
      %v4200 = vrot.slane %v4198, 4
      %v4201 = vrot.slane %v3058, 5
      %v4202 = vsel %vm1571, %v4200, %v4201
      %v4203 = vrot.slane %v3059, 5
      %v4204 = vrot.slane %v4203, 4
      %v4205 = vrot.slane %v3060, 5
      %v4206 = vsel %vm1571, %v4204, %v4205
      %v4207 = vrot.slane %v4205, 4
      %v4208 = vrot.slane %v3061, 5
      %v4209 = vsel %vm1571, %v4207, %v4208
      %v4210 = vrot.slane %v3062, 5
      %v4211 = vrot.slane %v4210, 4
      %v4212 = vrot.slane %v3063, 5
      %v4213 = vsel %vm1571, %v4211, %v4212
      %v4214 = vrot.slane %v4212, 4
      %v4215 = vrot.slane %v3064, 5
      %v4216 = vsel %vm1571, %v4214, %v4215
      %v4217 = vrot.slane %v3065, 5
      %v4218 = vrot.slane %v4217, 4
      %v4219 = vrot.slane %v3066, 5
      %v4220 = vsel %vm1571, %v4218, %v4219
      %v4221 = vrot.slane %v4219, 4
      %v4222 = vrot.slane %v3067, 5
      %v4223 = vsel %vm1571, %v4221, %v4222
      %v4224 = vrot.slane %v3068, 5
      %v4225 = vrot.slane %v4224, 4
      %v4226 = vrot.slane %v3069, 5
      %v4227 = vsel %vm1571, %v4225, %v4226
      %v4228 = vrot.slane %v4226, 4
      %v4229 = vrot.slane %v3070, 5
      %v4230 = vsel %vm1571, %v4228, %v4229
      %v4231 = vunpack.c.l.b16 %v4122
      %v4232 = vunpack.c.l.b16 %v4125
      %v4233 = vunpack.c.l.b16 %v4129
      %v4234 = vunpack.c.l.b16 %v4132
      %v4235 = vunpack.c.l.b16 %v4136
      %v4236 = vunpack.c.l.b16 %v4139
      %v4237 = vunpack.c.l.b16 %v4143
      %v4238 = vunpack.c.l.b16 %v4146
      %v4239 = vunpack.c.l.b16 %v4150
      %v4240 = vunpack.c.l.b16 %v4153
      %v4241 = vunpack.c.l.b16 %v4157
      %v4242 = vunpack.c.l.b16 %v4160
      %v4243 = vunpack.c.l.b16 %v4164
      %v4244 = vunpack.c.l.b16 %v4167
      %v4245 = vunpack.c.l.b16 %v4171
      %v4246 = vunpack.c.l.b16 %v4174
      %v4247 = vunpack.c.l.b16 %v4178
      %v4248 = vunpack.c.l.b16 %v4181
      %v4249 = vunpack.c.l.b16 %v4185
      %v4250 = vunpack.c.l.b16 %v4188
      %v4251 = vunpack.c.l.b16 %v4192
      %v4252 = vunpack.c.l.b16 %v4195
      %v4253 = vunpack.c.l.b16 %v4199
      %v4254 = vunpack.c.l.b16 %v4202
      %v4255 = vunpack.c.l.b16 %v4206
      %v4256 = vunpack.c.l.b16 %v4209
      %v4257 = vunpack.c.l.b16 %v4213
      %v4258 = vunpack.c.l.b16 %v4216
      %v4259 = vunpack.c.l.b16 %v4220
      %v4260 = vunpack.c.l.b16 %v4223
      %v4261 = vunpack.c.l.b16 %v4227
      %v4262 = vunpack.c.l.b16 %v4230
      %v4263 = vpack.c.b16 %v4232, %v4231
      %v4264 = vpack.c.b16 %v4234, %v4233
      %v4265 = vpack.c.b16 %v4236, %v4235
      %v4266 = vpack.c.b16 %v4238, %v4237
      %v4267 = vpack.c.b16 %v4240, %v4239
      %v4268 = vpack.c.b16 %v4242, %v4241
      %v4269 = vpack.c.b16 %v4244, %v4243
      %v4270 = vpack.c.b16 %v4246, %v4245
      %v4271 = vpack.c.b16 %v4248, %v4247
      %v4272 = vpack.c.b16 %v4250, %v4249
      %v4273 = vpack.c.b16 %v4252, %v4251
      %v4274 = vpack.c.b16 %v4254, %v4253
      %v4275 = vpack.c.b16 %v4256, %v4255
      %v4276 = vpack.c.b16 %v4258, %v4257
      %v4277 = vpack.c.b16 %v4260, %v4259
      %v4278 = vpack.c.b16 %v4262, %v4261
      %v4311 = vunpack.c.l.b16 %v3109
      %v4312 = vunpack.c.l.b16 %v3110
      %v4313 = vunpack.c.l.b16 %v3111
      %v4314 = vunpack.c.l.b16 %v3112
      %v4315 = vunpack.c.l.b16 %v3113
      %v4316 = vunpack.c.l.b16 %v3114
      %v4317 = vunpack.c.l.b16 %v3115
      %v4318 = vunpack.c.l.b16 %v3116
      %v4319 = vunpack.c.l.b16 %v3117
      %v4320 = vunpack.c.l.b16 %v3118
      %v4321 = vunpack.c.l.b16 %v3119
      %v4322 = vunpack.c.l.b16 %v3120
      %v4323 = vunpack.c.l.b16 %v3121
      %v4324 = vunpack.c.l.b16 %v3122
      %v4325 = vunpack.c.l.b16 %v3123
      %v4326 = vunpack.c.l.b16 %v3124
      %v4327 = vpack.c.b16 %v4312, %v4311
      %v4328 = vpack.c.b16 %v4314, %v4313
      %v4329 = vpack.c.b16 %v4316, %v4315
      %v4330 = vpack.c.b16 %v4318, %v4317
      %v4331 = vpack.c.b16 %v4320, %v4319
      %v4332 = vpack.c.b16 %v4322, %v4321
      %v4333 = vpack.c.b16 %v4324, %v4323
      %v4334 = vpack.c.b16 %v4326, %v4325
      %4343 = vmatpush.bf16.msra.mxu0 %v4334
      %4344 = vmatpush.bf16.msra.mxu0 %v4333
      %4345 = vmatpush.bf16.msra.mxu0 %v4332
      %4346 = vmatpush.bf16.msra.mxu0 %v4331
      %4347 = vmatpush.bf16.msra.mxu0 %v4330
      %4348 = vmatpush.bf16.msra.mxu0 %v4329
      %4349 = vmatpush.bf16.msra.mxu0 %v4328
      %4350 = vmatpush.bf16.msra.mxu0 %v4327
      %4351 = vmatmul.bf16.gmra.mxu0 %v4263
      %v4352 = vpop.f32.mrf.mxu0
      %v4353 = vadd.f32 0.0, %v4352
      %v4354 = vpop.f32.mrf.mxu0
      %v4355 = vadd.f32 0.0, %v4354
      %4356 = vmatmul.bf16.gmra.mxu0 %v4264
      %v4357 = vpop.f32.mrf.mxu0
      %v4358 = vadd.f32 0.0, %v4357
      %v4359 = vpop.f32.mrf.mxu0
      %v4360 = vadd.f32 0.0, %v4359
      %4361 = vmatmul.bf16.gmra.mxu0 %v4265
      %v4362 = vpop.f32.mrf.mxu0
      %v4363 = vadd.f32 0.0, %v4362
      %v4364 = vpop.f32.mrf.mxu0
      %v4365 = vadd.f32 0.0, %v4364
      %4366 = vmatmul.bf16.gmra.mxu0 %v4266
      %v4367 = vpop.f32.mrf.mxu0
      %v4368 = vadd.f32 0.0, %v4367
      %v4369 = vpop.f32.mrf.mxu0
      %v4370 = vadd.f32 0.0, %v4369
      %4371 = vmatmul.bf16.gmra.mxu0 %v4267
      %v4372 = vpop.f32.mrf.mxu0
      %v4373 = vadd.f32 0.0, %v4372
      %v4374 = vpop.f32.mrf.mxu0
      %v4375 = vadd.f32 0.0, %v4374
      %4376 = vmatmul.bf16.gmra.mxu0 %v4268
      %v4377 = vpop.f32.mrf.mxu0
      %v4378 = vadd.f32 0.0, %v4377
      %v4379 = vpop.f32.mrf.mxu0
      %v4380 = vadd.f32 0.0, %v4379
      %4381 = vmatmul.bf16.gmra.mxu0 %v4269
      %v4382 = vpop.f32.mrf.mxu0
      %v4383 = vadd.f32 0.0, %v4382
      %v4384 = vpop.f32.mrf.mxu0
      %v4385 = vadd.f32 0.0, %v4384
      %4386 = vmatmul.bf16.gmra.mxu0 %v4270
      %v4387 = vpop.f32.mrf.mxu0
      %v4388 = vadd.f32 0.0, %v4387
      %v4389 = vpop.f32.mrf.mxu0
      %v4390 = vadd.f32 0.0, %v4389
      %4391 = vmatmul.bf16.gmra.mxu0 %v4271
      %v4392 = vpop.f32.mrf.mxu0
      %v4393 = vadd.f32 0.0, %v4392
      %v4394 = vpop.f32.mrf.mxu0
      %v4395 = vadd.f32 0.0, %v4394
      %4396 = vmatmul.bf16.gmra.mxu0 %v4272
      %v4397 = vpop.f32.mrf.mxu0
      %v4398 = vadd.f32 0.0, %v4397
      %v4399 = vpop.f32.mrf.mxu0
      %v4400 = vadd.f32 0.0, %v4399
      %4401 = vmatmul.bf16.gmra.mxu0 %v4273
      %v4402 = vpop.f32.mrf.mxu0
      %v4403 = vadd.f32 0.0, %v4402
      %v4404 = vpop.f32.mrf.mxu0
      %v4405 = vadd.f32 0.0, %v4404
      %4406 = vmatmul.bf16.gmra.mxu0 %v4274
      %v4407 = vpop.f32.mrf.mxu0
      %v4408 = vadd.f32 0.0, %v4407
      %v4409 = vpop.f32.mrf.mxu0
      %v4410 = vadd.f32 0.0, %v4409
      %4411 = vmatmul.bf16.gmra.mxu0 %v4275
      %v4412 = vpop.f32.mrf.mxu0
      %v4413 = vadd.f32 0.0, %v4412
      %v4414 = vpop.f32.mrf.mxu0
      %v4415 = vadd.f32 0.0, %v4414
      %4416 = vmatmul.bf16.gmra.mxu0 %v4276
      %v4417 = vpop.f32.mrf.mxu0
      %v4418 = vadd.f32 0.0, %v4417
      %v4419 = vpop.f32.mrf.mxu0
      %v4420 = vadd.f32 0.0, %v4419
      %4421 = vmatmul.bf16.gmra.mxu0 %v4277
      %v4422 = vpop.f32.mrf.mxu0
      %v4423 = vadd.f32 0.0, %v4422
      %v4424 = vpop.f32.mrf.mxu0
      %v4425 = vadd.f32 0.0, %v4424
      %4426 = vmatmul.bf16.gmra.mxu0 %v4278
      %v4427 = vpop.f32.mrf.mxu0
      %v4428 = vadd.f32 0.0, %v4427
      %v4429 = vpop.f32.mrf.mxu0
      %v4430 = vadd.f32 0.0, %v4429
      %4431 = vdwg.mxu0
      %v4432 = vadd.f32 %v4071, %v4353
      %v4433 = vadd.f32 %v4072, %v4355
      %v4434 = vadd.f32 %v4073, %v4358
      %v4435 = vadd.f32 %v4074, %v4360
      %v4436 = vadd.f32 %v4075, %v4363
      %v4437 = vadd.f32 %v4076, %v4365
      %v4438 = vadd.f32 %v4077, %v4368
      %v4439 = vadd.f32 %v4078, %v4370
      %v4440 = vadd.f32 %v4079, %v4373
      %v4441 = vadd.f32 %v4080, %v4375
      %v4442 = vadd.f32 %v4081, %v4378
      %v4443 = vadd.f32 %v4082, %v4380
      %v4444 = vadd.f32 %v4083, %v4383
      %v4445 = vadd.f32 %v4084, %v4385
      %v4446 = vadd.f32 %v4085, %v4388
      %v4447 = vadd.f32 %v4086, %v4390
      %v4448 = vadd.f32 %v4087, %v4393
      %v4449 = vadd.f32 %v4088, %v4395
      %v4450 = vadd.f32 %v4089, %v4398
      %v4451 = vadd.f32 %v4090, %v4400
      %v4452 = vadd.f32 %v4091, %v4403
      %v4453 = vadd.f32 %v4092, %v4405
      %v4454 = vadd.f32 %v4093, %v4408
      %v4455 = vadd.f32 %v4094, %v4410
      %v4456 = vadd.f32 %v4095, %v4413
      %v4457 = vadd.f32 %v4096, %v4415
      %v4458 = vadd.f32 %v4097, %v4418
      %v4459 = vadd.f32 %v4098, %v4420
      %v4460 = vadd.f32 %v4099, %v4423
      %v4461 = vadd.f32 %v4100, %v4425
      %v4462 = vadd.f32 %v4101, %v4428
      %v4463 = vadd.f32 %v4102, %v4430
      %v4466 = vunpack.c.l.b16 %v3071
      %v4467 = vunpack.c.l.b16 %v3072
      %v4468 = vpack.c.b16 %v4467, %v4466
      %v4486 = vunpack.c.l.b16 %v3125
      %v4487 = vunpack.c.l.b16 %v3126
      %v4488 = vunpack.c.l.b16 %v3127
      %v4489 = vunpack.c.l.b16 %v3128
      %v4490 = vunpack.c.l.b16 %v3129
      %v4491 = vunpack.c.l.b16 %v3130
      %v4492 = vunpack.c.l.b16 %v3131
      %v4493 = vunpack.c.l.b16 %v3132
      %v4494 = vunpack.c.l.b16 %v3133
      %v4495 = vunpack.c.l.b16 %v3134
      %v4496 = vunpack.c.l.b16 %v3135
      %v4497 = vunpack.c.l.b16 %v3136
      %v4498 = vunpack.c.l.b16 %v3137
      %v4499 = vunpack.c.l.b16 %v3138
      %v4500 = vunpack.c.l.b16 %v3139
      %v4501 = vunpack.c.l.b16 %v3140
      %v4502 = vpack.c.b16 %v4487, %v4486
      %v4503 = vpack.c.b16 %v4489, %v4488
      %v4504 = vpack.c.b16 %v4491, %v4490
      %v4505 = vpack.c.b16 %v4493, %v4492
      %v4506 = vpack.c.b16 %v4495, %v4494
      %v4507 = vpack.c.b16 %v4497, %v4496
      %v4508 = vpack.c.b16 %v4499, %v4498
      %v4509 = vpack.c.b16 %v4501, %v4500
      %4518 = vmatpush.bf16.msra.mxu0 %v4509
      %4519 = vmatpush.bf16.msra.mxu0 %v4508
      %4520 = vmatpush.bf16.msra.mxu0 %v4507
      %4521 = vmatpush.bf16.msra.mxu0 %v4506
      %4522 = vmatpush.bf16.msra.mxu0 %v4505
      %4523 = vmatpush.bf16.msra.mxu0 %v4504
      %4524 = vmatpush.bf16.msra.mxu0 %v4503
      %4525 = vmatpush.bf16.msra.mxu0 %v4502
      %4526 = vmatmul.bf16.gmra.mxu0 %v3286
      %v4527 = vpop.f32.mrf.mxu0
      %v4528 = vadd.f32 0.0, %v4527
      %v4529 = vpop.f32.mrf.mxu0
      %v4530 = vadd.f32 0.0, %v4529
      %4531 = vmatmul.bf16.gmra.mxu0 %v3287
      %v4532 = vpop.f32.mrf.mxu0
      %v4533 = vadd.f32 0.0, %v4532
      %v4534 = vpop.f32.mrf.mxu0
      %v4535 = vadd.f32 0.0, %v4534
      %4536 = vmatmul.bf16.gmra.mxu0 %v3288
      %v4537 = vpop.f32.mrf.mxu0
      %v4538 = vadd.f32 0.0, %v4537
      %v4539 = vpop.f32.mrf.mxu0
      %v4540 = vadd.f32 0.0, %v4539
      %4541 = vmatmul.bf16.gmra.mxu0 %v3289
      %v4542 = vpop.f32.mrf.mxu0
      %v4543 = vadd.f32 0.0, %v4542
      %v4544 = vpop.f32.mrf.mxu0
      %v4545 = vadd.f32 0.0, %v4544
      %4546 = vmatmul.bf16.gmra.mxu0 %v3290
      %v4547 = vpop.f32.mrf.mxu0
      %v4548 = vadd.f32 0.0, %v4547
      %v4549 = vpop.f32.mrf.mxu0
      %v4550 = vadd.f32 0.0, %v4549
      %4551 = vmatmul.bf16.gmra.mxu0 %v3291
      %v4552 = vpop.f32.mrf.mxu0
      %v4553 = vadd.f32 0.0, %v4552
      %v4554 = vpop.f32.mrf.mxu0
      %v4555 = vadd.f32 0.0, %v4554
      %4556 = vmatmul.bf16.gmra.mxu0 %v3292
      %v4557 = vpop.f32.mrf.mxu0
      %v4558 = vadd.f32 0.0, %v4557
      %v4559 = vpop.f32.mrf.mxu0
      %v4560 = vadd.f32 0.0, %v4559
      %4561 = vmatmul.bf16.gmra.mxu0 %v3293
      %v4562 = vpop.f32.mrf.mxu0
      %v4563 = vadd.f32 0.0, %v4562
      %v4564 = vpop.f32.mrf.mxu0
      %v4565 = vadd.f32 0.0, %v4564
      %4566 = vmatmul.bf16.gmra.mxu0 %v3294
      %v4567 = vpop.f32.mrf.mxu0
      %v4568 = vadd.f32 0.0, %v4567
      %v4569 = vpop.f32.mrf.mxu0
      %v4570 = vadd.f32 0.0, %v4569
      %4571 = vmatmul.bf16.gmra.mxu0 %v3295
      %v4572 = vpop.f32.mrf.mxu0
      %v4573 = vadd.f32 0.0, %v4572
      %v4574 = vpop.f32.mrf.mxu0
      %v4575 = vadd.f32 0.0, %v4574
      %4576 = vmatmul.bf16.gmra.mxu0 %v3296
      %v4577 = vpop.f32.mrf.mxu0
      %v4578 = vadd.f32 0.0, %v4577
      %v4579 = vpop.f32.mrf.mxu0
      %v4580 = vadd.f32 0.0, %v4579
      %4581 = vmatmul.bf16.gmra.mxu0 %v3297
      %v4582 = vpop.f32.mrf.mxu0
      %v4583 = vadd.f32 0.0, %v4582
      %v4584 = vpop.f32.mrf.mxu0
      %v4585 = vadd.f32 0.0, %v4584
      %4586 = vmatmul.bf16.gmra.mxu0 %v3298
      %v4587 = vpop.f32.mrf.mxu0
      %v4588 = vadd.f32 0.0, %v4587
      %v4589 = vpop.f32.mrf.mxu0
      %v4590 = vadd.f32 0.0, %v4589
      %4591 = vmatmul.bf16.gmra.mxu0 %v3299
      %v4592 = vpop.f32.mrf.mxu0
      %v4593 = vadd.f32 0.0, %v4592
      %v4594 = vpop.f32.mrf.mxu0
      %v4595 = vadd.f32 0.0, %v4594
      %4596 = vmatmul.bf16.gmra.mxu0 %v3300
      %v4597 = vpop.f32.mrf.mxu0
      %v4598 = vadd.f32 0.0, %v4597
      %v4599 = vpop.f32.mrf.mxu0
      %v4600 = vadd.f32 0.0, %v4599
      %4601 = vmatmul.bf16.gmra.mxu0 %v4468
      %v4602 = vpop.f32.mrf.mxu0
      %v4603 = vadd.f32 0.0, %v4602
      %v4604 = vpop.f32.mrf.mxu0
      %v4605 = vadd.f32 0.0, %v4604
      %4606 = vdwg.mxu0
      %v4607 = vadd.f32 %v4432, %v4528
      %v4608 = vadd.f32 %v4433, %v4530
      %v4609 = vadd.f32 %v4434, %v4533
      %v4610 = vadd.f32 %v4435, %v4535
      %v4611 = vadd.f32 %v4436, %v4538
      %v4612 = vadd.f32 %v4437, %v4540
      %v4613 = vadd.f32 %v4438, %v4543
      %v4614 = vadd.f32 %v4439, %v4545
      %v4615 = vadd.f32 %v4440, %v4548
      %v4616 = vadd.f32 %v4441, %v4550
      %v4617 = vadd.f32 %v4442, %v4553
      %v4618 = vadd.f32 %v4443, %v4555
      %v4619 = vadd.f32 %v4444, %v4558
      %v4620 = vadd.f32 %v4445, %v4560
      %v4621 = vadd.f32 %v4446, %v4563
      %v4622 = vadd.f32 %v4447, %v4565
      %v4623 = vadd.f32 %v4448, %v4568
      %v4624 = vadd.f32 %v4449, %v4570
      %v4625 = vadd.f32 %v4450, %v4573
      %v4626 = vadd.f32 %v4451, %v4575
      %v4627 = vadd.f32 %v4452, %v4578
      %v4628 = vadd.f32 %v4453, %v4580
      %v4629 = vadd.f32 %v4454, %v4583
      %v4630 = vadd.f32 %v4455, %v4585
      %v4631 = vadd.f32 %v4456, %v4588
      %v4632 = vadd.f32 %v4457, %v4590
      %v4633 = vadd.f32 %v4458, %v4593
      %v4634 = vadd.f32 %v4459, %v4595
      %v4635 = vadd.f32 %v4460, %v4598
      %v4636 = vadd.f32 %v4461, %v4600
      %v4637 = vadd.f32 %v4462, %v4603
      %v4638 = vadd.f32 %v4463, %v4605
      %v4640 = vshrl.u32 %v3071, 16
      %v4642 = vrot.slane %v4640, 4
      %v4643 = vshll.u32 %v3071, 16
      %v4645 = vrot.slane %v4643, 5
      %v4646 = vor.u32 %v4642, %v4645
      %v4647 = vrot.slane %v4646, 4
      %v4649 = vshll.u32 %v3072, 16
      %v4651 = vrot.slane %v4649, 5
      %v4652 = vsel %vm734, %v4647, %v4651
      %v4653 = vshrl.u32 %v3072, 16
      %v4655 = vrot.slane %v4653, 4
      %v4656 = vor.u32 %v4655, %v4651
      %v4657 = vrot.slane %v4656, 4
      %v4659 = vshll.u32 %v3073, 16
      %v4661 = vrot.slane %v4659, 5
      %v4662 = vsel %vm734, %v4657, %v4661
      %v4663 = vunpack.c.l.b16 %v4652
      %v4664 = vunpack.c.l.b16 %v4662
      %v4665 = vpack.c.b16 %v4664, %v4663
      %v4683 = vunpack.c.l.b16 %v3141
      %v4684 = vunpack.c.l.b16 %v3142
      %v4685 = vunpack.c.l.b16 %v3143
      %v4686 = vunpack.c.l.b16 %v3144
      %v4687 = vunpack.c.l.b16 %v3145
      %v4688 = vunpack.c.l.b16 %v3146
      %v4689 = vunpack.c.l.b16 %v3147
      %v4690 = vunpack.c.l.b16 %v3148
      %v4691 = vunpack.c.l.b16 %v3149
      %v4692 = vunpack.c.l.b16 %v3150
      %v4693 = vunpack.c.l.b16 %v3151
      %v4694 = vunpack.c.l.b16 %v3152
      %v4695 = vunpack.c.l.b16 %v3153
      %v4696 = vunpack.c.l.b16 %v3154
      %v4697 = vunpack.c.l.b16 %v3155
      %v4698 = vunpack.c.l.b16 %v3156
      %v4699 = vpack.c.b16 %v4684, %v4683
      %v4700 = vpack.c.b16 %v4686, %v4685
      %v4701 = vpack.c.b16 %v4688, %v4687
      %v4702 = vpack.c.b16 %v4690, %v4689
      %v4703 = vpack.c.b16 %v4692, %v4691
      %v4704 = vpack.c.b16 %v4694, %v4693
      %v4705 = vpack.c.b16 %v4696, %v4695
      %v4706 = vpack.c.b16 %v4698, %v4697
      %4715 = vmatpush.bf16.msra.mxu0 %v4706
      %4716 = vmatpush.bf16.msra.mxu0 %v4705
      %4717 = vmatpush.bf16.msra.mxu0 %v4704
      %4718 = vmatpush.bf16.msra.mxu0 %v4703
      %4719 = vmatpush.bf16.msra.mxu0 %v4702
      %4720 = vmatpush.bf16.msra.mxu0 %v4701
      %4721 = vmatpush.bf16.msra.mxu0 %v4700
      %4722 = vmatpush.bf16.msra.mxu0 %v4699
      %4723 = vmatmul.bf16.gmra.mxu0 %v3903
      %v4724 = vpop.f32.mrf.mxu0
      %v4725 = vadd.f32 0.0, %v4724
      %v4726 = vpop.f32.mrf.mxu0
      %v4727 = vadd.f32 0.0, %v4726
      %4728 = vmatmul.bf16.gmra.mxu0 %v3904
      %v4729 = vpop.f32.mrf.mxu0
      %v4730 = vadd.f32 0.0, %v4729
      %v4731 = vpop.f32.mrf.mxu0
      %v4732 = vadd.f32 0.0, %v4731
      %4733 = vmatmul.bf16.gmra.mxu0 %v3905
      %v4734 = vpop.f32.mrf.mxu0
      %v4735 = vadd.f32 0.0, %v4734
      %v4736 = vpop.f32.mrf.mxu0
      %v4737 = vadd.f32 0.0, %v4736
      %4738 = vmatmul.bf16.gmra.mxu0 %v3906
      %v4739 = vpop.f32.mrf.mxu0
      %v4740 = vadd.f32 0.0, %v4739
      %v4741 = vpop.f32.mrf.mxu0
      %v4742 = vadd.f32 0.0, %v4741
      %4743 = vmatmul.bf16.gmra.mxu0 %v3907
      %v4744 = vpop.f32.mrf.mxu0
      %v4745 = vadd.f32 0.0, %v4744
      %v4746 = vpop.f32.mrf.mxu0
      %v4747 = vadd.f32 0.0, %v4746
      %4748 = vmatmul.bf16.gmra.mxu0 %v3908
      %v4749 = vpop.f32.mrf.mxu0
      %v4750 = vadd.f32 0.0, %v4749
      %v4751 = vpop.f32.mrf.mxu0
      %v4752 = vadd.f32 0.0, %v4751
      %4753 = vmatmul.bf16.gmra.mxu0 %v3909
      %v4754 = vpop.f32.mrf.mxu0
      %v4755 = vadd.f32 0.0, %v4754
      %v4756 = vpop.f32.mrf.mxu0
      %v4757 = vadd.f32 0.0, %v4756
      %4758 = vmatmul.bf16.gmra.mxu0 %v3910
      %v4759 = vpop.f32.mrf.mxu0
      %v4760 = vadd.f32 0.0, %v4759
      %v4761 = vpop.f32.mrf.mxu0
      %v4762 = vadd.f32 0.0, %v4761
      %4763 = vmatmul.bf16.gmra.mxu0 %v3911
      %v4764 = vpop.f32.mrf.mxu0
      %v4765 = vadd.f32 0.0, %v4764
      %v4766 = vpop.f32.mrf.mxu0
      %v4767 = vadd.f32 0.0, %v4766
      %4768 = vmatmul.bf16.gmra.mxu0 %v3912
      %v4769 = vpop.f32.mrf.mxu0
      %v4770 = vadd.f32 0.0, %v4769
      %v4771 = vpop.f32.mrf.mxu0
      %v4772 = vadd.f32 0.0, %v4771
      %4773 = vmatmul.bf16.gmra.mxu0 %v3913
      %v4774 = vpop.f32.mrf.mxu0
      %v4775 = vadd.f32 0.0, %v4774
      %v4776 = vpop.f32.mrf.mxu0
      %v4777 = vadd.f32 0.0, %v4776
      %4778 = vmatmul.bf16.gmra.mxu0 %v3914
      %v4779 = vpop.f32.mrf.mxu0
      %v4780 = vadd.f32 0.0, %v4779
      %v4781 = vpop.f32.mrf.mxu0
      %v4782 = vadd.f32 0.0, %v4781
      %4783 = vmatmul.bf16.gmra.mxu0 %v3915
      %v4784 = vpop.f32.mrf.mxu0
      %v4785 = vadd.f32 0.0, %v4784
      %v4786 = vpop.f32.mrf.mxu0
      %v4787 = vadd.f32 0.0, %v4786
      %4788 = vmatmul.bf16.gmra.mxu0 %v3916
      %v4789 = vpop.f32.mrf.mxu0
      %v4790 = vadd.f32 0.0, %v4789
      %v4791 = vpop.f32.mrf.mxu0
      %v4792 = vadd.f32 0.0, %v4791
      %4793 = vmatmul.bf16.gmra.mxu0 %v3917
      %v4794 = vpop.f32.mrf.mxu0
      %v4795 = vadd.f32 0.0, %v4794
      %v4796 = vpop.f32.mrf.mxu0
      %v4797 = vadd.f32 0.0, %v4796
      %4798 = vmatmul.bf16.gmra.mxu0 %v4665
      %v4799 = vpop.f32.mrf.mxu0
      %v4800 = vadd.f32 0.0, %v4799
      %v4801 = vpop.f32.mrf.mxu0
      %v4802 = vadd.f32 0.0, %v4801
      %4803 = vdwg.mxu0
      %v4804 = vadd.f32 %v4607, %v4725
      %v4805 = vadd.f32 %v4608, %v4727
      %v4806 = vadd.f32 %v4609, %v4730
      %v4807 = vadd.f32 %v4610, %v4732
      %v4808 = vadd.f32 %v4611, %v4735
      %v4809 = vadd.f32 %v4612, %v4737
      %v4810 = vadd.f32 %v4613, %v4740
      %v4811 = vadd.f32 %v4614, %v4742
      %v4812 = vadd.f32 %v4615, %v4745
      %v4813 = vadd.f32 %v4616, %v4747
      %v4814 = vadd.f32 %v4617, %v4750
      %v4815 = vadd.f32 %v4618, %v4752
      %v4816 = vadd.f32 %v4619, %v4755
      %v4817 = vadd.f32 %v4620, %v4757
      %v4818 = vadd.f32 %v4621, %v4760
      %v4819 = vadd.f32 %v4622, %v4762
      %v4820 = vadd.f32 %v4623, %v4765
      %v4821 = vadd.f32 %v4624, %v4767
      %v4822 = vadd.f32 %v4625, %v4770
      %v4823 = vadd.f32 %v4626, %v4772
      %v4824 = vadd.f32 %v4627, %v4775
      %v4825 = vadd.f32 %v4628, %v4777
      %v4826 = vadd.f32 %v4629, %v4780
      %v4827 = vadd.f32 %v4630, %v4782
      %v4828 = vadd.f32 %v4631, %v4785
      %v4829 = vadd.f32 %v4632, %v4787
      %v4830 = vadd.f32 %v4633, %v4790
      %v4831 = vadd.f32 %v4634, %v4792
      %v4832 = vadd.f32 %v4635, %v4795
      %v4833 = vadd.f32 %v4636, %v4797
      %v4834 = vadd.f32 %v4637, %v4800
      %v4835 = vadd.f32 %v4638, %v4802
      %v4837 = vrot.slane %v3071, 5
      %v4838 = vrot.slane %v4837, 4
      %v4839 = vrot.slane %v3072, 5
      %v4840 = vsel %vm1571, %v4838, %v4839
      %v4841 = vrot.slane %v4839, 4
      %v4842 = vrot.slane %v3073, 5
      %v4843 = vsel %vm1571, %v4841, %v4842
      %v4844 = vunpack.c.l.b16 %v4840
      %v4845 = vunpack.c.l.b16 %v4843
      %v4846 = vpack.c.b16 %v4845, %v4844
      %v4864 = vunpack.c.l.b16 %v3157
      %v4865 = vunpack.c.l.b16 %v3158
      %v4866 = vunpack.c.l.b16 %v3159
      %v4867 = vunpack.c.l.b16 %v3160
      %v4868 = vunpack.c.l.b16 %v3161
      %v4869 = vunpack.c.l.b16 %v3162
      %v4870 = vunpack.c.l.b16 %v3163
      %v4871 = vunpack.c.l.b16 %v3164
      %v4872 = vunpack.c.l.b16 %v3165
      %v4873 = vunpack.c.l.b16 %v3166
      %v4874 = vunpack.c.l.b16 %v3167
      %v4875 = vunpack.c.l.b16 %v3168
      %v4876 = vunpack.c.l.b16 %v3169
      %v4877 = vunpack.c.l.b16 %v3170
      %v4878 = vunpack.c.l.b16 %v3171
      %v4879 = vunpack.c.l.b16 %v3172
      %v4880 = vpack.c.b16 %v4865, %v4864
      %v4881 = vpack.c.b16 %v4867, %v4866
      %v4882 = vpack.c.b16 %v4869, %v4868
      %v4883 = vpack.c.b16 %v4871, %v4870
      %v4884 = vpack.c.b16 %v4873, %v4872
      %v4885 = vpack.c.b16 %v4875, %v4874
      %v4886 = vpack.c.b16 %v4877, %v4876
      %v4887 = vpack.c.b16 %v4879, %v4878
      %4896 = vmatpush.bf16.msra.mxu0 %v4887
      %4897 = vmatpush.bf16.msra.mxu0 %v4886
      %4898 = vmatpush.bf16.msra.mxu0 %v4885
      %4899 = vmatpush.bf16.msra.mxu0 %v4884
      %4900 = vmatpush.bf16.msra.mxu0 %v4883
      %4901 = vmatpush.bf16.msra.mxu0 %v4882
      %4902 = vmatpush.bf16.msra.mxu0 %v4881
      %4903 = vmatpush.bf16.msra.mxu0 %v4880
      %4904 = vmatmul.bf16.gmra.mxu0 %v4264
      %v4905 = vpop.f32.mrf.mxu0
      %v4906 = vadd.f32 0.0, %v4905
      %v4907 = vpop.f32.mrf.mxu0
      %v4908 = vadd.f32 0.0, %v4907
      %4909 = vmatmul.bf16.gmra.mxu0 %v4265
      %v4910 = vpop.f32.mrf.mxu0
      %v4911 = vadd.f32 0.0, %v4910
      %v4912 = vpop.f32.mrf.mxu0
      %v4913 = vadd.f32 0.0, %v4912
      %4914 = vmatmul.bf16.gmra.mxu0 %v4266
      %v4915 = vpop.f32.mrf.mxu0
      %v4916 = vadd.f32 0.0, %v4915
      %v4917 = vpop.f32.mrf.mxu0
      %v4918 = vadd.f32 0.0, %v4917
      %4919 = vmatmul.bf16.gmra.mxu0 %v4267
      %v4920 = vpop.f32.mrf.mxu0
      %v4921 = vadd.f32 0.0, %v4920
      %v4922 = vpop.f32.mrf.mxu0
      %v4923 = vadd.f32 0.0, %v4922
      %4924 = vmatmul.bf16.gmra.mxu0 %v4268
      %v4925 = vpop.f32.mrf.mxu0
      %v4926 = vadd.f32 0.0, %v4925
      %v4927 = vpop.f32.mrf.mxu0
      %v4928 = vadd.f32 0.0, %v4927
      %4929 = vmatmul.bf16.gmra.mxu0 %v4269
      %v4930 = vpop.f32.mrf.mxu0
      %v4931 = vadd.f32 0.0, %v4930
      %v4932 = vpop.f32.mrf.mxu0
      %v4933 = vadd.f32 0.0, %v4932
      %4934 = vmatmul.bf16.gmra.mxu0 %v4270
      %v4935 = vpop.f32.mrf.mxu0
      %v4936 = vadd.f32 0.0, %v4935
      %v4937 = vpop.f32.mrf.mxu0
      %v4938 = vadd.f32 0.0, %v4937
      %4939 = vmatmul.bf16.gmra.mxu0 %v4271
      %v4940 = vpop.f32.mrf.mxu0
      %v4941 = vadd.f32 0.0, %v4940
      %v4942 = vpop.f32.mrf.mxu0
      %v4943 = vadd.f32 0.0, %v4942
      %4944 = vmatmul.bf16.gmra.mxu0 %v4272
      %v4945 = vpop.f32.mrf.mxu0
      %v4946 = vadd.f32 0.0, %v4945
      %v4947 = vpop.f32.mrf.mxu0
      %v4948 = vadd.f32 0.0, %v4947
      %4949 = vmatmul.bf16.gmra.mxu0 %v4273
      %v4950 = vpop.f32.mrf.mxu0
      %v4951 = vadd.f32 0.0, %v4950
      %v4952 = vpop.f32.mrf.mxu0
      %v4953 = vadd.f32 0.0, %v4952
      %4954 = vmatmul.bf16.gmra.mxu0 %v4274
      %v4955 = vpop.f32.mrf.mxu0
      %v4956 = vadd.f32 0.0, %v4955
      %v4957 = vpop.f32.mrf.mxu0
      %v4958 = vadd.f32 0.0, %v4957
      %4959 = vmatmul.bf16.gmra.mxu0 %v4275
      %v4960 = vpop.f32.mrf.mxu0
      %v4961 = vadd.f32 0.0, %v4960
      %v4962 = vpop.f32.mrf.mxu0
      %v4963 = vadd.f32 0.0, %v4962
      %4964 = vmatmul.bf16.gmra.mxu0 %v4276
      %v4965 = vpop.f32.mrf.mxu0
      %v4966 = vadd.f32 0.0, %v4965
      %v4967 = vpop.f32.mrf.mxu0
      %v4968 = vadd.f32 0.0, %v4967
      %4969 = vmatmul.bf16.gmra.mxu0 %v4277
      %v4970 = vpop.f32.mrf.mxu0
      %v4971 = vadd.f32 0.0, %v4970
      %v4972 = vpop.f32.mrf.mxu0
      %v4973 = vadd.f32 0.0, %v4972
      %4974 = vmatmul.bf16.gmra.mxu0 %v4278
      %v4975 = vpop.f32.mrf.mxu0
      %v4976 = vadd.f32 0.0, %v4975
      %v4977 = vpop.f32.mrf.mxu0
      %v4978 = vadd.f32 0.0, %v4977
      %4979 = vmatmul.bf16.gmra.mxu0 %v4846
      %v4980 = vpop.f32.mrf.mxu0
      %v4981 = vadd.f32 0.0, %v4980
      %v4982 = vpop.f32.mrf.mxu0
      %v4983 = vadd.f32 0.0, %v4982
      %4984 = vdwg.mxu0
      %v4985 = vadd.f32 %v4804, %v4906
      %v4986 = vadd.f32 %v4805, %v4908
      %v4987 = vadd.f32 %v4806, %v4911
      %v4988 = vadd.f32 %v4807, %v4913
      %v4989 = vadd.f32 %v4808, %v4916
      %v4990 = vadd.f32 %v4809, %v4918
      %v4991 = vadd.f32 %v4810, %v4921
      %v4992 = vadd.f32 %v4811, %v4923
      %v4993 = vadd.f32 %v4812, %v4926
      %v4994 = vadd.f32 %v4813, %v4928
      %v4995 = vadd.f32 %v4814, %v4931
      %v4996 = vadd.f32 %v4815, %v4933
      %v4997 = vadd.f32 %v4816, %v4936
      %v4998 = vadd.f32 %v4817, %v4938
      %v4999 = vadd.f32 %v4818, %v4941
      %v5000 = vadd.f32 %v4819, %v4943
      %v5001 = vadd.f32 %v4820, %v4946
      %v5002 = vadd.f32 %v4821, %v4948
      %v5003 = vadd.f32 %v4822, %v4951
      %v5004 = vadd.f32 %v4823, %v4953
      %v5005 = vadd.f32 %v4824, %v4956
      %v5006 = vadd.f32 %v4825, %v4958
      %v5007 = vadd.f32 %v4826, %v4961
      %v5008 = vadd.f32 %v4827, %v4963
      %v5009 = vadd.f32 %v4828, %v4966
      %v5010 = vadd.f32 %v4829, %v4968
      %v5011 = vadd.f32 %v4830, %v4971
      %v5012 = vadd.f32 %v4831, %v4973
      %v5013 = vadd.f32 %v4832, %v4976
      %v5014 = vadd.f32 %v4833, %v4978
      %v5015 = vadd.f32 %v4834, %v4981
      %v5016 = vadd.f32 %v4835, %v4983
      %v5019 = vunpack.c.l.b16 %v3074
      %v5020 = vunpack.c.l.b16 %v3075
      %v5021 = vpack.c.b16 %v5020, %v5019
      %v5039 = vunpack.c.l.b16 %v3173
      %v5040 = vunpack.c.l.b16 %v3174
      %v5041 = vunpack.c.l.b16 %v3175
      %v5042 = vunpack.c.l.b16 %v3176
      %v5043 = vunpack.c.l.b16 %v3177
      %v5044 = vunpack.c.l.b16 %v3178
      %v5045 = vunpack.c.l.b16 %v3179
      %v5046 = vunpack.c.l.b16 %v3180
      %v5047 = vunpack.c.l.b16 %v3181
      %v5048 = vunpack.c.l.b16 %v3182
      %v5049 = vunpack.c.l.b16 %v3183
      %v5050 = vunpack.c.l.b16 %v3184
      %v5051 = vunpack.c.l.b16 %v3185
      %v5052 = vunpack.c.l.b16 %v3186
      %v5053 = vunpack.c.l.b16 %v3187
      %v5054 = vunpack.c.l.b16 %v3188
      %v5055 = vpack.c.b16 %v5040, %v5039
      %v5056 = vpack.c.b16 %v5042, %v5041
      %v5057 = vpack.c.b16 %v5044, %v5043
      %v5058 = vpack.c.b16 %v5046, %v5045
      %v5059 = vpack.c.b16 %v5048, %v5047
      %v5060 = vpack.c.b16 %v5050, %v5049
      %v5061 = vpack.c.b16 %v5052, %v5051
      %v5062 = vpack.c.b16 %v5054, %v5053
      %5071 = vmatpush.bf16.msra.mxu0 %v5062
      %5072 = vmatpush.bf16.msra.mxu0 %v5061
      %5073 = vmatpush.bf16.msra.mxu0 %v5060
      %5074 = vmatpush.bf16.msra.mxu0 %v5059
      %5075 = vmatpush.bf16.msra.mxu0 %v5058
      %5076 = vmatpush.bf16.msra.mxu0 %v5057
      %5077 = vmatpush.bf16.msra.mxu0 %v5056
      %5078 = vmatpush.bf16.msra.mxu0 %v5055
      %5079 = vmatmul.bf16.gmra.mxu0 %v3287
      %v5080 = vpop.f32.mrf.mxu0
      %v5081 = vadd.f32 0.0, %v5080
      %v5082 = vpop.f32.mrf.mxu0
      %v5083 = vadd.f32 0.0, %v5082
      %5084 = vmatmul.bf16.gmra.mxu0 %v3288
      %v5085 = vpop.f32.mrf.mxu0
      %v5086 = vadd.f32 0.0, %v5085
      %v5087 = vpop.f32.mrf.mxu0
      %v5088 = vadd.f32 0.0, %v5087
      %5089 = vmatmul.bf16.gmra.mxu0 %v3289
      %v5090 = vpop.f32.mrf.mxu0
      %v5091 = vadd.f32 0.0, %v5090
      %v5092 = vpop.f32.mrf.mxu0
      %v5093 = vadd.f32 0.0, %v5092
      %5094 = vmatmul.bf16.gmra.mxu0 %v3290
      %v5095 = vpop.f32.mrf.mxu0
      %v5096 = vadd.f32 0.0, %v5095
      %v5097 = vpop.f32.mrf.mxu0
      %v5098 = vadd.f32 0.0, %v5097
      %5099 = vmatmul.bf16.gmra.mxu0 %v3291
      %v5100 = vpop.f32.mrf.mxu0
      %v5101 = vadd.f32 0.0, %v5100
      %v5102 = vpop.f32.mrf.mxu0
      %v5103 = vadd.f32 0.0, %v5102
      %5104 = vmatmul.bf16.gmra.mxu0 %v3292
      %v5105 = vpop.f32.mrf.mxu0
      %v5106 = vadd.f32 0.0, %v5105
      %v5107 = vpop.f32.mrf.mxu0
      %v5108 = vadd.f32 0.0, %v5107
      %5109 = vmatmul.bf16.gmra.mxu0 %v3293
      %v5110 = vpop.f32.mrf.mxu0
      %v5111 = vadd.f32 0.0, %v5110
      %v5112 = vpop.f32.mrf.mxu0
      %v5113 = vadd.f32 0.0, %v5112
      %5114 = vmatmul.bf16.gmra.mxu0 %v3294
      %v5115 = vpop.f32.mrf.mxu0
      %v5116 = vadd.f32 0.0, %v5115
      %v5117 = vpop.f32.mrf.mxu0
      %v5118 = vadd.f32 0.0, %v5117
      %5119 = vmatmul.bf16.gmra.mxu0 %v3295
      %v5120 = vpop.f32.mrf.mxu0
      %v5121 = vadd.f32 0.0, %v5120
      %v5122 = vpop.f32.mrf.mxu0
      %v5123 = vadd.f32 0.0, %v5122
      %5124 = vmatmul.bf16.gmra.mxu0 %v3296
      %v5125 = vpop.f32.mrf.mxu0
      %v5126 = vadd.f32 0.0, %v5125
      %v5127 = vpop.f32.mrf.mxu0
      %v5128 = vadd.f32 0.0, %v5127
      %5129 = vmatmul.bf16.gmra.mxu0 %v3297
      %v5130 = vpop.f32.mrf.mxu0
      %v5131 = vadd.f32 0.0, %v5130
      %v5132 = vpop.f32.mrf.mxu0
      %v5133 = vadd.f32 0.0, %v5132
      %5134 = vmatmul.bf16.gmra.mxu0 %v3298
      %v5135 = vpop.f32.mrf.mxu0
      %v5136 = vadd.f32 0.0, %v5135
      %v5137 = vpop.f32.mrf.mxu0
      %v5138 = vadd.f32 0.0, %v5137
      %5139 = vmatmul.bf16.gmra.mxu0 %v3299
      %v5140 = vpop.f32.mrf.mxu0
      %v5141 = vadd.f32 0.0, %v5140
      %v5142 = vpop.f32.mrf.mxu0
      %v5143 = vadd.f32 0.0, %v5142
      %5144 = vmatmul.bf16.gmra.mxu0 %v3300
      %v5145 = vpop.f32.mrf.mxu0
      %v5146 = vadd.f32 0.0, %v5145
      %v5147 = vpop.f32.mrf.mxu0
      %v5148 = vadd.f32 0.0, %v5147
      %5149 = vmatmul.bf16.gmra.mxu0 %v4468
      %v5150 = vpop.f32.mrf.mxu0
      %v5151 = vadd.f32 0.0, %v5150
      %v5152 = vpop.f32.mrf.mxu0
      %v5153 = vadd.f32 0.0, %v5152
      %5154 = vmatmul.bf16.gmra.mxu0 %v5021
      %v5155 = vpop.f32.mrf.mxu0
      %v5156 = vadd.f32 0.0, %v5155
      %v5157 = vpop.f32.mrf.mxu0
      %v5158 = vadd.f32 0.0, %v5157
      %5159 = vdwg.mxu0
      %v5160 = vadd.f32 %v4985, %v5081
      %v5161 = vadd.f32 %v4986, %v5083
      %v5162 = vadd.f32 %v4987, %v5086
      %v5163 = vadd.f32 %v4988, %v5088
      %v5164 = vadd.f32 %v4989, %v5091
      %v5165 = vadd.f32 %v4990, %v5093
      %v5166 = vadd.f32 %v4991, %v5096
      %v5167 = vadd.f32 %v4992, %v5098
      %v5168 = vadd.f32 %v4993, %v5101
      %v5169 = vadd.f32 %v4994, %v5103
      %v5170 = vadd.f32 %v4995, %v5106
      %v5171 = vadd.f32 %v4996, %v5108
      %v5172 = vadd.f32 %v4997, %v5111
      %v5173 = vadd.f32 %v4998, %v5113
      %v5174 = vadd.f32 %v4999, %v5116
      %v5175 = vadd.f32 %v5000, %v5118
      %v5176 = vadd.f32 %v5001, %v5121
      %v5177 = vadd.f32 %v5002, %v5123
      %v5178 = vadd.f32 %v5003, %v5126
      %v5179 = vadd.f32 %v5004, %v5128
      %v5180 = vadd.f32 %v5005, %v5131
      %v5181 = vadd.f32 %v5006, %v5133
      %v5182 = vadd.f32 %v5007, %v5136
      %v5183 = vadd.f32 %v5008, %v5138
      %v5184 = vadd.f32 %v5009, %v5141
      %v5185 = vadd.f32 %v5010, %v5143
      %v5186 = vadd.f32 %v5011, %v5146
      %v5187 = vadd.f32 %v5012, %v5148
      %v5188 = vadd.f32 %v5013, %v5151
      %v5189 = vadd.f32 %v5014, %v5153
      %v5190 = vadd.f32 %v5015, %v5156
      %v5191 = vadd.f32 %v5016, %v5158
      %v5193 = vshrl.u32 %v3074, 16
      %v5195 = vrot.slane %v5193, 4
      %v5196 = vshll.u32 %v3074, 16
      %v5198 = vrot.slane %v5196, 5
      %v5199 = vor.u32 %v5195, %v5198
      %v5200 = vrot.slane %v5199, 4
      %v5202 = vshll.u32 %v3075, 16
      %v5204 = vrot.slane %v5202, 5
      %v5205 = vsel %vm734, %v5200, %v5204
      %v5206 = vshrl.u32 %v3075, 16
      %v5208 = vrot.slane %v5206, 4
      %v5209 = vor.u32 %v5208, %v5204
      %v5210 = vrot.slane %v5209, 4
      %v5212 = vshll.u32 %v3076, 16
      %v5214 = vrot.slane %v5212, 5
      %v5215 = vsel %vm734, %v5210, %v5214
      %v5216 = vunpack.c.l.b16 %v5205
      %v5217 = vunpack.c.l.b16 %v5215
      %v5218 = vpack.c.b16 %v5217, %v5216
      %v5236 = vunpack.c.l.b16 %v3189
      %v5237 = vunpack.c.l.b16 %v3190
      %v5238 = vunpack.c.l.b16 %v3191
      %v5239 = vunpack.c.l.b16 %v3192
      %v5240 = vunpack.c.l.b16 %v3193
      %v5241 = vunpack.c.l.b16 %v3194
      %v5242 = vunpack.c.l.b16 %v3195
      %v5243 = vunpack.c.l.b16 %v3196
      %v5244 = vunpack.c.l.b16 %v3197
      %v5245 = vunpack.c.l.b16 %v3198
      %v5246 = vunpack.c.l.b16 %v3199
      %v5247 = vunpack.c.l.b16 %v3200
      %v5248 = vunpack.c.l.b16 %v3201
      %v5249 = vunpack.c.l.b16 %v3202
      %v5250 = vunpack.c.l.b16 %v3203
      %v5251 = vunpack.c.l.b16 %v3204
      %v5252 = vpack.c.b16 %v5237, %v5236
      %v5253 = vpack.c.b16 %v5239, %v5238
      %v5254 = vpack.c.b16 %v5241, %v5240
      %v5255 = vpack.c.b16 %v5243, %v5242
      %v5256 = vpack.c.b16 %v5245, %v5244
      %v5257 = vpack.c.b16 %v5247, %v5246
      %v5258 = vpack.c.b16 %v5249, %v5248
      %v5259 = vpack.c.b16 %v5251, %v5250
      %5268 = vmatpush.bf16.msra.mxu0 %v5259
      %5269 = vmatpush.bf16.msra.mxu0 %v5258
      %5270 = vmatpush.bf16.msra.mxu0 %v5257
      %5271 = vmatpush.bf16.msra.mxu0 %v5256
      %5272 = vmatpush.bf16.msra.mxu0 %v5255
      %5273 = vmatpush.bf16.msra.mxu0 %v5254
      %5274 = vmatpush.bf16.msra.mxu0 %v5253
      %5275 = vmatpush.bf16.msra.mxu0 %v5252
      %5276 = vmatmul.bf16.gmra.mxu0 %v3904
      %v5277 = vpop.f32.mrf.mxu0
      %v5278 = vadd.f32 0.0, %v5277
      %v5279 = vpop.f32.mrf.mxu0
      %v5280 = vadd.f32 0.0, %v5279
      %5281 = vmatmul.bf16.gmra.mxu0 %v3905
      %v5282 = vpop.f32.mrf.mxu0
      %v5283 = vadd.f32 0.0, %v5282
      %v5284 = vpop.f32.mrf.mxu0
      %v5285 = vadd.f32 0.0, %v5284
      %5286 = vmatmul.bf16.gmra.mxu0 %v3906
      %v5287 = vpop.f32.mrf.mxu0
      %v5288 = vadd.f32 0.0, %v5287
      %v5289 = vpop.f32.mrf.mxu0
      %v5290 = vadd.f32 0.0, %v5289
      %5291 = vmatmul.bf16.gmra.mxu0 %v3907
      %v5292 = vpop.f32.mrf.mxu0
      %v5293 = vadd.f32 0.0, %v5292
      %v5294 = vpop.f32.mrf.mxu0
      %v5295 = vadd.f32 0.0, %v5294
      %5296 = vmatmul.bf16.gmra.mxu0 %v3908
      %v5297 = vpop.f32.mrf.mxu0
      %v5298 = vadd.f32 0.0, %v5297
      %v5299 = vpop.f32.mrf.mxu0
      %v5300 = vadd.f32 0.0, %v5299
      %5301 = vmatmul.bf16.gmra.mxu0 %v3909
      %v5302 = vpop.f32.mrf.mxu0
      %v5303 = vadd.f32 0.0, %v5302
      %v5304 = vpop.f32.mrf.mxu0
      %v5305 = vadd.f32 0.0, %v5304
      %5306 = vmatmul.bf16.gmra.mxu0 %v3910
      %v5307 = vpop.f32.mrf.mxu0
      %v5308 = vadd.f32 0.0, %v5307
      %v5309 = vpop.f32.mrf.mxu0
      %v5310 = vadd.f32 0.0, %v5309
      %5311 = vmatmul.bf16.gmra.mxu0 %v3911
      %v5312 = vpop.f32.mrf.mxu0
      %v5313 = vadd.f32 0.0, %v5312
      %v5314 = vpop.f32.mrf.mxu0
      %v5315 = vadd.f32 0.0, %v5314
      %5316 = vmatmul.bf16.gmra.mxu0 %v3912
      %v5317 = vpop.f32.mrf.mxu0
      %v5318 = vadd.f32 0.0, %v5317
      %v5319 = vpop.f32.mrf.mxu0
      %v5320 = vadd.f32 0.0, %v5319
      %5321 = vmatmul.bf16.gmra.mxu0 %v3913
      %v5322 = vpop.f32.mrf.mxu0
      %v5323 = vadd.f32 0.0, %v5322
      %v5324 = vpop.f32.mrf.mxu0
      %v5325 = vadd.f32 0.0, %v5324
      %5326 = vmatmul.bf16.gmra.mxu0 %v3914
      %v5327 = vpop.f32.mrf.mxu0
      %v5328 = vadd.f32 0.0, %v5327
      %v5329 = vpop.f32.mrf.mxu0
      %v5330 = vadd.f32 0.0, %v5329
      %5331 = vmatmul.bf16.gmra.mxu0 %v3915
      %v5332 = vpop.f32.mrf.mxu0
      %v5333 = vadd.f32 0.0, %v5332
      %v5334 = vpop.f32.mrf.mxu0
      %v5335 = vadd.f32 0.0, %v5334
      %5336 = vmatmul.bf16.gmra.mxu0 %v3916
      %v5337 = vpop.f32.mrf.mxu0
      %v5338 = vadd.f32 0.0, %v5337
      %v5339 = vpop.f32.mrf.mxu0
      %v5340 = vadd.f32 0.0, %v5339
      %5341 = vmatmul.bf16.gmra.mxu0 %v3917
      %v5342 = vpop.f32.mrf.mxu0
      %v5343 = vadd.f32 0.0, %v5342
      %v5344 = vpop.f32.mrf.mxu0
      %v5345 = vadd.f32 0.0, %v5344
      %5346 = vmatmul.bf16.gmra.mxu0 %v4665
      %v5347 = vpop.f32.mrf.mxu0
      %v5348 = vadd.f32 0.0, %v5347
      %v5349 = vpop.f32.mrf.mxu0
      %v5350 = vadd.f32 0.0, %v5349
      %5351 = vmatmul.bf16.gmra.mxu0 %v5218
      %v5352 = vpop.f32.mrf.mxu0
      %v5353 = vadd.f32 0.0, %v5352
      %v5354 = vpop.f32.mrf.mxu0
      %v5355 = vadd.f32 0.0, %v5354
      %5356 = vdwg.mxu0
      %v5357 = vadd.f32 %v5160, %v5278
      %v5358 = vadd.f32 %v5161, %v5280
      %v5359 = vadd.f32 %v5162, %v5283
      %v5360 = vadd.f32 %v5163, %v5285
      %v5361 = vadd.f32 %v5164, %v5288
      %v5362 = vadd.f32 %v5165, %v5290
      %v5363 = vadd.f32 %v5166, %v5293
      %v5364 = vadd.f32 %v5167, %v5295
      %v5365 = vadd.f32 %v5168, %v5298
      %v5366 = vadd.f32 %v5169, %v5300
      %v5367 = vadd.f32 %v5170, %v5303
      %v5368 = vadd.f32 %v5171, %v5305
      %v5369 = vadd.f32 %v5172, %v5308
      %v5370 = vadd.f32 %v5173, %v5310
      %v5371 = vadd.f32 %v5174, %v5313
      %v5372 = vadd.f32 %v5175, %v5315
      %v5373 = vadd.f32 %v5176, %v5318
      %v5374 = vadd.f32 %v5177, %v5320
      %v5375 = vadd.f32 %v5178, %v5323
      %v5376 = vadd.f32 %v5179, %v5325
      %v5377 = vadd.f32 %v5180, %v5328
      %v5378 = vadd.f32 %v5181, %v5330
      %v5379 = vadd.f32 %v5182, %v5333
      %v5380 = vadd.f32 %v5183, %v5335
      %v5381 = vadd.f32 %v5184, %v5338
      %v5382 = vadd.f32 %v5185, %v5340
      %v5383 = vadd.f32 %v5186, %v5343
      %v5384 = vadd.f32 %v5187, %v5345
      %v5385 = vadd.f32 %v5188, %v5348
      %v5386 = vadd.f32 %v5189, %v5350
      %v5387 = vadd.f32 %v5190, %v5353
      %v5388 = vadd.f32 %v5191, %v5355
      %v5390 = vrot.slane %v3074, 5
      %v5391 = vrot.slane %v5390, 4
      %v5392 = vrot.slane %v3075, 5
      %v5393 = vsel %vm1571, %v5391, %v5392
      %v5394 = vrot.slane %v5392, 4
      %v5395 = vrot.slane %v3076, 5
      %v5396 = vsel %vm1571, %v5394, %v5395
      %v5397 = vunpack.c.l.b16 %v5393
      %v5398 = vunpack.c.l.b16 %v5396
      %v5399 = vpack.c.b16 %v5398, %v5397
      %v5417 = vunpack.c.l.b16 %v3205
      %v5418 = vunpack.c.l.b16 %v3206
      %v5419 = vunpack.c.l.b16 %v3207
      %v5420 = vunpack.c.l.b16 %v3208
      %v5421 = vunpack.c.l.b16 %v3209
      %v5422 = vunpack.c.l.b16 %v3210
      %v5423 = vunpack.c.l.b16 %v3211
      %v5424 = vunpack.c.l.b16 %v3212
      %v5425 = vunpack.c.l.b16 %v3213
      %v5426 = vunpack.c.l.b16 %v3214
      %v5427 = vunpack.c.l.b16 %v3215
      %v5428 = vunpack.c.l.b16 %v3216
      %v5429 = vunpack.c.l.b16 %v3217
      %v5430 = vunpack.c.l.b16 %v3218
      %v5431 = vunpack.c.l.b16 %v3219
      %v5432 = vunpack.c.l.b16 %v3220
      %v5433 = vpack.c.b16 %v5418, %v5417
      %v5434 = vpack.c.b16 %v5420, %v5419
      %v5435 = vpack.c.b16 %v5422, %v5421
      %v5436 = vpack.c.b16 %v5424, %v5423
      %v5437 = vpack.c.b16 %v5426, %v5425
      %v5438 = vpack.c.b16 %v5428, %v5427
      %v5439 = vpack.c.b16 %v5430, %v5429
      %v5440 = vpack.c.b16 %v5432, %v5431
      %5449 = vmatpush.bf16.msra.mxu0 %v5440
      %5450 = vmatpush.bf16.msra.mxu0 %v5439
      %5451 = vmatpush.bf16.msra.mxu0 %v5438
      %5452 = vmatpush.bf16.msra.mxu0 %v5437
      %5453 = vmatpush.bf16.msra.mxu0 %v5436
      %5454 = vmatpush.bf16.msra.mxu0 %v5435
      %5455 = vmatpush.bf16.msra.mxu0 %v5434
      %5456 = vmatpush.bf16.msra.mxu0 %v5433
      %5457 = vmatmul.bf16.gmra.mxu0 %v4265
      %v5458 = vpop.f32.mrf.mxu0
      %v5459 = vadd.f32 0.0, %v5458
      %v5460 = vpop.f32.mrf.mxu0
      %v5461 = vadd.f32 0.0, %v5460
      %5462 = vmatmul.bf16.gmra.mxu0 %v4266
      %v5463 = vpop.f32.mrf.mxu0
      %v5464 = vadd.f32 0.0, %v5463
      %v5465 = vpop.f32.mrf.mxu0
      %v5466 = vadd.f32 0.0, %v5465
      %5467 = vmatmul.bf16.gmra.mxu0 %v4267
      %v5468 = vpop.f32.mrf.mxu0
      %v5469 = vadd.f32 0.0, %v5468
      %v5470 = vpop.f32.mrf.mxu0
      %v5471 = vadd.f32 0.0, %v5470
      %5472 = vmatmul.bf16.gmra.mxu0 %v4268
      %v5473 = vpop.f32.mrf.mxu0
      %v5474 = vadd.f32 0.0, %v5473
      %v5475 = vpop.f32.mrf.mxu0
      %v5476 = vadd.f32 0.0, %v5475
      %5477 = vmatmul.bf16.gmra.mxu0 %v4269
      %v5478 = vpop.f32.mrf.mxu0
      %v5479 = vadd.f32 0.0, %v5478
      %v5480 = vpop.f32.mrf.mxu0
      %v5481 = vadd.f32 0.0, %v5480
      %5482 = vmatmul.bf16.gmra.mxu0 %v4270
      %v5483 = vpop.f32.mrf.mxu0
      %v5484 = vadd.f32 0.0, %v5483
      %v5485 = vpop.f32.mrf.mxu0
      %v5486 = vadd.f32 0.0, %v5485
      %5487 = vmatmul.bf16.gmra.mxu0 %v4271
      %v5488 = vpop.f32.mrf.mxu0
      %v5489 = vadd.f32 0.0, %v5488
      %v5490 = vpop.f32.mrf.mxu0
      %v5491 = vadd.f32 0.0, %v5490
      %5492 = vmatmul.bf16.gmra.mxu0 %v4272
      %v5493 = vpop.f32.mrf.mxu0
      %v5494 = vadd.f32 0.0, %v5493
      %v5495 = vpop.f32.mrf.mxu0
      %v5496 = vadd.f32 0.0, %v5495
      %5497 = vmatmul.bf16.gmra.mxu0 %v4273
      %v5498 = vpop.f32.mrf.mxu0
      %v5499 = vadd.f32 0.0, %v5498
      %v5500 = vpop.f32.mrf.mxu0
      %v5501 = vadd.f32 0.0, %v5500
      %5502 = vmatmul.bf16.gmra.mxu0 %v4274
      %v5503 = vpop.f32.mrf.mxu0
      %v5504 = vadd.f32 0.0, %v5503
      %v5505 = vpop.f32.mrf.mxu0
      %v5506 = vadd.f32 0.0, %v5505
      %5507 = vmatmul.bf16.gmra.mxu0 %v4275
      %v5508 = vpop.f32.mrf.mxu0
      %v5509 = vadd.f32 0.0, %v5508
      %v5510 = vpop.f32.mrf.mxu0
      %v5511 = vadd.f32 0.0, %v5510
      %5512 = vmatmul.bf16.gmra.mxu0 %v4276
      %v5513 = vpop.f32.mrf.mxu0
      %v5514 = vadd.f32 0.0, %v5513
      %v5515 = vpop.f32.mrf.mxu0
      %v5516 = vadd.f32 0.0, %v5515
      %5517 = vmatmul.bf16.gmra.mxu0 %v4277
      %v5518 = vpop.f32.mrf.mxu0
      %v5519 = vadd.f32 0.0, %v5518
      %v5520 = vpop.f32.mrf.mxu0
      %v5521 = vadd.f32 0.0, %v5520
      %5522 = vmatmul.bf16.gmra.mxu0 %v4278
      %v5523 = vpop.f32.mrf.mxu0
      %v5524 = vadd.f32 0.0, %v5523
      %v5525 = vpop.f32.mrf.mxu0
      %v5526 = vadd.f32 0.0, %v5525
      %5527 = vmatmul.bf16.gmra.mxu0 %v4846
      %v5528 = vpop.f32.mrf.mxu0
      %v5529 = vadd.f32 0.0, %v5528
      %v5530 = vpop.f32.mrf.mxu0
      %v5531 = vadd.f32 0.0, %v5530
      %5532 = vmatmul.bf16.gmra.mxu0 %v5399
      %v5533 = vpop.f32.mrf.mxu0
      %v5534 = vadd.f32 0.0, %v5533
      %v5535 = vpop.f32.mrf.mxu0
      %v5536 = vadd.f32 0.0, %v5535
      %5537 = vdwg.mxu0
      %v5538 = vadd.f32 %v5357, %v5459
      %v5539 = vadd.f32 %v5358, %v5461
      %v5540 = vadd.f32 %v5359, %v5464
      %v5541 = vadd.f32 %v5360, %v5466
      %v5542 = vadd.f32 %v5361, %v5469
      %v5543 = vadd.f32 %v5362, %v5471
      %v5544 = vadd.f32 %v5363, %v5474
      %v5545 = vadd.f32 %v5364, %v5476
      %v5546 = vadd.f32 %v5365, %v5479
      %v5547 = vadd.f32 %v5366, %v5481
      %v5548 = vadd.f32 %v5367, %v5484
      %v5549 = vadd.f32 %v5368, %v5486
      %v5550 = vadd.f32 %v5369, %v5489
      %v5551 = vadd.f32 %v5370, %v5491
      %v5552 = vadd.f32 %v5371, %v5494
      %v5553 = vadd.f32 %v5372, %v5496
      %v5554 = vadd.f32 %v5373, %v5499
      %v5555 = vadd.f32 %v5374, %v5501
      %v5556 = vadd.f32 %v5375, %v5504
      %v5557 = vadd.f32 %v5376, %v5506
      %v5558 = vadd.f32 %v5377, %v5509
      %v5559 = vadd.f32 %v5378, %v5511
      %v5560 = vadd.f32 %v5379, %v5514
      %v5561 = vadd.f32 %v5380, %v5516
      %v5562 = vadd.f32 %v5381, %v5519
      %v5563 = vadd.f32 %v5382, %v5521
      %v5564 = vadd.f32 %v5383, %v5524
      %v5565 = vadd.f32 %v5384, %v5526
      %v5566 = vadd.f32 %v5385, %v5529
      %v5567 = vadd.f32 %v5386, %v5531
      %v5568 = vadd.f32 %v5387, %v5534
      %v5569 = vadd.f32 %v5388, %v5536
      %v5570 = vpack.c.bf16 %v5538, %v5538
      %v5571 = vpack.c.bf16 %v5539, %v5539
      %v5572 = vpack.c.bf16 %v5540, %v5540
      %v5573 = vpack.c.bf16 %v5541, %v5541
      %v5574 = vpack.c.bf16 %v5542, %v5542
      %v5575 = vpack.c.bf16 %v5543, %v5543
      %v5576 = vpack.c.bf16 %v5544, %v5544
      %v5577 = vpack.c.bf16 %v5545, %v5545
      %v5578 = vpack.c.bf16 %v5546, %v5546
      %v5579 = vpack.c.bf16 %v5547, %v5547
      %v5580 = vpack.c.bf16 %v5548, %v5548
      %v5581 = vpack.c.bf16 %v5549, %v5549
      %v5582 = vpack.c.bf16 %v5550, %v5550
      %v5583 = vpack.c.bf16 %v5551, %v5551
      %v5584 = vpack.c.bf16 %v5552, %v5552
      %v5585 = vpack.c.bf16 %v5553, %v5553
      %v5586 = vpack.c.bf16 %v5554, %v5554
      %v5587 = vpack.c.bf16 %v5555, %v5555
      %v5588 = vpack.c.bf16 %v5556, %v5556
      %v5589 = vpack.c.bf16 %v5557, %v5557
      %v5590 = vpack.c.bf16 %v5558, %v5558
      %v5591 = vpack.c.bf16 %v5559, %v5559
      %v5592 = vpack.c.bf16 %v5560, %v5560
      %v5593 = vpack.c.bf16 %v5561, %v5561
      %v5594 = vpack.c.bf16 %v5562, %v5562
      %v5595 = vpack.c.bf16 %v5563, %v5563
      %v5596 = vpack.c.bf16 %v5564, %v5564
      %v5597 = vpack.c.bf16 %v5565, %v5565
      %v5598 = vpack.c.bf16 %v5566, %v5566
      %v5599 = vpack.c.bf16 %v5567, %v5567
      %v5600 = vpack.c.bf16 %v5568, %v5568
      %v5601 = vpack.c.bf16 %v5569, %v5569
      %5602 = vst [vmem:[%s526] sm:$0xf] %v5570
      %5603 = vst [vmem:[%s526 + $0x4] sm:$0xf] %v5571
      %5604 = vst [vmem:[%s526 + $0x8] sm:$0xf] %v5572
      %5605 = vst [vmem:[%s526 + $0xc] sm:$0xf] %v5573
      %5606 = vst [vmem:[%s526 + $0x10] sm:$0xf] %v5574
      %5607 = vst [vmem:[%s526 + $0x14] sm:$0xf] %v5575
      %5608 = vst [vmem:[%s526 + $0x18] sm:$0xf] %v5576
      %5609 = vst [vmem:[%s526 + $0x1c] sm:$0xf] %v5577
      %5610 = vst [vmem:[%s526 + $0x20] sm:$0xf] %v5578
      %5611 = vst [vmem:[%s526 + $0x24] sm:$0xf] %v5579
      %5612 = vst [vmem:[%s526 + $0x28] sm:$0xf] %v5580
      %5613 = vst [vmem:[%s526 + $0x2c] sm:$0xf] %v5581
      %5614 = vst [vmem:[%s526 + $0x30] sm:$0xf] %v5582
      %5615 = vst [vmem:[%s526 + $0x34] sm:$0xf] %v5583
      %5616 = vst [vmem:[%s526 + $0x38] sm:$0xf] %v5584
      %5617 = vst [vmem:[%s526 + $0x3c] sm:$0xf] %v5585
      %5618 = vst [vmem:[%s526 + $0x40] sm:$0xf] %v5586
      %5619 = vst [vmem:[%s526 + $0x44] sm:$0xf] %v5587
      %5620 = vst [vmem:[%s526 + $0x48] sm:$0xf] %v5588
      %5621 = vst [vmem:[%s526 + $0x4c] sm:$0xf] %v5589
      %5622 = vst [vmem:[%s526 + $0x50] sm:$0xf] %v5590
      %5623 = vst [vmem:[%s526 + $0x54] sm:$0xf] %v5591
      %5624 = vst [vmem:[%s526 + $0x58] sm:$0xf] %v5592
      %5625 = vst [vmem:[%s526 + $0x5c] sm:$0xf] %v5593
      %5626 = vst [vmem:[%s526 + $0x60] sm:$0xf] %v5594
      %5627 = vst [vmem:[%s526 + $0x64] sm:$0xf] %v5595
      %5628 = vst [vmem:[%s526 + $0x68] sm:$0xf] %v5596
      %5629 = vst [vmem:[%s526 + $0x6c] sm:$0xf] %v5597
      %5630 = vst [vmem:[%s526 + $0x70] sm:$0xf] %v5598
      %5631 = vst [vmem:[%s526 + $0x74] sm:$0xf] %v5599
      %5632 = vst [vmem:[%s526 + $0x78] sm:$0xf] %v5600
      %5633 = vst [vmem:[%s526 + $0x7c] sm:$0xf] %v5601
      %v5634 = vadd.f32 %v5538, %v5539
      %v5635 = vadd.f32 %v5634, %v5540
      %v5636 = vadd.f32 %v5635, %v5541
      %v5637 = vadd.f32 %v5636, %v5542
      %v5638 = vadd.f32 %v5637, %v5543
      %v5639 = vadd.f32 %v5638, %v5544
      %v5640 = vadd.f32 %v5639, %v5545
      %v5641 = vadd.f32 %v5640, %v5546
      %v5642 = vadd.f32 %v5641, %v5547
      %v5643 = vadd.f32 %v5642, %v5548
      %v5644 = vadd.f32 %v5643, %v5549
      %v5645 = vadd.f32 %v5644, %v5550
      %v5646 = vadd.f32 %v5645, %v5551
      %v5647 = vadd.f32 %v5646, %v5552
      %v5648 = vadd.f32 %v5647, %v5553
      %v5649 = vadd.f32 %v5648, %v5554
      %v5650 = vadd.f32 %v5649, %v5555
      %v5651 = vadd.f32 %v5650, %v5556
      %v5652 = vadd.f32 %v5651, %v5557
      %v5653 = vadd.f32 %v5652, %v5558
      %v5654 = vadd.f32 %v5653, %v5559
      %v5655 = vadd.f32 %v5654, %v5560
      %v5656 = vadd.f32 %v5655, %v5561
      %v5657 = vadd.f32 %v5656, %v5562
      %v5658 = vadd.f32 %v5657, %v5563
      %v5659 = vadd.f32 %v5658, %v5564
      %v5660 = vadd.f32 %v5659, %v5565
      %v5661 = vadd.f32 %v5660, %v5566
      %v5662 = vadd.f32 %v5661, %v5567
      %v5663 = vadd.f32 %v5662, %v5568
      %v5664 = vadd.f32 %v5663, %v5569
      %v5665 = vrot.slane %v5664, 4
      %v5666 = vadd.f32 %v5664, %v5665
      %v5667 = vrot.slane %v5666, 2
      %v5668 = vadd.f32 %v5666, %v5667
      %v5669 = vrot.slane %v5668, 1
      %v5670 = vadd.f32 %v5668, %v5669
      %v5671 = vmul.f32 %v5538, %v5538
      %v5672 = vmul.f32 %v5539, %v5539
      %v5673 = vmul.f32 %v5540, %v5540
      %v5674 = vmul.f32 %v5541, %v5541
      %v5675 = vmul.f32 %v5542, %v5542
      %v5676 = vmul.f32 %v5543, %v5543
      %v5677 = vmul.f32 %v5544, %v5544
      %v5678 = vmul.f32 %v5545, %v5545
      %v5679 = vmul.f32 %v5546, %v5546
      %v5680 = vmul.f32 %v5547, %v5547
      %v5681 = vmul.f32 %v5548, %v5548
      %v5682 = vmul.f32 %v5549, %v5549
      %v5683 = vmul.f32 %v5550, %v5550
      %v5684 = vmul.f32 %v5551, %v5551
      %v5685 = vmul.f32 %v5552, %v5552
      %v5686 = vmul.f32 %v5553, %v5553
      %v5687 = vmul.f32 %v5554, %v5554
      %v5688 = vmul.f32 %v5555, %v5555
      %v5689 = vmul.f32 %v5556, %v5556
      %v5690 = vmul.f32 %v5557, %v5557
      %v5691 = vmul.f32 %v5558, %v5558
      %v5692 = vmul.f32 %v5559, %v5559
      %v5693 = vmul.f32 %v5560, %v5560
      %v5694 = vmul.f32 %v5561, %v5561
      %v5695 = vmul.f32 %v5562, %v5562
      %v5696 = vmul.f32 %v5563, %v5563
      %v5697 = vmul.f32 %v5564, %v5564
      %v5698 = vmul.f32 %v5565, %v5565
      %v5699 = vmul.f32 %v5566, %v5566
      %v5700 = vmul.f32 %v5567, %v5567
      %v5701 = vmul.f32 %v5568, %v5568
      %v5702 = vmul.f32 %v5569, %v5569
      %v5703 = vadd.f32 %v5671, %v5672
      %v5704 = vadd.f32 %v5703, %v5673
      %v5705 = vadd.f32 %v5704, %v5674
      %v5706 = vadd.f32 %v5705, %v5675
      %v5707 = vadd.f32 %v5706, %v5676
      %v5708 = vadd.f32 %v5707, %v5677
      %v5709 = vadd.f32 %v5708, %v5678
      %v5710 = vadd.f32 %v5709, %v5679
      %v5711 = vadd.f32 %v5710, %v5680
      %v5712 = vadd.f32 %v5711, %v5681
      %v5713 = vadd.f32 %v5712, %v5682
      %v5714 = vadd.f32 %v5713, %v5683
      %v5715 = vadd.f32 %v5714, %v5684
      %v5716 = vadd.f32 %v5715, %v5685
      %v5717 = vadd.f32 %v5716, %v5686
      %v5718 = vadd.f32 %v5717, %v5687
      %v5719 = vadd.f32 %v5718, %v5688
      %v5720 = vadd.f32 %v5719, %v5689
      %v5721 = vadd.f32 %v5720, %v5690
      %v5722 = vadd.f32 %v5721, %v5691
      %v5723 = vadd.f32 %v5722, %v5692
      %v5724 = vadd.f32 %v5723, %v5693
      %v5725 = vadd.f32 %v5724, %v5694
      %v5726 = vadd.f32 %v5725, %v5695
      %v5727 = vadd.f32 %v5726, %v5696
      %v5728 = vadd.f32 %v5727, %v5697
      %v5729 = vadd.f32 %v5728, %v5698
      %v5730 = vadd.f32 %v5729, %v5699
      %v5731 = vadd.f32 %v5730, %v5700
      %v5732 = vadd.f32 %v5731, %v5701
      %v5733 = vadd.f32 %v5732, %v5702
      %v5734 = vrot.slane %v5733, 4
      %v5735 = vadd.f32 %v5733, %v5734
      %v5736 = vrot.slane %v5735, 2
      %v5737 = vadd.f32 %v5735, %v5736
      %v5738 = vrot.slane %v5737, 1
      %v5739 = vadd.f32 %v5737, %v5738
      %vm5740 = vcmask 1040384
      %v5741 = vsel %vm5740, %v5670, %v5739
      %5742 = vst [vmem:[%s532] sm:$0x3] %v5741
      %s5743 = smul.u32 16, %s24
      %p5744 = scmp.lt.s32.totalorder %s23, 1
      %s5745 = scalar_select %p5744, %s23, 1
      %p5746 = scmp.lt.s32.totalorder %s5743, 15
      %s5747 = scalar_select %p5746, %s5743, 15
      %s5748 = smul.addr %s5747, 2
      %s5749 = smul.addr %s5745, 32
      %s5750 = sadd.s32 %s5748, %s5749
      %s5751 = smul.addr %s5750, 4
      %s5752 = scalar_lea.vmem %s6, %s5751
      %s5753 = sadd.s32 %s23, %s24
      %p5754 = scmp.lt.s32.totalorder %s5753, 1
      %s5755 = scalar_select %p5754, %s5753, 1
      %s5756 = smul.addr %s5755, 2
      %s5757 = scalar_lea.vmem %s7, %s5756
      // Predicated region
      $region45: #{up_forward.5} parent=43 // pred_check
        %p5758 = pneg %p213
      $region46: #{up_forward.5} parent=43 // pred_check_branch
        %5760 = sbr.rel (%p5758) target = $region48
      $region47: #{up_forward.5} parent=43 // pred_region
        %s5761 = smul.u32 16, %s24
      $region48: #{up_forward.5} parent=43 // pred_fallthru
        _
      // Predicated region
      $region49: #{up_forward.5} parent=43 // pred_check
        %p5762 = pneg %p241
      $region50: #{up_forward.5} parent=43 // pred_check_branch
        %5764 = sbr.rel (%p5762) target = $region52
      $region51: #{up_forward.5} parent=43 // pred_region
        %s5765 = sadd.s32 %s23, %s24
      $region52: #{up_forward.5} parent=43 // pred_fallthru
        _
    $region44: #{up_forward.5} parent=5 // pred_fallthru
      _
    %p5766 = scmp.le.s32.totalorder 2, %s14
    // Predicated region
    $region53: #{up_forward.5} parent=5 // pred_check
      %p5767 = pneg %p5766
    $region54: #{up_forward.5} parent=5 // pred_check_branch
      %5769 = sbr.rel (%p5767) target = $region56
    $region55: #{up_forward.5} parent=5 // pred_region
      %s5770 = ssub.s32 %s14, 2
      // Predicated region
      $region57: #{up_forward.5} parent=55 // pred_check
        %p5771 = pneg %p219
      $region58: #{up_forward.5} parent=55 // pred_check_branch
        %5773 = sbr.rel (%p5771) target = $region60
      $region59: #{up_forward.5} parent=55 // pred_region
        %s5774 = smul.u32 16, %s26
        %p5775 = scmp.lt.s32.totalorder %s25, 1
        %s5776 = scalar_select %p5775, %s25, 1
        %p5777 = scmp.lt.s32.totalorder %s5774, 15
        %s5778 = scalar_select %p5777, %s5774, 15
        %s5779 = smul.addr %s5778, 2
        %s5780 = smul.addr %s5776, 32
        %s5781 = sadd.s32 %s5779, %s5780
        %s5782 = smul.addr %s5781, 4
        %s5783 = scalar_lea.vmem %s6, %s5782
      $region60: #{up_forward.5} parent=55 // pred_fallthru
        _
      // Predicated region
      $region61: #{up_forward.5} parent=55 // pred_check
        %p5784 = pneg %p247
      $region62: #{up_forward.5} parent=55 // pred_check_branch
        %5786 = sbr.rel (%p5784) target = $region64
      $region63: #{up_forward.5} parent=55 // pred_region
        %s5787 = sadd.s32 %s25, %s26
        %p5788 = scmp.lt.s32.totalorder %s5787, 1
        %s5789 = scalar_select %p5788, %s5787, 1
        %s5790 = smul.addr %s5789, 2
        %s5791 = scalar_lea.vmem %s7, %s5790
      $region64: #{up_forward.5} parent=55 // pred_fallthru
        _
    $region56: #{up_forward.5} parent=5 // pred_fallthru
      _
  $region6: #{up_forward.5} parent=0 // loop_footer
    %s18 = sadd.s32 1, %s14
  $region7: #{up_forward.5} parent=0 // loop_footer_branch
    %13 = sbr.rel target = $region3
  $region8: #{up_forward.5} parent=0 // loop_exit
    _

</llo_original>
